<compile_context>
chip_gen: v7x
topology: tpu7x:2x2x1
jax: 0.10.0
libtpu: 0.0.40
codegen_flags: <defaults>
</compile_context>

<pallas_src>
import functools

import jax
import jax.numpy as jnp
import numpy as np
from jax.experimental import pallas as pl
from jax.experimental.pallas import tpu as pltpu


# ----------------------------- in-kernel helpers -----------------------------

def _linear(h_bf16, w_ref, b_ref=None):
    """bf16 x bf16 MXU matmul with f32 accumulation (+ optional f32 bias)."""
    y = jnp.dot(h_bf16, w_ref[...], preferred_element_type=jnp.float32)
    if b_ref is not None:
        y = y + b_ref[...].astype(jnp.float32)
    return y


def _layernorm(h, g_ref, b_ref, eps=1e-5):
    mu = jnp.mean(h, axis=-1, keepdims=True)
    var = jnp.mean((h - mu) ** 2, axis=-1, keepdims=True)
    hn = (h - mu) * jax.lax.rsqrt(var + eps)
    return hn * g_ref[...].astype(jnp.float32) + b_ref[...].astype(jnp.float32)


# ----------------------------- stage 1: attention -----------------------------

def vmt2_stage1_kernel(
    x_ref,
    wimg_ref, bimg_ref,
    wkv_ref, wq_ref, wu_ref, bu_ref,
    g1_ref, be1_ref,
    bias_ref,
    h1_ref,
):
    f32, bf16 = jnp.float32, jnp.bfloat16
    bb, T, K = x_ref.shape
    E = wimg_ref.shape[1]

    # ---- img_emb over all bb*T tokens; keep only a bf16 copy resident -------
    x_flat = x_ref[...].reshape(bb * T, K).astype(bf16)            # (bb*T, K)
    h_bf = _linear(x_flat, wimg_ref, bimg_ref).astype(bf16)        # (bb*T, E)

    # ---- fused k/v projection, kept resident in bf16 ------------------------
    kv = _linear(h_bf, wkv_ref).astype(bf16)                       # (bb*T, 2E)
    k = kv[:, :E]
    v = kv[:, E:]

    # ---- last-token path (bb rows only) --------------------------------------
    # Recompute img_emb for the last token of each sequence: negligible FLOPs,
    # avoids a strided in-register row gather.
    x_last = x_ref[:, T - 1, :].astype(bf16)                       # (bb, K)
    h_last = _linear(x_last, wimg_ref, bimg_ref)                   # (bb, E) f32

    # Both 1/E**0.25 scales folded into q before the bf16 cast.
    scale = 1.0 / float(E) ** 0.5
    q = (_linear(h_last.astype(bf16), wq_ref) * scale).astype(bf16)  # (bb, E)

    # Block-diagonal attention: bb last-token queries vs all bb*T keys on the
    # MXU; cross-sequence entries masked with a precomputed additive bias.
    logits = jax.lax.dot_general(
        q, k, dimension_numbers=(((1,), (1,)), ((), ())),
        preferred_element_type=f32)                                # (bb, bb*T)
    logits = logits + bias_ref[...]

    logits = logits - jnp.max(logits, axis=-1, keepdims=True)      # stable softmax
    p = jnp.exp(logits)
    p = p * pl.reciprocal(jnp.sum(p, axis=-1, keepdims=True), approx=True)

    attn = jnp.dot(p.astype(bf16), v, preferred_element_type=f32)  # (bb, E)

    # residual + unifyheads + LN1, last-token rows only
    h_last = h_last + _linear(attn.astype(bf16), wu_ref, bu_ref)
    h_last = _layernorm(h_last, g1_ref, be1_ref)
    h1_ref[...] = h_last.astype(h1_ref.dtype)


# ------------------------- stage 2: FF + to_pixels ---------------------------

def vmt2_stage2_kernel(
    h1_ref,
    w1_ref, b1_ref, w2_ref, b2_ref,
    g2_ref, be2_ref,
    wp1_ref, bp1_ref, wp2_ref, bp2_ref, wp3_ref, bp3_ref,
    out_ref,
):
    bf16 = jnp.bfloat16

    h1 = h1_ref[...]                                               # (B, E) f32

    ff = jnp.maximum(_linear(h1.astype(bf16), w1_ref, b1_ref), 0.0)   # (B, 4E)
    h2 = h1 + _linear(ff.astype(bf16), w2_ref, b2_ref)
    h2 = _layernorm(h2, g2_ref, be2_ref)

    o = jnp.maximum(_linear(h2.astype(bf16), wp1_ref, bp1_ref), 0.0)
    o = _linear(o.astype(bf16), wp2_ref, bp2_ref)
    o = _linear(o.astype(bf16), wp3_ref, bp3_ref)                  # (B, K)
    out_ref[...] = o.astype(out_ref.dtype)


# ------------------------------- host helpers --------------------------------

def _chip_settings():
    """(target matmul rows, vmem_limit_bytes) per TPU generation."""
    kind = ""
    try:
        kind = jax.devices()[0].device_kind.lower()
    except Exception:  # no device info -> conservative defaults
        pass
    old_gen = any(v in kind for v in ("v2", "v3", "v4", "v5"))
    is_v7 = ("v7" in kind) or ("7x" in kind)

    # 4x128x128 MXU (<=v5e): 128 rows fill a pass; 2x256x256 (v6e/v7x): 256.
    target_rows = 128 if old_gen else 256

    try:
        vmem_cap = int(pltpu.get_tpu_info().vmem_capacity_bytes)
    except Exception:
        vmem_cap = (64 if is_v7 else 128) * 1024 * 1024
    # 3/4 of physical VMEM, clipped: leaves headroom for Mosaic internal
    # scratch and the activation double buffers (48 MiB on v7x, 96 MiB else).
    vmem_limit = int(min(max(vmem_cap * 3 // 4, 32 * 1024 * 1024),
                         96 * 1024 * 1024))
    return target_rows, vmem_limit


def _choose_block_b(batch, seq, target_rows):
    """Largest divisor of batch with ~target_rows matmul rows per step that
    still leaves >=2 grid steps (keeps both v7x TensorCores busy)."""
    target_bb = max(1, target_rows // seq)
    divisors = [d for d in range(1, batch + 1) if batch % d == 0]
    cands = [d for d in divisors if d <= target_bb and batch // d >= 2]
    if not cands:
        cands = [d for d in divisors if d <= target_bb] or [1]
    return max(cands)


@functools.lru_cache(maxsize=None)
def _buffered_single_supported():
    """Narrow capability probe for pipeline_mode=pl.Buffered(1) on a tiny
    kernel.  Any failure here only disables the optional single-buffering of
    grid-invariant weights; the real kernels are compiled exactly once."""
    try:
        spec = pl.BlockSpec((8, 128), lambda i: (0, 0),
                            pipeline_mode=pl.Buffered(buffer_count=1))
    except (TypeError, ValueError, AttributeError):
        return False

    def _copy(x_ref, o_ref):
        o_ref[...] = x_ref[...]

    try:
        out = pl.pallas_call(
            _copy,
            out_shape=jax.ShapeDtypeStruct((8, 128), jnp.float32),
            grid=(1,),
            in_specs=[spec],
            out_specs=pl.BlockSpec((8, 128), lambda i: (0, 0)),
        )(jnp.zeros((8, 128), jnp.float32))
        jax.block_until_ready(out)
        return True
    except Exception:  # capability probe only
        return False


def _invariant_spec(arr):
    nd = arr.ndim
    idx = lambda i, _nd=nd: (0,) * _nd     # grid-invariant block
    if _buffered_single_supported():
        return pl.BlockSpec(arr.shape, idx,
                            pipeline_mode=pl.Buffered(buffer_count=1))
    return pl.BlockSpec(arr.shape, idx)


def _block_diag_bias(block_b, seq):
    rows = np.arange(block_b)[:, None]
    cols = np.arange(block_b * seq)[None, :]
    in_seq = (cols // seq) == rows
    return jnp.asarray(np.where(in_seq, 0.0, -1e30).astype(np.float32))


# --------------------------------- wrapper ------------------------------------

def vmtransformer2_forward(x, params, *, block_b=None):
    B, T, K = x.shape
    E = params["wimg"].shape[1]
    target_rows, vmem_limit = _chip_settings()
    if block_b is None:
        block_b = _choose_block_b(B, T, target_rows)
    assert B % block_b == 0, (B, block_b)

    attn_bias = _block_diag_bias(block_b, T)                 # (block_b, block_b*T)

    # ---- stage 1: per-block img_emb + attention + LN1 (last token only) -----
    stage1_weights = (
        params["wimg"], params["bimg"],
        params["wkv"], params["wq"], params["wu"], params["bu"],
        params["g1"], params["be1"],
        attn_bias,
    )
    in_specs1 = [pl.BlockSpec((block_b, T, K), lambda i: (i, 0, 0))]
    in_specs1 += [_invariant_spec(a) for a in stage1_weights]
    h1 = pl.pallas_call(
        vmt2_stage1_kernel,
        out_shape=jax.ShapeDtypeStruct((B, E), jnp.float32),
        grid=(B // block_b,),
        in_specs=in_specs1,
        out_specs=pl.BlockSpec((block_b, E), lambda i: (i, 0)),
        compiler_params=pltpu.CompilerParams(
            dimension_semantics=("parallel",),
            vmem_limit_bytes=vmem_limit,
        ),
    )(x, *stage1_weights)

    # ---- stage 2: FF + LN2 + to_pixels over all B last-token rows -----------
    stage2_weights = (
        params["w1"], params["b1"], params["w2"], params["b2"],
        params["g2"], params["be2"],
        params["wp1"], params["bp1"], params["wp2"], params["bp2"],
        params["wp3"], params["bp3"],
    )
    in_specs2 = [pl.BlockSpec((B, E), lambda i: (0, 0))]
    in_specs2 += [_invariant_spec(a) for a in stage2_weights]
    out = pl.pallas_call(
        vmt2_stage2_kernel,
        out_shape=jax.ShapeDtypeStruct((B, K), jnp.float32),
        grid=(1,),
        in_specs=in_specs2,
        out_specs=pl.BlockSpec((B, K), lambda i: (0, 0)),
        compiler_params=pltpu.CompilerParams(
            dimension_semantics=("arbitrary",),
            vmem_limit_bytes=vmem_limit,
        ),
    )(h1, *stage2_weights)
    return out                                                # (B, K)


# --------------------------- params / pure-JAX ref -----------------------------

def init_params(key, k_in, emb):
    keys = jax.random.split(key, 32)
    it = iter(keys)

    def w(shape):                       # bf16 weights (streamed from HBM as bf16)
        fan_in = shape[0]
        return (jax.random.normal(next(it), shape, dtype=jnp.float32)
                * (1.0 / float(fan_in) ** 0.5)).astype(jnp.bfloat16)

    def b(shape):                       # small f32 biases
        return 0.01 * jax.random.normal(next(it), shape, dtype=jnp.float32)

    return {
        "wimg": w((k_in, emb)), "bimg": b((1, emb)),
        "wq": w((emb, emb)),
        "wkv": w((emb, 2 * emb)),       # fused [wk | wv]
        "wu": w((emb, emb)), "bu": b((1, emb)),
        "g1": jnp.ones((1, emb), jnp.float32), "be1": jnp.zeros((1, emb), jnp.float32),
        "w1": w((emb, 4 * emb)), "b1": b((1, 4 * emb)),
        "w2": w((4 * emb, emb)), "b2": b((1, emb)),
        "g2": jnp.ones((1, emb), jnp.float32), "be2": jnp.zeros((1, emb), jnp.float32),
        "wp1": w((emb, emb)), "bp1": b((1, emb)),
        "wp2": w((emb, emb)), "bp2": b((1, emb)),
        "wp3": w((emb, k_in)), "bp3": b((1, k_in)),
    }


def reference_forward(x, p):
    """Pure-JAX reference mirroring the full PyTorch forward (no pruning)."""
    f = lambda a: jnp.asarray(a, jnp.float32)

    def ln(h, g, b, eps=1e-5):
        mu = jnp.mean(h, axis=-1, keepdims=True)
        var = jnp.mean((h - mu) ** 2, axis=-1, keepdims=True)
        return (h - mu) / jnp.sqrt(var + eps) * f(g) + f(b)

    x = x.astype(jnp.float32)
    h = x @ f(p["wimg"]) + f(p["bimg"])
    emb = h.shape[-1]
    s = 1.0 / float(emb) ** 0.25
    wkv = f(p["wkv"])
    q = (h @ f(p["wq"])) * s
    k = (h @ wkv[:, :emb]) * s
    v = h @ wkv[:, emb:]
    dot = jnp.einsum("btd,bsd->bts", q, k)
    a = jax.nn.softmax(dot, axis=-1)
    attn = jnp.einsum("bts,bsd->btd", a, v) @ f(p["wu"]) + f(p["bu"])
    h = h + attn
    h = ln(h, p["g1"], p["be1"])
    ff = jax.nn.relu(h @ f(p["w1"]) + f(p["b1"])) @ f(p["w2"]) + f(p["b2"])
    h = h + ff
    h = ln(h, p["g2"], p["be2"])
    last = h[:, -1, :]
    o = jax.nn.relu(last @ f(p["wp1"]) + f(p["bp1"]))
    o = o @ f(p["wp2"]) + f(p["bp2"])
    o = o @ f(p["wp3"]) + f(p["bp3"])
    return o


if __name__ == "__main__":
    # Small but lane/sublane-aligned demo shapes (PyTorch default: k=4096, emb=8192):
    # K_IN/EMB multiples of 128, T multiple of 8, B=64 so v6e/v7x get block_b=32
    # (256-row matmul tiles) with a 2-step parallel grid (v5e: block_b=16, 4 steps).
    B, T, K_IN, EMB = 64, 8, 256, 512
    key = jax.random.PRNGKey(0)
    kx, kp = jax.random.split(key)
    x = jax.random.normal(kx, (B, T, K_IN), dtype=jnp.float32)
    params = init_params(kp, K_IN, EMB)

    out = jax.block_until_ready(vmtransformer2_forward(x, params))
    assert out.shape == (B, K_IN)

    ref = jax.block_until_ready(reference_forward(x, params))
    # Tolerance accounts for bf16 weight/activation matmuls on the MXU, bf16-
    # resident k/v/h, the approx EUP reciprocal in the softmax, and XLA's
    # default TPU matmul precision in the reference.
    np.testing.assert_allclose(np.asarray(out), np.asarray(ref), rtol=4e-2, atol=4e-2)
    print("KERNEL_OK")
</pallas_src>

<mosaic_0001>
module attributes {stable_mosaic.version = 11 : i64} {
  func.func @_copy(%arg0: i32, %arg1: memref<8x128xf32, #tpu.memory_space<vmem>>, %arg2: memref<8x128xf32, #tpu.memory_space<vmem>>) attributes {dimension_semantics = [#tpu.dimension_semantics<arbitrary>], iteration_bounds = array<i64: 1>, scalar_prefetch = 0 : i64, scratch_operands = 0 : i64, tpu.core_type = #tpu.core_type<tc>, window_params = [{pipeline_mode = #tpu.pipeline_mode<synchronous>, transform_indices = @transform_0, window_bounds = array<i64: 8, 128>}, {pipeline_mode = #tpu.pipeline_mode<synchronous>, transform_indices = @transform_1, window_bounds = array<i64: 8, 128>}]} {
    %c0 = arith.constant 0 : index
    %c0_0 = arith.constant 0 : index
    %0 = vector.load %arg1[%c0, %c0_0] : memref<8x128xf32, #tpu.memory_space<vmem>>, vector<8x128xf32>
    %c0_1 = arith.constant 0 : index
    %c0_2 = arith.constant 0 : index
    %1 = vector.load %arg2[%c0_1, %c0_2] : memref<8x128xf32, #tpu.memory_space<vmem>>, vector<8x128xf32>
    tpu.vector_store %arg2[%c0_1, %c0_2], %0 {strides = array<i32>} : memref<8x128xf32, #tpu.memory_space<vmem>>, vector<8x128xf32>,
    return
  }
  func.func @transform_0(%arg0: i32) -> (i32, i32) {
    %c0_i32 = arith.constant 0 : i32
    %c0_i32_0 = arith.constant 0 : i32
    %c0_i32_1 = arith.constant 0 : i32
    return %c0_i32, %c0_i32_0 : i32, i32
  }
  func.func @transform_1(%arg0: i32) -> (i32, i32) {
    %c0_i32 = arith.constant 0 : i32
    %c0_i32_0 = arith.constant 0 : i32
    %c0_i32_1 = arith.constant 0 : i32
    return %c0_i32, %c0_i32_0 : i32, i32
  }
}

module attributes {stable_mosaic.version = 11 : i64} {
  func.func @vmt2_stage1_kernel(%arg0: i32, %arg1: memref<32x8x256xf32, #tpu.memory_space<vmem>>, %arg2: memref<256x512xbf16, #tpu.memory_space<vmem>>, %arg3: memref<1x512xf32, #tpu.memory_space<vmem>>, %arg4: memref<512x1024xbf16, #tpu.memory_space<vmem>>, %arg5: memref<512x512xbf16, #tpu.memory_space<vmem>>, %arg6: memref<512x512xbf16, #tpu.memory_space<vmem>>, %arg7: memref<1x512xf32, #tpu.memory_space<vmem>>, %arg8: memref<1x512xf32, #tpu.memory_space<vmem>>, %arg9: memref<1x512xf32, #tpu.memory_space<vmem>>, %arg10: memref<32x256xf32, #tpu.memory_space<vmem>>, %arg11: memref<32x512xf32, #tpu.memory_space<vmem>>) attributes {dimension_semantics = [#tpu.dimension_semantics<parallel>], iteration_bounds = array<i64: 2>, scalar_prefetch = 0 : i64, scratch_operands = 0 : i64, tpu.core_type = #tpu.core_type<tc>, window_params = [{transform_indices = @transform_0, window_bounds = array<i64: 32, 8, 256>}, {pipeline_mode = #tpu.pipeline_mode<synchronous>, transform_indices = @transform_1, window_bounds = array<i64: 256, 512>}, {pipeline_mode = #tpu.pipeline_mode<synchronous>, transform_indices = @transform_2, window_bounds = array<i64: 1, 512>}, {pipeline_mode = #tpu.pipeline_mode<synchronous>, transform_indices = @transform_3, window_bounds = array<i64: 512, 1024>}, {pipeline_mode = #tpu.pipeline_mode<synchronous>, transform_indices = @transform_4, window_bounds = array<i64: 512, 512>}, {pipeline_mode = #tpu.pipeline_mode<synchronous>, transform_indices = @transform_5, window_bounds = array<i64: 512, 512>}, {pipeline_mode = #tpu.pipeline_mode<synchronous>, transform_indices = @transform_6, window_bounds = array<i64: 1, 512>}, {pipeline_mode = #tpu.pipeline_mode<synchronous>, transform_indices = @transform_7, window_bounds = array<i64: 1, 512>}, {pipeline_mode = #tpu.pipeline_mode<synchronous>, transform_indices = @transform_8, window_bounds = array<i64: 1, 512>}, {pipeline_mode = #tpu.pipeline_mode<synchronous>, transform_indices = @transform_9, window_bounds = array<i64: 32, 256>}, {transform_indices = @transform_10, window_bounds = array<i64: 32, 512>}]} {
    %c0 = arith.constant 0 : index
    %c0_0 = arith.constant 0 : index
    %c0_1 = arith.constant 0 : index
    %0 = vector.load %arg1[%c0, %c0_0, %c0_1] : memref<32x8x256xf32, #tpu.memory_space<vmem>>, vector<32x8x256xf32>
    %1 = vector.shape_cast %0 : vector<32x8x256xf32> to vector<256x256xf32>
    %2 = arith.truncf %1 : vector<256x256xf32> to vector<256x256xbf16>
    %c0_2 = arith.constant 0 : index
    %c0_3 = arith.constant 0 : index
    %3 = vector.load %arg2[%c0_2, %c0_3] : memref<256x512xbf16, #tpu.memory_space<vmem>>, vector<256x512xbf16>
    %cst = arith.constant dense<0.000000e+00> : vector<256x512xf32>
    %4 = tpu.matmul %2, %3, %cst {dimension_numbers = #tpu.dot_dimension_numbers<[1], [0], [0], [1], [0, 0, 1, 1], [], []>} : vector<256x256xbf16>, vector<256x512xbf16>, vector<256x512xf32> -> vector<256x512xf32>
    %c0_4 = arith.constant 0 : index
    %c0_5 = arith.constant 0 : index
    %5 = vector.load %arg3[%c0_4, %c0_5] : memref<1x512xf32, #tpu.memory_space<vmem>>, vector<1x512xf32>
    %6 = vector.broadcast %5 : vector<1x512xf32> to vector<256x512xf32>
    %7 = arith.addf %4, %6 : vector<256x512xf32>
    %8 = arith.truncf %7 : vector<256x512xf32> to vector<256x512xbf16>
    %c0_6 = arith.constant 0 : index
    %c0_7 = arith.constant 0 : index
    %9 = vector.load %arg4[%c0_6, %c0_7] : memref<512x1024xbf16, #tpu.memory_space<vmem>>, vector<512x1024xbf16>
    %cst_8 = arith.constant dense<0.000000e+00> : vector<256x1024xf32>
    %10 = tpu.matmul %8, %9, %cst_8 {dimension_numbers = #tpu.dot_dimension_numbers<[1], [0], [0], [1], [0, 0, 1, 1], [], []>} : vector<256x512xbf16>, vector<512x1024xbf16>, vector<256x1024xf32> -> vector<256x1024xf32>
    %11 = arith.truncf %10 : vector<256x1024xf32> to vector<256x1024xbf16>
    %12 = vector.extract_strided_slice %11 {offsets = [0, 0], sizes = [256, 512], strides = [1, 1]} : vector<256x1024xbf16> to vector<256x512xbf16>
    %13 = vector.extract_strided_slice %11 {offsets = [0, 512], sizes = [256, 512], strides = [1, 1]} : vector<256x1024xbf16> to vector<256x512xbf16>
    %c0_9 = arith.constant 0 : index
    %c7 = arith.constant 7 : index
    %c0_10 = arith.constant 0 : index
    %14 = vector.load %arg1[%c0_9, %c7, %c0_10] : memref<32x8x256xf32, #tpu.memory_space<vmem>>, vector<32x1x256xf32>
    %15 = vector.shape_cast %14 : vector<32x1x256xf32> to vector<32x256xf32>
    %16 = arith.truncf %15 : vector<32x256xf32> to vector<32x256xbf16>
    %c0_11 = arith.constant 0 : index
    %c0_12 = arith.constant 0 : index
    %17 = vector.load %arg2[%c0_11, %c0_12] : memref<256x512xbf16, #tpu.memory_space<vmem>>, vector<256x512xbf16>
    %cst_13 = arith.constant dense<0.000000e+00> : vector<32x512xf32>
    %18 = tpu.matmul %16, %17, %cst_13 {dimension_numbers = #tpu.dot_dimension_numbers<[1], [0], [0], [1], [0, 0, 1, 1], [], []>} : vector<32x256xbf16>, vector<256x512xbf16>, vector<32x512xf32> -> vector<32x512xf32>
    %c0_14 = arith.constant 0 : index
    %c0_15 = arith.constant 0 : index
    %19 = vector.load %arg3[%c0_14, %c0_15] : memref<1x512xf32, #tpu.memory_space<vmem>>, vector<1x512xf32>
    %20 = vector.broadcast %19 : vector<1x512xf32> to vector<32x512xf32>
    %21 = arith.addf %18, %20 : vector<32x512xf32>
    %22 = arith.truncf %21 : vector<32x512xf32> to vector<32x512xbf16>
    %c0_16 = arith.constant 0 : index
    %c0_17 = arith.constant 0 : index
    %23 = vector.load %arg5[%c0_16, %c0_17] : memref<512x512xbf16, #tpu.memory_space<vmem>>, vector<512x512xbf16>
    %cst_18 = arith.constant dense<0.000000e+00> : vector<32x512xf32>
    %24 = tpu.matmul %22, %23, %cst_18 {dimension_numbers = #tpu.dot_dimension_numbers<[1], [0], [0], [1], [0, 0, 1, 1], [], []>} : vector<32x512xbf16>, vector<512x512xbf16>, vector<32x512xf32> -> vector<32x512xf32>
    %cst_19 = arith.constant 0.0441941731 : f32
    %25 = vector.broadcast %cst_19 : f32 to vector<32x512xf32>
    %26 = arith.mulf %24, %25 : vector<32x512xf32>
    %27 = arith.truncf %26 : vector<32x512xf32> to vector<32x512xbf16>
    %cst_20 = arith.constant dense<0.000000e+00> : vector<32x256xf32>
    %28 = tpu.matmul %27, %12, %cst_20 {dimension_numbers = #tpu.dot_dimension_numbers<[1], [1], [0], [0], [0, 0, 1, 0], [], []>} : vector<32x512xbf16>, vector<256x512xbf16>, vector<32x256xf32> -> vector<32x256xf32>
    %c0_21 = arith.constant 0 : index
    %c0_22 = arith.constant 0 : index
    %29 = vector.load %arg10[%c0_21, %c0_22] : memref<32x256xf32, #tpu.memory_space<vmem>>, vector<32x256xf32>
    %30 = arith.addf %28, %29 : vector<32x256xf32>
    %cst_23 = arith.constant dense<0xFF800000> : vector<32xf32>
    %31 = vector.multi_reduction <maximumf>, %30, %cst_23 [1] : vector<32x256xf32> to vector<32xf32>
    %32 = vector.shape_cast %31 : vector<32xf32> to vector<32x1xf32>
    %33 = vector.broadcast %32 : vector<32x1xf32> to vector<32x256xf32>
    %34 = arith.subf %30, %33 : vector<32x256xf32>
    %35 = math.exp %34 : vector<32x256xf32>
    %cst_24 = arith.constant dense<0.000000e+00> : vector<32xf32>
    %36 = vector.multi_reduction <add>, %35, %cst_24 [1] : vector<32x256xf32> to vector<32xf32>
    %37 = vector.shape_cast %36 : vector<32xf32> to vector<32x1xf32>
    %38 = tpu.reciprocal %37 {approx = true} : vector<32x1xf32> -> vector<32x1xf32>
    %39 = vector.broadcast %38 : vector<32x1xf32> to vector<32x256xf32>
    %40 = arith.mulf %35, %39 : vector<32x256xf32>
    %41 = arith.truncf %40 : vector<32x256xf32> to vector<32x256xbf16>
    %cst_25 = arith.constant dense<0.000000e+00> : vector<32x512xf32>
    %42 = tpu.matmul %41, %13, %cst_25 {dimension_numbers = #tpu.dot_dimension_numbers<[1], [0], [0], [1], [0, 0, 1, 1], [], []>} : vector<32x256xbf16>, vector<256x512xbf16>, vector<32x512xf32> -> vector<32x512xf32>
    %43 = arith.truncf %42 : vector<32x512xf32> to vector<32x512xbf16>
    %c0_26 = arith.constant 0 : index
    %c0_27 = arith.constant 0 : index
    %44 = vector.load %arg6[%c0_26, %c0_27] : memref<512x512xbf16, #tpu.memory_space<vmem>>, vector<512x512xbf16>
    %cst_28 = arith.constant dense<0.000000e+00> : vector<32x512xf32>
    %45 = tpu.matmul %43, %44, %cst_28 {dimension_numbers = #tpu.dot_dimension_numbers<[1], [0], [0], [1], [0, 0, 1, 1], [], []>} : vector<32x512xbf16>, vector<512x512xbf16>, vector<32x512xf32> -> vector<32x512xf32>
    %c0_29 = arith.constant 0 : index
    %c0_30 = arith.constant 0 : index
    %46 = vector.load %arg7[%c0_29, %c0_30] : memref<1x512xf32, #tpu.memory_space<vmem>>, vector<1x512xf32>
    %47 = vector.broadcast %46 : vector<1x512xf32> to vector<32x512xf32>
    %48 = arith.addf %45, %47 : vector<32x512xf32>
    %49 = arith.addf %21, %48 : vector<32x512xf32>
    %cst_31 = arith.constant dense<0.000000e+00> : vector<32xf32>
    %50 = vector.multi_reduction <add>, %49, %cst_31 [1] : vector<32x512xf32> to vector<32xf32>
    %51 = vector.shape_cast %50 : vector<32xf32> to vector<32x1xf32>
    %cst_32 = arith.constant 5.120000e+02 : f32
    %52 = vector.broadcast %cst_32 : f32 to vector<32x1xf32>
    %53 = arith.divf %51, %52 : vector<32x1xf32>
    %54 = vector.broadcast %53 : vector<32x1xf32> to vector<32x512xf32>
    %55 = arith.subf %49, %54 : vector<32x512xf32>
    %56 = arith.mulf %55, %55 : vector<32x512xf32>
    %cst_33 = arith.constant dense<0.000000e+00> : vector<32xf32>
    %57 = vector.multi_reduction <add>, %56, %cst_33 [1] : vector<32x512xf32> to vector<32xf32>
    %58 = vector.shape_cast %57 : vector<32xf32> to vector<32x1xf32>
    %cst_34 = arith.constant 5.120000e+02 : f32
    %59 = vector.broadcast %cst_34 : f32 to vector<32x1xf32>
    %60 = arith.divf %58, %59 : vector<32x1xf32>
    %61 = vector.broadcast %53 : vector<32x1xf32> to vector<32x512xf32>
    %62 = arith.subf %49, %61 : vector<32x512xf32>
    %cst_35 = arith.constant 9.99999974E-6 : f32
    %63 = vector.broadcast %cst_35 : f32 to vector<32x1xf32>
    %64 = arith.addf %60, %63 : vector<32x1xf32>
    %65 = math.rsqrt %64 : vector<32x1xf32>
    %66 = vector.broadcast %65 : vector<32x1xf32> to vector<32x512xf32>
    %67 = arith.mulf %62, %66 : vector<32x512xf32>
    %c0_36 = arith.constant 0 : index
    %c0_37 = arith.constant 0 : index
    %68 = vector.load %arg8[%c0_36, %c0_37] : memref<1x512xf32, #tpu.memory_space<vmem>>, vector<1x512xf32>
    %69 = vector.broadcast %68 : vector<1x512xf32> to vector<32x512xf32>
    %70 = arith.mulf %67, %69 : vector<32x512xf32>
    %c0_38 = arith.constant 0 : index
    %c0_39 = arith.constant 0 : index
    %71 = vector.load %arg9[%c0_38, %c0_39] : memref<1x512xf32, #tpu.memory_space<vmem>>, vector<1x512xf32>
    %72 = vector.broadcast %71 : vector<1x512xf32> to vector<32x512xf32>
    %73 = arith.addf %70, %72 : vector<32x512xf32>
    %c0_40 = arith.constant 0 : index
    %c0_41 = arith.constant 0 : index
    %74 = vector.load %arg11[%c0_40, %c0_41] : memref<32x512xf32, #tpu.memory_space<vmem>>, vector<32x512xf32>
    tpu.vector_store %arg11[%c0_40, %c0_41], %73 {strides = array<i32>} : memref<32x512xf32, #tpu.memory_space<vmem>>, vector<32x512xf32>,
    return
  }
  func.func @transform_0(%arg0: i32) -> (i32, i32, i32) {
    %c0_i32 = arith.constant 0 : i32
    %c0_i32_0 = arith.constant 0 : i32
    %c0_i32_1 = arith.constant 0 : i32
    return %arg0, %c0_i32, %c0_i32_0 : i32, i32, i32
  }
  func.func @transform_1(%arg0: i32) -> (i32, i32) {
    %c0_i32 = arith.constant 0 : i32
    %c0_i32_0 = arith.constant 0 : i32
    %c0_i32_1 = arith.constant 0 : i32
    return %c0_i32, %c0_i32_0 : i32, i32
  }
  func.func @transform_2(%arg0: i32) -> (i32, i32) {
    %c0_i32 = arith.constant 0 : i32
    %c0_i32_0 = arith.constant 0 : i32
    %c0_i32_1 = arith.constant 0 : i32
    return %c0_i32, %c0_i32_0 : i32, i32
  }
  func.func @transform_3(%arg0: i32) -> (i32, i32) {
    %c0_i32 = arith.constant 0 : i32
    %c0_i32_0 = arith.constant 0 : i32
    %c0_i32_1 = arith.constant 0 : i32
    return %c0_i32, %c0_i32_0 : i32, i32
  }
  func.func @transform_4(%arg0: i32) -> (i32, i32) {
    %c0_i32 = arith.constant 0 : i32
    %c0_i32_0 = arith.constant 0 : i32
    %c0_i32_1 = arith.constant 0 : i32
    return %c0_i32, %c0_i32_0 : i32, i32
  }
  func.func @transform_5(%arg0: i32) -> (i32, i32) {
    %c0_i32 = arith.constant 0 : i32
    %c0_i32_0 = arith.constant 0 : i32
    %c0_i32_1 = arith.constant 0 : i32
    return %c0_i32, %c0_i32_0 : i32, i32
  }
  func.func @transform_6(%arg0: i32) -> (i32, i32) {
    %c0_i32 = arith.constant 0 : i32
    %c0_i32_0 = arith.constant 0 : i32
    %c0_i32_1 = arith.constant 0 : i32
    return %c0_i32, %c0_i32_0 : i32, i32
  }
  func.func @transform_7(%arg0: i32) -> (i32, i32) {
    %c0_i32 = arith.constant 0 : i32
    %c0_i32_0 = arith.constant 0 : i32
    %c0_i32_1 = arith.constant 0 : i32
    return %c0_i32, %c0_i32_0 : i32, i32
  }
  func.func @transform_8(%arg0: i32) -> (i32, i32) {
    %c0_i32 = arith.constant 0 : i32
    %c0_i32_0 = arith.constant 0 : i32
    %c0_i32_1 = arith.constant 0 : i32
    return %c0_i32, %c0_i32_0 : i32, i32
  }
  func.func @transform_9(%arg0: i32) -> (i32, i32) {
    %c0_i32 = arith.constant 0 : i32
    %c0_i32_0 = arith.constant 0 : i32
    %c0_i32_1 = arith.constant 0 : i32
    return %c0_i32, %c0_i32_0 : i32, i32
  }
  func.func @transform_10(%arg0: i32) -> (i32, i32) {
    %c0_i32 = arith.constant 0 : i32
    %c0_i32_0 = arith.constant 0 : i32
    return %arg0, %c0_i32 : i32, i32
  }
}

</mosaic_0001>

<llo_original>
// kernel: tpu_custom_call.1
$region0: #{tpu_custom_call.1}
  #allocation0 [shape = 'u32[]', space=smem, size = 0x4, offset = 0x4, fixed_abs, tag = 'smem constant byte address 0x4 - core index']
  #allocation1 [shape = 'u32[144,128]{1,0:T(1,128)}', space=vmem, size = 0x12000, scoped, tag = 'internal scratch']
  %s0 = inlined_call_operand.hbm [shape: f32[8,128], index: 0, kind: input, shape index: {}]
  %s1 = inlined_call_operand.hbm [shape: f32[8,128], index: 1, kind: output, shape index: {}]
  %s2 = sld [smem:[#allocation0]]
  $region18: #{tpu_custom_call.1} parent=0
    _
  %s4 = ssub.s32 1, %s2
  %s5 = scalar_select 0, %s4, %s2
  $region1: #{tpu_custom_call.1} parent=0
    #allocation2 [shape = 'u8[4096]{0}', space=vmem, size = 0x1000, scoped, tag = 'input window, operand 0, single buffered']
    #allocation3 [shape = 's32[1]{0}', space=sflag, size = 0x4, scoped, tag = 'scoped memory for tpu_custom_call.1']
    #allocation4 [shape = 's32[1]{0}', space=sflag, size = 0x4, scoped, tag = 'scoped memory for tpu_custom_call.1']
    #allocation5 [shape = 'u8[4096]{0}', space=vmem, size = 0x1000, scoped, tag = 'output window, operand 0, single buffered']
    %6 = vsyncpa [#allocation3], 0
    %7 = vsyncpa [#allocation4], 0
    // Predicated region
    $region2: #{tpu_custom_call.1} parent=1 // pred_check
      _
    $region3: #{tpu_custom_call.1} parent=1 // pred_check_branch
      %9 = sbr.rel (0) target = $region5
    $region4: #{tpu_custom_call.1} parent=1 // pred_region
      %s11 = ssub.s32 128, 128
      %12 = vsyncadd [#allocation3], %s11
      %s14 = sshll.u32 [#allocation2], 4
      %s15 = int_to_ptr.vmem [resolvable:$true] %s14
      %17 = dma.hbm_to_vmem [thread:$0]  %s0, 128, %s15, [#allocation3]
    $region5: #{tpu_custom_call.1} parent=1 // pred_fallthru
      _
    // Predicated region
    $region6: #{tpu_custom_call.1} parent=1 // pred_check
      _
    $region7: #{tpu_custom_call.1} parent=1 // pred_check_branch
      %19 = sbr.rel (0) target = $region9
    $region8: #{tpu_custom_call.1} parent=1 // pred_region
      %20 = dma.done [#allocation3], 128
    $region9: #{tpu_custom_call.1} parent=1 // pred_fallthru
      _
    %v21 = vld [vmem:[#allocation2] sm:$0xff]
    %22 = vst [vmem:[#allocation5] sm:$0xff] %v21
    // Predicated region
    $region10: #{tpu_custom_call.1} parent=1 // pred_check
      _
    $region11: #{tpu_custom_call.1} parent=1 // pred_check_branch
      %24 = sbr.rel (0) target = $region13
    $region12: #{tpu_custom_call.1} parent=1 // pred_region
      %s26 = ssub.s32 128, 128
      %27 = vsyncadd [#allocation4], %s26
      %s29 = sshll.u32 [#allocation5], 4
      %s30 = int_to_ptr.vmem [resolvable:$true] %s29
      %32 = dma.vmem_to_hbm [thread:$0]  %s30, 128, %s1, [#allocation4]
    $region13: #{tpu_custom_call.1} parent=1 // pred_fallthru
      _
    // Predicated region
    $region14: #{tpu_custom_call.1} parent=1 // pred_check
      _
    $region15: #{tpu_custom_call.1} parent=1 // pred_check_branch
      %34 = sbr.rel (0) target = $region17
    $region16: #{tpu_custom_call.1} parent=1 // pred_region
      %35 = dma.done [#allocation4], 128
    $region17: #{tpu_custom_call.1} parent=1 // pred_fallthru
      _
    %36 = vsyncpa [#allocation3], 1
    %37 = vsyncpa [#allocation4], 1

// kernel: tpu_custom_call.1
$region0: #{tpu_custom_call.1}
  #allocation0 [shape = 'u32[]', space=smem, size = 0x4, offset = 0x4, fixed_abs, tag = 'smem constant byte address 0x4 - core index']
  #allocation1 [shape = 'u32[144,128]{1,0:T(1,128)}', space=vmem, size = 0x12000, scoped, tag = 'internal scratch']
  %s0 = inlined_call_operand.hbm [shape: f32[64,8,256], index: 0, kind: input, shape index: {}]
  %s1 = inlined_call_operand.hbm [shape: bf16[256,512], index: 1, kind: input, shape index: {}]
  %s2 = inlined_call_operand.hbm [shape: f32[1,512], index: 2, kind: input, shape index: {}]
  %s3 = inlined_call_operand.hbm [shape: bf16[512,1024], index: 3, kind: input, shape index: {}]
  %s4 = inlined_call_operand.hbm [shape: bf16[512,512], index: 4, kind: input, shape index: {}]
  %s5 = inlined_call_operand.hbm [shape: bf16[512,512], index: 5, kind: input, shape index: {}]
  %s6 = inlined_call_operand.hbm [shape: f32[1,512], index: 6, kind: input, shape index: {}]
  %s7 = inlined_call_operand.hbm [shape: f32[1,512], index: 7, kind: input, shape index: {}]
  %s8 = inlined_call_operand.hbm [shape: f32[1,512], index: 8, kind: input, shape index: {}]
  %s9 = inlined_call_operand.hbm [shape: f32[32,256], index: 9, kind: input, shape index: {}]
  %s10 = inlined_call_operand.hbm [shape: f32[64,512], index: 10, kind: output, shape index: {}]
  %s11 = sld [smem:[#allocation0]]
  $region113: #{tpu_custom_call.1} parent=0
    _
  %s13 = ssub.s32 1, %s11
  %s14 = scalar_select 0, %s13, %s11
  $region1: #{tpu_custom_call.1} parent=0
    #allocation2 [shape = 'u8[524288]{0}', space=vmem, size = 0x80000, scoped, tag = 'input window, operand 0']
    #allocation3 [shape = 's32[2]{0}', space=sflag, size = 0x8, scoped, tag = 'scoped memory for tpu_custom_call.1']
    #allocation4 [shape = 's32[2]{0}', space=sflag, size = 0x8, scoped, tag = 'scoped memory for tpu_custom_call.1']
    #allocation5 [shape = 'u8[262144]{0}', space=vmem, size = 0x40000, scoped, tag = 'input window, operand 1, single buffered']
    #allocation6 [shape = 's32[1]{0}', space=sflag, size = 0x4, scoped, tag = 'scoped memory for tpu_custom_call.1']
    #allocation7 [shape = 'u8[2048]{0}', space=vmem, size = 0x800, scoped, tag = 'input window, operand 2, single buffered']
    #allocation8 [shape = 'u8[1048576]{0}', space=vmem, size = 0x100000, scoped, tag = 'input window, operand 3, single buffered']
    #allocation9 [shape = 's32[1]{0}', space=sflag, size = 0x4, scoped, tag = 'scoped memory for tpu_custom_call.1']
    #allocation10 [shape = 'u8[524288]{0}', space=vmem, size = 0x80000, scoped, tag = 'input window, operand 4, single buffered']
    #allocation11 [shape = 'u8[524288]{0}', space=vmem, size = 0x80000, scoped, tag = 'input window, operand 5, single buffered']
    #allocation12 [shape = 's32[1]{0}', space=sflag, size = 0x4, scoped, tag = 'scoped memory for tpu_custom_call.1']
    #allocation13 [shape = 'u8[2048]{0}', space=vmem, size = 0x800, scoped, tag = 'input window, operand 6, single buffered']
    #allocation14 [shape = 'u8[2048]{0}', space=vmem, size = 0x800, scoped, tag = 'input window, operand 7, single buffered']
    #allocation15 [shape = 's32[1]{0}', space=sflag, size = 0x4, scoped, tag = 'scoped memory for tpu_custom_call.1']
    #allocation16 [shape = 'u8[2048]{0}', space=vmem, size = 0x800, scoped, tag = 'input window, operand 8, single buffered']
    #allocation17 [shape = 'u8[32768]{0}', space=vmem, size = 0x8000, scoped, tag = 'input window, operand 9, single buffered']
    #allocation18 [shape = 's32[1]{0}', space=sflag, size = 0x4, scoped, tag = 'scoped memory for tpu_custom_call.1']
    #allocation19 [shape = 'u8[131072]{0}', space=vmem, size = 0x20000, scoped, tag = 'output window, operand 0']
    %15 = vsyncpa [#allocation3], 0
    %s16 = scalar_lea.sflag [#allocation3], 1
    %17 = vsyncpa %s16, 0
    %18 = vsyncpa [#allocation6], 0
    %19 = vsyncpa [#allocation9], 0
    %20 = vsyncpa [#allocation12], 0
    %21 = vsyncpa [#allocation15], 0
    %22 = vsyncpa [#allocation18], 0
    %23 = vsyncpa [#allocation4], 0
    %s24 = scalar_lea.sflag [#allocation4], 1
    %25 = vsyncpa %s24, 0
    loop: start=0, step=1, limit=4
    $region2: #{tpu_custom_call.1} parent=1 // loop_pre_header
      _
    $region3: #{tpu_custom_call.1} parent=1 // loop_header
      %s27 = sphi 0, %s31
      %p28 = scmp.ge.s32.totalorder %s27, 4
      %s37 = sphi 0, %s39
      %s40 = sphi 0, %s37
      %s41 = sphi 0, %s40
      %s57 = sphi 0, %s41
      %s61 = sphi 0, %s61
      %s63 = sphi 0, %s61
      %s64 = sphi 0, %s63
      %s78 = sphi 0, %s64
      %s82 = sphi 0, %s82
      %s84 = sphi 0, %s82
      %s85 = sphi 0, %s84
      %s99 = sphi 0, %s85
      %s103 = sphi 0, %s103
      %s105 = sphi 0, %s103
      %s106 = sphi 0, %s105
      %s120 = sphi 0, %s106
      %s124 = sphi 0, %s124
      %s126 = sphi 0, %s124
      %s127 = sphi 0, %s126
      %s141 = sphi 0, %s127
      %s145 = sphi 0, %s145
      %s147 = sphi 0, %s145
      %s148 = sphi 0, %s147
      %s162 = sphi 0, %s148
      %s166 = sphi 0, %s166
      %s168 = sphi 0, %s166
      %s169 = sphi 0, %s168
      %s183 = sphi 0, %s169
      %s187 = sphi 0, %s187
      %s189 = sphi 0, %s187
      %s190 = sphi 0, %s189
      %s204 = sphi 0, %s190
      %s208 = sphi 0, %s208
      %s210 = sphi 0, %s208
      %s211 = sphi 0, %s210
      %s225 = sphi 0, %s211
      %s229 = sphi 0, %s229
      %s231 = sphi 0, %s229
      %s232 = sphi 0, %s231
      %s246 = sphi 0, %s232
      %s252 = sphi 0, %s254
      %s255 = sphi 0, %s252
      %s256 = sphi 0, %s255
      %s272 = sphi 0, %s256
    $region4: #{tpu_custom_call.1} parent=1 // loop_header_branch
      %30 = sbr.rel (%p28) target = $region8
    $region5: #{tpu_custom_call.1} parent=1 // loop_body
      %s32 = ssub.s32 %s27, 1
      %s33 = ssub.s32 %s27, 2
      %s34 = sadd.s32 %s27, 1
      %s35 = ssub.s32 %s27, %s34
      %p36 = scmp.eq.s32.totalorder %s35, 0
      %s38 = sadd.s32 %s37, 1
      %s39 = scalar_select %p36, %s37, %s38
      %p42 = pneg %p36
      %p43 = scmp.eq.s32.totalorder %s27, 1
      %p44 = por %p42, %p43
      %p45 = scmp.ne.s32.totalorder %s37, %s40
      %p46 = scmp.eq.s32.totalorder %s27, 0
      %p47 = por %p45, %p46
      %p48 = scmp.ne.s32.totalorder %s37, %s40
      %p49 = scmp.eq.s32.totalorder %s32, 1
      %p50 = por %p48, %p49
      %p51 = scmp.ne.s32.totalorder %s40, %s41
      %p52 = scmp.eq.s32.totalorder %s32, 0
      %p53 = por %p51, %p52
      %p54 = scmp.ne.s32.totalorder %s40, %s41
      %p55 = scmp.eq.s32.totalorder %s33, 1
      %p56 = por %p54, %p55
      %p58 = scmp.ne.s32.totalorder %s41, %s57
      %p59 = scmp.eq.s32.totalorder %s33, 0
      %p60 = por %p58, %p59
      %s62 = sadd.s32 %s61, 1
      %p65 = scmp.eq.s32.totalorder %s27, 1
      %p66 = scmp.ne.s32.totalorder %s61, %s63
      %p67 = scmp.eq.s32.totalorder %s27, 0
      %p68 = por %p66, %p67
      %p69 = scmp.ne.s32.totalorder %s61, %s63
      %p70 = scmp.eq.s32.totalorder %s32, 1
      %p71 = por %p69, %p70
      %p72 = scmp.ne.s32.totalorder %s63, %s64
      %p73 = scmp.eq.s32.totalorder %s32, 0
      %p74 = por %p72, %p73
      %p75 = scmp.ne.s32.totalorder %s63, %s64
      %p76 = scmp.eq.s32.totalorder %s33, 1
      %p77 = por %p75, %p76
      %p79 = scmp.ne.s32.totalorder %s64, %s78
      %p80 = scmp.eq.s32.totalorder %s33, 0
      %p81 = por %p79, %p80
      %s83 = sadd.s32 %s82, 1
      %p86 = scmp.eq.s32.totalorder %s27, 1
      %p87 = scmp.ne.s32.totalorder %s82, %s84
      %p88 = scmp.eq.s32.totalorder %s27, 0
      %p89 = por %p87, %p88
      %p90 = scmp.ne.s32.totalorder %s82, %s84
      %p91 = scmp.eq.s32.totalorder %s32, 1
      %p92 = por %p90, %p91
      %p93 = scmp.ne.s32.totalorder %s84, %s85
      %p94 = scmp.eq.s32.totalorder %s32, 0
      %p95 = por %p93, %p94
      %p96 = scmp.ne.s32.totalorder %s84, %s85
      %p97 = scmp.eq.s32.totalorder %s33, 1
      %p98 = por %p96, %p97
      %p100 = scmp.ne.s32.totalorder %s85, %s99
      %p101 = scmp.eq.s32.totalorder %s33, 0
      %p102 = por %p100, %p101
      %s104 = sadd.s32 %s103, 1
      %p107 = scmp.eq.s32.totalorder %s27, 1
      %p108 = scmp.ne.s32.totalorder %s103, %s105
      %p109 = scmp.eq.s32.totalorder %s27, 0
      %p110 = por %p108, %p109
      %p111 = scmp.ne.s32.totalorder %s103, %s105
      %p112 = scmp.eq.s32.totalorder %s32, 1
      %p113 = por %p111, %p112
      %p114 = scmp.ne.s32.totalorder %s105, %s106
      %p115 = scmp.eq.s32.totalorder %s32, 0
      %p116 = por %p114, %p115
      %p117 = scmp.ne.s32.totalorder %s105, %s106
      %p118 = scmp.eq.s32.totalorder %s33, 1
      %p119 = por %p117, %p118
      %p121 = scmp.ne.s32.totalorder %s106, %s120
      %p122 = scmp.eq.s32.totalorder %s33, 0
      %p123 = por %p121, %p122
      %s125 = sadd.s32 %s124, 1
      %p128 = scmp.eq.s32.totalorder %s27, 1
      %p129 = scmp.ne.s32.totalorder %s124, %s126
      %p130 = scmp.eq.s32.totalorder %s27, 0
      %p131 = por %p129, %p130
      %p132 = scmp.ne.s32.totalorder %s124, %s126
      %p133 = scmp.eq.s32.totalorder %s32, 1
      %p134 = por %p132, %p133
      %p135 = scmp.ne.s32.totalorder %s126, %s127
      %p136 = scmp.eq.s32.totalorder %s32, 0
      %p137 = por %p135, %p136
      %p138 = scmp.ne.s32.totalorder %s126, %s127
      %p139 = scmp.eq.s32.totalorder %s33, 1
      %p140 = por %p138, %p139
      %p142 = scmp.ne.s32.totalorder %s127, %s141
      %p143 = scmp.eq.s32.totalorder %s33, 0
      %p144 = por %p142, %p143
      %s146 = sadd.s32 %s145, 1
      %p149 = scmp.eq.s32.totalorder %s27, 1
      %p150 = scmp.ne.s32.totalorder %s145, %s147
      %p151 = scmp.eq.s32.totalorder %s27, 0
      %p152 = por %p150, %p151
      %p153 = scmp.ne.s32.totalorder %s145, %s147
      %p154 = scmp.eq.s32.totalorder %s32, 1
      %p155 = por %p153, %p154
      %p156 = scmp.ne.s32.totalorder %s147, %s148
      %p157 = scmp.eq.s32.totalorder %s32, 0
      %p158 = por %p156, %p157
      %p159 = scmp.ne.s32.totalorder %s147, %s148
      %p160 = scmp.eq.s32.totalorder %s33, 1
      %p161 = por %p159, %p160
      %p163 = scmp.ne.s32.totalorder %s148, %s162
      %p164 = scmp.eq.s32.totalorder %s33, 0
      %p165 = por %p163, %p164
      %s167 = sadd.s32 %s166, 1
      %p170 = scmp.eq.s32.totalorder %s27, 1
      %p171 = scmp.ne.s32.totalorder %s166, %s168
      %p172 = scmp.eq.s32.totalorder %s27, 0
      %p173 = por %p171, %p172
      %p174 = scmp.ne.s32.totalorder %s166, %s168
      %p175 = scmp.eq.s32.totalorder %s32, 1
      %p176 = por %p174, %p175
      %p177 = scmp.ne.s32.totalorder %s168, %s169
      %p178 = scmp.eq.s32.totalorder %s32, 0
      %p179 = por %p177, %p178
      %p180 = scmp.ne.s32.totalorder %s168, %s169
      %p181 = scmp.eq.s32.totalorder %s33, 1
      %p182 = por %p180, %p181
      %p184 = scmp.ne.s32.totalorder %s169, %s183
      %p185 = scmp.eq.s32.totalorder %s33, 0
      %p186 = por %p184, %p185
      %s188 = sadd.s32 %s187, 1
      %p191 = scmp.eq.s32.totalorder %s27, 1
      %p192 = scmp.ne.s32.totalorder %s187, %s189
      %p193 = scmp.eq.s32.totalorder %s27, 0
      %p194 = por %p192, %p193
      %p195 = scmp.ne.s32.totalorder %s187, %s189
      %p196 = scmp.eq.s32.totalorder %s32, 1
      %p197 = por %p195, %p196
      %p198 = scmp.ne.s32.totalorder %s189, %s190
      %p199 = scmp.eq.s32.totalorder %s32, 0
      %p200 = por %p198, %p199
      %p201 = scmp.ne.s32.totalorder %s189, %s190
      %p202 = scmp.eq.s32.totalorder %s33, 1
      %p203 = por %p201, %p202
      %p205 = scmp.ne.s32.totalorder %s190, %s204
      %p206 = scmp.eq.s32.totalorder %s33, 0
      %p207 = por %p205, %p206
      %s209 = sadd.s32 %s208, 1
      %p212 = scmp.eq.s32.totalorder %s27, 1
      %p213 = scmp.ne.s32.totalorder %s208, %s210
      %p214 = scmp.eq.s32.totalorder %s27, 0
      %p215 = por %p213, %p214
      %p216 = scmp.ne.s32.totalorder %s208, %s210
      %p217 = scmp.eq.s32.totalorder %s32, 1
      %p218 = por %p216, %p217
      %p219 = scmp.ne.s32.totalorder %s210, %s211
      %p220 = scmp.eq.s32.totalorder %s32, 0
      %p221 = por %p219, %p220
      %p222 = scmp.ne.s32.totalorder %s210, %s211
      %p223 = scmp.eq.s32.totalorder %s33, 1
      %p224 = por %p222, %p223
      %p226 = scmp.ne.s32.totalorder %s211, %s225
      %p227 = scmp.eq.s32.totalorder %s33, 0
      %p228 = por %p226, %p227
      %s230 = sadd.s32 %s229, 1
      %p233 = scmp.eq.s32.totalorder %s27, 1
      %p234 = scmp.ne.s32.totalorder %s229, %s231
      %p235 = scmp.eq.s32.totalorder %s27, 0
      %p236 = por %p234, %p235
      %p237 = scmp.ne.s32.totalorder %s229, %s231
      %p238 = scmp.eq.s32.totalorder %s32, 1
      %p239 = por %p237, %p238
      %p240 = scmp.ne.s32.totalorder %s231, %s232
      %p241 = scmp.eq.s32.totalorder %s32, 0
      %p242 = por %p240, %p241
      %p243 = scmp.ne.s32.totalorder %s231, %s232
      %p244 = scmp.eq.s32.totalorder %s33, 1
      %p245 = por %p243, %p244
      %p247 = scmp.ne.s32.totalorder %s232, %s246
      %p248 = scmp.eq.s32.totalorder %s33, 0
      %p249 = por %p247, %p248
      %s250 = ssub.s32 %s27, %s34
      %p251 = scmp.eq.s32.totalorder %s250, 0
      %s253 = sadd.s32 %s252, 1
      %s254 = scalar_select %p251, %s252, %s253
      %p257 = pneg %p251
      %p258 = scmp.eq.s32.totalorder %s27, 1
      %p259 = por %p257, %p258
      %p260 = scmp.ne.s32.totalorder %s252, %s255
      %p261 = scmp.eq.s32.totalorder %s27, 0
      %p262 = por %p260, %p261
      %p263 = scmp.ne.s32.totalorder %s252, %s255
      %p264 = scmp.eq.s32.totalorder %s32, 1
      %p265 = por %p263, %p264
      %p266 = scmp.ne.s32.totalorder %s255, %s256
      %p267 = scmp.eq.s32.totalorder %s32, 0
      %p268 = por %p266, %p267
      %p269 = scmp.ne.s32.totalorder %s255, %s256
      %p270 = scmp.eq.s32.totalorder %s33, 1
      %p271 = por %p269, %p270
      %p273 = scmp.ne.s32.totalorder %s256, %s272
      %p274 = scmp.eq.s32.totalorder %s33, 0
      %p275 = por %p273, %p274
      %p276 = scmp.le.s32.totalorder 1, %s27
      %p277 = scmp.lt.s32.totalorder %s27, 3
      %p278 = pnand %p276, %p277
      %p279 = pneg %p278
      // Predicated region
      $region9: #{tpu_custom_call.1} parent=5 // pred_check
        _
      $region10: #{tpu_custom_call.1} parent=5 // pred_check_branch
        %281 = sbr.rel (%p278) target = $region12
      $region11: #{tpu_custom_call.1} parent=5 // pred_region
        %s282 = ssub.s32 %s27, 1
        // Predicated region
        $region13: #{tpu_custom_call.1} parent=11 // pred_check
          %p283 = pneg %p74
        $region14: #{tpu_custom_call.1} parent=11 // pred_check_branch
          %285 = sbr.rel (%p283) target = $region16
        $region15: #{tpu_custom_call.1} parent=11 // pred_region
          %s287 = ssub.s32 8192, 8192
          %288 = vsyncadd [#allocation6], %s287
          %s289 = sshll.u32 [#allocation5], 4
          %s290 = int_to_ptr.vmem [resolvable:$true] %s289
          %295 = dma.hbm_to_vmem [thread:$0]  %s1, 8192, %s290, [#allocation6], 256, 256, 16
        $region16: #{tpu_custom_call.1} parent=11 // pred_fallthru
          _
        // Predicated region
        $region17: #{tpu_custom_call.1} parent=11 // pred_check
          %p296 = pneg %p95
        $region18: #{tpu_custom_call.1} parent=11 // pred_check_branch
          %298 = sbr.rel (%p296) target = $region20
        $region19: #{tpu_custom_call.1} parent=11 // pred_region
          %s300 = ssub.s32 64, 64
          %301 = vsyncadd [#allocation6], %s300
          %s303 = sshll.u32 [#allocation7], 4
          %s304 = int_to_ptr.vmem [resolvable:$true] %s303
          %306 = dma.hbm_to_vmem [thread:$0]  %s2, 64, %s304, [#allocation6]
        $region20: #{tpu_custom_call.1} parent=11 // pred_fallthru
          _
        // Predicated region
        $region21: #{tpu_custom_call.1} parent=11 // pred_check
          %p307 = pneg %p116
        $region22: #{tpu_custom_call.1} parent=11 // pred_check_branch
          %309 = sbr.rel (%p307) target = $region24
        $region23: #{tpu_custom_call.1} parent=11 // pred_region
          %s311 = ssub.s32 32768, 32768
          %312 = vsyncadd [#allocation9], %s311
          %s313 = sshll.u32 [#allocation8], 4
          %s314 = int_to_ptr.vmem [resolvable:$true] %s313
          %319 = dma.hbm_to_vmem [thread:$0]  %s3, 32768, %s314, [#allocation9], 512, 512, 32
        $region24: #{tpu_custom_call.1} parent=11 // pred_fallthru
          _
        // Predicated region
        $region25: #{tpu_custom_call.1} parent=11 // pred_check
          %p320 = pneg %p137
        $region26: #{tpu_custom_call.1} parent=11 // pred_check_branch
          %322 = sbr.rel (%p320) target = $region28
        $region27: #{tpu_custom_call.1} parent=11 // pred_region
          %s324 = ssub.s32 16384, 16384
          %325 = vsyncadd [#allocation9], %s324
          %s326 = sshll.u32 [#allocation10], 4
          %s327 = int_to_ptr.vmem [resolvable:$true] %s326
          %332 = dma.hbm_to_vmem [thread:$0]  %s4, 16384, %s327, [#allocation9], 256, 256, 16
        $region28: #{tpu_custom_call.1} parent=11 // pred_fallthru
          _
        // Predicated region
        $region29: #{tpu_custom_call.1} parent=11 // pred_check
          %p333 = pneg %p158
        $region30: #{tpu_custom_call.1} parent=11 // pred_check_branch
          %335 = sbr.rel (%p333) target = $region32
        $region31: #{tpu_custom_call.1} parent=11 // pred_region
          %s337 = ssub.s32 16384, 16384
          %338 = vsyncadd [#allocation12], %s337
          %s339 = sshll.u32 [#allocation11], 4
          %s340 = int_to_ptr.vmem [resolvable:$true] %s339
          %345 = dma.hbm_to_vmem [thread:$0]  %s5, 16384, %s340, [#allocation12], 256, 256, 16
        $region32: #{tpu_custom_call.1} parent=11 // pred_fallthru
          _
        // Predicated region
        $region33: #{tpu_custom_call.1} parent=11 // pred_check
          %p346 = pneg %p179
        $region34: #{tpu_custom_call.1} parent=11 // pred_check_branch
          %348 = sbr.rel (%p346) target = $region36
        $region35: #{tpu_custom_call.1} parent=11 // pred_region
          %s350 = ssub.s32 64, 64
          %351 = vsyncadd [#allocation12], %s350
          %s353 = sshll.u32 [#allocation13], 4
          %s354 = int_to_ptr.vmem [resolvable:$true] %s353
          %356 = dma.hbm_to_vmem [thread:$0]  %s6, 64, %s354, [#allocation12]
        $region36: #{tpu_custom_call.1} parent=11 // pred_fallthru
          _
        // Predicated region
        $region37: #{tpu_custom_call.1} parent=11 // pred_check
          %p357 = pneg %p200
        $region38: #{tpu_custom_call.1} parent=11 // pred_check_branch
          %359 = sbr.rel (%p357) target = $region40
        $region39: #{tpu_custom_call.1} parent=11 // pred_region
          %s361 = ssub.s32 64, 64
          %362 = vsyncadd [#allocation15], %s361
          %s364 = sshll.u32 [#allocation14], 4
          %s365 = int_to_ptr.vmem [resolvable:$true] %s364
          %367 = dma.hbm_to_vmem [thread:$0]  %s7, 64, %s365, [#allocation15]
        $region40: #{tpu_custom_call.1} parent=11 // pred_fallthru
          _
        // Predicated region
        $region41: #{tpu_custom_call.1} parent=11 // pred_check
          %p368 = pneg %p221
        $region42: #{tpu_custom_call.1} parent=11 // pred_check_branch
          %370 = sbr.rel (%p368) target = $region44
        $region43: #{tpu_custom_call.1} parent=11 // pred_region
          %s372 = ssub.s32 64, 64
          %373 = vsyncadd [#allocation15], %s372
          %s375 = sshll.u32 [#allocation16], 4
          %s376 = int_to_ptr.vmem [resolvable:$true] %s375
          %378 = dma.hbm_to_vmem [thread:$0]  %s8, 64, %s376, [#allocation15]
        $region44: #{tpu_custom_call.1} parent=11 // pred_fallthru
          _
        // Predicated region
        $region45: #{tpu_custom_call.1} parent=11 // pred_check
          %p379 = pneg %p242
        $region46: #{tpu_custom_call.1} parent=11 // pred_check_branch
          %381 = sbr.rel (%p379) target = $region48
        $region47: #{tpu_custom_call.1} parent=11 // pred_region
          %s383 = ssub.s32 1024, 1024
          %384 = vsyncadd [#allocation18], %s383
          %s385 = sshll.u32 [#allocation17], 4
          %s386 = int_to_ptr.vmem [resolvable:$true] %s385
          %391 = dma.hbm_to_vmem [thread:$0]  %s9, 1024, %s386, [#allocation18], 256, 256, 16
        $region48: #{tpu_custom_call.1} parent=11 // pred_fallthru
          _
      $region12: #{tpu_custom_call.1} parent=5 // pred_fallthru
        _
      %p392 = scmp.lt.s32.totalorder %s27, 2
      // Predicated region
      $region49: #{tpu_custom_call.1} parent=5 // pred_check
        %p393 = pneg %p392
      $region50: #{tpu_custom_call.1} parent=5 // pred_check_branch
        %395 = sbr.rel (%p393) target = $region52
      $region51: #{tpu_custom_call.1} parent=5 // pred_region
        // Predicated region
        $region53: #{tpu_custom_call.1} parent=51 // pred_check
          %p396 = pneg %p47
        $region54: #{tpu_custom_call.1} parent=51 // pred_check_branch
          %398 = sbr.rel (%p396) target = $region56
        $region55: #{tpu_custom_call.1} parent=51 // pred_region
          %s399 = sand.u32 %s37, 1
          %s400 = scalar_lea.sflag [#allocation3], %s399
          %s401 = sand.u32 %s37, 1
          %s402 = smul.addr %s401, 512
          %s403 = scalar_lea.vmem [#allocation2], %s402
          %s404 = smul.u32 32, %s27
          %s406 = ssub.s32 8192, 8192
          %407 = vsyncadd %s400, %s406
          %s408 = smul.addr %s404, 2
          %s409 = smul.addr %s408, 128
          %s410 = scalar_lea.hbm %s0, %s409
          %s411 = sshll.u32 %s403, 4
          %s412 = int_to_ptr.vmem [resolvable:$true] %s411
          %417 = dma.hbm_to_vmem [thread:$0]  %s410, 8192, %s412, %s400, 256, 256, 16
        $region56: #{tpu_custom_call.1} parent=51 // pred_fallthru
          _
      $region52: #{tpu_custom_call.1} parent=5 // pred_fallthru
        _
      %p418 = scmp.le.s32.totalorder 1, %s27
      %p419 = scmp.lt.s32.totalorder %s27, 3
      %p420 = pnand %p418, %p419
      %p421 = pneg %p420
      // Predicated region
      $region57: #{tpu_custom_call.1} parent=5 // pred_check
        _
      $region58: #{tpu_custom_call.1} parent=5 // pred_check_branch
        %423 = sbr.rel (%p420) target = $region60
      $region59: #{tpu_custom_call.1} parent=5 // pred_region
        %s424 = ssub.s32 %s27, 1
        %s425 = sand.u32 %s40, 1
        %s426 = scalar_lea.sflag [#allocation3], %s425
        %s427 = sand.u32 %s40, 1
        %s428 = smul.addr %s427, 512
        %s429 = scalar_lea.vmem [#allocation2], %s428
        // Predicated region
        $region61: #{tpu_custom_call.1} parent=59 // pred_check
          %p430 = pneg %p53
        $region62: #{tpu_custom_call.1} parent=59 // pred_check_branch
          %432 = sbr.rel (%p430) target = $region64
        $region63: #{tpu_custom_call.1} parent=59 // pred_region
          %433 = dma.done %s426, 8192
        $region64: #{tpu_custom_call.1} parent=59 // pred_fallthru
          _
        // Predicated region
        $region65: #{tpu_custom_call.1} parent=59 // pred_check
          %p434 = pneg %p74
        $region66: #{tpu_custom_call.1} parent=59 // pred_check_branch
          %436 = sbr.rel (%p434) target = $region68
        $region67: #{tpu_custom_call.1} parent=59 // pred_region
          %437 = dma.done [#allocation6], 8192
        $region68: #{tpu_custom_call.1} parent=59 // pred_fallthru
          _
        // Predicated region
        $region69: #{tpu_custom_call.1} parent=59 // pred_check
          %p438 = pneg %p95
        $region70: #{tpu_custom_call.1} parent=59 // pred_check_branch
          %440 = sbr.rel (%p438) target = $region72
        $region71: #{tpu_custom_call.1} parent=59 // pred_region
          %441 = dma.done [#allocation6], 64
        $region72: #{tpu_custom_call.1} parent=59 // pred_fallthru
          _
        // Predicated region
        $region73: #{tpu_custom_call.1} parent=59 // pred_check
          %p442 = pneg %p116
        $region74: #{tpu_custom_call.1} parent=59 // pred_check_branch
          %444 = sbr.rel (%p442) target = $region76
        $region75: #{tpu_custom_call.1} parent=59 // pred_region
          %445 = dma.done [#allocation9], 32768
        $region76: #{tpu_custom_call.1} parent=59 // pred_fallthru
          _
        // Predicated region
        $region77: #{tpu_custom_call.1} parent=59 // pred_check
          %p446 = pneg %p137
        $region78: #{tpu_custom_call.1} parent=59 // pred_check_branch
          %448 = sbr.rel (%p446) target = $region80
        $region79: #{tpu_custom_call.1} parent=59 // pred_region
          %449 = dma.done [#allocation9], 16384
        $region80: #{tpu_custom_call.1} parent=59 // pred_fallthru
          _
        // Predicated region
        $region81: #{tpu_custom_call.1} parent=59 // pred_check
          %p450 = pneg %p158
        $region82: #{tpu_custom_call.1} parent=59 // pred_check_branch
          %452 = sbr.rel (%p450) target = $region84
        $region83: #{tpu_custom_call.1} parent=59 // pred_region
          %453 = dma.done [#allocation12], 16384
        $region84: #{tpu_custom_call.1} parent=59 // pred_fallthru
          _
        // Predicated region
        $region85: #{tpu_custom_call.1} parent=59 // pred_check
          %p454 = pneg %p179
        $region86: #{tpu_custom_call.1} parent=59 // pred_check_branch
          %456 = sbr.rel (%p454) target = $region88
        $region87: #{tpu_custom_call.1} parent=59 // pred_region
          %457 = dma.done [#allocation12], 64
        $region88: #{tpu_custom_call.1} parent=59 // pred_fallthru
          _
        // Predicated region
        $region89: #{tpu_custom_call.1} parent=59 // pred_check
          %p458 = pneg %p200
        $region90: #{tpu_custom_call.1} parent=59 // pred_check_branch
          %460 = sbr.rel (%p458) target = $region92
        $region91: #{tpu_custom_call.1} parent=59 // pred_region
          %461 = dma.done [#allocation15], 64
        $region92: #{tpu_custom_call.1} parent=59 // pred_fallthru
          _
        // Predicated region
        $region93: #{tpu_custom_call.1} parent=59 // pred_check
          %p462 = pneg %p221
        $region94: #{tpu_custom_call.1} parent=59 // pred_check_branch
          %464 = sbr.rel (%p462) target = $region96
        $region95: #{tpu_custom_call.1} parent=59 // pred_region
          %465 = dma.done [#allocation15], 64
        $region96: #{tpu_custom_call.1} parent=59 // pred_fallthru
          _
        // Predicated region
        $region97: #{tpu_custom_call.1} parent=59 // pred_check
          %p466 = pneg %p242
        $region98: #{tpu_custom_call.1} parent=59 // pred_check_branch
          %468 = sbr.rel (%p466) target = $region100
        $region99: #{tpu_custom_call.1} parent=59 // pred_region
          %469 = dma.done [#allocation18], 1024
        $region100: #{tpu_custom_call.1} parent=59 // pred_fallthru
          _
        %s470 = sand.u32 %s40, 1
        %s471 = scalar_lea.sflag [#allocation3], %s470
        %s472 = sand.u32 %s40, 1
        %s473 = smul.addr %s472, 512
        %s474 = scalar_lea.vmem [#allocation2], %s473
        %p475 = pneg %p53
        %p476 = pneg %p50
        %p477 = pneg %p74
        %p478 = pneg %p71
        %p479 = pneg %p95
        %p480 = pneg %p92
        %p481 = pneg %p116
        %p482 = pneg %p113
        %p483 = pneg %p137
        %p484 = pneg %p134
        %p485 = pneg %p158
        %p486 = pneg %p155
        %p487 = pneg %p179
        %p488 = pneg %p176
        %p489 = pneg %p200
        %p490 = pneg %p197
        %p491 = pneg %p221
        %p492 = pneg %p218
        %p493 = pneg %p242
        %p494 = pneg %p239
        %p495 = pneg %p268
        %p496 = pneg %p265
        %s497 = sand.u32 %s255, 1
        %s498 = scalar_lea.sflag [#allocation4], %s497
        %s499 = sand.u32 %s255, 1
        %s500 = smul.addr %s499, 128
        %s501 = scalar_lea.vmem [#allocation19], %s500
        %s502 = smul.u32 32, %s32
        %s503 = smul.u32 4, %s32
        %v504 = vld [vmem:[%s429] sm:$0xff]
        %v505 = vld [vmem:[%s429 + $0x8] sm:$0xff]
        %v506 = vld [vmem:[%s429 + $0x10] sm:$0xff]
        %v507 = vld [vmem:[%s429 + $0x18] sm:$0xff]
        %v508 = vld [vmem:[%s429 + $0x20] sm:$0xff]
        %v509 = vld [vmem:[%s429 + $0x28] sm:$0xff]
        %v510 = vld [vmem:[%s429 + $0x30] sm:$0xff]
        %v511 = vld [vmem:[%s429 + $0x38] sm:$0xff]
        %v512 = vld [vmem:[%s429 + $0x40] sm:$0xff]
        %v513 = vld [vmem:[%s429 + $0x48] sm:$0xff]
        %v514 = vld [vmem:[%s429 + $0x50] sm:$0xff]
        %v515 = vld [vmem:[%s429 + $0x58] sm:$0xff]
        %v516 = vld [vmem:[%s429 + $0x60] sm:$0xff]
        %v517 = vld [vmem:[%s429 + $0x68] sm:$0xff]
        %v518 = vld [vmem:[%s429 + $0x70] sm:$0xff]
        %v519 = vld [vmem:[%s429 + $0x78] sm:$0xff]
        %v520 = vld [vmem:[%s429 + $0x80] sm:$0xff]
        %v521 = vld [vmem:[%s429 + $0x88] sm:$0xff]
        %v522 = vld [vmem:[%s429 + $0x90] sm:$0xff]
        %v523 = vld [vmem:[%s429 + $0x98] sm:$0xff]
        %v524 = vld [vmem:[%s429 + $0xa0] sm:$0xff]
        %v525 = vld [vmem:[%s429 + $0xa8] sm:$0xff]
        %v526 = vld [vmem:[%s429 + $0xb0] sm:$0xff]
        %v527 = vld [vmem:[%s429 + $0xb8] sm:$0xff]
        %v528 = vld [vmem:[%s429 + $0xc0] sm:$0xff]
        %v529 = vld [vmem:[%s429 + $0xc8] sm:$0xff]
        %v530 = vld [vmem:[%s429 + $0xd0] sm:$0xff]
        %v531 = vld [vmem:[%s429 + $0xd8] sm:$0xff]
        %v532 = vld [vmem:[%s429 + $0xe0] sm:$0xff]
        %v533 = vld [vmem:[%s429 + $0xe8] sm:$0xff]
        %v534 = vld [vmem:[%s429 + $0xf0] sm:$0xff]
        %v535 = vld [vmem:[%s429 + $0xf8] sm:$0xff]
        %v536 = vld [vmem:[%s429 + $0x100] sm:$0xff]
        %v537 = vld [vmem:[%s429 + $0x108] sm:$0xff]
        %v538 = vld [vmem:[%s429 + $0x110] sm:$0xff]
        %v539 = vld [vmem:[%s429 + $0x118] sm:$0xff]
        %v540 = vld [vmem:[%s429 + $0x120] sm:$0xff]
        %v541 = vld [vmem:[%s429 + $0x128] sm:$0xff]
        %v542 = vld [vmem:[%s429 + $0x130] sm:$0xff]
        %v543 = vld [vmem:[%s429 + $0x138] sm:$0xff]
        %v544 = vld [vmem:[%s429 + $0x140] sm:$0xff]
        %v545 = vld [vmem:[%s429 + $0x148] sm:$0xff]
        %v546 = vld [vmem:[%s429 + $0x150] sm:$0xff]
        %v547 = vld [vmem:[%s429 + $0x158] sm:$0xff]
        %v548 = vld [vmem:[%s429 + $0x160] sm:$0xff]
        %v549 = vld [vmem:[%s429 + $0x168] sm:$0xff]
        %v550 = vld [vmem:[%s429 + $0x170] sm:$0xff]
        %v551 = vld [vmem:[%s429 + $0x178] sm:$0xff]
        %v552 = vld [vmem:[%s429 + $0x180] sm:$0xff]
        %v553 = vld [vmem:[%s429 + $0x188] sm:$0xff]
        %v554 = vld [vmem:[%s429 + $0x190] sm:$0xff]
        %v555 = vld [vmem:[%s429 + $0x198] sm:$0xff]
        %v556 = vld [vmem:[%s429 + $0x1a0] sm:$0xff]
        %v557 = vld [vmem:[%s429 + $0x1a8] sm:$0xff]
        %v558 = vld [vmem:[%s429 + $0x1b0] sm:$0xff]
        %v559 = vld [vmem:[%s429 + $0x1b8] sm:$0xff]
        %v560 = vld [vmem:[%s429 + $0x1c0] sm:$0xff]
        %v561 = vld [vmem:[%s429 + $0x1c8] sm:$0xff]
        %v562 = vld [vmem:[%s429 + $0x1d0] sm:$0xff]
        %v563 = vld [vmem:[%s429 + $0x1d8] sm:$0xff]
        %v564 = vld [vmem:[%s429 + $0x1e0] sm:$0xff]
        %v565 = vld [vmem:[%s429 + $0x1e8] sm:$0xff]
        %v566 = vld [vmem:[%s429 + $0x1f0] sm:$0xff]
        %v567 = vld [vmem:[%s429 + $0x1f8] sm:$0xff]
        %v568 = vpack.c.bf16 %v506, %v504
        %v569 = vpack.c.bf16 %v507, %v505
        %v570 = vpack.c.bf16 %v510, %v508
        %v571 = vpack.c.bf16 %v511, %v509
        %v572 = vpack.c.bf16 %v514, %v512
        %v573 = vpack.c.bf16 %v515, %v513
        %v574 = vpack.c.bf16 %v518, %v516
        %v575 = vpack.c.bf16 %v519, %v517
        %v576 = vpack.c.bf16 %v522, %v520
        %v577 = vpack.c.bf16 %v523, %v521
        %v578 = vpack.c.bf16 %v526, %v524
        %v579 = vpack.c.bf16 %v527, %v525
        %v580 = vpack.c.bf16 %v530, %v528
        %v581 = vpack.c.bf16 %v531, %v529
        %v582 = vpack.c.bf16 %v534, %v532
        %v583 = vpack.c.bf16 %v535, %v533
        %v584 = vpack.c.bf16 %v538, %v536
        %v585 = vpack.c.bf16 %v539, %v537
        %v586 = vpack.c.bf16 %v542, %v540
        %v587 = vpack.c.bf16 %v543, %v541
        %v588 = vpack.c.bf16 %v546, %v544
        %v589 = vpack.c.bf16 %v547, %v545
        %v590 = vpack.c.bf16 %v550, %v548
        %v591 = vpack.c.bf16 %v551, %v549
        %v592 = vpack.c.bf16 %v554, %v552
        %v593 = vpack.c.bf16 %v555, %v553
        %v594 = vpack.c.bf16 %v558, %v556
        %v595 = vpack.c.bf16 %v559, %v557
        %v596 = vpack.c.bf16 %v562, %v560
        %v597 = vpack.c.bf16 %v563, %v561
        %v598 = vpack.c.bf16 %v566, %v564
        %v599 = vpack.c.bf16 %v567, %v565
        %v600 = vld [vmem:[#allocation5] sm:$0xff]
        %v601 = vld [vmem:[#allocation5 + $0x8] sm:$0xff]
        %v602 = vld [vmem:[#allocation5 + $0x10] sm:$0xff]
        %v603 = vld [vmem:[#allocation5 + $0x18] sm:$0xff]
        %v604 = vld [vmem:[#allocation5 + $0x20] sm:$0xff]
        %v605 = vld [vmem:[#allocation5 + $0x28] sm:$0xff]
        %v606 = vld [vmem:[#allocation5 + $0x30] sm:$0xff]
        %v607 = vld [vmem:[#allocation5 + $0x38] sm:$0xff]
        %v608 = vld [vmem:[#allocation5 + $0x40] sm:$0xff]
        %v609 = vld [vmem:[#allocation5 + $0x48] sm:$0xff]
        %v610 = vld [vmem:[#allocation5 + $0x50] sm:$0xff]
        %v611 = vld [vmem:[#allocation5 + $0x58] sm:$0xff]
        %v612 = vld [vmem:[#allocation5 + $0x60] sm:$0xff]
        %v613 = vld [vmem:[#allocation5 + $0x68] sm:$0xff]
        %v614 = vld [vmem:[#allocation5 + $0x70] sm:$0xff]
        %v615 = vld [vmem:[#allocation5 + $0x78] sm:$0xff]
        %v616 = vld [vmem:[#allocation5 + $0x80] sm:$0xff]
        %v617 = vld [vmem:[#allocation5 + $0x88] sm:$0xff]
        %v618 = vld [vmem:[#allocation5 + $0x90] sm:$0xff]
        %v619 = vld [vmem:[#allocation5 + $0x98] sm:$0xff]
        %v620 = vld [vmem:[#allocation5 + $0xa0] sm:$0xff]
        %v621 = vld [vmem:[#allocation5 + $0xa8] sm:$0xff]
        %v622 = vld [vmem:[#allocation5 + $0xb0] sm:$0xff]
        %v623 = vld [vmem:[#allocation5 + $0xb8] sm:$0xff]
        %v624 = vld [vmem:[#allocation5 + $0xc0] sm:$0xff]
        %v625 = vld [vmem:[#allocation5 + $0xc8] sm:$0xff]
        %v626 = vld [vmem:[#allocation5 + $0xd0] sm:$0xff]
        %v627 = vld [vmem:[#allocation5 + $0xd8] sm:$0xff]
        %v628 = vld [vmem:[#allocation5 + $0xe0] sm:$0xff]
        %v629 = vld [vmem:[#allocation5 + $0xe8] sm:$0xff]
        %v630 = vld [vmem:[#allocation5 + $0xf0] sm:$0xff]
        %v631 = vld [vmem:[#allocation5 + $0xf8] sm:$0xff]
        %v632 = vld [vmem:[#allocation5 + $0x100] sm:$0xff]
        %v633 = vld [vmem:[#allocation5 + $0x108] sm:$0xff]
        %v634 = vld [vmem:[#allocation5 + $0x110] sm:$0xff]
        %v635 = vld [vmem:[#allocation5 + $0x118] sm:$0xff]
        %v636 = vld [vmem:[#allocation5 + $0x120] sm:$0xff]
        %v637 = vld [vmem:[#allocation5 + $0x128] sm:$0xff]
        %v638 = vld [vmem:[#allocation5 + $0x130] sm:$0xff]
        %v639 = vld [vmem:[#allocation5 + $0x138] sm:$0xff]
        %v640 = vld [vmem:[#allocation5 + $0x140] sm:$0xff]
        %v641 = vld [vmem:[#allocation5 + $0x148] sm:$0xff]
        %v642 = vld [vmem:[#allocation5 + $0x150] sm:$0xff]
        %v643 = vld [vmem:[#allocation5 + $0x158] sm:$0xff]
        %v644 = vld [vmem:[#allocation5 + $0x160] sm:$0xff]
        %v645 = vld [vmem:[#allocation5 + $0x168] sm:$0xff]
        %v646 = vld [vmem:[#allocation5 + $0x170] sm:$0xff]
        %v647 = vld [vmem:[#allocation5 + $0x178] sm:$0xff]
        %v648 = vld [vmem:[#allocation5 + $0x180] sm:$0xff]
        %v649 = vld [vmem:[#allocation5 + $0x188] sm:$0xff]
        %v650 = vld [vmem:[#allocation5 + $0x190] sm:$0xff]
        %v651 = vld [vmem:[#allocation5 + $0x198] sm:$0xff]
        %v652 = vld [vmem:[#allocation5 + $0x1a0] sm:$0xff]
        %v653 = vld [vmem:[#allocation5 + $0x1a8] sm:$0xff]
        %v654 = vld [vmem:[#allocation5 + $0x1b0] sm:$0xff]
        %v655 = vld [vmem:[#allocation5 + $0x1b8] sm:$0xff]
        %v656 = vld [vmem:[#allocation5 + $0x1c0] sm:$0xff]
        %v657 = vld [vmem:[#allocation5 + $0x1c8] sm:$0xff]
        %v658 = vld [vmem:[#allocation5 + $0x1d0] sm:$0xff]
        %v659 = vld [vmem:[#allocation5 + $0x1d8] sm:$0xff]
        %v660 = vld [vmem:[#allocation5 + $0x1e0] sm:$0xff]
        %v661 = vld [vmem:[#allocation5 + $0x1e8] sm:$0xff]
        %v662 = vld [vmem:[#allocation5 + $0x1f0] sm:$0xff]
        %v663 = vld [vmem:[#allocation5 + $0x1f8] sm:$0xff]
        %v664 = vld [vmem:[#allocation7] sm:$0xf]
        %v666 = vlaneseq
        %v667 = vshrl.u32 %v666, 7
        %v668 = vsub.s32 0, %v667
        %v669 = vrot.slane %v664, %v668
        %v670 = vlaneseq
        %v671 = vshrl.u32 %v670, 7
        %v672 = vsub.s32 1, %v671
        %v673 = vrot.slane %v664, %v672
        %v674 = vlaneseq
        %v675 = vshrl.u32 %v674, 7
        %v676 = vsub.s32 2, %v675
        %v677 = vrot.slane %v664, %v676
        %v678 = vlaneseq
        %v679 = vshrl.u32 %v678, 7
        %v680 = vsub.s32 3, %v679
        %v681 = vrot.slane %v664, %v680
        %v750 = vunpack.c.l.b16 %v600
        %v751 = vunpack.c.h.b16 %v600
        %v752 = vunpack.c.l.b16 %v601
        %v753 = vunpack.c.h.b16 %v601
        %v754 = vunpack.c.l.b16 %v602
        %v755 = vunpack.c.h.b16 %v602
        %v756 = vunpack.c.l.b16 %v603
        %v757 = vunpack.c.h.b16 %v603
        %v758 = vunpack.c.l.b16 %v604
        %v759 = vunpack.c.h.b16 %v604
        %v760 = vunpack.c.l.b16 %v605
        %v761 = vunpack.c.h.b16 %v605
        %v762 = vunpack.c.l.b16 %v606
        %v763 = vunpack.c.h.b16 %v606
        %v764 = vunpack.c.l.b16 %v607
        %v765 = vunpack.c.h.b16 %v607
        %v766 = vunpack.c.l.b16 %v608
        %v767 = vunpack.c.h.b16 %v608
        %v768 = vunpack.c.l.b16 %v609
        %v769 = vunpack.c.h.b16 %v609
        %v770 = vunpack.c.l.b16 %v610
        %v771 = vunpack.c.h.b16 %v610
        %v772 = vunpack.c.l.b16 %v611
        %v773 = vunpack.c.h.b16 %v611
        %v774 = vunpack.c.l.b16 %v612
        %v775 = vunpack.c.h.b16 %v612
        %v776 = vunpack.c.l.b16 %v613
        %v777 = vunpack.c.h.b16 %v613
        %v778 = vunpack.c.l.b16 %v614
        %v779 = vunpack.c.h.b16 %v614
        %v780 = vunpack.c.l.b16 %v615
        %v781 = vunpack.c.h.b16 %v615
        %v782 = vunpack.c.l.b16 %v616
        %v783 = vunpack.c.h.b16 %v616
        %v784 = vunpack.c.l.b16 %v617
        %v785 = vunpack.c.h.b16 %v617
        %v786 = vunpack.c.l.b16 %v618
        %v787 = vunpack.c.h.b16 %v618
        %v788 = vunpack.c.l.b16 %v619
        %v789 = vunpack.c.h.b16 %v619
        %v790 = vunpack.c.l.b16 %v620
        %v791 = vunpack.c.h.b16 %v620
        %v792 = vunpack.c.l.b16 %v621
        %v793 = vunpack.c.h.b16 %v621
        %v794 = vunpack.c.l.b16 %v622
        %v795 = vunpack.c.h.b16 %v622
        %v796 = vunpack.c.l.b16 %v623
        %v797 = vunpack.c.h.b16 %v623
        %v798 = vunpack.c.l.b16 %v624
        %v799 = vunpack.c.h.b16 %v624
        %v800 = vunpack.c.l.b16 %v625
        %v801 = vunpack.c.h.b16 %v625
        %v802 = vunpack.c.l.b16 %v626
        %v803 = vunpack.c.h.b16 %v626
        %v804 = vunpack.c.l.b16 %v627
        %v805 = vunpack.c.h.b16 %v627
        %v806 = vunpack.c.l.b16 %v628
        %v807 = vunpack.c.h.b16 %v628
        %v808 = vunpack.c.l.b16 %v629
        %v809 = vunpack.c.h.b16 %v629
        %v810 = vunpack.c.l.b16 %v630
        %v811 = vunpack.c.h.b16 %v630
        %v812 = vunpack.c.l.b16 %v631
        %v813 = vunpack.c.h.b16 %v631
        %v814 = vunpack.c.l.b16 %v632
        %v815 = vunpack.c.h.b16 %v632
        %v816 = vunpack.c.l.b16 %v633
        %v817 = vunpack.c.h.b16 %v633
        %v818 = vunpack.c.l.b16 %v634
        %v819 = vunpack.c.h.b16 %v634
        %v820 = vunpack.c.l.b16 %v635
        %v821 = vunpack.c.h.b16 %v635
        %v822 = vunpack.c.l.b16 %v636
        %v823 = vunpack.c.h.b16 %v636
        %v824 = vunpack.c.l.b16 %v637
        %v825 = vunpack.c.h.b16 %v637
        %v826 = vunpack.c.l.b16 %v638
        %v827 = vunpack.c.h.b16 %v638
        %v828 = vunpack.c.l.b16 %v639
        %v829 = vunpack.c.h.b16 %v639
        %v830 = vunpack.c.l.b16 %v640
        %v831 = vunpack.c.h.b16 %v640
        %v832 = vunpack.c.l.b16 %v641
        %v833 = vunpack.c.h.b16 %v641
        %v834 = vunpack.c.l.b16 %v642
        %v835 = vunpack.c.h.b16 %v642
        %v836 = vunpack.c.l.b16 %v643
        %v837 = vunpack.c.h.b16 %v643
        %v838 = vunpack.c.l.b16 %v644
        %v839 = vunpack.c.h.b16 %v644
        %v840 = vunpack.c.l.b16 %v645
        %v841 = vunpack.c.h.b16 %v645
        %v842 = vunpack.c.l.b16 %v646
        %v843 = vunpack.c.h.b16 %v646
        %v844 = vunpack.c.l.b16 %v647
        %v845 = vunpack.c.h.b16 %v647
        %v846 = vunpack.c.l.b16 %v648
        %v847 = vunpack.c.h.b16 %v648
        %v848 = vunpack.c.l.b16 %v649
        %v849 = vunpack.c.h.b16 %v649
        %v850 = vunpack.c.l.b16 %v650
        %v851 = vunpack.c.h.b16 %v650
        %v852 = vunpack.c.l.b16 %v651
        %v853 = vunpack.c.h.b16 %v651
        %v854 = vunpack.c.l.b16 %v652
        %v855 = vunpack.c.h.b16 %v652
        %v856 = vunpack.c.l.b16 %v653
        %v857 = vunpack.c.h.b16 %v653
        %v858 = vunpack.c.l.b16 %v654
        %v859 = vunpack.c.h.b16 %v654
        %v860 = vunpack.c.l.b16 %v655
        %v861 = vunpack.c.h.b16 %v655
        %v862 = vunpack.c.l.b16 %v656
        %v863 = vunpack.c.h.b16 %v656
        %v864 = vunpack.c.l.b16 %v657
        %v865 = vunpack.c.h.b16 %v657
        %v866 = vunpack.c.l.b16 %v658
        %v867 = vunpack.c.h.b16 %v658
        %v868 = vunpack.c.l.b16 %v659
        %v869 = vunpack.c.h.b16 %v659
        %v870 = vunpack.c.l.b16 %v660
        %v871 = vunpack.c.h.b16 %v660
        %v872 = vunpack.c.l.b16 %v661
        %v873 = vunpack.c.h.b16 %v661
        %v874 = vunpack.c.l.b16 %v662
        %v875 = vunpack.c.h.b16 %v662
        %v876 = vunpack.c.l.b16 %v663
        %v877 = vunpack.c.h.b16 %v663
        %v878 = vpack.c.b16 %v754, %v750
        %v879 = vpack.c.b16 %v755, %v751
        %v880 = vpack.c.b16 %v756, %v752
        %v881 = vpack.c.b16 %v757, %v753
        %v882 = vpack.c.b16 %v762, %v758
        %v883 = vpack.c.b16 %v763, %v759
        %v884 = vpack.c.b16 %v764, %v760
        %v885 = vpack.c.b16 %v765, %v761
        %v886 = vpack.c.b16 %v770, %v766
        %v887 = vpack.c.b16 %v771, %v767
        %v888 = vpack.c.b16 %v772, %v768
        %v889 = vpack.c.b16 %v773, %v769
        %v890 = vpack.c.b16 %v778, %v774
        %v891 = vpack.c.b16 %v779, %v775
        %v892 = vpack.c.b16 %v780, %v776
        %v893 = vpack.c.b16 %v781, %v777
        %v894 = vpack.c.b16 %v786, %v782
        %v895 = vpack.c.b16 %v787, %v783
        %v896 = vpack.c.b16 %v788, %v784
        %v897 = vpack.c.b16 %v789, %v785
        %v898 = vpack.c.b16 %v794, %v790
        %v899 = vpack.c.b16 %v795, %v791
        %v900 = vpack.c.b16 %v796, %v792
        %v901 = vpack.c.b16 %v797, %v793
        %v902 = vpack.c.b16 %v802, %v798
        %v903 = vpack.c.b16 %v803, %v799
        %v904 = vpack.c.b16 %v804, %v800
        %v905 = vpack.c.b16 %v805, %v801
        %v906 = vpack.c.b16 %v810, %v806
        %v907 = vpack.c.b16 %v811, %v807
        %v908 = vpack.c.b16 %v812, %v808
        %v909 = vpack.c.b16 %v813, %v809
        %v910 = vpack.c.b16 %v818, %v814
        %v911 = vpack.c.b16 %v819, %v815
        %v912 = vpack.c.b16 %v820, %v816
        %v913 = vpack.c.b16 %v821, %v817
        %v914 = vpack.c.b16 %v826, %v822
        %v915 = vpack.c.b16 %v827, %v823
        %v916 = vpack.c.b16 %v828, %v824
        %v917 = vpack.c.b16 %v829, %v825
        %v918 = vpack.c.b16 %v834, %v830
        %v919 = vpack.c.b16 %v835, %v831
        %v920 = vpack.c.b16 %v836, %v832
        %v921 = vpack.c.b16 %v837, %v833
        %v922 = vpack.c.b16 %v842, %v838
        %v923 = vpack.c.b16 %v843, %v839
        %v924 = vpack.c.b16 %v844, %v840
        %v925 = vpack.c.b16 %v845, %v841
        %v926 = vpack.c.b16 %v850, %v846
        %v927 = vpack.c.b16 %v851, %v847
        %v928 = vpack.c.b16 %v852, %v848
        %v929 = vpack.c.b16 %v853, %v849
        %v930 = vpack.c.b16 %v858, %v854
        %v931 = vpack.c.b16 %v859, %v855
        %v932 = vpack.c.b16 %v860, %v856
        %v933 = vpack.c.b16 %v861, %v857
        %v934 = vpack.c.b16 %v866, %v862
        %v935 = vpack.c.b16 %v867, %v863
        %v936 = vpack.c.b16 %v868, %v864
        %v937 = vpack.c.b16 %v869, %v865
        %v938 = vpack.c.b16 %v874, %v870
        %v939 = vpack.c.b16 %v875, %v871
        %v940 = vpack.c.b16 %v876, %v872
        %v941 = vpack.c.b16 %v877, %v873
        %1006 = vmatprep.subr.bf16.mxu0 %v879
        %1007 = vmatpush1.bf16.msra.mxu0 %v878
        %1008 = vmatprep.subr.bf16.mxu0 %v883
        %1009 = vmatpush1.bf16.msra.mxu0 %v882
        %1010 = vmatprep.subr.bf16.mxu0 %v887
        %1011 = vmatpush1.bf16.msra.mxu0 %v886
        %1012 = vmatprep.subr.bf16.mxu0 %v891
        %1013 = vmatpush1.bf16.msra.mxu0 %v890
        %1014 = vmatprep.subr.bf16.mxu0 %v895
        %1015 = vmatpush1.bf16.msra.mxu0 %v894
        %1016 = vmatprep.subr.bf16.mxu0 %v899
        %1017 = vmatpush1.bf16.msra.mxu0 %v898
        %1018 = vmatprep.subr.bf16.mxu0 %v903
        %1019 = vmatpush1.bf16.msra.mxu0 %v902
        %1020 = vmatprep.subr.bf16.mxu0 %v907
        %1021 = vmatpush1.bf16.msra.mxu0 %v906
        %1022 = vmatprep.subr.bf16.mxu0 %v911
        %1023 = vmatpush1.bf16.msra.mxu0 %v910
        %1024 = vmatprep.subr.bf16.mxu0 %v915
        %1025 = vmatpush1.bf16.msra.mxu0 %v914
        %1026 = vmatprep.subr.bf16.mxu0 %v919
        %1027 = vmatpush1.bf16.msra.mxu0 %v918
        %1028 = vmatprep.subr.bf16.mxu0 %v923
        %1029 = vmatpush1.bf16.msra.mxu0 %v922
        %1030 = vmatprep.subr.bf16.mxu0 %v927
        %1031 = vmatpush1.bf16.msra.mxu0 %v926
        %1032 = vmatprep.subr.bf16.mxu0 %v931
        %1033 = vmatpush1.bf16.msra.mxu0 %v930
        %1034 = vmatprep.subr.bf16.mxu0 %v935
        %1035 = vmatpush1.bf16.msra.mxu0 %v934
        %1036 = vmatprep.subr.bf16.mxu0 %v939
        %1037 = vmatpush1.bf16.msra.mxu0 %v938
        %1038 = vmatprep.mubr.bf16.mxu0 %v569
        %1039 = vmatmul.mubr.bf16.gmra.mrb[0].mxu0 %v568
        %v1040 = vpop.f32.mrb[0].mxu0
        %v1041 = vadd.f32 %v669, %v1040
        %v1042 = vpop.f32.mrb[0].mxu0
        %v1043 = vadd.f32 %v673, %v1042
        %v1044 = vpop.f32.mrb[0].mxu0
        %v1045 = vadd.f32 %v669, %v1044
        %v1046 = vpop.f32.mrb[0].mxu0
        %v1047 = vadd.f32 %v673, %v1046
        %1048 = vmatprep.mubr.bf16.mxu0 %v571
        %1049 = vmatmul.mubr.bf16.gmra.mrb[0].mxu0 %v570
        %v1050 = vpop.f32.mrb[0].mxu0
        %v1051 = vadd.f32 %v669, %v1050
        %v1052 = vpop.f32.mrb[0].mxu0
        %v1053 = vadd.f32 %v673, %v1052
        %v1054 = vpop.f32.mrb[0].mxu0
        %v1055 = vadd.f32 %v669, %v1054
        %v1056 = vpop.f32.mrb[0].mxu0
        %v1057 = vadd.f32 %v673, %v1056
        %1058 = vmatprep.mubr.bf16.mxu0 %v573
        %1059 = vmatmul.mubr.bf16.gmra.mrb[0].mxu0 %v572
        %v1060 = vpop.f32.mrb[0].mxu0
        %v1061 = vadd.f32 %v669, %v1060
        %v1062 = vpop.f32.mrb[0].mxu0
        %v1063 = vadd.f32 %v673, %v1062
        %v1064 = vpop.f32.mrb[0].mxu0
        %v1065 = vadd.f32 %v669, %v1064
        %v1066 = vpop.f32.mrb[0].mxu0
        %v1067 = vadd.f32 %v673, %v1066
        %1068 = vmatprep.mubr.bf16.mxu0 %v575
        %1069 = vmatmul.mubr.bf16.gmra.mrb[0].mxu0 %v574
        %v1070 = vpop.f32.mrb[0].mxu0
        %v1071 = vadd.f32 %v669, %v1070
        %v1072 = vpop.f32.mrb[0].mxu0
        %v1073 = vadd.f32 %v673, %v1072
        %v1074 = vpop.f32.mrb[0].mxu0
        %v1075 = vadd.f32 %v669, %v1074
        %v1076 = vpop.f32.mrb[0].mxu0
        %v1077 = vadd.f32 %v673, %v1076
        %1078 = vmatprep.mubr.bf16.mxu0 %v577
        %1079 = vmatmul.mubr.bf16.gmra.mrb[0].mxu0 %v576
        %v1080 = vpop.f32.mrb[0].mxu0
        %v1081 = vadd.f32 %v669, %v1080
        %v1082 = vpop.f32.mrb[0].mxu0
        %v1083 = vadd.f32 %v673, %v1082
        %v1084 = vpop.f32.mrb[0].mxu0
        %v1085 = vadd.f32 %v669, %v1084
        %v1086 = vpop.f32.mrb[0].mxu0
        %v1087 = vadd.f32 %v673, %v1086
        %1088 = vmatprep.mubr.bf16.mxu0 %v579
        %1089 = vmatmul.mubr.bf16.gmra.mrb[0].mxu0 %v578
        %v1090 = vpop.f32.mrb[0].mxu0
        %v1091 = vadd.f32 %v669, %v1090
        %v1092 = vpop.f32.mrb[0].mxu0
        %v1093 = vadd.f32 %v673, %v1092
        %v1094 = vpop.f32.mrb[0].mxu0
        %v1095 = vadd.f32 %v669, %v1094
        %v1096 = vpop.f32.mrb[0].mxu0
        %v1097 = vadd.f32 %v673, %v1096
        %1098 = vmatprep.mubr.bf16.mxu0 %v581
        %1099 = vmatmul.mubr.bf16.gmra.mrb[0].mxu0 %v580
        %v1100 = vpop.f32.mrb[0].mxu0
        %v1101 = vadd.f32 %v669, %v1100
        %v1102 = vpop.f32.mrb[0].mxu0
        %v1103 = vadd.f32 %v673, %v1102
        %v1104 = vpop.f32.mrb[0].mxu0
        %v1105 = vadd.f32 %v669, %v1104
        %v1106 = vpop.f32.mrb[0].mxu0
        %v1107 = vadd.f32 %v673, %v1106
        %1108 = vmatprep.mubr.bf16.mxu0 %v583
        %1109 = vmatmul.mubr.bf16.gmra.mrb[0].mxu0 %v582
        %v1110 = vpop.f32.mrb[0].mxu0
        %v1111 = vadd.f32 %v669, %v1110
        %v1112 = vpop.f32.mrb[0].mxu0
        %v1113 = vadd.f32 %v673, %v1112
        %v1114 = vpop.f32.mrb[0].mxu0
        %v1115 = vadd.f32 %v669, %v1114
        %v1116 = vpop.f32.mrb[0].mxu0
        %v1117 = vadd.f32 %v673, %v1116
        %1118 = vmatprep.mubr.bf16.mxu0 %v585
        %1119 = vmatmul.mubr.bf16.gmra.mrb[0].mxu0 %v584
        %v1120 = vpop.f32.mrb[0].mxu0
        %v1121 = vadd.f32 %v669, %v1120
        %v1122 = vpop.f32.mrb[0].mxu0
        %v1123 = vadd.f32 %v673, %v1122
        %v1124 = vpop.f32.mrb[0].mxu0
        %v1125 = vadd.f32 %v669, %v1124
        %v1126 = vpop.f32.mrb[0].mxu0
        %v1127 = vadd.f32 %v673, %v1126
        %1128 = vmatprep.mubr.bf16.mxu0 %v587
        %1129 = vmatmul.mubr.bf16.gmra.mrb[0].mxu0 %v586
        %v1130 = vpop.f32.mrb[0].mxu0
        %v1131 = vadd.f32 %v669, %v1130
        %v1132 = vpop.f32.mrb[0].mxu0
        %v1133 = vadd.f32 %v673, %v1132
        %v1134 = vpop.f32.mrb[0].mxu0
        %v1135 = vadd.f32 %v669, %v1134
        %v1136 = vpop.f32.mrb[0].mxu0
        %v1137 = vadd.f32 %v673, %v1136
        %1138 = vmatprep.mubr.bf16.mxu0 %v589
        %1139 = vmatmul.mubr.bf16.gmra.mrb[0].mxu0 %v588
        %v1140 = vpop.f32.mrb[0].mxu0
        %v1141 = vadd.f32 %v669, %v1140
        %v1142 = vpop.f32.mrb[0].mxu0
        %v1143 = vadd.f32 %v673, %v1142
        %v1144 = vpop.f32.mrb[0].mxu0
        %v1145 = vadd.f32 %v669, %v1144
        %v1146 = vpop.f32.mrb[0].mxu0
        %v1147 = vadd.f32 %v673, %v1146
        %1148 = vmatprep.mubr.bf16.mxu0 %v591
        %1149 = vmatmul.mubr.bf16.gmra.mrb[0].mxu0 %v590
        %v1150 = vpop.f32.mrb[0].mxu0
        %v1151 = vadd.f32 %v669, %v1150
        %v1152 = vpop.f32.mrb[0].mxu0
        %v1153 = vadd.f32 %v673, %v1152
        %v1154 = vpop.f32.mrb[0].mxu0
        %v1155 = vadd.f32 %v669, %v1154
        %v1156 = vpop.f32.mrb[0].mxu0
        %v1157 = vadd.f32 %v673, %v1156
        %1158 = vmatprep.mubr.bf16.mxu0 %v593
        %1159 = vmatmul.mubr.bf16.gmra.mrb[0].mxu0 %v592
        %v1160 = vpop.f32.mrb[0].mxu0
        %v1161 = vadd.f32 %v669, %v1160
        %v1162 = vpop.f32.mrb[0].mxu0
        %v1163 = vadd.f32 %v673, %v1162
        %v1164 = vpop.f32.mrb[0].mxu0
        %v1165 = vadd.f32 %v669, %v1164
        %v1166 = vpop.f32.mrb[0].mxu0
        %v1167 = vadd.f32 %v673, %v1166
        %1168 = vmatprep.mubr.bf16.mxu0 %v595
        %1169 = vmatmul.mubr.bf16.gmra.mrb[0].mxu0 %v594
        %v1170 = vpop.f32.mrb[0].mxu0
        %v1171 = vadd.f32 %v669, %v1170
        %v1172 = vpop.f32.mrb[0].mxu0
        %v1173 = vadd.f32 %v673, %v1172
        %v1174 = vpop.f32.mrb[0].mxu0
        %v1175 = vadd.f32 %v669, %v1174
        %v1176 = vpop.f32.mrb[0].mxu0
        %v1177 = vadd.f32 %v673, %v1176
        %1178 = vmatprep.mubr.bf16.mxu0 %v597
        %1179 = vmatmul.mubr.bf16.gmra.mrb[0].mxu0 %v596
        %v1180 = vpop.f32.mrb[0].mxu0
        %v1181 = vadd.f32 %v669, %v1180
        %v1182 = vpop.f32.mrb[0].mxu0
        %v1183 = vadd.f32 %v673, %v1182
        %v1184 = vpop.f32.mrb[0].mxu0
        %v1185 = vadd.f32 %v669, %v1184
        %v1186 = vpop.f32.mrb[0].mxu0
        %v1187 = vadd.f32 %v673, %v1186
        %1188 = vmatprep.mubr.bf16.mxu0 %v599
        %1189 = vmatmul.mubr.bf16.gmra.mrb[0].mxu0 %v598
        %v1190 = vpop.f32.mrb[0].mxu0
        %v1191 = vadd.f32 %v669, %v1190
        %v1192 = vpop.f32.mrb[0].mxu0
        %v1193 = vadd.f32 %v673, %v1192
        %v1194 = vpop.f32.mrb[0].mxu0
        %v1195 = vadd.f32 %v669, %v1194
        %v1196 = vpop.f32.mrb[0].mxu0
        %v1197 = vadd.f32 %v673, %v1196
        %1198 = vdwg.mxu0
        %1199 = vmatprep.subr.bf16.mxu0 %v881
        %1200 = vmatpush1.bf16.msra.mxu0 %v880
        %1201 = vmatprep.subr.bf16.mxu0 %v885
        %1202 = vmatpush1.bf16.msra.mxu0 %v884
        %1203 = vmatprep.subr.bf16.mxu0 %v889
        %1204 = vmatpush1.bf16.msra.mxu0 %v888
        %1205 = vmatprep.subr.bf16.mxu0 %v893
        %1206 = vmatpush1.bf16.msra.mxu0 %v892
        %1207 = vmatprep.subr.bf16.mxu0 %v897
        %1208 = vmatpush1.bf16.msra.mxu0 %v896
        %1209 = vmatprep.subr.bf16.mxu0 %v901
        %1210 = vmatpush1.bf16.msra.mxu0 %v900
        %1211 = vmatprep.subr.bf16.mxu0 %v905
        %1212 = vmatpush1.bf16.msra.mxu0 %v904
        %1213 = vmatprep.subr.bf16.mxu0 %v909
        %1214 = vmatpush1.bf16.msra.mxu0 %v908
        %1215 = vmatprep.subr.bf16.mxu0 %v913
        %1216 = vmatpush1.bf16.msra.mxu0 %v912
        %1217 = vmatprep.subr.bf16.mxu0 %v917
        %1218 = vmatpush1.bf16.msra.mxu0 %v916
        %1219 = vmatprep.subr.bf16.mxu0 %v921
        %1220 = vmatpush1.bf16.msra.mxu0 %v920
        %1221 = vmatprep.subr.bf16.mxu0 %v925
        %1222 = vmatpush1.bf16.msra.mxu0 %v924
        %1223 = vmatprep.subr.bf16.mxu0 %v929
        %1224 = vmatpush1.bf16.msra.mxu0 %v928
        %1225 = vmatprep.subr.bf16.mxu0 %v933
        %1226 = vmatpush1.bf16.msra.mxu0 %v932
        %1227 = vmatprep.subr.bf16.mxu0 %v937
        %1228 = vmatpush1.bf16.msra.mxu0 %v936
        %1229 = vmatprep.subr.bf16.mxu0 %v941
        %1230 = vmatpush1.bf16.msra.mxu0 %v940
        %1231 = vmatprep.mubr.bf16.mxu0 %v569
        %1232 = vmatmul.mubr.bf16.gmra.mrb[0].mxu0 %v568
        %v1233 = vpop.f32.mrb[0].mxu0
        %v1234 = vadd.f32 %v677, %v1233
        %v1235 = vpop.f32.mrb[0].mxu0
        %v1236 = vadd.f32 %v681, %v1235
        %v1237 = vpop.f32.mrb[0].mxu0
        %v1238 = vadd.f32 %v677, %v1237
        %v1239 = vpop.f32.mrb[0].mxu0
        %v1240 = vadd.f32 %v681, %v1239
        %1241 = vmatprep.mubr.bf16.mxu0 %v571
        %1242 = vmatmul.mubr.bf16.gmra.mrb[0].mxu0 %v570
        %v1243 = vpop.f32.mrb[0].mxu0
        %v1244 = vadd.f32 %v677, %v1243
        %v1245 = vpop.f32.mrb[0].mxu0
        %v1246 = vadd.f32 %v681, %v1245
        %v1247 = vpop.f32.mrb[0].mxu0
        %v1248 = vadd.f32 %v677, %v1247
        %v1249 = vpop.f32.mrb[0].mxu0
        %v1250 = vadd.f32 %v681, %v1249
        %1251 = vmatprep.mubr.bf16.mxu0 %v573
        %1252 = vmatmul.mubr.bf16.gmra.mrb[0].mxu0 %v572
        %v1253 = vpop.f32.mrb[0].mxu0
        %v1254 = vadd.f32 %v677, %v1253
        %v1255 = vpop.f32.mrb[0].mxu0
        %v1256 = vadd.f32 %v681, %v1255
        %v1257 = vpop.f32.mrb[0].mxu0
        %v1258 = vadd.f32 %v677, %v1257
        %v1259 = vpop.f32.mrb[0].mxu0
        %v1260 = vadd.f32 %v681, %v1259
        %1261 = vmatprep.mubr.bf16.mxu0 %v575
        %1262 = vmatmul.mubr.bf16.gmra.mrb[0].mxu0 %v574
        %v1263 = vpop.f32.mrb[0].mxu0
        %v1264 = vadd.f32 %v677, %v1263
        %v1265 = vpop.f32.mrb[0].mxu0
        %v1266 = vadd.f32 %v681, %v1265
        %v1267 = vpop.f32.mrb[0].mxu0
        %v1268 = vadd.f32 %v677, %v1267
        %v1269 = vpop.f32.mrb[0].mxu0
        %v1270 = vadd.f32 %v681, %v1269
        %1271 = vmatprep.mubr.bf16.mxu0 %v577
        %1272 = vmatmul.mubr.bf16.gmra.mrb[0].mxu0 %v576
        %v1273 = vpop.f32.mrb[0].mxu0
        %v1274 = vadd.f32 %v677, %v1273
        %v1275 = vpop.f32.mrb[0].mxu0
        %v1276 = vadd.f32 %v681, %v1275
        %v1277 = vpop.f32.mrb[0].mxu0
        %v1278 = vadd.f32 %v677, %v1277
        %v1279 = vpop.f32.mrb[0].mxu0
        %v1280 = vadd.f32 %v681, %v1279
        %1281 = vmatprep.mubr.bf16.mxu0 %v579
        %1282 = vmatmul.mubr.bf16.gmra.mrb[0].mxu0 %v578
        %v1283 = vpop.f32.mrb[0].mxu0
        %v1284 = vadd.f32 %v677, %v1283
        %v1285 = vpop.f32.mrb[0].mxu0
        %v1286 = vadd.f32 %v681, %v1285
        %v1287 = vpop.f32.mrb[0].mxu0
        %v1288 = vadd.f32 %v677, %v1287
        %v1289 = vpop.f32.mrb[0].mxu0
        %v1290 = vadd.f32 %v681, %v1289
        %1291 = vmatprep.mubr.bf16.mxu0 %v581
        %1292 = vmatmul.mubr.bf16.gmra.mrb[0].mxu0 %v580
        %v1293 = vpop.f32.mrb[0].mxu0
        %v1294 = vadd.f32 %v677, %v1293
        %v1295 = vpop.f32.mrb[0].mxu0
        %v1296 = vadd.f32 %v681, %v1295
        %v1297 = vpop.f32.mrb[0].mxu0
        %v1298 = vadd.f32 %v677, %v1297
        %v1299 = vpop.f32.mrb[0].mxu0
        %v1300 = vadd.f32 %v681, %v1299
        %1301 = vmatprep.mubr.bf16.mxu0 %v583
        %1302 = vmatmul.mubr.bf16.gmra.mrb[0].mxu0 %v582
        %v1303 = vpop.f32.mrb[0].mxu0
        %v1304 = vadd.f32 %v677, %v1303
        %v1305 = vpop.f32.mrb[0].mxu0
        %v1306 = vadd.f32 %v681, %v1305
        %v1307 = vpop.f32.mrb[0].mxu0
        %v1308 = vadd.f32 %v677, %v1307
        %v1309 = vpop.f32.mrb[0].mxu0
        %v1310 = vadd.f32 %v681, %v1309
        %1311 = vmatprep.mubr.bf16.mxu0 %v585
        %1312 = vmatmul.mubr.bf16.gmra.mrb[0].mxu0 %v584
        %v1313 = vpop.f32.mrb[0].mxu0
        %v1314 = vadd.f32 %v677, %v1313
        %v1315 = vpop.f32.mrb[0].mxu0
        %v1316 = vadd.f32 %v681, %v1315
        %v1317 = vpop.f32.mrb[0].mxu0
        %v1318 = vadd.f32 %v677, %v1317
        %v1319 = vpop.f32.mrb[0].mxu0
        %v1320 = vadd.f32 %v681, %v1319
        %1321 = vmatprep.mubr.bf16.mxu0 %v587
        %1322 = vmatmul.mubr.bf16.gmra.mrb[0].mxu0 %v586
        %v1323 = vpop.f32.mrb[0].mxu0
        %v1324 = vadd.f32 %v677, %v1323
        %v1325 = vpop.f32.mrb[0].mxu0
        %v1326 = vadd.f32 %v681, %v1325
        %v1327 = vpop.f32.mrb[0].mxu0
        %v1328 = vadd.f32 %v677, %v1327
        %v1329 = vpop.f32.mrb[0].mxu0
        %v1330 = vadd.f32 %v681, %v1329
        %1331 = vmatprep.mubr.bf16.mxu0 %v589
        %1332 = vmatmul.mubr.bf16.gmra.mrb[0].mxu0 %v588
        %v1333 = vpop.f32.mrb[0].mxu0
        %v1334 = vadd.f32 %v677, %v1333
        %v1335 = vpop.f32.mrb[0].mxu0
        %v1336 = vadd.f32 %v681, %v1335
        %v1337 = vpop.f32.mrb[0].mxu0
        %v1338 = vadd.f32 %v677, %v1337
        %v1339 = vpop.f32.mrb[0].mxu0
        %v1340 = vadd.f32 %v681, %v1339
        %1341 = vmatprep.mubr.bf16.mxu0 %v591
        %1342 = vmatmul.mubr.bf16.gmra.mrb[0].mxu0 %v590
        %v1343 = vpop.f32.mrb[0].mxu0
        %v1344 = vadd.f32 %v677, %v1343
        %v1345 = vpop.f32.mrb[0].mxu0
        %v1346 = vadd.f32 %v681, %v1345
        %v1347 = vpop.f32.mrb[0].mxu0
        %v1348 = vadd.f32 %v677, %v1347
        %v1349 = vpop.f32.mrb[0].mxu0
        %v1350 = vadd.f32 %v681, %v1349
        %1351 = vmatprep.mubr.bf16.mxu0 %v593
        %1352 = vmatmul.mubr.bf16.gmra.mrb[0].mxu0 %v592
        %v1353 = vpop.f32.mrb[0].mxu0
        %v1354 = vadd.f32 %v677, %v1353
        %v1355 = vpop.f32.mrb[0].mxu0
        %v1356 = vadd.f32 %v681, %v1355
        %v1357 = vpop.f32.mrb[0].mxu0
        %v1358 = vadd.f32 %v677, %v1357
        %v1359 = vpop.f32.mrb[0].mxu0
        %v1360 = vadd.f32 %v681, %v1359
        %1361 = vmatprep.mubr.bf16.mxu0 %v595
        %1362 = vmatmul.mubr.bf16.gmra.mrb[0].mxu0 %v594
        %v1363 = vpop.f32.mrb[0].mxu0
        %v1364 = vadd.f32 %v677, %v1363
        %v1365 = vpop.f32.mrb[0].mxu0
        %v1366 = vadd.f32 %v681, %v1365
        %v1367 = vpop.f32.mrb[0].mxu0
        %v1368 = vadd.f32 %v677, %v1367
        %v1369 = vpop.f32.mrb[0].mxu0
        %v1370 = vadd.f32 %v681, %v1369
        %1371 = vmatprep.mubr.bf16.mxu0 %v597
        %1372 = vmatmul.mubr.bf16.gmra.mrb[0].mxu0 %v596
        %v1373 = vpop.f32.mrb[0].mxu0
        %v1374 = vadd.f32 %v677, %v1373
        %v1375 = vpop.f32.mrb[0].mxu0
        %v1376 = vadd.f32 %v681, %v1375
        %v1377 = vpop.f32.mrb[0].mxu0
        %v1378 = vadd.f32 %v677, %v1377
        %v1379 = vpop.f32.mrb[0].mxu0
        %v1380 = vadd.f32 %v681, %v1379
        %1381 = vmatprep.mubr.bf16.mxu0 %v599
        %1382 = vmatmul.mubr.bf16.gmra.mrb[0].mxu0 %v598
        %v1383 = vpop.f32.mrb[0].mxu0
        %v1384 = vadd.f32 %v677, %v1383
        %v1385 = vpop.f32.mrb[0].mxu0
        %v1386 = vadd.f32 %v681, %v1385
        %v1387 = vpop.f32.mrb[0].mxu0
        %v1388 = vadd.f32 %v677, %v1387
        %v1389 = vpop.f32.mrb[0].mxu0
        %v1390 = vadd.f32 %v681, %v1389
        %1391 = vdwg.mxu0
        %v1392 = vpack.c.bf16 %v1045, %v1041
        %v1393 = vpack.c.bf16 %v1047, %v1043
        %v1394 = vpack.c.bf16 %v1238, %v1234
        %v1395 = vpack.c.bf16 %v1240, %v1236
        %v1396 = vpack.c.bf16 %v1055, %v1051
        %v1397 = vpack.c.bf16 %v1057, %v1053
        %v1398 = vpack.c.bf16 %v1248, %v1244
        %v1399 = vpack.c.bf16 %v1250, %v1246
        %v1400 = vpack.c.bf16 %v1065, %v1061
        %v1401 = vpack.c.bf16 %v1067, %v1063
        %v1402 = vpack.c.bf16 %v1258, %v1254
        %v1403 = vpack.c.bf16 %v1260, %v1256
        %v1404 = vpack.c.bf16 %v1075, %v1071
        %v1405 = vpack.c.bf16 %v1077, %v1073
        %v1406 = vpack.c.bf16 %v1268, %v1264
        %v1407 = vpack.c.bf16 %v1270, %v1266
        %v1408 = vpack.c.bf16 %v1085, %v1081
        %v1409 = vpack.c.bf16 %v1087, %v1083
        %v1410 = vpack.c.bf16 %v1278, %v1274
        %v1411 = vpack.c.bf16 %v1280, %v1276
        %v1412 = vpack.c.bf16 %v1095, %v1091
        %v1413 = vpack.c.bf16 %v1097, %v1093
        %v1414 = vpack.c.bf16 %v1288, %v1284
        %v1415 = vpack.c.bf16 %v1290, %v1286
        %v1416 = vpack.c.bf16 %v1105, %v1101
        %v1417 = vpack.c.bf16 %v1107, %v1103
        %v1418 = vpack.c.bf16 %v1298, %v1294
        %v1419 = vpack.c.bf16 %v1300, %v1296
        %v1420 = vpack.c.bf16 %v1115, %v1111
        %v1421 = vpack.c.bf16 %v1117, %v1113
        %v1422 = vpack.c.bf16 %v1308, %v1304
        %v1423 = vpack.c.bf16 %v1310, %v1306
        %v1424 = vpack.c.bf16 %v1125, %v1121
        %v1425 = vpack.c.bf16 %v1127, %v1123
        %v1426 = vpack.c.bf16 %v1318, %v1314
        %v1427 = vpack.c.bf16 %v1320, %v1316
        %v1428 = vpack.c.bf16 %v1135, %v1131
        %v1429 = vpack.c.bf16 %v1137, %v1133
        %v1430 = vpack.c.bf16 %v1328, %v1324
        %v1431 = vpack.c.bf16 %v1330, %v1326
        %v1432 = vpack.c.bf16 %v1145, %v1141
        %v1433 = vpack.c.bf16 %v1147, %v1143
        %v1434 = vpack.c.bf16 %v1338, %v1334
        %v1435 = vpack.c.bf16 %v1340, %v1336
        %v1436 = vpack.c.bf16 %v1155, %v1151
        %v1437 = vpack.c.bf16 %v1157, %v1153
        %v1438 = vpack.c.bf16 %v1348, %v1344
        %v1439 = vpack.c.bf16 %v1350, %v1346
        %v1440 = vpack.c.bf16 %v1165, %v1161
        %v1441 = vpack.c.bf16 %v1167, %v1163
        %v1442 = vpack.c.bf16 %v1358, %v1354
        %v1443 = vpack.c.bf16 %v1360, %v1356
        %v1444 = vpack.c.bf16 %v1175, %v1171
        %v1445 = vpack.c.bf16 %v1177, %v1173
        %v1446 = vpack.c.bf16 %v1368, %v1364
        %v1447 = vpack.c.bf16 %v1370, %v1366
        %v1448 = vpack.c.bf16 %v1185, %v1181
        %v1449 = vpack.c.bf16 %v1187, %v1183
        %v1450 = vpack.c.bf16 %v1378, %v1374
        %v1451 = vpack.c.bf16 %v1380, %v1376
        %v1452 = vpack.c.bf16 %v1195, %v1191
        %v1453 = vpack.c.bf16 %v1197, %v1193
        %v1454 = vpack.c.bf16 %v1388, %v1384
        %v1455 = vpack.c.bf16 %v1390, %v1386
        %v1456 = vld [vmem:[#allocation8] sm:$0xff]
        %v1457 = vld [vmem:[#allocation8 + $0x8] sm:$0xff]
        %v1458 = vld [vmem:[#allocation8 + $0x10] sm:$0xff]
        %v1459 = vld [vmem:[#allocation8 + $0x18] sm:$0xff]
        %v1460 = vld [vmem:[#allocation8 + $0x20] sm:$0xff]
        %v1461 = vld [vmem:[#allocation8 + $0x28] sm:$0xff]
        %v1462 = vld [vmem:[#allocation8 + $0x30] sm:$0xff]
        %v1463 = vld [vmem:[#allocation8 + $0x38] sm:$0xff]
        %v1464 = vld [vmem:[#allocation8 + $0x40] sm:$0xff]
        %v1465 = vld [vmem:[#allocation8 + $0x48] sm:$0xff]
        %v1466 = vld [vmem:[#allocation8 + $0x50] sm:$0xff]
        %v1467 = vld [vmem:[#allocation8 + $0x58] sm:$0xff]
        %v1468 = vld [vmem:[#allocation8 + $0x60] sm:$0xff]
        %v1469 = vld [vmem:[#allocation8 + $0x68] sm:$0xff]
        %v1470 = vld [vmem:[#allocation8 + $0x70] sm:$0xff]
        %v1471 = vld [vmem:[#allocation8 + $0x78] sm:$0xff]
        %v1472 = vld [vmem:[#allocation8 + $0x80] sm:$0xff]
        %v1473 = vld [vmem:[#allocation8 + $0x88] sm:$0xff]
        %v1474 = vld [vmem:[#allocation8 + $0x90] sm:$0xff]
        %v1475 = vld [vmem:[#allocation8 + $0x98] sm:$0xff]
        %v1476 = vld [vmem:[#allocation8 + $0xa0] sm:$0xff]
        %v1477 = vld [vmem:[#allocation8 + $0xa8] sm:$0xff]
        %v1478 = vld [vmem:[#allocation8 + $0xb0] sm:$0xff]
        %v1479 = vld [vmem:[#allocation8 + $0xb8] sm:$0xff]
        %v1480 = vld [vmem:[#allocation8 + $0xc0] sm:$0xff]
        %v1481 = vld [vmem:[#allocation8 + $0xc8] sm:$0xff]
        %v1482 = vld [vmem:[#allocation8 + $0xd0] sm:$0xff]
        %v1483 = vld [vmem:[#allocation8 + $0xd8] sm:$0xff]
        %v1484 = vld [vmem:[#allocation8 + $0xe0] sm:$0xff]
        %v1485 = vld [vmem:[#allocation8 + $0xe8] sm:$0xff]
        %v1486 = vld [vmem:[#allocation8 + $0xf0] sm:$0xff]
        %v1487 = vld [vmem:[#allocation8 + $0xf8] sm:$0xff]
        %v1488 = vld [vmem:[#allocation8 + $0x100] sm:$0xff]
        %v1489 = vld [vmem:[#allocation8 + $0x108] sm:$0xff]
        %v1490 = vld [vmem:[#allocation8 + $0x110] sm:$0xff]
        %v1491 = vld [vmem:[#allocation8 + $0x118] sm:$0xff]
        %v1492 = vld [vmem:[#allocation8 + $0x120] sm:$0xff]
        %v1493 = vld [vmem:[#allocation8 + $0x128] sm:$0xff]
        %v1494 = vld [vmem:[#allocation8 + $0x130] sm:$0xff]
        %v1495 = vld [vmem:[#allocation8 + $0x138] sm:$0xff]
        %v1496 = vld [vmem:[#allocation8 + $0x140] sm:$0xff]
        %v1497 = vld [vmem:[#allocation8 + $0x148] sm:$0xff]
        %v1498 = vld [vmem:[#allocation8 + $0x150] sm:$0xff]
        %v1499 = vld [vmem:[#allocation8 + $0x158] sm:$0xff]
        %v1500 = vld [vmem:[#allocation8 + $0x160] sm:$0xff]
        %v1501 = vld [vmem:[#allocation8 + $0x168] sm:$0xff]
        %v1502 = vld [vmem:[#allocation8 + $0x170] sm:$0xff]
        %v1503 = vld [vmem:[#allocation8 + $0x178] sm:$0xff]
        %v1504 = vld [vmem:[#allocation8 + $0x180] sm:$0xff]
        %v1505 = vld [vmem:[#allocation8 + $0x188] sm:$0xff]
        %v1506 = vld [vmem:[#allocation8 + $0x190] sm:$0xff]
        %v1507 = vld [vmem:[#allocation8 + $0x198] sm:$0xff]
        %v1508 = vld [vmem:[#allocation8 + $0x1a0] sm:$0xff]
        %v1509 = vld [vmem:[#allocation8 + $0x1a8] sm:$0xff]
        %v1510 = vld [vmem:[#allocation8 + $0x1b0] sm:$0xff]
        %v1511 = vld [vmem:[#allocation8 + $0x1b8] sm:$0xff]
        %v1512 = vld [vmem:[#allocation8 + $0x1c0] sm:$0xff]
        %v1513 = vld [vmem:[#allocation8 + $0x1c8] sm:$0xff]
        %v1514 = vld [vmem:[#allocation8 + $0x1d0] sm:$0xff]
        %v1515 = vld [vmem:[#allocation8 + $0x1d8] sm:$0xff]
        %v1516 = vld [vmem:[#allocation8 + $0x1e0] sm:$0xff]
        %v1517 = vld [vmem:[#allocation8 + $0x1e8] sm:$0xff]
        %v1518 = vld [vmem:[#allocation8 + $0x1f0] sm:$0xff]
        %v1519 = vld [vmem:[#allocation8 + $0x1f8] sm:$0xff]
        %v1520 = vld [vmem:[#allocation8 + $0x200] sm:$0xff]
        %v1521 = vld [vmem:[#allocation8 + $0x208] sm:$0xff]
        %v1522 = vld [vmem:[#allocation8 + $0x210] sm:$0xff]
        %v1523 = vld [vmem:[#allocation8 + $0x218] sm:$0xff]
        %v1524 = vld [vmem:[#allocation8 + $0x220] sm:$0xff]
        %v1525 = vld [vmem:[#allocation8 + $0x228] sm:$0xff]
        %v1526 = vld [vmem:[#allocation8 + $0x230] sm:$0xff]
        %v1527 = vld [vmem:[#allocation8 + $0x238] sm:$0xff]
        %v1528 = vld [vmem:[#allocation8 + $0x240] sm:$0xff]
        %v1529 = vld [vmem:[#allocation8 + $0x248] sm:$0xff]
        %v1530 = vld [vmem:[#allocation8 + $0x250] sm:$0xff]
        %v1531 = vld [vmem:[#allocation8 + $0x258] sm:$0xff]
        %v1532 = vld [vmem:[#allocation8 + $0x260] sm:$0xff]
        %v1533 = vld [vmem:[#allocation8 + $0x268] sm:$0xff]
        %v1534 = vld [vmem:[#allocation8 + $0x270] sm:$0xff]
        %v1535 = vld [vmem:[#allocation8 + $0x278] sm:$0xff]
        %v1536 = vld [vmem:[#allocation8 + $0x280] sm:$0xff]
        %v1537 = vld [vmem:[#allocation8 + $0x288] sm:$0xff]
        %v1538 = vld [vmem:[#allocation8 + $0x290] sm:$0xff]
        %v1539 = vld [vmem:[#allocation8 + $0x298] sm:$0xff]
        %v1540 = vld [vmem:[#allocation8 + $0x2a0] sm:$0xff]
        %v1541 = vld [vmem:[#allocation8 + $0x2a8] sm:$0xff]
        %v1542 = vld [vmem:[#allocation8 + $0x2b0] sm:$0xff]
        %v1543 = vld [vmem:[#allocation8 + $0x2b8] sm:$0xff]
        %v1544 = vld [vmem:[#allocation8 + $0x2c0] sm:$0xff]
        %v1545 = vld [vmem:[#allocation8 + $0x2c8] sm:$0xff]
        %v1546 = vld [vmem:[#allocation8 + $0x2d0] sm:$0xff]
        %v1547 = vld [vmem:[#allocation8 + $0x2d8] sm:$0xff]
        %v1548 = vld [vmem:[#allocation8 + $0x2e0] sm:$0xff]
        %v1549 = vld [vmem:[#allocation8 + $0x2e8] sm:$0xff]
        %v1550 = vld [vmem:[#allocation8 + $0x2f0] sm:$0xff]
        %v1551 = vld [vmem:[#allocation8 + $0x2f8] sm:$0xff]
        %v1552 = vld [vmem:[#allocation8 + $0x300] sm:$0xff]
        %v1553 = vld [vmem:[#allocation8 + $0x308] sm:$0xff]
        %v1554 = vld [vmem:[#allocation8 + $0x310] sm:$0xff]
        %v1555 = vld [vmem:[#allocation8 + $0x318] sm:$0xff]
        %v1556 = vld [vmem:[#allocation8 + $0x320] sm:$0xff]
        %v1557 = vld [vmem:[#allocation8 + $0x328] sm:$0xff]
        %v1558 = vld [vmem:[#allocation8 + $0x330] sm:$0xff]
        %v1559 = vld [vmem:[#allocation8 + $0x338] sm:$0xff]
        %v1560 = vld [vmem:[#allocation8 + $0x340] sm:$0xff]
        %v1561 = vld [vmem:[#allocation8 + $0x348] sm:$0xff]
        %v1562 = vld [vmem:[#allocation8 + $0x350] sm:$0xff]
        %v1563 = vld [vmem:[#allocation8 + $0x358] sm:$0xff]
        %v1564 = vld [vmem:[#allocation8 + $0x360] sm:$0xff]
        %v1565 = vld [vmem:[#allocation8 + $0x368] sm:$0xff]
        %v1566 = vld [vmem:[#allocation8 + $0x370] sm:$0xff]
        %v1567 = vld [vmem:[#allocation8 + $0x378] sm:$0xff]
        %v1568 = vld [vmem:[#allocation8 + $0x380] sm:$0xff]
        %v1569 = vld [vmem:[#allocation8 + $0x388] sm:$0xff]
        %v1570 = vld [vmem:[#allocation8 + $0x390] sm:$0xff]
        %v1571 = vld [vmem:[#allocation8 + $0x398] sm:$0xff]
        %v1572 = vld [vmem:[#allocation8 + $0x3a0] sm:$0xff]
        %v1573 = vld [vmem:[#allocation8 + $0x3a8] sm:$0xff]
        %v1574 = vld [vmem:[#allocation8 + $0x3b0] sm:$0xff]
        %v1575 = vld [vmem:[#allocation8 + $0x3b8] sm:$0xff]
        %v1576 = vld [vmem:[#allocation8 + $0x3c0] sm:$0xff]
        %v1577 = vld [vmem:[#allocation8 + $0x3c8] sm:$0xff]
        %v1578 = vld [vmem:[#allocation8 + $0x3d0] sm:$0xff]
        %v1579 = vld [vmem:[#allocation8 + $0x3d8] sm:$0xff]
        %v1580 = vld [vmem:[#allocation8 + $0x3e0] sm:$0xff]
        %v1581 = vld [vmem:[#allocation8 + $0x3e8] sm:$0xff]
        %v1582 = vld [vmem:[#allocation8 + $0x3f0] sm:$0xff]
        %v1583 = vld [vmem:[#allocation8 + $0x3f8] sm:$0xff]
        %v1584 = vld [vmem:[#allocation8 + $0x400] sm:$0xff]
        %v1585 = vld [vmem:[#allocation8 + $0x408] sm:$0xff]
        %v1586 = vld [vmem:[#allocation8 + $0x410] sm:$0xff]
        %v1587 = vld [vmem:[#allocation8 + $0x418] sm:$0xff]
        %v1588 = vld [vmem:[#allocation8 + $0x420] sm:$0xff]
        %v1589 = vld [vmem:[#allocation8 + $0x428] sm:$0xff]
        %v1590 = vld [vmem:[#allocation8 + $0x430] sm:$0xff]
        %v1591 = vld [vmem:[#allocation8 + $0x438] sm:$0xff]
        %v1592 = vld [vmem:[#allocation8 + $0x440] sm:$0xff]
        %v1593 = vld [vmem:[#allocation8 + $0x448] sm:$0xff]
        %v1594 = vld [vmem:[#allocation8 + $0x450] sm:$0xff]
        %v1595 = vld [vmem:[#allocation8 + $0x458] sm:$0xff]
        %v1596 = vld [vmem:[#allocation8 + $0x460] sm:$0xff]
        %v1597 = vld [vmem:[#allocation8 + $0x468] sm:$0xff]
        %v1598 = vld [vmem:[#allocation8 + $0x470] sm:$0xff]
        %v1599 = vld [vmem:[#allocation8 + $0x478] sm:$0xff]
        %v1600 = vld [vmem:[#allocation8 + $0x480] sm:$0xff]
        %v1601 = vld [vmem:[#allocation8 + $0x488] sm:$0xff]
        %v1602 = vld [vmem:[#allocation8 + $0x490] sm:$0xff]
        %v1603 = vld [vmem:[#allocation8 + $0x498] sm:$0xff]
        %v1604 = vld [vmem:[#allocation8 + $0x4a0] sm:$0xff]
        %v1605 = vld [vmem:[#allocation8 + $0x4a8] sm:$0xff]
        %v1606 = vld [vmem:[#allocation8 + $0x4b0] sm:$0xff]
        %v1607 = vld [vmem:[#allocation8 + $0x4b8] sm:$0xff]
        %v1608 = vld [vmem:[#allocation8 + $0x4c0] sm:$0xff]
        %v1609 = vld [vmem:[#allocation8 + $0x4c8] sm:$0xff]
        %v1610 = vld [vmem:[#allocation8 + $0x4d0] sm:$0xff]
        %v1611 = vld [vmem:[#allocation8 + $0x4d8] sm:$0xff]
        %v1612 = vld [vmem:[#allocation8 + $0x4e0] sm:$0xff]
        %v1613 = vld [vmem:[#allocation8 + $0x4e8] sm:$0xff]
        %v1614 = vld [vmem:[#allocation8 + $0x4f0] sm:$0xff]
        %v1615 = vld [vmem:[#allocation8 + $0x4f8] sm:$0xff]
        %v1616 = vld [vmem:[#allocation8 + $0x500] sm:$0xff]
        %v1617 = vld [vmem:[#allocation8 + $0x508] sm:$0xff]
        %v1618 = vld [vmem:[#allocation8 + $0x510] sm:$0xff]
        %v1619 = vld [vmem:[#allocation8 + $0x518] sm:$0xff]
        %v1620 = vld [vmem:[#allocation8 + $0x520] sm:$0xff]
        %v1621 = vld [vmem:[#allocation8 + $0x528] sm:$0xff]
        %v1622 = vld [vmem:[#allocation8 + $0x530] sm:$0xff]
        %v1623 = vld [vmem:[#allocation8 + $0x538] sm:$0xff]
        %v1624 = vld [vmem:[#allocation8 + $0x540] sm:$0xff]
        %v1625 = vld [vmem:[#allocation8 + $0x548] sm:$0xff]
        %v1626 = vld [vmem:[#allocation8 + $0x550] sm:$0xff]
        %v1627 = vld [vmem:[#allocation8 + $0x558] sm:$0xff]
        %v1628 = vld [vmem:[#allocation8 + $0x560] sm:$0xff]
        %v1629 = vld [vmem:[#allocation8 + $0x568] sm:$0xff]
        %v1630 = vld [vmem:[#allocation8 + $0x570] sm:$0xff]
        %v1631 = vld [vmem:[#allocation8 + $0x578] sm:$0xff]
        %v1632 = vld [vmem:[#allocation8 + $0x580] sm:$0xff]
        %v1633 = vld [vmem:[#allocation8 + $0x588] sm:$0xff]
        %v1634 = vld [vmem:[#allocation8 + $0x590] sm:$0xff]
        %v1635 = vld [vmem:[#allocation8 + $0x598] sm:$0xff]
        %v1636 = vld [vmem:[#allocation8 + $0x5a0] sm:$0xff]
        %v1637 = vld [vmem:[#allocation8 + $0x5a8] sm:$0xff]
        %v1638 = vld [vmem:[#allocation8 + $0x5b0] sm:$0xff]
        %v1639 = vld [vmem:[#allocation8 + $0x5b8] sm:$0xff]
        %v1640 = vld [vmem:[#allocation8 + $0x5c0] sm:$0xff]
        %v1641 = vld [vmem:[#allocation8 + $0x5c8] sm:$0xff]
        %v1642 = vld [vmem:[#allocation8 + $0x5d0] sm:$0xff]
        %v1643 = vld [vmem:[#allocation8 + $0x5d8] sm:$0xff]
        %v1644 = vld [vmem:[#allocation8 + $0x5e0] sm:$0xff]
        %v1645 = vld [vmem:[#allocation8 + $0x5e8] sm:$0xff]
        %v1646 = vld [vmem:[#allocation8 + $0x5f0] sm:$0xff]
        %v1647 = vld [vmem:[#allocation8 + $0x5f8] sm:$0xff]
        %v1648 = vld [vmem:[#allocation8 + $0x600] sm:$0xff]
        %v1649 = vld [vmem:[#allocation8 + $0x608] sm:$0xff]
        %v1650 = vld [vmem:[#allocation8 + $0x610] sm:$0xff]
        %v1651 = vld [vmem:[#allocation8 + $0x618] sm:$0xff]
        %v1652 = vld [vmem:[#allocation8 + $0x620] sm:$0xff]
        %v1653 = vld [vmem:[#allocation8 + $0x628] sm:$0xff]
        %v1654 = vld [vmem:[#allocation8 + $0x630] sm:$0xff]
        %v1655 = vld [vmem:[#allocation8 + $0x638] sm:$0xff]
        %v1656 = vld [vmem:[#allocation8 + $0x640] sm:$0xff]
        %v1657 = vld [vmem:[#allocation8 + $0x648] sm:$0xff]
        %v1658 = vld [vmem:[#allocation8 + $0x650] sm:$0xff]
        %v1659 = vld [vmem:[#allocation8 + $0x658] sm:$0xff]
        %v1660 = vld [vmem:[#allocation8 + $0x660] sm:$0xff]
        %v1661 = vld [vmem:[#allocation8 + $0x668] sm:$0xff]
        %v1662 = vld [vmem:[#allocation8 + $0x670] sm:$0xff]
        %v1663 = vld [vmem:[#allocation8 + $0x678] sm:$0xff]
        %v1664 = vld [vmem:[#allocation8 + $0x680] sm:$0xff]
        %v1665 = vld [vmem:[#allocation8 + $0x688] sm:$0xff]
        %v1666 = vld [vmem:[#allocation8 + $0x690] sm:$0xff]
        %v1667 = vld [vmem:[#allocation8 + $0x698] sm:$0xff]
        %v1668 = vld [vmem:[#allocation8 + $0x6a0] sm:$0xff]
        %v1669 = vld [vmem:[#allocation8 + $0x6a8] sm:$0xff]
        %v1670 = vld [vmem:[#allocation8 + $0x6b0] sm:$0xff]
        %v1671 = vld [vmem:[#allocation8 + $0x6b8] sm:$0xff]
        %v1672 = vld [vmem:[#allocation8 + $0x6c0] sm:$0xff]
        %v1673 = vld [vmem:[#allocation8 + $0x6c8] sm:$0xff]
        %v1674 = vld [vmem:[#allocation8 + $0x6d0] sm:$0xff]
        %v1675 = vld [vmem:[#allocation8 + $0x6d8] sm:$0xff]
        %v1676 = vld [vmem:[#allocation8 + $0x6e0] sm:$0xff]
        %v1677 = vld [vmem:[#allocation8 + $0x6e8] sm:$0xff]
        %v1678 = vld [vmem:[#allocation8 + $0x6f0] sm:$0xff]
        %v1679 = vld [vmem:[#allocation8 + $0x6f8] sm:$0xff]
        %v1680 = vld [vmem:[#allocation8 + $0x700] sm:$0xff]
        %v1681 = vld [vmem:[#allocation8 + $0x708] sm:$0xff]
        %v1682 = vld [vmem:[#allocation8 + $0x710] sm:$0xff]
        %v1683 = vld [vmem:[#allocation8 + $0x718] sm:$0xff]
        %v1684 = vld [vmem:[#allocation8 + $0x720] sm:$0xff]
        %v1685 = vld [vmem:[#allocation8 + $0x728] sm:$0xff]
        %v1686 = vld [vmem:[#allocation8 + $0x730] sm:$0xff]
        %v1687 = vld [vmem:[#allocation8 + $0x738] sm:$0xff]
        %v1688 = vld [vmem:[#allocation8 + $0x740] sm:$0xff]
        %v1689 = vld [vmem:[#allocation8 + $0x748] sm:$0xff]
        %v1690 = vld [vmem:[#allocation8 + $0x750] sm:$0xff]
        %v1691 = vld [vmem:[#allocation8 + $0x758] sm:$0xff]
        %v1692 = vld [vmem:[#allocation8 + $0x760] sm:$0xff]
        %v1693 = vld [vmem:[#allocation8 + $0x768] sm:$0xff]
        %v1694 = vld [vmem:[#allocation8 + $0x770] sm:$0xff]
        %v1695 = vld [vmem:[#allocation8 + $0x778] sm:$0xff]
        %v1696 = vld [vmem:[#allocation8 + $0x780] sm:$0xff]
        %v1697 = vld [vmem:[#allocation8 + $0x788] sm:$0xff]
        %v1698 = vld [vmem:[#allocation8 + $0x790] sm:$0xff]
        %v1699 = vld [vmem:[#allocation8 + $0x798] sm:$0xff]
        %v1700 = vld [vmem:[#allocation8 + $0x7a0] sm:$0xff]
        %v1701 = vld [vmem:[#allocation8 + $0x7a8] sm:$0xff]
        %v1702 = vld [vmem:[#allocation8 + $0x7b0] sm:$0xff]
        %v1703 = vld [vmem:[#allocation8 + $0x7b8] sm:$0xff]
        %v1704 = vld [vmem:[#allocation8 + $0x7c0] sm:$0xff]
        %v1705 = vld [vmem:[#allocation8 + $0x7c8] sm:$0xff]
        %v1706 = vld [vmem:[#allocation8 + $0x7d0] sm:$0xff]
        %v1707 = vld [vmem:[#allocation8 + $0x7d8] sm:$0xff]
        %v1708 = vld [vmem:[#allocation8 + $0x7e0] sm:$0xff]
        %v1709 = vld [vmem:[#allocation8 + $0x7e8] sm:$0xff]
        %v1710 = vld [vmem:[#allocation8 + $0x7f0] sm:$0xff]
        %v1711 = vld [vmem:[#allocation8 + $0x7f8] sm:$0xff]
        %v1968 = vunpack.c.l.b16 %v1456
        %v1969 = vunpack.c.h.b16 %v1456
        %v1970 = vunpack.c.l.b16 %v1457
        %v1971 = vunpack.c.h.b16 %v1457
        %v1972 = vunpack.c.l.b16 %v1458
        %v1973 = vunpack.c.h.b16 %v1458
        %v1974 = vunpack.c.l.b16 %v1459
        %v1975 = vunpack.c.h.b16 %v1459
        %v1976 = vunpack.c.l.b16 %v1460
        %v1977 = vunpack.c.h.b16 %v1460
        %v1978 = vunpack.c.l.b16 %v1461
        %v1979 = vunpack.c.h.b16 %v1461
        %v1980 = vunpack.c.l.b16 %v1462
        %v1981 = vunpack.c.h.b16 %v1462
        %v1982 = vunpack.c.l.b16 %v1463
        %v1983 = vunpack.c.h.b16 %v1463
        %v1984 = vunpack.c.l.b16 %v1464
        %v1985 = vunpack.c.h.b16 %v1464
        %v1986 = vunpack.c.l.b16 %v1465
        %v1987 = vunpack.c.h.b16 %v1465
        %v1988 = vunpack.c.l.b16 %v1466
        %v1989 = vunpack.c.h.b16 %v1466
        %v1990 = vunpack.c.l.b16 %v1467
        %v1991 = vunpack.c.h.b16 %v1467
        %v1992 = vunpack.c.l.b16 %v1468
        %v1993 = vunpack.c.h.b16 %v1468
        %v1994 = vunpack.c.l.b16 %v1469
        %v1995 = vunpack.c.h.b16 %v1469
        %v1996 = vunpack.c.l.b16 %v1470
        %v1997 = vunpack.c.h.b16 %v1470
        %v1998 = vunpack.c.l.b16 %v1471
        %v1999 = vunpack.c.h.b16 %v1471
        %v2000 = vunpack.c.l.b16 %v1472
        %v2001 = vunpack.c.h.b16 %v1472
        %v2002 = vunpack.c.l.b16 %v1473
        %v2003 = vunpack.c.h.b16 %v1473
        %v2004 = vunpack.c.l.b16 %v1474
        %v2005 = vunpack.c.h.b16 %v1474
        %v2006 = vunpack.c.l.b16 %v1475
        %v2007 = vunpack.c.h.b16 %v1475
        %v2008 = vunpack.c.l.b16 %v1476
        %v2009 = vunpack.c.h.b16 %v1476
        %v2010 = vunpack.c.l.b16 %v1477
        %v2011 = vunpack.c.h.b16 %v1477
        %v2012 = vunpack.c.l.b16 %v1478
        %v2013 = vunpack.c.h.b16 %v1478
        %v2014 = vunpack.c.l.b16 %v1479
        %v2015 = vunpack.c.h.b16 %v1479
        %v2016 = vunpack.c.l.b16 %v1480
        %v2017 = vunpack.c.h.b16 %v1480
        %v2018 = vunpack.c.l.b16 %v1481
        %v2019 = vunpack.c.h.b16 %v1481
        %v2020 = vunpack.c.l.b16 %v1482
        %v2021 = vunpack.c.h.b16 %v1482
        %v2022 = vunpack.c.l.b16 %v1483
        %v2023 = vunpack.c.h.b16 %v1483
        %v2024 = vunpack.c.l.b16 %v1484
        %v2025 = vunpack.c.h.b16 %v1484
        %v2026 = vunpack.c.l.b16 %v1485
        %v2027 = vunpack.c.h.b16 %v1485
        %v2028 = vunpack.c.l.b16 %v1486
        %v2029 = vunpack.c.h.b16 %v1486
        %v2030 = vunpack.c.l.b16 %v1487
        %v2031 = vunpack.c.h.b16 %v1487
        %v2032 = vunpack.c.l.b16 %v1488
        %v2033 = vunpack.c.h.b16 %v1488
        %v2034 = vunpack.c.l.b16 %v1489
        %v2035 = vunpack.c.h.b16 %v1489
        %v2036 = vunpack.c.l.b16 %v1490
        %v2037 = vunpack.c.h.b16 %v1490
        %v2038 = vunpack.c.l.b16 %v1491
        %v2039 = vunpack.c.h.b16 %v1491
        %v2040 = vunpack.c.l.b16 %v1492
        %v2041 = vunpack.c.h.b16 %v1492
        %v2042 = vunpack.c.l.b16 %v1493
        %v2043 = vunpack.c.h.b16 %v1493
        %v2044 = vunpack.c.l.b16 %v1494
        %v2045 = vunpack.c.h.b16 %v1494
        %v2046 = vunpack.c.l.b16 %v1495
        %v2047 = vunpack.c.h.b16 %v1495
        %v2048 = vunpack.c.l.b16 %v1496
        %v2049 = vunpack.c.h.b16 %v1496
        %v2050 = vunpack.c.l.b16 %v1497
        %v2051 = vunpack.c.h.b16 %v1497
        %v2052 = vunpack.c.l.b16 %v1498
        %v2053 = vunpack.c.h.b16 %v1498
        %v2054 = vunpack.c.l.b16 %v1499
        %v2055 = vunpack.c.h.b16 %v1499
        %v2056 = vunpack.c.l.b16 %v1500
        %v2057 = vunpack.c.h.b16 %v1500
        %v2058 = vunpack.c.l.b16 %v1501
        %v2059 = vunpack.c.h.b16 %v1501
        %v2060 = vunpack.c.l.b16 %v1502
        %v2061 = vunpack.c.h.b16 %v1502
        %v2062 = vunpack.c.l.b16 %v1503
        %v2063 = vunpack.c.h.b16 %v1503
        %v2064 = vunpack.c.l.b16 %v1504
        %v2065 = vunpack.c.h.b16 %v1504
        %v2066 = vunpack.c.l.b16 %v1505
        %v2067 = vunpack.c.h.b16 %v1505
        %v2068 = vunpack.c.l.b16 %v1506
        %v2069 = vunpack.c.h.b16 %v1506
        %v2070 = vunpack.c.l.b16 %v1507
        %v2071 = vunpack.c.h.b16 %v1507
        %v2072 = vunpack.c.l.b16 %v1508
        %v2073 = vunpack.c.h.b16 %v1508
        %v2074 = vunpack.c.l.b16 %v1509
        %v2075 = vunpack.c.h.b16 %v1509
        %v2076 = vunpack.c.l.b16 %v1510
        %v2077 = vunpack.c.h.b16 %v1510
        %v2078 = vunpack.c.l.b16 %v1511
        %v2079 = vunpack.c.h.b16 %v1511
        %v2080 = vunpack.c.l.b16 %v1512
        %v2081 = vunpack.c.h.b16 %v1512
        %v2082 = vunpack.c.l.b16 %v1513
        %v2083 = vunpack.c.h.b16 %v1513
        %v2084 = vunpack.c.l.b16 %v1514
        %v2085 = vunpack.c.h.b16 %v1514
        %v2086 = vunpack.c.l.b16 %v1515
        %v2087 = vunpack.c.h.b16 %v1515
        %v2088 = vunpack.c.l.b16 %v1516
        %v2089 = vunpack.c.h.b16 %v1516
        %v2090 = vunpack.c.l.b16 %v1517
        %v2091 = vunpack.c.h.b16 %v1517
        %v2092 = vunpack.c.l.b16 %v1518
        %v2093 = vunpack.c.h.b16 %v1518
        %v2094 = vunpack.c.l.b16 %v1519
        %v2095 = vunpack.c.h.b16 %v1519
        %v2096 = vunpack.c.l.b16 %v1520
        %v2097 = vunpack.c.h.b16 %v1520
        %v2098 = vunpack.c.l.b16 %v1521
        %v2099 = vunpack.c.h.b16 %v1521
        %v2100 = vunpack.c.l.b16 %v1522
        %v2101 = vunpack.c.h.b16 %v1522
        %v2102 = vunpack.c.l.b16 %v1523
        %v2103 = vunpack.c.h.b16 %v1523
        %v2104 = vunpack.c.l.b16 %v1524
        %v2105 = vunpack.c.h.b16 %v1524
        %v2106 = vunpack.c.l.b16 %v1525
        %v2107 = vunpack.c.h.b16 %v1525
        %v2108 = vunpack.c.l.b16 %v1526
        %v2109 = vunpack.c.h.b16 %v1526
        %v2110 = vunpack.c.l.b16 %v1527
        %v2111 = vunpack.c.h.b16 %v1527
        %v2112 = vunpack.c.l.b16 %v1528
        %v2113 = vunpack.c.h.b16 %v1528
        %v2114 = vunpack.c.l.b16 %v1529
        %v2115 = vunpack.c.h.b16 %v1529
        %v2116 = vunpack.c.l.b16 %v1530
        %v2117 = vunpack.c.h.b16 %v1530
        %v2118 = vunpack.c.l.b16 %v1531
        %v2119 = vunpack.c.h.b16 %v1531
        %v2120 = vunpack.c.l.b16 %v1532
        %v2121 = vunpack.c.h.b16 %v1532
        %v2122 = vunpack.c.l.b16 %v1533
        %v2123 = vunpack.c.h.b16 %v1533
        %v2124 = vunpack.c.l.b16 %v1534
        %v2125 = vunpack.c.h.b16 %v1534
        %v2126 = vunpack.c.l.b16 %v1535
        %v2127 = vunpack.c.h.b16 %v1535
        %v2128 = vunpack.c.l.b16 %v1536
        %v2129 = vunpack.c.h.b16 %v1536
        %v2130 = vunpack.c.l.b16 %v1537
        %v2131 = vunpack.c.h.b16 %v1537
        %v2132 = vunpack.c.l.b16 %v1538
        %v2133 = vunpack.c.h.b16 %v1538
        %v2134 = vunpack.c.l.b16 %v1539
        %v2135 = vunpack.c.h.b16 %v1539
        %v2136 = vunpack.c.l.b16 %v1540
        %v2137 = vunpack.c.h.b16 %v1540
        %v2138 = vunpack.c.l.b16 %v1541
        %v2139 = vunpack.c.h.b16 %v1541
        %v2140 = vunpack.c.l.b16 %v1542
        %v2141 = vunpack.c.h.b16 %v1542
        %v2142 = vunpack.c.l.b16 %v1543
        %v2143 = vunpack.c.h.b16 %v1543
        %v2144 = vunpack.c.l.b16 %v1544
        %v2145 = vunpack.c.h.b16 %v1544
        %v2146 = vunpack.c.l.b16 %v1545
        %v2147 = vunpack.c.h.b16 %v1545
        %v2148 = vunpack.c.l.b16 %v1546
        %v2149 = vunpack.c.h.b16 %v1546
        %v2150 = vunpack.c.l.b16 %v1547
        %v2151 = vunpack.c.h.b16 %v1547
        %v2152 = vunpack.c.l.b16 %v1548
        %v2153 = vunpack.c.h.b16 %v1548
        %v2154 = vunpack.c.l.b16 %v1549
        %v2155 = vunpack.c.h.b16 %v1549
        %v2156 = vunpack.c.l.b16 %v1550
        %v2157 = vunpack.c.h.b16 %v1550
        %v2158 = vunpack.c.l.b16 %v1551
        %v2159 = vunpack.c.h.b16 %v1551
        %v2160 = vunpack.c.l.b16 %v1552
        %v2161 = vunpack.c.h.b16 %v1552
        %v2162 = vunpack.c.l.b16 %v1553
        %v2163 = vunpack.c.h.b16 %v1553
        %v2164 = vunpack.c.l.b16 %v1554
        %v2165 = vunpack.c.h.b16 %v1554
        %v2166 = vunpack.c.l.b16 %v1555
        %v2167 = vunpack.c.h.b16 %v1555
        %v2168 = vunpack.c.l.b16 %v1556
        %v2169 = vunpack.c.h.b16 %v1556
        %v2170 = vunpack.c.l.b16 %v1557
        %v2171 = vunpack.c.h.b16 %v1557
        %v2172 = vunpack.c.l.b16 %v1558
        %v2173 = vunpack.c.h.b16 %v1558
        %v2174 = vunpack.c.l.b16 %v1559
        %v2175 = vunpack.c.h.b16 %v1559
        %v2176 = vunpack.c.l.b16 %v1560
        %v2177 = vunpack.c.h.b16 %v1560
        %v2178 = vunpack.c.l.b16 %v1561
        %v2179 = vunpack.c.h.b16 %v1561
        %v2180 = vunpack.c.l.b16 %v1562
        %v2181 = vunpack.c.h.b16 %v1562
        %v2182 = vunpack.c.l.b16 %v1563
        %v2183 = vunpack.c.h.b16 %v1563
        %v2184 = vunpack.c.l.b16 %v1564
        %v2185 = vunpack.c.h.b16 %v1564
        %v2186 = vunpack.c.l.b16 %v1565
        %v2187 = vunpack.c.h.b16 %v1565
        %v2188 = vunpack.c.l.b16 %v1566
        %v2189 = vunpack.c.h.b16 %v1566
        %v2190 = vunpack.c.l.b16 %v1567
        %v2191 = vunpack.c.h.b16 %v1567
        %v2192 = vunpack.c.l.b16 %v1568
        %v2193 = vunpack.c.h.b16 %v1568
        %v2194 = vunpack.c.l.b16 %v1569
        %v2195 = vunpack.c.h.b16 %v1569
        %v2196 = vunpack.c.l.b16 %v1570
        %v2197 = vunpack.c.h.b16 %v1570
        %v2198 = vunpack.c.l.b16 %v1571
        %v2199 = vunpack.c.h.b16 %v1571
        %v2200 = vunpack.c.l.b16 %v1572
        %v2201 = vunpack.c.h.b16 %v1572
        %v2202 = vunpack.c.l.b16 %v1573
        %v2203 = vunpack.c.h.b16 %v1573
        %v2204 = vunpack.c.l.b16 %v1574
        %v2205 = vunpack.c.h.b16 %v1574
        %v2206 = vunpack.c.l.b16 %v1575
        %v2207 = vunpack.c.h.b16 %v1575
        %v2208 = vunpack.c.l.b16 %v1576
        %v2209 = vunpack.c.h.b16 %v1576
        %v2210 = vunpack.c.l.b16 %v1577
        %v2211 = vunpack.c.h.b16 %v1577
        %v2212 = vunpack.c.l.b16 %v1578
        %v2213 = vunpack.c.h.b16 %v1578
        %v2214 = vunpack.c.l.b16 %v1579
        %v2215 = vunpack.c.h.b16 %v1579
        %v2216 = vunpack.c.l.b16 %v1580
        %v2217 = vunpack.c.h.b16 %v1580
        %v2218 = vunpack.c.l.b16 %v1581
        %v2219 = vunpack.c.h.b16 %v1581
        %v2220 = vunpack.c.l.b16 %v1582
        %v2221 = vunpack.c.h.b16 %v1582
        %v2222 = vunpack.c.l.b16 %v1583
        %v2223 = vunpack.c.h.b16 %v1583
        %v2224 = vunpack.c.l.b16 %v1584
        %v2225 = vunpack.c.h.b16 %v1584
        %v2226 = vunpack.c.l.b16 %v1585
        %v2227 = vunpack.c.h.b16 %v1585
        %v2228 = vunpack.c.l.b16 %v1586
        %v2229 = vunpack.c.h.b16 %v1586
        %v2230 = vunpack.c.l.b16 %v1587
        %v2231 = vunpack.c.h.b16 %v1587
        %v2232 = vunpack.c.l.b16 %v1588
        %v2233 = vunpack.c.h.b16 %v1588
        %v2234 = vunpack.c.l.b16 %v1589
        %v2235 = vunpack.c.h.b16 %v1589
        %v2236 = vunpack.c.l.b16 %v1590
        %v2237 = vunpack.c.h.b16 %v1590
        %v2238 = vunpack.c.l.b16 %v1591
        %v2239 = vunpack.c.h.b16 %v1591
        %v2240 = vunpack.c.l.b16 %v1592
        %v2241 = vunpack.c.h.b16 %v1592
        %v2242 = vunpack.c.l.b16 %v1593
        %v2243 = vunpack.c.h.b16 %v1593
        %v2244 = vunpack.c.l.b16 %v1594
        %v2245 = vunpack.c.h.b16 %v1594
        %v2246 = vunpack.c.l.b16 %v1595
        %v2247 = vunpack.c.h.b16 %v1595
        %v2248 = vunpack.c.l.b16 %v1596
        %v2249 = vunpack.c.h.b16 %v1596
        %v2250 = vunpack.c.l.b16 %v1597
        %v2251 = vunpack.c.h.b16 %v1597
        %v2252 = vunpack.c.l.b16 %v1598
        %v2253 = vunpack.c.h.b16 %v1598
        %v2254 = vunpack.c.l.b16 %v1599
        %v2255 = vunpack.c.h.b16 %v1599
        %v2256 = vunpack.c.l.b16 %v1600
        %v2257 = vunpack.c.h.b16 %v1600
        %v2258 = vunpack.c.l.b16 %v1601
        %v2259 = vunpack.c.h.b16 %v1601
        %v2260 = vunpack.c.l.b16 %v1602
        %v2261 = vunpack.c.h.b16 %v1602
        %v2262 = vunpack.c.l.b16 %v1603
        %v2263 = vunpack.c.h.b16 %v1603
        %v2264 = vunpack.c.l.b16 %v1604
        %v2265 = vunpack.c.h.b16 %v1604
        %v2266 = vunpack.c.l.b16 %v1605
        %v2267 = vunpack.c.h.b16 %v1605
        %v2268 = vunpack.c.l.b16 %v1606
        %v2269 = vunpack.c.h.b16 %v1606
        %v2270 = vunpack.c.l.b16 %v1607
        %v2271 = vunpack.c.h.b16 %v1607
        %v2272 = vunpack.c.l.b16 %v1608
        %v2273 = vunpack.c.h.b16 %v1608
        %v2274 = vunpack.c.l.b16 %v1609
        %v2275 = vunpack.c.h.b16 %v1609
        %v2276 = vunpack.c.l.b16 %v1610
        %v2277 = vunpack.c.h.b16 %v1610
        %v2278 = vunpack.c.l.b16 %v1611
        %v2279 = vunpack.c.h.b16 %v1611
        %v2280 = vunpack.c.l.b16 %v1612
        %v2281 = vunpack.c.h.b16 %v1612
        %v2282 = vunpack.c.l.b16 %v1613
        %v2283 = vunpack.c.h.b16 %v1613
        %v2284 = vunpack.c.l.b16 %v1614
        %v2285 = vunpack.c.h.b16 %v1614
        %v2286 = vunpack.c.l.b16 %v1615
        %v2287 = vunpack.c.h.b16 %v1615
        %v2288 = vunpack.c.l.b16 %v1616
        %v2289 = vunpack.c.h.b16 %v1616
        %v2290 = vunpack.c.l.b16 %v1617
        %v2291 = vunpack.c.h.b16 %v1617
        %v2292 = vunpack.c.l.b16 %v1618
        %v2293 = vunpack.c.h.b16 %v1618
        %v2294 = vunpack.c.l.b16 %v1619
        %v2295 = vunpack.c.h.b16 %v1619
        %v2296 = vunpack.c.l.b16 %v1620
        %v2297 = vunpack.c.h.b16 %v1620
        %v2298 = vunpack.c.l.b16 %v1621
        %v2299 = vunpack.c.h.b16 %v1621
        %v2300 = vunpack.c.l.b16 %v1622
        %v2301 = vunpack.c.h.b16 %v1622
        %v2302 = vunpack.c.l.b16 %v1623
        %v2303 = vunpack.c.h.b16 %v1623
        %v2304 = vunpack.c.l.b16 %v1624
        %v2305 = vunpack.c.h.b16 %v1624
        %v2306 = vunpack.c.l.b16 %v1625
        %v2307 = vunpack.c.h.b16 %v1625
        %v2308 = vunpack.c.l.b16 %v1626
        %v2309 = vunpack.c.h.b16 %v1626
        %v2310 = vunpack.c.l.b16 %v1627
        %v2311 = vunpack.c.h.b16 %v1627
        %v2312 = vunpack.c.l.b16 %v1628
        %v2313 = vunpack.c.h.b16 %v1628
        %v2314 = vunpack.c.l.b16 %v1629
        %v2315 = vunpack.c.h.b16 %v1629
        %v2316 = vunpack.c.l.b16 %v1630
        %v2317 = vunpack.c.h.b16 %v1630
        %v2318 = vunpack.c.l.b16 %v1631
        %v2319 = vunpack.c.h.b16 %v1631
        %v2320 = vunpack.c.l.b16 %v1632
        %v2321 = vunpack.c.h.b16 %v1632
        %v2322 = vunpack.c.l.b16 %v1633
        %v2323 = vunpack.c.h.b16 %v1633
        %v2324 = vunpack.c.l.b16 %v1634
        %v2325 = vunpack.c.h.b16 %v1634
        %v2326 = vunpack.c.l.b16 %v1635
        %v2327 = vunpack.c.h.b16 %v1635
        %v2328 = vunpack.c.l.b16 %v1636
        %v2329 = vunpack.c.h.b16 %v1636
        %v2330 = vunpack.c.l.b16 %v1637
        %v2331 = vunpack.c.h.b16 %v1637
        %v2332 = vunpack.c.l.b16 %v1638
        %v2333 = vunpack.c.h.b16 %v1638
        %v2334 = vunpack.c.l.b16 %v1639
        %v2335 = vunpack.c.h.b16 %v1639
        %v2336 = vunpack.c.l.b16 %v1640
        %v2337 = vunpack.c.h.b16 %v1640
        %v2338 = vunpack.c.l.b16 %v1641
        %v2339 = vunpack.c.h.b16 %v1641
        %v2340 = vunpack.c.l.b16 %v1642
        %v2341 = vunpack.c.h.b16 %v1642
        %v2342 = vunpack.c.l.b16 %v1643
        %v2343 = vunpack.c.h.b16 %v1643
        %v2344 = vunpack.c.l.b16 %v1644
        %v2345 = vunpack.c.h.b16 %v1644
        %v2346 = vunpack.c.l.b16 %v1645
        %v2347 = vunpack.c.h.b16 %v1645
        %v2348 = vunpack.c.l.b16 %v1646
        %v2349 = vunpack.c.h.b16 %v1646
        %v2350 = vunpack.c.l.b16 %v1647
        %v2351 = vunpack.c.h.b16 %v1647
        %v2352 = vunpack.c.l.b16 %v1648
        %v2353 = vunpack.c.h.b16 %v1648
        %v2354 = vunpack.c.l.b16 %v1649
        %v2355 = vunpack.c.h.b16 %v1649
        %v2356 = vunpack.c.l.b16 %v1650
        %v2357 = vunpack.c.h.b16 %v1650
        %v2358 = vunpack.c.l.b16 %v1651
        %v2359 = vunpack.c.h.b16 %v1651
        %v2360 = vunpack.c.l.b16 %v1652
        %v2361 = vunpack.c.h.b16 %v1652
        %v2362 = vunpack.c.l.b16 %v1653
        %v2363 = vunpack.c.h.b16 %v1653
        %v2364 = vunpack.c.l.b16 %v1654
        %v2365 = vunpack.c.h.b16 %v1654
        %v2366 = vunpack.c.l.b16 %v1655
        %v2367 = vunpack.c.h.b16 %v1655
        %v2368 = vunpack.c.l.b16 %v1656
        %v2369 = vunpack.c.h.b16 %v1656
        %v2370 = vunpack.c.l.b16 %v1657
        %v2371 = vunpack.c.h.b16 %v1657
        %v2372 = vunpack.c.l.b16 %v1658
        %v2373 = vunpack.c.h.b16 %v1658
        %v2374 = vunpack.c.l.b16 %v1659
        %v2375 = vunpack.c.h.b16 %v1659
        %v2376 = vunpack.c.l.b16 %v1660
        %v2377 = vunpack.c.h.b16 %v1660
        %v2378 = vunpack.c.l.b16 %v1661
        %v2379 = vunpack.c.h.b16 %v1661
        %v2380 = vunpack.c.l.b16 %v1662
        %v2381 = vunpack.c.h.b16 %v1662
        %v2382 = vunpack.c.l.b16 %v1663
        %v2383 = vunpack.c.h.b16 %v1663
        %v2384 = vunpack.c.l.b16 %v1664
        %v2385 = vunpack.c.h.b16 %v1664
        %v2386 = vunpack.c.l.b16 %v1665
        %v2387 = vunpack.c.h.b16 %v1665
        %v2388 = vunpack.c.l.b16 %v1666
        %v2389 = vunpack.c.h.b16 %v1666
        %v2390 = vunpack.c.l.b16 %v1667
        %v2391 = vunpack.c.h.b16 %v1667
        %v2392 = vunpack.c.l.b16 %v1668
        %v2393 = vunpack.c.h.b16 %v1668
        %v2394 = vunpack.c.l.b16 %v1669
        %v2395 = vunpack.c.h.b16 %v1669
        %v2396 = vunpack.c.l.b16 %v1670
        %v2397 = vunpack.c.h.b16 %v1670
        %v2398 = vunpack.c.l.b16 %v1671
        %v2399 = vunpack.c.h.b16 %v1671
        %v2400 = vunpack.c.l.b16 %v1672
        %v2401 = vunpack.c.h.b16 %v1672
        %v2402 = vunpack.c.l.b16 %v1673
        %v2403 = vunpack.c.h.b16 %v1673
        %v2404 = vunpack.c.l.b16 %v1674
        %v2405 = vunpack.c.h.b16 %v1674
        %v2406 = vunpack.c.l.b16 %v1675
        %v2407 = vunpack.c.h.b16 %v1675
        %v2408 = vunpack.c.l.b16 %v1676
        %v2409 = vunpack.c.h.b16 %v1676
        %v2410 = vunpack.c.l.b16 %v1677
        %v2411 = vunpack.c.h.b16 %v1677
        %v2412 = vunpack.c.l.b16 %v1678
        %v2413 = vunpack.c.h.b16 %v1678
        %v2414 = vunpack.c.l.b16 %v1679
        %v2415 = vunpack.c.h.b16 %v1679
        %v2416 = vunpack.c.l.b16 %v1680
        %v2417 = vunpack.c.h.b16 %v1680
        %v2418 = vunpack.c.l.b16 %v1681
        %v2419 = vunpack.c.h.b16 %v1681
        %v2420 = vunpack.c.l.b16 %v1682
        %v2421 = vunpack.c.h.b16 %v1682
        %v2422 = vunpack.c.l.b16 %v1683
        %v2423 = vunpack.c.h.b16 %v1683
        %v2424 = vunpack.c.l.b16 %v1684
        %v2425 = vunpack.c.h.b16 %v1684
        %v2426 = vunpack.c.l.b16 %v1685
        %v2427 = vunpack.c.h.b16 %v1685
        %v2428 = vunpack.c.l.b16 %v1686
        %v2429 = vunpack.c.h.b16 %v1686
        %v2430 = vunpack.c.l.b16 %v1687
        %v2431 = vunpack.c.h.b16 %v1687
        %v2432 = vunpack.c.l.b16 %v1688
        %v2433 = vunpack.c.h.b16 %v1688
        %v2434 = vunpack.c.l.b16 %v1689
        %v2435 = vunpack.c.h.b16 %v1689
        %v2436 = vunpack.c.l.b16 %v1690
        %v2437 = vunpack.c.h.b16 %v1690
        %v2438 = vunpack.c.l.b16 %v1691
        %v2439 = vunpack.c.h.b16 %v1691
        %v2440 = vunpack.c.l.b16 %v1692
        %v2441 = vunpack.c.h.b16 %v1692
        %v2442 = vunpack.c.l.b16 %v1693
        %v2443 = vunpack.c.h.b16 %v1693
        %v2444 = vunpack.c.l.b16 %v1694
        %v2445 = vunpack.c.h.b16 %v1694
        %v2446 = vunpack.c.l.b16 %v1695
        %v2447 = vunpack.c.h.b16 %v1695
        %v2448 = vunpack.c.l.b16 %v1696
        %v2449 = vunpack.c.h.b16 %v1696
        %v2450 = vunpack.c.l.b16 %v1697
        %v2451 = vunpack.c.h.b16 %v1697
        %v2452 = vunpack.c.l.b16 %v1698
        %v2453 = vunpack.c.h.b16 %v1698
        %v2454 = vunpack.c.l.b16 %v1699
        %v2455 = vunpack.c.h.b16 %v1699
        %v2456 = vunpack.c.l.b16 %v1700
        %v2457 = vunpack.c.h.b16 %v1700
        %v2458 = vunpack.c.l.b16 %v1701
        %v2459 = vunpack.c.h.b16 %v1701
        %v2460 = vunpack.c.l.b16 %v1702
        %v2461 = vunpack.c.h.b16 %v1702
        %v2462 = vunpack.c.l.b16 %v1703
        %v2463 = vunpack.c.h.b16 %v1703
        %v2464 = vunpack.c.l.b16 %v1704
        %v2465 = vunpack.c.h.b16 %v1704
        %v2466 = vunpack.c.l.b16 %v1705
        %v2467 = vunpack.c.h.b16 %v1705
        %v2468 = vunpack.c.l.b16 %v1706
        %v2469 = vunpack.c.h.b16 %v1706
        %v2470 = vunpack.c.l.b16 %v1707
        %v2471 = vunpack.c.h.b16 %v1707
        %v2472 = vunpack.c.l.b16 %v1708
        %v2473 = vunpack.c.h.b16 %v1708
        %v2474 = vunpack.c.l.b16 %v1709
        %v2475 = vunpack.c.h.b16 %v1709
        %v2476 = vunpack.c.l.b16 %v1710
        %v2477 = vunpack.c.h.b16 %v1710
        %v2478 = vunpack.c.l.b16 %v1711
        %v2479 = vunpack.c.h.b16 %v1711
        %v2480 = vpack.c.b16 %v1976, %v1968
        %v2481 = vpack.c.b16 %v1977, %v1969
        %v2482 = vpack.c.b16 %v1978, %v1970
        %v2483 = vpack.c.b16 %v1979, %v1971
        %v2484 = vpack.c.b16 %v1980, %v1972
        %v2485 = vpack.c.b16 %v1981, %v1973
        %v2486 = vpack.c.b16 %v1982, %v1974
        %v2487 = vpack.c.b16 %v1983, %v1975
        %v2488 = vpack.c.b16 %v1992, %v1984
        %v2489 = vpack.c.b16 %v1993, %v1985
        %v2490 = vpack.c.b16 %v1994, %v1986
        %v2491 = vpack.c.b16 %v1995, %v1987
        %v2492 = vpack.c.b16 %v1996, %v1988
        %v2493 = vpack.c.b16 %v1997, %v1989
        %v2494 = vpack.c.b16 %v1998, %v1990
        %v2495 = vpack.c.b16 %v1999, %v1991
        %v2496 = vpack.c.b16 %v2008, %v2000
        %v2497 = vpack.c.b16 %v2009, %v2001
        %v2498 = vpack.c.b16 %v2010, %v2002
        %v2499 = vpack.c.b16 %v2011, %v2003
        %v2500 = vpack.c.b16 %v2012, %v2004
        %v2501 = vpack.c.b16 %v2013, %v2005
        %v2502 = vpack.c.b16 %v2014, %v2006
        %v2503 = vpack.c.b16 %v2015, %v2007
        %v2504 = vpack.c.b16 %v2024, %v2016
        %v2505 = vpack.c.b16 %v2025, %v2017
        %v2506 = vpack.c.b16 %v2026, %v2018
        %v2507 = vpack.c.b16 %v2027, %v2019
        %v2508 = vpack.c.b16 %v2028, %v2020
        %v2509 = vpack.c.b16 %v2029, %v2021
        %v2510 = vpack.c.b16 %v2030, %v2022
        %v2511 = vpack.c.b16 %v2031, %v2023
        %v2512 = vpack.c.b16 %v2040, %v2032
        %v2513 = vpack.c.b16 %v2041, %v2033
        %v2514 = vpack.c.b16 %v2042, %v2034
        %v2515 = vpack.c.b16 %v2043, %v2035
        %v2516 = vpack.c.b16 %v2044, %v2036
        %v2517 = vpack.c.b16 %v2045, %v2037
        %v2518 = vpack.c.b16 %v2046, %v2038
        %v2519 = vpack.c.b16 %v2047, %v2039
        %v2520 = vpack.c.b16 %v2056, %v2048
        %v2521 = vpack.c.b16 %v2057, %v2049
        %v2522 = vpack.c.b16 %v2058, %v2050
        %v2523 = vpack.c.b16 %v2059, %v2051
        %v2524 = vpack.c.b16 %v2060, %v2052
        %v2525 = vpack.c.b16 %v2061, %v2053
        %v2526 = vpack.c.b16 %v2062, %v2054
        %v2527 = vpack.c.b16 %v2063, %v2055
        %v2528 = vpack.c.b16 %v2072, %v2064
        %v2529 = vpack.c.b16 %v2073, %v2065
        %v2530 = vpack.c.b16 %v2074, %v2066
        %v2531 = vpack.c.b16 %v2075, %v2067
        %v2532 = vpack.c.b16 %v2076, %v2068
        %v2533 = vpack.c.b16 %v2077, %v2069
        %v2534 = vpack.c.b16 %v2078, %v2070
        %v2535 = vpack.c.b16 %v2079, %v2071
        %v2536 = vpack.c.b16 %v2088, %v2080
        %v2537 = vpack.c.b16 %v2089, %v2081
        %v2538 = vpack.c.b16 %v2090, %v2082
        %v2539 = vpack.c.b16 %v2091, %v2083
        %v2540 = vpack.c.b16 %v2092, %v2084
        %v2541 = vpack.c.b16 %v2093, %v2085
        %v2542 = vpack.c.b16 %v2094, %v2086
        %v2543 = vpack.c.b16 %v2095, %v2087
        %v2544 = vpack.c.b16 %v2104, %v2096
        %v2545 = vpack.c.b16 %v2105, %v2097
        %v2546 = vpack.c.b16 %v2106, %v2098
        %v2547 = vpack.c.b16 %v2107, %v2099
        %v2548 = vpack.c.b16 %v2108, %v2100
        %v2549 = vpack.c.b16 %v2109, %v2101
        %v2550 = vpack.c.b16 %v2110, %v2102
        %v2551 = vpack.c.b16 %v2111, %v2103
        %v2552 = vpack.c.b16 %v2120, %v2112
        %v2553 = vpack.c.b16 %v2121, %v2113
        %v2554 = vpack.c.b16 %v2122, %v2114
        %v2555 = vpack.c.b16 %v2123, %v2115
        %v2556 = vpack.c.b16 %v2124, %v2116
        %v2557 = vpack.c.b16 %v2125, %v2117
        %v2558 = vpack.c.b16 %v2126, %v2118
        %v2559 = vpack.c.b16 %v2127, %v2119
        %v2560 = vpack.c.b16 %v2136, %v2128
        %v2561 = vpack.c.b16 %v2137, %v2129
        %v2562 = vpack.c.b16 %v2138, %v2130
        %v2563 = vpack.c.b16 %v2139, %v2131
        %v2564 = vpack.c.b16 %v2140, %v2132
        %v2565 = vpack.c.b16 %v2141, %v2133
        %v2566 = vpack.c.b16 %v2142, %v2134
        %v2567 = vpack.c.b16 %v2143, %v2135
        %v2568 = vpack.c.b16 %v2152, %v2144
        %v2569 = vpack.c.b16 %v2153, %v2145
        %v2570 = vpack.c.b16 %v2154, %v2146
        %v2571 = vpack.c.b16 %v2155, %v2147
        %v2572 = vpack.c.b16 %v2156, %v2148
        %v2573 = vpack.c.b16 %v2157, %v2149
        %v2574 = vpack.c.b16 %v2158, %v2150
        %v2575 = vpack.c.b16 %v2159, %v2151
        %v2576 = vpack.c.b16 %v2168, %v2160
        %v2577 = vpack.c.b16 %v2169, %v2161
        %v2578 = vpack.c.b16 %v2170, %v2162
        %v2579 = vpack.c.b16 %v2171, %v2163
        %v2580 = vpack.c.b16 %v2172, %v2164
        %v2581 = vpack.c.b16 %v2173, %v2165
        %v2582 = vpack.c.b16 %v2174, %v2166
        %v2583 = vpack.c.b16 %v2175, %v2167
        %v2584 = vpack.c.b16 %v2184, %v2176
        %v2585 = vpack.c.b16 %v2185, %v2177
        %v2586 = vpack.c.b16 %v2186, %v2178
        %v2587 = vpack.c.b16 %v2187, %v2179
        %v2588 = vpack.c.b16 %v2188, %v2180
        %v2589 = vpack.c.b16 %v2189, %v2181
        %v2590 = vpack.c.b16 %v2190, %v2182
        %v2591 = vpack.c.b16 %v2191, %v2183
        %v2592 = vpack.c.b16 %v2200, %v2192
        %v2593 = vpack.c.b16 %v2201, %v2193
        %v2594 = vpack.c.b16 %v2202, %v2194
        %v2595 = vpack.c.b16 %v2203, %v2195
        %v2596 = vpack.c.b16 %v2204, %v2196
        %v2597 = vpack.c.b16 %v2205, %v2197
        %v2598 = vpack.c.b16 %v2206, %v2198
        %v2599 = vpack.c.b16 %v2207, %v2199
        %v2600 = vpack.c.b16 %v2216, %v2208
        %v2601 = vpack.c.b16 %v2217, %v2209
        %v2602 = vpack.c.b16 %v2218, %v2210
        %v2603 = vpack.c.b16 %v2219, %v2211
        %v2604 = vpack.c.b16 %v2220, %v2212
        %v2605 = vpack.c.b16 %v2221, %v2213
        %v2606 = vpack.c.b16 %v2222, %v2214
        %v2607 = vpack.c.b16 %v2223, %v2215
        %v2608 = vpack.c.b16 %v2232, %v2224
        %v2609 = vpack.c.b16 %v2233, %v2225
        %v2610 = vpack.c.b16 %v2234, %v2226
        %v2611 = vpack.c.b16 %v2235, %v2227
        %v2612 = vpack.c.b16 %v2236, %v2228
        %v2613 = vpack.c.b16 %v2237, %v2229
        %v2614 = vpack.c.b16 %v2238, %v2230
        %v2615 = vpack.c.b16 %v2239, %v2231
        %v2616 = vpack.c.b16 %v2248, %v2240
        %v2617 = vpack.c.b16 %v2249, %v2241
        %v2618 = vpack.c.b16 %v2250, %v2242
        %v2619 = vpack.c.b16 %v2251, %v2243
        %v2620 = vpack.c.b16 %v2252, %v2244
        %v2621 = vpack.c.b16 %v2253, %v2245
        %v2622 = vpack.c.b16 %v2254, %v2246
        %v2623 = vpack.c.b16 %v2255, %v2247
        %v2624 = vpack.c.b16 %v2264, %v2256
        %v2625 = vpack.c.b16 %v2265, %v2257
        %v2626 = vpack.c.b16 %v2266, %v2258
        %v2627 = vpack.c.b16 %v2267, %v2259
        %v2628 = vpack.c.b16 %v2268, %v2260
        %v2629 = vpack.c.b16 %v2269, %v2261
        %v2630 = vpack.c.b16 %v2270, %v2262
        %v2631 = vpack.c.b16 %v2271, %v2263
        %v2632 = vpack.c.b16 %v2280, %v2272
        %v2633 = vpack.c.b16 %v2281, %v2273
        %v2634 = vpack.c.b16 %v2282, %v2274
        %v2635 = vpack.c.b16 %v2283, %v2275
        %v2636 = vpack.c.b16 %v2284, %v2276
        %v2637 = vpack.c.b16 %v2285, %v2277
        %v2638 = vpack.c.b16 %v2286, %v2278
        %v2639 = vpack.c.b16 %v2287, %v2279
        %v2640 = vpack.c.b16 %v2296, %v2288
        %v2641 = vpack.c.b16 %v2297, %v2289
        %v2642 = vpack.c.b16 %v2298, %v2290
        %v2643 = vpack.c.b16 %v2299, %v2291
        %v2644 = vpack.c.b16 %v2300, %v2292
        %v2645 = vpack.c.b16 %v2301, %v2293
        %v2646 = vpack.c.b16 %v2302, %v2294
        %v2647 = vpack.c.b16 %v2303, %v2295
        %v2648 = vpack.c.b16 %v2312, %v2304
        %v2649 = vpack.c.b16 %v2313, %v2305
        %v2650 = vpack.c.b16 %v2314, %v2306
        %v2651 = vpack.c.b16 %v2315, %v2307
        %v2652 = vpack.c.b16 %v2316, %v2308
        %v2653 = vpack.c.b16 %v2317, %v2309
        %v2654 = vpack.c.b16 %v2318, %v2310
        %v2655 = vpack.c.b16 %v2319, %v2311
        %v2656 = vpack.c.b16 %v2328, %v2320
        %v2657 = vpack.c.b16 %v2329, %v2321
        %v2658 = vpack.c.b16 %v2330, %v2322
        %v2659 = vpack.c.b16 %v2331, %v2323
        %v2660 = vpack.c.b16 %v2332, %v2324
        %v2661 = vpack.c.b16 %v2333, %v2325
        %v2662 = vpack.c.b16 %v2334, %v2326
        %v2663 = vpack.c.b16 %v2335, %v2327
        %v2664 = vpack.c.b16 %v2344, %v2336
        %v2665 = vpack.c.b16 %v2345, %v2337
        %v2666 = vpack.c.b16 %v2346, %v2338
        %v2667 = vpack.c.b16 %v2347, %v2339
        %v2668 = vpack.c.b16 %v2348, %v2340
        %v2669 = vpack.c.b16 %v2349, %v2341
        %v2670 = vpack.c.b16 %v2350, %v2342
        %v2671 = vpack.c.b16 %v2351, %v2343
        %v2672 = vpack.c.b16 %v2360, %v2352
        %v2673 = vpack.c.b16 %v2361, %v2353
        %v2674 = vpack.c.b16 %v2362, %v2354
        %v2675 = vpack.c.b16 %v2363, %v2355
        %v2676 = vpack.c.b16 %v2364, %v2356
        %v2677 = vpack.c.b16 %v2365, %v2357
        %v2678 = vpack.c.b16 %v2366, %v2358
        %v2679 = vpack.c.b16 %v2367, %v2359
        %v2680 = vpack.c.b16 %v2376, %v2368
        %v2681 = vpack.c.b16 %v2377, %v2369
        %v2682 = vpack.c.b16 %v2378, %v2370
        %v2683 = vpack.c.b16 %v2379, %v2371
        %v2684 = vpack.c.b16 %v2380, %v2372
        %v2685 = vpack.c.b16 %v2381, %v2373
        %v2686 = vpack.c.b16 %v2382, %v2374
        %v2687 = vpack.c.b16 %v2383, %v2375
        %v2688 = vpack.c.b16 %v2392, %v2384
        %v2689 = vpack.c.b16 %v2393, %v2385
        %v2690 = vpack.c.b16 %v2394, %v2386
        %v2691 = vpack.c.b16 %v2395, %v2387
        %v2692 = vpack.c.b16 %v2396, %v2388
        %v2693 = vpack.c.b16 %v2397, %v2389
        %v2694 = vpack.c.b16 %v2398, %v2390
        %v2695 = vpack.c.b16 %v2399, %v2391
        %v2696 = vpack.c.b16 %v2408, %v2400
        %v2697 = vpack.c.b16 %v2409, %v2401
        %v2698 = vpack.c.b16 %v2410, %v2402
        %v2699 = vpack.c.b16 %v2411, %v2403
        %v2700 = vpack.c.b16 %v2412, %v2404
        %v2701 = vpack.c.b16 %v2413, %v2405
        %v2702 = vpack.c.b16 %v2414, %v2406
        %v2703 = vpack.c.b16 %v2415, %v2407
        %v2704 = vpack.c.b16 %v2424, %v2416
        %v2705 = vpack.c.b16 %v2425, %v2417
        %v2706 = vpack.c.b16 %v2426, %v2418
        %v2707 = vpack.c.b16 %v2427, %v2419
        %v2708 = vpack.c.b16 %v2428, %v2420
        %v2709 = vpack.c.b16 %v2429, %v2421
        %v2710 = vpack.c.b16 %v2430, %v2422
        %v2711 = vpack.c.b16 %v2431, %v2423
        %v2712 = vpack.c.b16 %v2440, %v2432
        %v2713 = vpack.c.b16 %v2441, %v2433
        %v2714 = vpack.c.b16 %v2442, %v2434
        %v2715 = vpack.c.b16 %v2443, %v2435
        %v2716 = vpack.c.b16 %v2444, %v2436
        %v2717 = vpack.c.b16 %v2445, %v2437
        %v2718 = vpack.c.b16 %v2446, %v2438
        %v2719 = vpack.c.b16 %v2447, %v2439
        %v2720 = vpack.c.b16 %v2456, %v2448
        %v2721 = vpack.c.b16 %v2457, %v2449
        %v2722 = vpack.c.b16 %v2458, %v2450
        %v2723 = vpack.c.b16 %v2459, %v2451
        %v2724 = vpack.c.b16 %v2460, %v2452
        %v2725 = vpack.c.b16 %v2461, %v2453
        %v2726 = vpack.c.b16 %v2462, %v2454
        %v2727 = vpack.c.b16 %v2463, %v2455
        %v2728 = vpack.c.b16 %v2472, %v2464
        %v2729 = vpack.c.b16 %v2473, %v2465
        %v2730 = vpack.c.b16 %v2474, %v2466
        %v2731 = vpack.c.b16 %v2475, %v2467
        %v2732 = vpack.c.b16 %v2476, %v2468
        %v2733 = vpack.c.b16 %v2477, %v2469
        %v2734 = vpack.c.b16 %v2478, %v2470
        %v2735 = vpack.c.b16 %v2479, %v2471
        %2992 = vmatprep.subr.bf16.mxu0 %v2481
        %2993 = vmatpush1.bf16.msra.mxu0 %v2480
        %2994 = vmatprep.subr.bf16.mxu0 %v2489
        %2995 = vmatpush1.bf16.msra.mxu0 %v2488
        %2996 = vmatprep.subr.bf16.mxu0 %v2497
        %2997 = vmatpush1.bf16.msra.mxu0 %v2496
        %2998 = vmatprep.subr.bf16.mxu0 %v2505
        %2999 = vmatpush1.bf16.msra.mxu0 %v2504
        %3000 = vmatprep.subr.bf16.mxu0 %v2513
        %3001 = vmatpush1.bf16.msra.mxu0 %v2512
        %3002 = vmatprep.subr.bf16.mxu0 %v2521
        %3003 = vmatpush1.bf16.msra.mxu0 %v2520
        %3004 = vmatprep.subr.bf16.mxu0 %v2529
        %3005 = vmatpush1.bf16.msra.mxu0 %v2528
        %3006 = vmatprep.subr.bf16.mxu0 %v2537
        %3007 = vmatpush1.bf16.msra.mxu0 %v2536
        %3008 = vmatprep.subr.bf16.mxu0 %v2545
        %3009 = vmatpush1.bf16.msra.mxu0 %v2544
        %3010 = vmatprep.subr.bf16.mxu0 %v2553
        %3011 = vmatpush1.bf16.msra.mxu0 %v2552
        %3012 = vmatprep.subr.bf16.mxu0 %v2561
        %3013 = vmatpush1.bf16.msra.mxu0 %v2560
        %3014 = vmatprep.subr.bf16.mxu0 %v2569
        %3015 = vmatpush1.bf16.msra.mxu0 %v2568
        %3016 = vmatprep.subr.bf16.mxu0 %v2577
        %3017 = vmatpush1.bf16.msra.mxu0 %v2576
        %3018 = vmatprep.subr.bf16.mxu0 %v2585
        %3019 = vmatpush1.bf16.msra.mxu0 %v2584
        %3020 = vmatprep.subr.bf16.mxu0 %v2593
        %3021 = vmatpush1.bf16.msra.mxu0 %v2592
        %3022 = vmatprep.subr.bf16.mxu0 %v2601
        %3023 = vmatpush1.bf16.msra.mxu0 %v2600
        %3024 = vmatprep.mubr.bf16.mxu0 %v1393
        %3025 = vmatmul.mubr.bf16.gmra.mrb[0].mxu0 %v1392
        %v3026 = vpop.f32.mrb[0].mxu0
        %v3027 = vadd.f32 0.0, %v3026
        %v3028 = vpop.f32.mrb[0].mxu0
        %v3029 = vadd.f32 0.0, %v3028
        %v3030 = vpop.f32.mrb[0].mxu0
        %v3031 = vadd.f32 0.0, %v3030
        %v3032 = vpop.f32.mrb[0].mxu0
        %v3033 = vadd.f32 0.0, %v3032
        %3034 = vmatprep.mubr.bf16.mxu0 %v1397
        %3035 = vmatmul.mubr.bf16.gmra.mrb[0].mxu0 %v1396
        %v3036 = vpop.f32.mrb[0].mxu0
        %v3037 = vadd.f32 0.0, %v3036
        %v3038 = vpop.f32.mrb[0].mxu0
        %v3039 = vadd.f32 0.0, %v3038
        %v3040 = vpop.f32.mrb[0].mxu0
        %v3041 = vadd.f32 0.0, %v3040
        %v3042 = vpop.f32.mrb[0].mxu0
        %v3043 = vadd.f32 0.0, %v3042
        %3044 = vmatprep.mubr.bf16.mxu0 %v1401
        %3045 = vmatmul.mubr.bf16.gmra.mrb[0].mxu0 %v1400
        %v3046 = vpop.f32.mrb[0].mxu0
        %v3047 = vadd.f32 0.0, %v3046
        %v3048 = vpop.f32.mrb[0].mxu0
        %v3049 = vadd.f32 0.0, %v3048
        %v3050 = vpop.f32.mrb[0].mxu0
        %v3051 = vadd.f32 0.0, %v3050
        %v3052 = vpop.f32.mrb[0].mxu0
        %v3053 = vadd.f32 0.0, %v3052
        %3054 = vmatprep.mubr.bf16.mxu0 %v1405
        %3055 = vmatmul.mubr.bf16.gmra.mrb[0].mxu0 %v1404
        %v3056 = vpop.f32.mrb[0].mxu0
        %v3057 = vadd.f32 0.0, %v3056
        %v3058 = vpop.f32.mrb[0].mxu0
        %v3059 = vadd.f32 0.0, %v3058
        %v3060 = vpop.f32.mrb[0].mxu0
        %v3061 = vadd.f32 0.0, %v3060
        %v3062 = vpop.f32.mrb[0].mxu0
        %v3063 = vadd.f32 0.0, %v3062
        %3064 = vmatprep.mubr.bf16.mxu0 %v1409
        %3065 = vmatmul.mubr.bf16.gmra.mrb[0].mxu0 %v1408
        %v3066 = vpop.f32.mrb[0].mxu0
        %v3067 = vadd.f32 0.0, %v3066
        %v3068 = vpop.f32.mrb[0].mxu0
        %v3069 = vadd.f32 0.0, %v3068
        %v3070 = vpop.f32.mrb[0].mxu0
        %v3071 = vadd.f32 0.0, %v3070
        %v3072 = vpop.f32.mrb[0].mxu0
        %v3073 = vadd.f32 0.0, %v3072
        %3074 = vmatprep.mubr.bf16.mxu0 %v1413
        %3075 = vmatmul.mubr.bf16.gmra.mrb[0].mxu0 %v1412
        %v3076 = vpop.f32.mrb[0].mxu0
        %v3077 = vadd.f32 0.0, %v3076
        %v3078 = vpop.f32.mrb[0].mxu0
        %v3079 = vadd.f32 0.0, %v3078
        %v3080 = vpop.f32.mrb[0].mxu0
        %v3081 = vadd.f32 0.0, %v3080
        %v3082 = vpop.f32.mrb[0].mxu0
        %v3083 = vadd.f32 0.0, %v3082
        %3084 = vmatprep.mubr.bf16.mxu0 %v1417
        %3085 = vmatmul.mubr.bf16.gmra.mrb[0].mxu0 %v1416
        %v3086 = vpop.f32.mrb[0].mxu0
        %v3087 = vadd.f32 0.0, %v3086
        %v3088 = vpop.f32.mrb[0].mxu0
        %v3089 = vadd.f32 0.0, %v3088
        %v3090 = vpop.f32.mrb[0].mxu0
        %v3091 = vadd.f32 0.0, %v3090
        %v3092 = vpop.f32.mrb[0].mxu0
        %v3093 = vadd.f32 0.0, %v3092
        %3094 = vmatprep.mubr.bf16.mxu0 %v1421
        %3095 = vmatmul.mubr.bf16.gmra.mrb[0].mxu0 %v1420
        %v3096 = vpop.f32.mrb[0].mxu0
        %v3097 = vadd.f32 0.0, %v3096
        %v3098 = vpop.f32.mrb[0].mxu0
        %v3099 = vadd.f32 0.0, %v3098
        %v3100 = vpop.f32.mrb[0].mxu0
        %v3101 = vadd.f32 0.0, %v3100
        %v3102 = vpop.f32.mrb[0].mxu0
        %v3103 = vadd.f32 0.0, %v3102
        %3104 = vmatprep.mubr.bf16.mxu0 %v1425
        %3105 = vmatmul.mubr.bf16.gmra.mrb[0].mxu0 %v1424
        %v3106 = vpop.f32.mrb[0].mxu0
        %v3107 = vadd.f32 0.0, %v3106
        %v3108 = vpop.f32.mrb[0].mxu0
        %v3109 = vadd.f32 0.0, %v3108
        %v3110 = vpop.f32.mrb[0].mxu0
        %v3111 = vadd.f32 0.0, %v3110
        %v3112 = vpop.f32.mrb[0].mxu0
        %v3113 = vadd.f32 0.0, %v3112
        %3114 = vmatprep.mubr.bf16.mxu0 %v1429
        %3115 = vmatmul.mubr.bf16.gmra.mrb[0].mxu0 %v1428
        %v3116 = vpop.f32.mrb[0].mxu0
        %v3117 = vadd.f32 0.0, %v3116
        %v3118 = vpop.f32.mrb[0].mxu0
        %v3119 = vadd.f32 0.0, %v3118
        %v3120 = vpop.f32.mrb[0].mxu0
        %v3121 = vadd.f32 0.0, %v3120
        %v3122 = vpop.f32.mrb[0].mxu0
        %v3123 = vadd.f32 0.0, %v3122
        %3124 = vmatprep.mubr.bf16.mxu0 %v1433
        %3125 = vmatmul.mubr.bf16.gmra.mrb[0].mxu0 %v1432
        %v3126 = vpop.f32.mrb[0].mxu0
        %v3127 = vadd.f32 0.0, %v3126
        %v3128 = vpop.f32.mrb[0].mxu0
        %v3129 = vadd.f32 0.0, %v3128
        %v3130 = vpop.f32.mrb[0].mxu0
        %v3131 = vadd.f32 0.0, %v3130
        %v3132 = vpop.f32.mrb[0].mxu0
        %v3133 = vadd.f32 0.0, %v3132
        %3134 = vmatprep.mubr.bf16.mxu0 %v1437
        %3135 = vmatmul.mubr.bf16.gmra.mrb[0].mxu0 %v1436
        %v3136 = vpop.f32.mrb[0].mxu0
        %v3137 = vadd.f32 0.0, %v3136
        %v3138 = vpop.f32.mrb[0].mxu0
        %v3139 = vadd.f32 0.0, %v3138
        %v3140 = vpop.f32.mrb[0].mxu0
        %v3141 = vadd.f32 0.0, %v3140
        %v3142 = vpop.f32.mrb[0].mxu0
        %v3143 = vadd.f32 0.0, %v3142
        %3144 = vmatprep.mubr.bf16.mxu0 %v1441
        %3145 = vmatmul.mubr.bf16.gmra.mrb[0].mxu0 %v1440
        %v3146 = vpop.f32.mrb[0].mxu0
        %v3147 = vadd.f32 0.0, %v3146
        %v3148 = vpop.f32.mrb[0].mxu0
        %v3149 = vadd.f32 0.0, %v3148
        %v3150 = vpop.f32.mrb[0].mxu0
        %v3151 = vadd.f32 0.0, %v3150
        %v3152 = vpop.f32.mrb[0].mxu0
        %v3153 = vadd.f32 0.0, %v3152
        %3154 = vmatprep.mubr.bf16.mxu0 %v1445
        %3155 = vmatmul.mubr.bf16.gmra.mrb[0].mxu0 %v1444
        %v3156 = vpop.f32.mrb[0].mxu0
        %v3157 = vadd.f32 0.0, %v3156
        %v3158 = vpop.f32.mrb[0].mxu0
        %v3159 = vadd.f32 0.0, %v3158
        %v3160 = vpop.f32.mrb[0].mxu0
        %v3161 = vadd.f32 0.0, %v3160
        %v3162 = vpop.f32.mrb[0].mxu0
        %v3163 = vadd.f32 0.0, %v3162
        %3164 = vmatprep.mubr.bf16.mxu0 %v1449
        %3165 = vmatmul.mubr.bf16.gmra.mrb[0].mxu0 %v1448
        %v3166 = vpop.f32.mrb[0].mxu0
        %v3167 = vadd.f32 0.0, %v3166
        %v3168 = vpop.f32.mrb[0].mxu0
        %v3169 = vadd.f32 0.0, %v3168
        %v3170 = vpop.f32.mrb[0].mxu0
        %v3171 = vadd.f32 0.0, %v3170
        %v3172 = vpop.f32.mrb[0].mxu0
        %v3173 = vadd.f32 0.0, %v3172
        %3174 = vmatprep.mubr.bf16.mxu0 %v1453
        %3175 = vmatmul.mubr.bf16.gmra.mrb[0].mxu0 %v1452
        %v3176 = vpop.f32.mrb[0].mxu0
        %v3177 = vadd.f32 0.0, %v3176
        %v3178 = vpop.f32.mrb[0].mxu0
        %v3179 = vadd.f32 0.0, %v3178
        %v3180 = vpop.f32.mrb[0].mxu0
        %v3181 = vadd.f32 0.0, %v3180
        %v3182 = vpop.f32.mrb[0].mxu0
        %v3183 = vadd.f32 0.0, %v3182
        %3184 = vdwg.mxu0
        %3185 = vmatprep.subr.bf16.mxu0 %v2609
        %3186 = vmatpush1.bf16.msra.mxu0 %v2608
        %3187 = vmatprep.subr.bf16.mxu0 %v2617
        %3188 = vmatpush1.bf16.msra.mxu0 %v2616
        %3189 = vmatprep.subr.bf16.mxu0 %v2625
        %3190 = vmatpush1.bf16.msra.mxu0 %v2624
        %3191 = vmatprep.subr.bf16.mxu0 %v2633
        %3192 = vmatpush1.bf16.msra.mxu0 %v2632
        %3193 = vmatprep.subr.bf16.mxu0 %v2641
        %3194 = vmatpush1.bf16.msra.mxu0 %v2640
        %3195 = vmatprep.subr.bf16.mxu0 %v2649
        %3196 = vmatpush1.bf16.msra.mxu0 %v2648
        %3197 = vmatprep.subr.bf16.mxu0 %v2657
        %3198 = vmatpush1.bf16.msra.mxu0 %v2656
        %3199 = vmatprep.subr.bf16.mxu0 %v2665
        %3200 = vmatpush1.bf16.msra.mxu0 %v2664
        %3201 = vmatprep.subr.bf16.mxu0 %v2673
        %3202 = vmatpush1.bf16.msra.mxu0 %v2672
        %3203 = vmatprep.subr.bf16.mxu0 %v2681
        %3204 = vmatpush1.bf16.msra.mxu0 %v2680
        %3205 = vmatprep.subr.bf16.mxu0 %v2689
        %3206 = vmatpush1.bf16.msra.mxu0 %v2688
        %3207 = vmatprep.subr.bf16.mxu0 %v2697
        %3208 = vmatpush1.bf16.msra.mxu0 %v2696
        %3209 = vmatprep.subr.bf16.mxu0 %v2705
        %3210 = vmatpush1.bf16.msra.mxu0 %v2704
        %3211 = vmatprep.subr.bf16.mxu0 %v2713
        %3212 = vmatpush1.bf16.msra.mxu0 %v2712
        %3213 = vmatprep.subr.bf16.mxu0 %v2721
        %3214 = vmatpush1.bf16.msra.mxu0 %v2720
        %3215 = vmatprep.subr.bf16.mxu0 %v2729
        %3216 = vmatpush1.bf16.msra.mxu0 %v2728
        %3217 = vmatprep.mubr.bf16.mxu0 %v1395
        %3218 = vmatmul.mubr.bf16.gmra.mrb[0].mxu0 %v1394
        %v3219 = vpop.f32.mrb[0].mxu0
        %v3220 = vadd.f32 %v3027, %v3219
        %v3221 = vpop.f32.mrb[0].mxu0
        %v3222 = vadd.f32 %v3029, %v3221
        %v3223 = vpop.f32.mrb[0].mxu0
        %v3224 = vadd.f32 %v3031, %v3223
        %v3225 = vpop.f32.mrb[0].mxu0
        %v3226 = vadd.f32 %v3033, %v3225
        %3227 = vmatprep.mubr.bf16.mxu0 %v1399
        %3228 = vmatmul.mubr.bf16.gmra.mrb[0].mxu0 %v1398
        %v3229 = vpop.f32.mrb[0].mxu0
        %v3230 = vadd.f32 %v3037, %v3229
        %v3231 = vpop.f32.mrb[0].mxu0
        %v3232 = vadd.f32 %v3039, %v3231
        %v3233 = vpop.f32.mrb[0].mxu0
        %v3234 = vadd.f32 %v3041, %v3233
        %v3235 = vpop.f32.mrb[0].mxu0
        %v3236 = vadd.f32 %v3043, %v3235
        %3237 = vmatprep.mubr.bf16.mxu0 %v1403
        %3238 = vmatmul.mubr.bf16.gmra.mrb[0].mxu0 %v1402
        %v3239 = vpop.f32.mrb[0].mxu0
        %v3240 = vadd.f32 %v3047, %v3239
        %v3241 = vpop.f32.mrb[0].mxu0
        %v3242 = vadd.f32 %v3049, %v3241
        %v3243 = vpop.f32.mrb[0].mxu0
        %v3244 = vadd.f32 %v3051, %v3243
        %v3245 = vpop.f32.mrb[0].mxu0
        %v3246 = vadd.f32 %v3053, %v3245
        %3247 = vmatprep.mubr.bf16.mxu0 %v1407
        %3248 = vmatmul.mubr.bf16.gmra.mrb[0].mxu0 %v1406
        %v3249 = vpop.f32.mrb[0].mxu0
        %v3250 = vadd.f32 %v3057, %v3249
        %v3251 = vpop.f32.mrb[0].mxu0
        %v3252 = vadd.f32 %v3059, %v3251
        %v3253 = vpop.f32.mrb[0].mxu0
        %v3254 = vadd.f32 %v3061, %v3253
        %v3255 = vpop.f32.mrb[0].mxu0
        %v3256 = vadd.f32 %v3063, %v3255
        %3257 = vmatprep.mubr.bf16.mxu0 %v1411
        %3258 = vmatmul.mubr.bf16.gmra.mrb[0].mxu0 %v1410
        %v3259 = vpop.f32.mrb[0].mxu0
        %v3260 = vadd.f32 %v3067, %v3259
        %v3261 = vpop.f32.mrb[0].mxu0
        %v3262 = vadd.f32 %v3069, %v3261
        %v3263 = vpop.f32.mrb[0].mxu0
        %v3264 = vadd.f32 %v3071, %v3263
        %v3265 = vpop.f32.mrb[0].mxu0
        %v3266 = vadd.f32 %v3073, %v3265
        %3267 = vmatprep.mubr.bf16.mxu0 %v1415
        %3268 = vmatmul.mubr.bf16.gmra.mrb[0].mxu0 %v1414
        %v3269 = vpop.f32.mrb[0].mxu0
        %v3270 = vadd.f32 %v3077, %v3269
        %v3271 = vpop.f32.mrb[0].mxu0
        %v3272 = vadd.f32 %v3079, %v3271
        %v3273 = vpop.f32.mrb[0].mxu0
        %v3274 = vadd.f32 %v3081, %v3273
        %v3275 = vpop.f32.mrb[0].mxu0
        %v3276 = vadd.f32 %v3083, %v3275
        %3277 = vmatprep.mubr.bf16.mxu0 %v1419
        %3278 = vmatmul.mubr.bf16.gmra.mrb[0].mxu0 %v1418
        %v3279 = vpop.f32.mrb[0].mxu0
        %v3280 = vadd.f32 %v3087, %v3279
        %v3281 = vpop.f32.mrb[0].mxu0
        %v3282 = vadd.f32 %v3089, %v3281
        %v3283 = vpop.f32.mrb[0].mxu0
        %v3284 = vadd.f32 %v3091, %v3283
        %v3285 = vpop.f32.mrb[0].mxu0
        %v3286 = vadd.f32 %v3093, %v3285
        %3287 = vmatprep.mubr.bf16.mxu0 %v1423
        %3288 = vmatmul.mubr.bf16.gmra.mrb[0].mxu0 %v1422
        %v3289 = vpop.f32.mrb[0].mxu0
        %v3290 = vadd.f32 %v3097, %v3289
        %v3291 = vpop.f32.mrb[0].mxu0
        %v3292 = vadd.f32 %v3099, %v3291
        %v3293 = vpop.f32.mrb[0].mxu0
        %v3294 = vadd.f32 %v3101, %v3293
        %v3295 = vpop.f32.mrb[0].mxu0
        %v3296 = vadd.f32 %v3103, %v3295
        %3297 = vmatprep.mubr.bf16.mxu0 %v1427
        %3298 = vmatmul.mubr.bf16.gmra.mrb[0].mxu0 %v1426
        %v3299 = vpop.f32.mrb[0].mxu0
        %v3300 = vadd.f32 %v3107, %v3299
        %v3301 = vpop.f32.mrb[0].mxu0
        %v3302 = vadd.f32 %v3109, %v3301
        %v3303 = vpop.f32.mrb[0].mxu0
        %v3304 = vadd.f32 %v3111, %v3303
        %v3305 = vpop.f32.mrb[0].mxu0
        %v3306 = vadd.f32 %v3113, %v3305
        %3307 = vmatprep.mubr.bf16.mxu0 %v1431
        %3308 = vmatmul.mubr.bf16.gmra.mrb[0].mxu0 %v1430
        %v3309 = vpop.f32.mrb[0].mxu0
        %v3310 = vadd.f32 %v3117, %v3309
        %v3311 = vpop.f32.mrb[0].mxu0
        %v3312 = vadd.f32 %v3119, %v3311
        %v3313 = vpop.f32.mrb[0].mxu0
        %v3314 = vadd.f32 %v3121, %v3313
        %v3315 = vpop.f32.mrb[0].mxu0
        %v3316 = vadd.f32 %v3123, %v3315
        %3317 = vmatprep.mubr.bf16.mxu0 %v1435
        %3318 = vmatmul.mubr.bf16.gmra.mrb[0].mxu0 %v1434
        %v3319 = vpop.f32.mrb[0].mxu0
        %v3320 = vadd.f32 %v3127, %v3319
        %v3321 = vpop.f32.mrb[0].mxu0
        %v3322 = vadd.f32 %v3129, %v3321
        %v3323 = vpop.f32.mrb[0].mxu0
        %v3324 = vadd.f32 %v3131, %v3323
        %v3325 = vpop.f32.mrb[0].mxu0
        %v3326 = vadd.f32 %v3133, %v3325
        %3327 = vmatprep.mubr.bf16.mxu0 %v1439
        %3328 = vmatmul.mubr.bf16.gmra.mrb[0].mxu0 %v1438
        %v3329 = vpop.f32.mrb[0].mxu0
        %v3330 = vadd.f32 %v3137, %v3329
        %v3331 = vpop.f32.mrb[0].mxu0
        %v3332 = vadd.f32 %v3139, %v3331
        %v3333 = vpop.f32.mrb[0].mxu0
        %v3334 = vadd.f32 %v3141, %v3333
        %v3335 = vpop.f32.mrb[0].mxu0
        %v3336 = vadd.f32 %v3143, %v3335
        %3337 = vmatprep.mubr.bf16.mxu0 %v1443
        %3338 = vmatmul.mubr.bf16.gmra.mrb[0].mxu0 %v1442
        %v3339 = vpop.f32.mrb[0].mxu0
        %v3340 = vadd.f32 %v3147, %v3339
        %v3341 = vpop.f32.mrb[0].mxu0
        %v3342 = vadd.f32 %v3149, %v3341
        %v3343 = vpop.f32.mrb[0].mxu0
        %v3344 = vadd.f32 %v3151, %v3343
        %v3345 = vpop.f32.mrb[0].mxu0
        %v3346 = vadd.f32 %v3153, %v3345
        %3347 = vmatprep.mubr.bf16.mxu0 %v1447
        %3348 = vmatmul.mubr.bf16.gmra.mrb[0].mxu0 %v1446
        %v3349 = vpop.f32.mrb[0].mxu0
        %v3350 = vadd.f32 %v3157, %v3349
        %v3351 = vpop.f32.mrb[0].mxu0
        %v3352 = vadd.f32 %v3159, %v3351
        %v3353 = vpop.f32.mrb[0].mxu0
        %v3354 = vadd.f32 %v3161, %v3353
        %v3355 = vpop.f32.mrb[0].mxu0
        %v3356 = vadd.f32 %v3163, %v3355
        %3357 = vmatprep.mubr.bf16.mxu0 %v1451
        %3358 = vmatmul.mubr.bf16.gmra.mrb[0].mxu0 %v1450
        %v3359 = vpop.f32.mrb[0].mxu0
        %v3360 = vadd.f32 %v3167, %v3359
        %v3361 = vpop.f32.mrb[0].mxu0
        %v3362 = vadd.f32 %v3169, %v3361
        %v3363 = vpop.f32.mrb[0].mxu0
        %v3364 = vadd.f32 %v3171, %v3363
        %v3365 = vpop.f32.mrb[0].mxu0
        %v3366 = vadd.f32 %v3173, %v3365
        %3367 = vmatprep.mubr.bf16.mxu0 %v1455
        %3368 = vmatmul.mubr.bf16.gmra.mrb[0].mxu0 %v1454
        %v3369 = vpop.f32.mrb[0].mxu0
        %v3370 = vadd.f32 %v3177, %v3369
        %v3371 = vpop.f32.mrb[0].mxu0
        %v3372 = vadd.f32 %v3179, %v3371
        %v3373 = vpop.f32.mrb[0].mxu0
        %v3374 = vadd.f32 %v3181, %v3373
        %v3375 = vpop.f32.mrb[0].mxu0
        %v3376 = vadd.f32 %v3183, %v3375
        %3377 = vdwg.mxu0
        %3378 = vmatprep.subr.bf16.mxu0 %v2483
        %3379 = vmatpush1.bf16.msra.mxu0 %v2482
        %3380 = vmatprep.subr.bf16.mxu0 %v2491
        %3381 = vmatpush1.bf16.msra.mxu0 %v2490
        %3382 = vmatprep.subr.bf16.mxu0 %v2499
        %3383 = vmatpush1.bf16.msra.mxu0 %v2498
        %3384 = vmatprep.subr.bf16.mxu0 %v2507
        %3385 = vmatpush1.bf16.msra.mxu0 %v2506
        %3386 = vmatprep.subr.bf16.mxu0 %v2515
        %3387 = vmatpush1.bf16.msra.mxu0 %v2514
        %3388 = vmatprep.subr.bf16.mxu0 %v2523
        %3389 = vmatpush1.bf16.msra.mxu0 %v2522
        %3390 = vmatprep.subr.bf16.mxu0 %v2531
        %3391 = vmatpush1.bf16.msra.mxu0 %v2530
        %3392 = vmatprep.subr.bf16.mxu0 %v2539
        %3393 = vmatpush1.bf16.msra.mxu0 %v2538
        %3394 = vmatprep.subr.bf16.mxu0 %v2547
        %3395 = vmatpush1.bf16.msra.mxu0 %v2546
        %3396 = vmatprep.subr.bf16.mxu0 %v2555
        %3397 = vmatpush1.bf16.msra.mxu0 %v2554
        %3398 = vmatprep.subr.bf16.mxu0 %v2563
        %3399 = vmatpush1.bf16.msra.mxu0 %v2562
        %3400 = vmatprep.subr.bf16.mxu0 %v2571
        %3401 = vmatpush1.bf16.msra.mxu0 %v2570
        %3402 = vmatprep.subr.bf16.mxu0 %v2579
        %3403 = vmatpush1.bf16.msra.mxu0 %v2578
        %3404 = vmatprep.subr.bf16.mxu0 %v2587
        %3405 = vmatpush1.bf16.msra.mxu0 %v2586
        %3406 = vmatprep.subr.bf16.mxu0 %v2595
        %3407 = vmatpush1.bf16.msra.mxu0 %v2594
        %3408 = vmatprep.subr.bf16.mxu0 %v2603
        %3409 = vmatpush1.bf16.msra.mxu0 %v2602
        %3410 = vmatprep.mubr.bf16.mxu0 %v1393
        %3411 = vmatmul.mubr.bf16.gmra.mrb[0].mxu0 %v1392
        %v3412 = vpop.f32.mrb[0].mxu0
        %v3413 = vadd.f32 0.0, %v3412
        %v3414 = vpop.f32.mrb[0].mxu0
        %v3415 = vadd.f32 0.0, %v3414
        %v3416 = vpop.f32.mrb[0].mxu0
        %v3417 = vadd.f32 0.0, %v3416
        %v3418 = vpop.f32.mrb[0].mxu0
        %v3419 = vadd.f32 0.0, %v3418
        %3420 = vmatprep.mubr.bf16.mxu0 %v1397
        %3421 = vmatmul.mubr.bf16.gmra.mrb[0].mxu0 %v1396
        %v3422 = vpop.f32.mrb[0].mxu0
        %v3423 = vadd.f32 0.0, %v3422
        %v3424 = vpop.f32.mrb[0].mxu0
        %v3425 = vadd.f32 0.0, %v3424
        %v3426 = vpop.f32.mrb[0].mxu0
        %v3427 = vadd.f32 0.0, %v3426
        %v3428 = vpop.f32.mrb[0].mxu0
        %v3429 = vadd.f32 0.0, %v3428
        %3430 = vmatprep.mubr.bf16.mxu0 %v1401
        %3431 = vmatmul.mubr.bf16.gmra.mrb[0].mxu0 %v1400
        %v3432 = vpop.f32.mrb[0].mxu0
        %v3433 = vadd.f32 0.0, %v3432
        %v3434 = vpop.f32.mrb[0].mxu0
        %v3435 = vadd.f32 0.0, %v3434
        %v3436 = vpop.f32.mrb[0].mxu0
        %v3437 = vadd.f32 0.0, %v3436
        %v3438 = vpop.f32.mrb[0].mxu0
        %v3439 = vadd.f32 0.0, %v3438
        %3440 = vmatprep.mubr.bf16.mxu0 %v1405
        %3441 = vmatmul.mubr.bf16.gmra.mrb[0].mxu0 %v1404
        %v3442 = vpop.f32.mrb[0].mxu0
        %v3443 = vadd.f32 0.0, %v3442
        %v3444 = vpop.f32.mrb[0].mxu0
        %v3445 = vadd.f32 0.0, %v3444
        %v3446 = vpop.f32.mrb[0].mxu0
        %v3447 = vadd.f32 0.0, %v3446
        %v3448 = vpop.f32.mrb[0].mxu0
        %v3449 = vadd.f32 0.0, %v3448
        %3450 = vmatprep.mubr.bf16.mxu0 %v1409
        %3451 = vmatmul.mubr.bf16.gmra.mrb[0].mxu0 %v1408
        %v3452 = vpop.f32.mrb[0].mxu0
        %v3453 = vadd.f32 0.0, %v3452
        %v3454 = vpop.f32.mrb[0].mxu0
        %v3455 = vadd.f32 0.0, %v3454
        %v3456 = vpop.f32.mrb[0].mxu0
        %v3457 = vadd.f32 0.0, %v3456
        %v3458 = vpop.f32.mrb[0].mxu0
        %v3459 = vadd.f32 0.0, %v3458
        %3460 = vmatprep.mubr.bf16.mxu0 %v1413
        %3461 = vmatmul.mubr.bf16.gmra.mrb[0].mxu0 %v1412
        %v3462 = vpop.f32.mrb[0].mxu0
        %v3463 = vadd.f32 0.0, %v3462
        %v3464 = vpop.f32.mrb[0].mxu0
        %v3465 = vadd.f32 0.0, %v3464
        %v3466 = vpop.f32.mrb[0].mxu0
        %v3467 = vadd.f32 0.0, %v3466
        %v3468 = vpop.f32.mrb[0].mxu0
        %v3469 = vadd.f32 0.0, %v3468
        %3470 = vmatprep.mubr.bf16.mxu0 %v1417
        %3471 = vmatmul.mubr.bf16.gmra.mrb[0].mxu0 %v1416
        %v3472 = vpop.f32.mrb[0].mxu0
        %v3473 = vadd.f32 0.0, %v3472
        %v3474 = vpop.f32.mrb[0].mxu0
        %v3475 = vadd.f32 0.0, %v3474
        %v3476 = vpop.f32.mrb[0].mxu0
        %v3477 = vadd.f32 0.0, %v3476
        %v3478 = vpop.f32.mrb[0].mxu0
        %v3479 = vadd.f32 0.0, %v3478
        %3480 = vmatprep.mubr.bf16.mxu0 %v1421
        %3481 = vmatmul.mubr.bf16.gmra.mrb[0].mxu0 %v1420
        %v3482 = vpop.f32.mrb[0].mxu0
        %v3483 = vadd.f32 0.0, %v3482
        %v3484 = vpop.f32.mrb[0].mxu0
        %v3485 = vadd.f32 0.0, %v3484
        %v3486 = vpop.f32.mrb[0].mxu0
        %v3487 = vadd.f32 0.0, %v3486
        %v3488 = vpop.f32.mrb[0].mxu0
        %v3489 = vadd.f32 0.0, %v3488
        %3490 = vmatprep.mubr.bf16.mxu0 %v1425
        %3491 = vmatmul.mubr.bf16.gmra.mrb[0].mxu0 %v1424
        %v3492 = vpop.f32.mrb[0].mxu0
        %v3493 = vadd.f32 0.0, %v3492
        %v3494 = vpop.f32.mrb[0].mxu0
        %v3495 = vadd.f32 0.0, %v3494
        %v3496 = vpop.f32.mrb[0].mxu0
        %v3497 = vadd.f32 0.0, %v3496
        %v3498 = vpop.f32.mrb[0].mxu0
        %v3499 = vadd.f32 0.0, %v3498
        %3500 = vmatprep.mubr.bf16.mxu0 %v1429
        %3501 = vmatmul.mubr.bf16.gmra.mrb[0].mxu0 %v1428
        %v3502 = vpop.f32.mrb[0].mxu0
        %v3503 = vadd.f32 0.0, %v3502
        %v3504 = vpop.f32.mrb[0].mxu0
        %v3505 = vadd.f32 0.0, %v3504
        %v3506 = vpop.f32.mrb[0].mxu0
        %v3507 = vadd.f32 0.0, %v3506
        %v3508 = vpop.f32.mrb[0].mxu0
        %v3509 = vadd.f32 0.0, %v3508
        %3510 = vmatprep.mubr.bf16.mxu0 %v1433
        %3511 = vmatmul.mubr.bf16.gmra.mrb[0].mxu0 %v1432
        %v3512 = vpop.f32.mrb[0].mxu0
        %v3513 = vadd.f32 0.0, %v3512
        %v3514 = vpop.f32.mrb[0].mxu0
        %v3515 = vadd.f32 0.0, %v3514
        %v3516 = vpop.f32.mrb[0].mxu0
        %v3517 = vadd.f32 0.0, %v3516
        %v3518 = vpop.f32.mrb[0].mxu0
        %v3519 = vadd.f32 0.0, %v3518
        %3520 = vmatprep.mubr.bf16.mxu0 %v1437
        %3521 = vmatmul.mubr.bf16.gmra.mrb[0].mxu0 %v1436
        %v3522 = vpop.f32.mrb[0].mxu0
        %v3523 = vadd.f32 0.0, %v3522
        %v3524 = vpop.f32.mrb[0].mxu0
        %v3525 = vadd.f32 0.0, %v3524
        %v3526 = vpop.f32.mrb[0].mxu0
        %v3527 = vadd.f32 0.0, %v3526
        %v3528 = vpop.f32.mrb[0].mxu0
        %v3529 = vadd.f32 0.0, %v3528
        %3530 = vmatprep.mubr.bf16.mxu0 %v1441
        %3531 = vmatmul.mubr.bf16.gmra.mrb[0].mxu0 %v1440
        %v3532 = vpop.f32.mrb[0].mxu0
        %v3533 = vadd.f32 0.0, %v3532
        %v3534 = vpop.f32.mrb[0].mxu0
        %v3535 = vadd.f32 0.0, %v3534
        %v3536 = vpop.f32.mrb[0].mxu0
        %v3537 = vadd.f32 0.0, %v3536
        %v3538 = vpop.f32.mrb[0].mxu0
        %v3539 = vadd.f32 0.0, %v3538
        %3540 = vmatprep.mubr.bf16.mxu0 %v1445
        %3541 = vmatmul.mubr.bf16.gmra.mrb[0].mxu0 %v1444
        %v3542 = vpop.f32.mrb[0].mxu0
        %v3543 = vadd.f32 0.0, %v3542
        %v3544 = vpop.f32.mrb[0].mxu0
        %v3545 = vadd.f32 0.0, %v3544
        %v3546 = vpop.f32.mrb[0].mxu0
        %v3547 = vadd.f32 0.0, %v3546
        %v3548 = vpop.f32.mrb[0].mxu0
        %v3549 = vadd.f32 0.0, %v3548
        %3550 = vmatprep.mubr.bf16.mxu0 %v1449
        %3551 = vmatmul.mubr.bf16.gmra.mrb[0].mxu0 %v1448
        %v3552 = vpop.f32.mrb[0].mxu0
        %v3553 = vadd.f32 0.0, %v3552
        %v3554 = vpop.f32.mrb[0].mxu0
        %v3555 = vadd.f32 0.0, %v3554
        %v3556 = vpop.f32.mrb[0].mxu0
        %v3557 = vadd.f32 0.0, %v3556
        %v3558 = vpop.f32.mrb[0].mxu0
        %v3559 = vadd.f32 0.0, %v3558
        %3560 = vmatprep.mubr.bf16.mxu0 %v1453
        %3561 = vmatmul.mubr.bf16.gmra.mrb[0].mxu0 %v1452
        %v3562 = vpop.f32.mrb[0].mxu0
        %v3563 = vadd.f32 0.0, %v3562
        %v3564 = vpop.f32.mrb[0].mxu0
        %v3565 = vadd.f32 0.0, %v3564
        %v3566 = vpop.f32.mrb[0].mxu0
        %v3567 = vadd.f32 0.0, %v3566
        %v3568 = vpop.f32.mrb[0].mxu0
        %v3569 = vadd.f32 0.0, %v3568
        %3570 = vdwg.mxu0
        %3571 = vmatprep.subr.bf16.mxu0 %v2611
        %3572 = vmatpush1.bf16.msra.mxu0 %v2610
        %3573 = vmatprep.subr.bf16.mxu0 %v2619
        %3574 = vmatpush1.bf16.msra.mxu0 %v2618
        %3575 = vmatprep.subr.bf16.mxu0 %v2627
        %3576 = vmatpush1.bf16.msra.mxu0 %v2626
        %3577 = vmatprep.subr.bf16.mxu0 %v2635
        %3578 = vmatpush1.bf16.msra.mxu0 %v2634
        %3579 = vmatprep.subr.bf16.mxu0 %v2643
        %3580 = vmatpush1.bf16.msra.mxu0 %v2642
        %3581 = vmatprep.subr.bf16.mxu0 %v2651
        %3582 = vmatpush1.bf16.msra.mxu0 %v2650
        %3583 = vmatprep.subr.bf16.mxu0 %v2659
        %3584 = vmatpush1.bf16.msra.mxu0 %v2658
        %3585 = vmatprep.subr.bf16.mxu0 %v2667
        %3586 = vmatpush1.bf16.msra.mxu0 %v2666
        %3587 = vmatprep.subr.bf16.mxu0 %v2675
        %3588 = vmatpush1.bf16.msra.mxu0 %v2674
        %3589 = vmatprep.subr.bf16.mxu0 %v2683
        %3590 = vmatpush1.bf16.msra.mxu0 %v2682
        %3591 = vmatprep.subr.bf16.mxu0 %v2691
        %3592 = vmatpush1.bf16.msra.mxu0 %v2690
        %3593 = vmatprep.subr.bf16.mxu0 %v2699
        %3594 = vmatpush1.bf16.msra.mxu0 %v2698
        %3595 = vmatprep.subr.bf16.mxu0 %v2707
        %3596 = vmatpush1.bf16.msra.mxu0 %v2706
        %3597 = vmatprep.subr.bf16.mxu0 %v2715
        %3598 = vmatpush1.bf16.msra.mxu0 %v2714
        %3599 = vmatprep.subr.bf16.mxu0 %v2723
        %3600 = vmatpush1.bf16.msra.mxu0 %v2722
        %3601 = vmatprep.subr.bf16.mxu0 %v2731
        %3602 = vmatpush1.bf16.msra.mxu0 %v2730
        %3603 = vmatprep.mubr.bf16.mxu0 %v1395
        %3604 = vmatmul.mubr.bf16.gmra.mrb[0].mxu0 %v1394
        %v3605 = vpop.f32.mrb[0].mxu0
        %v3606 = vadd.f32 %v3413, %v3605
        %v3607 = vpop.f32.mrb[0].mxu0
        %v3608 = vadd.f32 %v3415, %v3607
        %v3609 = vpop.f32.mrb[0].mxu0
        %v3610 = vadd.f32 %v3417, %v3609
        %v3611 = vpop.f32.mrb[0].mxu0
        %v3612 = vadd.f32 %v3419, %v3611
        %3613 = vmatprep.mubr.bf16.mxu0 %v1399
        %3614 = vmatmul.mubr.bf16.gmra.mrb[0].mxu0 %v1398
        %v3615 = vpop.f32.mrb[0].mxu0
        %v3616 = vadd.f32 %v3423, %v3615
        %v3617 = vpop.f32.mrb[0].mxu0
        %v3618 = vadd.f32 %v3425, %v3617
        %v3619 = vpop.f32.mrb[0].mxu0
        %v3620 = vadd.f32 %v3427, %v3619
        %v3621 = vpop.f32.mrb[0].mxu0
        %v3622 = vadd.f32 %v3429, %v3621
        %3623 = vmatprep.mubr.bf16.mxu0 %v1403
        %3624 = vmatmul.mubr.bf16.gmra.mrb[0].mxu0 %v1402
        %v3625 = vpop.f32.mrb[0].mxu0
        %v3626 = vadd.f32 %v3433, %v3625
        %v3627 = vpop.f32.mrb[0].mxu0
        %v3628 = vadd.f32 %v3435, %v3627
        %v3629 = vpop.f32.mrb[0].mxu0
        %v3630 = vadd.f32 %v3437, %v3629
        %v3631 = vpop.f32.mrb[0].mxu0
        %v3632 = vadd.f32 %v3439, %v3631
        %3633 = vmatprep.mubr.bf16.mxu0 %v1407
        %3634 = vmatmul.mubr.bf16.gmra.mrb[0].mxu0 %v1406
        %v3635 = vpop.f32.mrb[0].mxu0
        %v3636 = vadd.f32 %v3443, %v3635
        %v3637 = vpop.f32.mrb[0].mxu0
        %v3638 = vadd.f32 %v3445, %v3637
        %v3639 = vpop.f32.mrb[0].mxu0
        %v3640 = vadd.f32 %v3447, %v3639
        %v3641 = vpop.f32.mrb[0].mxu0
        %v3642 = vadd.f32 %v3449, %v3641
        %3643 = vmatprep.mubr.bf16.mxu0 %v1411
        %3644 = vmatmul.mubr.bf16.gmra.mrb[0].mxu0 %v1410
        %v3645 = vpop.f32.mrb[0].mxu0
        %v3646 = vadd.f32 %v3453, %v3645
        %v3647 = vpop.f32.mrb[0].mxu0
        %v3648 = vadd.f32 %v3455, %v3647
        %v3649 = vpop.f32.mrb[0].mxu0
        %v3650 = vadd.f32 %v3457, %v3649
        %v3651 = vpop.f32.mrb[0].mxu0
        %v3652 = vadd.f32 %v3459, %v3651
        %3653 = vmatprep.mubr.bf16.mxu0 %v1415
        %3654 = vmatmul.mubr.bf16.gmra.mrb[0].mxu0 %v1414
        %v3655 = vpop.f32.mrb[0].mxu0
        %v3656 = vadd.f32 %v3463, %v3655
        %v3657 = vpop.f32.mrb[0].mxu0
        %v3658 = vadd.f32 %v3465, %v3657
        %v3659 = vpop.f32.mrb[0].mxu0
        %v3660 = vadd.f32 %v3467, %v3659
        %v3661 = vpop.f32.mrb[0].mxu0
        %v3662 = vadd.f32 %v3469, %v3661
        %3663 = vmatprep.mubr.bf16.mxu0 %v1419
        %3664 = vmatmul.mubr.bf16.gmra.mrb[0].mxu0 %v1418
        %v3665 = vpop.f32.mrb[0].mxu0
        %v3666 = vadd.f32 %v3473, %v3665
        %v3667 = vpop.f32.mrb[0].mxu0
        %v3668 = vadd.f32 %v3475, %v3667
        %v3669 = vpop.f32.mrb[0].mxu0
        %v3670 = vadd.f32 %v3477, %v3669
        %v3671 = vpop.f32.mrb[0].mxu0
        %v3672 = vadd.f32 %v3479, %v3671
        %3673 = vmatprep.mubr.bf16.mxu0 %v1423
        %3674 = vmatmul.mubr.bf16.gmra.mrb[0].mxu0 %v1422
        %v3675 = vpop.f32.mrb[0].mxu0
        %v3676 = vadd.f32 %v3483, %v3675
        %v3677 = vpop.f32.mrb[0].mxu0
        %v3678 = vadd.f32 %v3485, %v3677
        %v3679 = vpop.f32.mrb[0].mxu0
        %v3680 = vadd.f32 %v3487, %v3679
        %v3681 = vpop.f32.mrb[0].mxu0
        %v3682 = vadd.f32 %v3489, %v3681
        %3683 = vmatprep.mubr.bf16.mxu0 %v1427
        %3684 = vmatmul.mubr.bf16.gmra.mrb[0].mxu0 %v1426
        %v3685 = vpop.f32.mrb[0].mxu0
        %v3686 = vadd.f32 %v3493, %v3685
        %v3687 = vpop.f32.mrb[0].mxu0
        %v3688 = vadd.f32 %v3495, %v3687
        %v3689 = vpop.f32.mrb[0].mxu0
        %v3690 = vadd.f32 %v3497, %v3689
        %v3691 = vpop.f32.mrb[0].mxu0
        %v3692 = vadd.f32 %v3499, %v3691
        %3693 = vmatprep.mubr.bf16.mxu0 %v1431
        %3694 = vmatmul.mubr.bf16.gmra.mrb[0].mxu0 %v1430
        %v3695 = vpop.f32.mrb[0].mxu0
        %v3696 = vadd.f32 %v3503, %v3695
        %v3697 = vpop.f32.mrb[0].mxu0
        %v3698 = vadd.f32 %v3505, %v3697
        %v3699 = vpop.f32.mrb[0].mxu0
        %v3700 = vadd.f32 %v3507, %v3699
        %v3701 = vpop.f32.mrb[0].mxu0
        %v3702 = vadd.f32 %v3509, %v3701
        %3703 = vmatprep.mubr.bf16.mxu0 %v1435
        %3704 = vmatmul.mubr.bf16.gmra.mrb[0].mxu0 %v1434
        %v3705 = vpop.f32.mrb[0].mxu0
        %v3706 = vadd.f32 %v3513, %v3705
        %v3707 = vpop.f32.mrb[0].mxu0
        %v3708 = vadd.f32 %v3515, %v3707
        %v3709 = vpop.f32.mrb[0].mxu0
        %v3710 = vadd.f32 %v3517, %v3709
        %v3711 = vpop.f32.mrb[0].mxu0
        %v3712 = vadd.f32 %v3519, %v3711
        %3713 = vmatprep.mubr.bf16.mxu0 %v1439
        %3714 = vmatmul.mubr.bf16.gmra.mrb[0].mxu0 %v1438
        %v3715 = vpop.f32.mrb[0].mxu0
        %v3716 = vadd.f32 %v3523, %v3715
        %v3717 = vpop.f32.mrb[0].mxu0
        %v3718 = vadd.f32 %v3525, %v3717
        %v3719 = vpop.f32.mrb[0].mxu0
        %v3720 = vadd.f32 %v3527, %v3719
        %v3721 = vpop.f32.mrb[0].mxu0
        %v3722 = vadd.f32 %v3529, %v3721
        %3723 = vmatprep.mubr.bf16.mxu0 %v1443
        %3724 = vmatmul.mubr.bf16.gmra.mrb[0].mxu0 %v1442
        %v3725 = vpop.f32.mrb[0].mxu0
        %v3726 = vadd.f32 %v3533, %v3725
        %v3727 = vpop.f32.mrb[0].mxu0
        %v3728 = vadd.f32 %v3535, %v3727
        %v3729 = vpop.f32.mrb[0].mxu0
        %v3730 = vadd.f32 %v3537, %v3729
        %v3731 = vpop.f32.mrb[0].mxu0
        %v3732 = vadd.f32 %v3539, %v3731
        %3733 = vmatprep.mubr.bf16.mxu0 %v1447
        %3734 = vmatmul.mubr.bf16.gmra.mrb[0].mxu0 %v1446
        %v3735 = vpop.f32.mrb[0].mxu0
        %v3736 = vadd.f32 %v3543, %v3735
        %v3737 = vpop.f32.mrb[0].mxu0
        %v3738 = vadd.f32 %v3545, %v3737
        %v3739 = vpop.f32.mrb[0].mxu0
        %v3740 = vadd.f32 %v3547, %v3739
        %v3741 = vpop.f32.mrb[0].mxu0
        %v3742 = vadd.f32 %v3549, %v3741
        %3743 = vmatprep.mubr.bf16.mxu0 %v1451
        %3744 = vmatmul.mubr.bf16.gmra.mrb[0].mxu0 %v1450
        %v3745 = vpop.f32.mrb[0].mxu0
        %v3746 = vadd.f32 %v3553, %v3745
        %v3747 = vpop.f32.mrb[0].mxu0
        %v3748 = vadd.f32 %v3555, %v3747
        %v3749 = vpop.f32.mrb[0].mxu0
        %v3750 = vadd.f32 %v3557, %v3749
        %v3751 = vpop.f32.mrb[0].mxu0
        %v3752 = vadd.f32 %v3559, %v3751
        %3753 = vmatprep.mubr.bf16.mxu0 %v1455
        %3754 = vmatmul.mubr.bf16.gmra.mrb[0].mxu0 %v1454
        %v3755 = vpop.f32.mrb[0].mxu0
        %v3756 = vadd.f32 %v3563, %v3755
        %v3757 = vpop.f32.mrb[0].mxu0
        %v3758 = vadd.f32 %v3565, %v3757
        %v3759 = vpop.f32.mrb[0].mxu0
        %v3760 = vadd.f32 %v3567, %v3759
        %v3761 = vpop.f32.mrb[0].mxu0
        %v3762 = vadd.f32 %v3569, %v3761
        %3763 = vdwg.mxu0
        %3764 = vmatprep.subr.bf16.mxu0 %v2485
        %3765 = vmatpush1.bf16.msra.mxu0 %v2484
        %3766 = vmatprep.subr.bf16.mxu0 %v2493
        %3767 = vmatpush1.bf16.msra.mxu0 %v2492
        %3768 = vmatprep.subr.bf16.mxu0 %v2501
        %3769 = vmatpush1.bf16.msra.mxu0 %v2500
        %3770 = vmatprep.subr.bf16.mxu0 %v2509
        %3771 = vmatpush1.bf16.msra.mxu0 %v2508
        %3772 = vmatprep.subr.bf16.mxu0 %v2517
        %3773 = vmatpush1.bf16.msra.mxu0 %v2516
        %3774 = vmatprep.subr.bf16.mxu0 %v2525
        %3775 = vmatpush1.bf16.msra.mxu0 %v2524
        %3776 = vmatprep.subr.bf16.mxu0 %v2533
        %3777 = vmatpush1.bf16.msra.mxu0 %v2532
        %3778 = vmatprep.subr.bf16.mxu0 %v2541
        %3779 = vmatpush1.bf16.msra.mxu0 %v2540
        %3780 = vmatprep.subr.bf16.mxu0 %v2549
        %3781 = vmatpush1.bf16.msra.mxu0 %v2548
        %3782 = vmatprep.subr.bf16.mxu0 %v2557
        %3783 = vmatpush1.bf16.msra.mxu0 %v2556
        %3784 = vmatprep.subr.bf16.mxu0 %v2565
        %3785 = vmatpush1.bf16.msra.mxu0 %v2564
        %3786 = vmatprep.subr.bf16.mxu0 %v2573
        %3787 = vmatpush1.bf16.msra.mxu0 %v2572
        %3788 = vmatprep.subr.bf16.mxu0 %v2581
        %3789 = vmatpush1.bf16.msra.mxu0 %v2580
        %3790 = vmatprep.subr.bf16.mxu0 %v2589
        %3791 = vmatpush1.bf16.msra.mxu0 %v2588
        %3792 = vmatprep.subr.bf16.mxu0 %v2597
        %3793 = vmatpush1.bf16.msra.mxu0 %v2596
        %3794 = vmatprep.subr.bf16.mxu0 %v2605
        %3795 = vmatpush1.bf16.msra.mxu0 %v2604
        %3796 = vmatprep.mubr.bf16.mxu0 %v1393
        %3797 = vmatmul.mubr.bf16.gmra.mrb[0].mxu0 %v1392
        %v3798 = vpop.f32.mrb[0].mxu0
        %v3799 = vadd.f32 0.0, %v3798
        %v3800 = vpop.f32.mrb[0].mxu0
        %v3801 = vadd.f32 0.0, %v3800
        %v3802 = vpop.f32.mrb[0].mxu0
        %v3803 = vadd.f32 0.0, %v3802
        %v3804 = vpop.f32.mrb[0].mxu0
        %v3805 = vadd.f32 0.0, %v3804
        %3806 = vmatprep.mubr.bf16.mxu0 %v1397
        %3807 = vmatmul.mubr.bf16.gmra.mrb[0].mxu0 %v1396
        %v3808 = vpop.f32.mrb[0].mxu0
        %v3809 = vadd.f32 0.0, %v3808
        %v3810 = vpop.f32.mrb[0].mxu0
        %v3811 = vadd.f32 0.0, %v3810
        %v3812 = vpop.f32.mrb[0].mxu0
        %v3813 = vadd.f32 0.0, %v3812
        %v3814 = vpop.f32.mrb[0].mxu0
        %v3815 = vadd.f32 0.0, %v3814
        %3816 = vmatprep.mubr.bf16.mxu0 %v1401
        %3817 = vmatmul.mubr.bf16.gmra.mrb[0].mxu0 %v1400
        %v3818 = vpop.f32.mrb[0].mxu0
        %v3819 = vadd.f32 0.0, %v3818
        %v3820 = vpop.f32.mrb[0].mxu0
        %v3821 = vadd.f32 0.0, %v3820
        %v3822 = vpop.f32.mrb[0].mxu0
        %v3823 = vadd.f32 0.0, %v3822
        %v3824 = vpop.f32.mrb[0].mxu0
        %v3825 = vadd.f32 0.0, %v3824
        %3826 = vmatprep.mubr.bf16.mxu0 %v1405
        %3827 = vmatmul.mubr.bf16.gmra.mrb[0].mxu0 %v1404
        %v3828 = vpop.f32.mrb[0].mxu0
        %v3829 = vadd.f32 0.0, %v3828
        %v3830 = vpop.f32.mrb[0].mxu0
        %v3831 = vadd.f32 0.0, %v3830
        %v3832 = vpop.f32.mrb[0].mxu0
        %v3833 = vadd.f32 0.0, %v3832
        %v3834 = vpop.f32.mrb[0].mxu0
        %v3835 = vadd.f32 0.0, %v3834
        %3836 = vmatprep.mubr.bf16.mxu0 %v1409
        %3837 = vmatmul.mubr.bf16.gmra.mrb[0].mxu0 %v1408
        %v3838 = vpop.f32.mrb[0].mxu0
        %v3839 = vadd.f32 0.0, %v3838
        %v3840 = vpop.f32.mrb[0].mxu0
        %v3841 = vadd.f32 0.0, %v3840
        %v3842 = vpop.f32.mrb[0].mxu0
        %v3843 = vadd.f32 0.0, %v3842
        %v3844 = vpop.f32.mrb[0].mxu0
        %v3845 = vadd.f32 0.0, %v3844
        %3846 = vmatprep.mubr.bf16.mxu0 %v1413
        %3847 = vmatmul.mubr.bf16.gmra.mrb[0].mxu0 %v1412
        %v3848 = vpop.f32.mrb[0].mxu0
        %v3849 = vadd.f32 0.0, %v3848
        %v3850 = vpop.f32.mrb[0].mxu0
        %v3851 = vadd.f32 0.0, %v3850
        %v3852 = vpop.f32.mrb[0].mxu0
        %v3853 = vadd.f32 0.0, %v3852
        %v3854 = vpop.f32.mrb[0].mxu0
        %v3855 = vadd.f32 0.0, %v3854
        %3856 = vmatprep.mubr.bf16.mxu0 %v1417
        %3857 = vmatmul.mubr.bf16.gmra.mrb[0].mxu0 %v1416
        %v3858 = vpop.f32.mrb[0].mxu0
        %v3859 = vadd.f32 0.0, %v3858
        %v3860 = vpop.f32.mrb[0].mxu0
        %v3861 = vadd.f32 0.0, %v3860
        %v3862 = vpop.f32.mrb[0].mxu0
        %v3863 = vadd.f32 0.0, %v3862
        %v3864 = vpop.f32.mrb[0].mxu0
        %v3865 = vadd.f32 0.0, %v3864
        %3866 = vmatprep.mubr.bf16.mxu0 %v1421
        %3867 = vmatmul.mubr.bf16.gmra.mrb[0].mxu0 %v1420
        %v3868 = vpop.f32.mrb[0].mxu0
        %v3869 = vadd.f32 0.0, %v3868
        %v3870 = vpop.f32.mrb[0].mxu0
        %v3871 = vadd.f32 0.0, %v3870
        %v3872 = vpop.f32.mrb[0].mxu0
        %v3873 = vadd.f32 0.0, %v3872
        %v3874 = vpop.f32.mrb[0].mxu0
        %v3875 = vadd.f32 0.0, %v3874
        %3876 = vmatprep.mubr.bf16.mxu0 %v1425
        %3877 = vmatmul.mubr.bf16.gmra.mrb[0].mxu0 %v1424
        %v3878 = vpop.f32.mrb[0].mxu0
        %v3879 = vadd.f32 0.0, %v3878
        %v3880 = vpop.f32.mrb[0].mxu0
        %v3881 = vadd.f32 0.0, %v3880
        %v3882 = vpop.f32.mrb[0].mxu0
        %v3883 = vadd.f32 0.0, %v3882
        %v3884 = vpop.f32.mrb[0].mxu0
        %v3885 = vadd.f32 0.0, %v3884
        %3886 = vmatprep.mubr.bf16.mxu0 %v1429
        %3887 = vmatmul.mubr.bf16.gmra.mrb[0].mxu0 %v1428
        %v3888 = vpop.f32.mrb[0].mxu0
        %v3889 = vadd.f32 0.0, %v3888
        %v3890 = vpop.f32.mrb[0].mxu0
        %v3891 = vadd.f32 0.0, %v3890
        %v3892 = vpop.f32.mrb[0].mxu0
        %v3893 = vadd.f32 0.0, %v3892
        %v3894 = vpop.f32.mrb[0].mxu0
        %v3895 = vadd.f32 0.0, %v3894
        %3896 = vmatprep.mubr.bf16.mxu0 %v1433
        %3897 = vmatmul.mubr.bf16.gmra.mrb[0].mxu0 %v1432
        %v3898 = vpop.f32.mrb[0].mxu0
        %v3899 = vadd.f32 0.0, %v3898
        %v3900 = vpop.f32.mrb[0].mxu0
        %v3901 = vadd.f32 0.0, %v3900
        %v3902 = vpop.f32.mrb[0].mxu0
        %v3903 = vadd.f32 0.0, %v3902
        %v3904 = vpop.f32.mrb[0].mxu0
        %v3905 = vadd.f32 0.0, %v3904
        %3906 = vmatprep.mubr.bf16.mxu0 %v1437
        %3907 = vmatmul.mubr.bf16.gmra.mrb[0].mxu0 %v1436
        %v3908 = vpop.f32.mrb[0].mxu0
        %v3909 = vadd.f32 0.0, %v3908
        %v3910 = vpop.f32.mrb[0].mxu0
        %v3911 = vadd.f32 0.0, %v3910
        %v3912 = vpop.f32.mrb[0].mxu0
        %v3913 = vadd.f32 0.0, %v3912
        %v3914 = vpop.f32.mrb[0].mxu0
        %v3915 = vadd.f32 0.0, %v3914
        %3916 = vmatprep.mubr.bf16.mxu0 %v1441
        %3917 = vmatmul.mubr.bf16.gmra.mrb[0].mxu0 %v1440
        %v3918 = vpop.f32.mrb[0].mxu0
        %v3919 = vadd.f32 0.0, %v3918
        %v3920 = vpop.f32.mrb[0].mxu0
        %v3921 = vadd.f32 0.0, %v3920
        %v3922 = vpop.f32.mrb[0].mxu0
        %v3923 = vadd.f32 0.0, %v3922
        %v3924 = vpop.f32.mrb[0].mxu0
        %v3925 = vadd.f32 0.0, %v3924
        %3926 = vmatprep.mubr.bf16.mxu0 %v1445
        %3927 = vmatmul.mubr.bf16.gmra.mrb[0].mxu0 %v1444
        %v3928 = vpop.f32.mrb[0].mxu0
        %v3929 = vadd.f32 0.0, %v3928
        %v3930 = vpop.f32.mrb[0].mxu0
        %v3931 = vadd.f32 0.0, %v3930
        %v3932 = vpop.f32.mrb[0].mxu0
        %v3933 = vadd.f32 0.0, %v3932
        %v3934 = vpop.f32.mrb[0].mxu0
        %v3935 = vadd.f32 0.0, %v3934
        %3936 = vmatprep.mubr.bf16.mxu0 %v1449
        %3937 = vmatmul.mubr.bf16.gmra.mrb[0].mxu0 %v1448
        %v3938 = vpop.f32.mrb[0].mxu0
        %v3939 = vadd.f32 0.0, %v3938
        %v3940 = vpop.f32.mrb[0].mxu0
        %v3941 = vadd.f32 0.0, %v3940
        %v3942 = vpop.f32.mrb[0].mxu0
        %v3943 = vadd.f32 0.0, %v3942
        %v3944 = vpop.f32.mrb[0].mxu0
        %v3945 = vadd.f32 0.0, %v3944
        %3946 = vmatprep.mubr.bf16.mxu0 %v1453
        %3947 = vmatmul.mubr.bf16.gmra.mrb[0].mxu0 %v1452
        %v3948 = vpop.f32.mrb[0].mxu0
        %v3949 = vadd.f32 0.0, %v3948
        %v3950 = vpop.f32.mrb[0].mxu0
        %v3951 = vadd.f32 0.0, %v3950
        %v3952 = vpop.f32.mrb[0].mxu0
        %v3953 = vadd.f32 0.0, %v3952
        %v3954 = vpop.f32.mrb[0].mxu0
        %v3955 = vadd.f32 0.0, %v3954
        %3956 = vdwg.mxu0
        %3957 = vmatprep.subr.bf16.mxu0 %v2613
        %3958 = vmatpush1.bf16.msra.mxu0 %v2612
        %3959 = vmatprep.subr.bf16.mxu0 %v2621
        %3960 = vmatpush1.bf16.msra.mxu0 %v2620
        %3961 = vmatprep.subr.bf16.mxu0 %v2629
        %3962 = vmatpush1.bf16.msra.mxu0 %v2628
        %3963 = vmatprep.subr.bf16.mxu0 %v2637
        %3964 = vmatpush1.bf16.msra.mxu0 %v2636
        %3965 = vmatprep.subr.bf16.mxu0 %v2645
        %3966 = vmatpush1.bf16.msra.mxu0 %v2644
        %3967 = vmatprep.subr.bf16.mxu0 %v2653
        %3968 = vmatpush1.bf16.msra.mxu0 %v2652
        %3969 = vmatprep.subr.bf16.mxu0 %v2661
        %3970 = vmatpush1.bf16.msra.mxu0 %v2660
        %3971 = vmatprep.subr.bf16.mxu0 %v2669
        %3972 = vmatpush1.bf16.msra.mxu0 %v2668
        %3973 = vmatprep.subr.bf16.mxu0 %v2677
        %3974 = vmatpush1.bf16.msra.mxu0 %v2676
        %3975 = vmatprep.subr.bf16.mxu0 %v2685
        %3976 = vmatpush1.bf16.msra.mxu0 %v2684
        %3977 = vmatprep.subr.bf16.mxu0 %v2693
        %3978 = vmatpush1.bf16.msra.mxu0 %v2692
        %3979 = vmatprep.subr.bf16.mxu0 %v2701
        %3980 = vmatpush1.bf16.msra.mxu0 %v2700
        %3981 = vmatprep.subr.bf16.mxu0 %v2709
        %3982 = vmatpush1.bf16.msra.mxu0 %v2708
        %3983 = vmatprep.subr.bf16.mxu0 %v2717
        %3984 = vmatpush1.bf16.msra.mxu0 %v2716
        %3985 = vmatprep.subr.bf16.mxu0 %v2725
        %3986 = vmatpush1.bf16.msra.mxu0 %v2724
        %3987 = vmatprep.subr.bf16.mxu0 %v2733
        %3988 = vmatpush1.bf16.msra.mxu0 %v2732
        %3989 = vmatprep.mubr.bf16.mxu0 %v1395
        %3990 = vmatmul.mubr.bf16.gmra.mrb[0].mxu0 %v1394
        %v3991 = vpop.f32.mrb[0].mxu0
        %v3992 = vadd.f32 %v3799, %v3991
        %v3993 = vpop.f32.mrb[0].mxu0
        %v3994 = vadd.f32 %v3801, %v3993
        %v3995 = vpop.f32.mrb[0].mxu0
        %v3996 = vadd.f32 %v3803, %v3995
        %v3997 = vpop.f32.mrb[0].mxu0
        %v3998 = vadd.f32 %v3805, %v3997
        %3999 = vmatprep.mubr.bf16.mxu0 %v1399
        %4000 = vmatmul.mubr.bf16.gmra.mrb[0].mxu0 %v1398
        %v4001 = vpop.f32.mrb[0].mxu0
        %v4002 = vadd.f32 %v3809, %v4001
        %v4003 = vpop.f32.mrb[0].mxu0
        %v4004 = vadd.f32 %v3811, %v4003
        %v4005 = vpop.f32.mrb[0].mxu0
        %v4006 = vadd.f32 %v3813, %v4005
        %v4007 = vpop.f32.mrb[0].mxu0
        %v4008 = vadd.f32 %v3815, %v4007
        %4009 = vmatprep.mubr.bf16.mxu0 %v1403
        %4010 = vmatmul.mubr.bf16.gmra.mrb[0].mxu0 %v1402
        %v4011 = vpop.f32.mrb[0].mxu0
        %v4012 = vadd.f32 %v3819, %v4011
        %v4013 = vpop.f32.mrb[0].mxu0
        %v4014 = vadd.f32 %v3821, %v4013
        %v4015 = vpop.f32.mrb[0].mxu0
        %v4016 = vadd.f32 %v3823, %v4015
        %v4017 = vpop.f32.mrb[0].mxu0
        %v4018 = vadd.f32 %v3825, %v4017
        %4019 = vmatprep.mubr.bf16.mxu0 %v1407
        %4020 = vmatmul.mubr.bf16.gmra.mrb[0].mxu0 %v1406
        %v4021 = vpop.f32.mrb[0].mxu0
        %v4022 = vadd.f32 %v3829, %v4021
        %v4023 = vpop.f32.mrb[0].mxu0
        %v4024 = vadd.f32 %v3831, %v4023
        %v4025 = vpop.f32.mrb[0].mxu0
        %v4026 = vadd.f32 %v3833, %v4025
        %v4027 = vpop.f32.mrb[0].mxu0
        %v4028 = vadd.f32 %v3835, %v4027
        %4029 = vmatprep.mubr.bf16.mxu0 %v1411
        %4030 = vmatmul.mubr.bf16.gmra.mrb[0].mxu0 %v1410
        %v4031 = vpop.f32.mrb[0].mxu0
        %v4032 = vadd.f32 %v3839, %v4031
        %v4033 = vpop.f32.mrb[0].mxu0
        %v4034 = vadd.f32 %v3841, %v4033
        %v4035 = vpop.f32.mrb[0].mxu0
        %v4036 = vadd.f32 %v3843, %v4035
        %v4037 = vpop.f32.mrb[0].mxu0
        %v4038 = vadd.f32 %v3845, %v4037
        %4039 = vmatprep.mubr.bf16.mxu0 %v1415
        %4040 = vmatmul.mubr.bf16.gmra.mrb[0].mxu0 %v1414
        %v4041 = vpop.f32.mrb[0].mxu0
        %v4042 = vadd.f32 %v3849, %v4041
        %v4043 = vpop.f32.mrb[0].mxu0
        %v4044 = vadd.f32 %v3851, %v4043
        %v4045 = vpop.f32.mrb[0].mxu0
        %v4046 = vadd.f32 %v3853, %v4045
        %v4047 = vpop.f32.mrb[0].mxu0
        %v4048 = vadd.f32 %v3855, %v4047
        %4049 = vmatprep.mubr.bf16.mxu0 %v1419
        %4050 = vmatmul.mubr.bf16.gmra.mrb[0].mxu0 %v1418
        %v4051 = vpop.f32.mrb[0].mxu0
        %v4052 = vadd.f32 %v3859, %v4051
        %v4053 = vpop.f32.mrb[0].mxu0
        %v4054 = vadd.f32 %v3861, %v4053
        %v4055 = vpop.f32.mrb[0].mxu0
        %v4056 = vadd.f32 %v3863, %v4055
        %v4057 = vpop.f32.mrb[0].mxu0
        %v4058 = vadd.f32 %v3865, %v4057
        %4059 = vmatprep.mubr.bf16.mxu0 %v1423
        %4060 = vmatmul.mubr.bf16.gmra.mrb[0].mxu0 %v1422
        %v4061 = vpop.f32.mrb[0].mxu0
        %v4062 = vadd.f32 %v3869, %v4061
        %v4063 = vpop.f32.mrb[0].mxu0
        %v4064 = vadd.f32 %v3871, %v4063
        %v4065 = vpop.f32.mrb[0].mxu0
        %v4066 = vadd.f32 %v3873, %v4065
        %v4067 = vpop.f32.mrb[0].mxu0
        %v4068 = vadd.f32 %v3875, %v4067
        %4069 = vmatprep.mubr.bf16.mxu0 %v1427
        %4070 = vmatmul.mubr.bf16.gmra.mrb[0].mxu0 %v1426
        %v4071 = vpop.f32.mrb[0].mxu0
        %v4072 = vadd.f32 %v3879, %v4071
        %v4073 = vpop.f32.mrb[0].mxu0
        %v4074 = vadd.f32 %v3881, %v4073
        %v4075 = vpop.f32.mrb[0].mxu0
        %v4076 = vadd.f32 %v3883, %v4075
        %v4077 = vpop.f32.mrb[0].mxu0
        %v4078 = vadd.f32 %v3885, %v4077
        %4079 = vmatprep.mubr.bf16.mxu0 %v1431
        %4080 = vmatmul.mubr.bf16.gmra.mrb[0].mxu0 %v1430
        %v4081 = vpop.f32.mrb[0].mxu0
        %v4082 = vadd.f32 %v3889, %v4081
        %v4083 = vpop.f32.mrb[0].mxu0
        %v4084 = vadd.f32 %v3891, %v4083
        %v4085 = vpop.f32.mrb[0].mxu0
        %v4086 = vadd.f32 %v3893, %v4085
        %v4087 = vpop.f32.mrb[0].mxu0
        %v4088 = vadd.f32 %v3895, %v4087
        %4089 = vmatprep.mubr.bf16.mxu0 %v1435
        %4090 = vmatmul.mubr.bf16.gmra.mrb[0].mxu0 %v1434
        %v4091 = vpop.f32.mrb[0].mxu0
        %v4092 = vadd.f32 %v3899, %v4091
        %v4093 = vpop.f32.mrb[0].mxu0
        %v4094 = vadd.f32 %v3901, %v4093
        %v4095 = vpop.f32.mrb[0].mxu0
        %v4096 = vadd.f32 %v3903, %v4095
        %v4097 = vpop.f32.mrb[0].mxu0
        %v4098 = vadd.f32 %v3905, %v4097
        %4099 = vmatprep.mubr.bf16.mxu0 %v1439
        %4100 = vmatmul.mubr.bf16.gmra.mrb[0].mxu0 %v1438
        %v4101 = vpop.f32.mrb[0].mxu0
        %v4102 = vadd.f32 %v3909, %v4101
        %v4103 = vpop.f32.mrb[0].mxu0
        %v4104 = vadd.f32 %v3911, %v4103
        %v4105 = vpop.f32.mrb[0].mxu0
        %v4106 = vadd.f32 %v3913, %v4105
        %v4107 = vpop.f32.mrb[0].mxu0
        %v4108 = vadd.f32 %v3915, %v4107
        %4109 = vmatprep.mubr.bf16.mxu0 %v1443
        %4110 = vmatmul.mubr.bf16.gmra.mrb[0].mxu0 %v1442
        %v4111 = vpop.f32.mrb[0].mxu0
        %v4112 = vadd.f32 %v3919, %v4111
        %v4113 = vpop.f32.mrb[0].mxu0
        %v4114 = vadd.f32 %v3921, %v4113
        %v4115 = vpop.f32.mrb[0].mxu0
        %v4116 = vadd.f32 %v3923, %v4115
        %v4117 = vpop.f32.mrb[0].mxu0
        %v4118 = vadd.f32 %v3925, %v4117
        %4119 = vmatprep.mubr.bf16.mxu0 %v1447
        %4120 = vmatmul.mubr.bf16.gmra.mrb[0].mxu0 %v1446
        %v4121 = vpop.f32.mrb[0].mxu0
        %v4122 = vadd.f32 %v3929, %v4121
        %v4123 = vpop.f32.mrb[0].mxu0
        %v4124 = vadd.f32 %v3931, %v4123
        %v4125 = vpop.f32.mrb[0].mxu0
        %v4126 = vadd.f32 %v3933, %v4125
        %v4127 = vpop.f32.mrb[0].mxu0
        %v4128 = vadd.f32 %v3935, %v4127
        %4129 = vmatprep.mubr.bf16.mxu0 %v1451
        %4130 = vmatmul.mubr.bf16.gmra.mrb[0].mxu0 %v1450
        %v4131 = vpop.f32.mrb[0].mxu0
        %v4132 = vadd.f32 %v3939, %v4131
        %v4133 = vpop.f32.mrb[0].mxu0
        %v4134 = vadd.f32 %v3941, %v4133
        %v4135 = vpop.f32.mrb[0].mxu0
        %v4136 = vadd.f32 %v3943, %v4135
        %v4137 = vpop.f32.mrb[0].mxu0
        %v4138 = vadd.f32 %v3945, %v4137
        %4139 = vmatprep.mubr.bf16.mxu0 %v1455
        %4140 = vmatmul.mubr.bf16.gmra.mrb[0].mxu0 %v1454
        %v4141 = vpop.f32.mrb[0].mxu0
        %v4142 = vadd.f32 %v3949, %v4141
        %v4143 = vpop.f32.mrb[0].mxu0
        %v4144 = vadd.f32 %v3951, %v4143
        %v4145 = vpop.f32.mrb[0].mxu0
        %v4146 = vadd.f32 %v3953, %v4145
        %v4147 = vpop.f32.mrb[0].mxu0
        %v4148 = vadd.f32 %v3955, %v4147
        %4149 = vdwg.mxu0
        %4150 = vmatprep.subr.bf16.mxu0 %v2487
        %4151 = vmatpush1.bf16.msra.mxu0 %v2486
        %4152 = vmatprep.subr.bf16.mxu0 %v2495
        %4153 = vmatpush1.bf16.msra.mxu0 %v2494
        %4154 = vmatprep.subr.bf16.mxu0 %v2503
        %4155 = vmatpush1.bf16.msra.mxu0 %v2502
        %4156 = vmatprep.subr.bf16.mxu0 %v2511
        %4157 = vmatpush1.bf16.msra.mxu0 %v2510
        %4158 = vmatprep.subr.bf16.mxu0 %v2519
        %4159 = vmatpush1.bf16.msra.mxu0 %v2518
        %4160 = vmatprep.subr.bf16.mxu0 %v2527
        %4161 = vmatpush1.bf16.msra.mxu0 %v2526
        %4162 = vmatprep.subr.bf16.mxu0 %v2535
        %4163 = vmatpush1.bf16.msra.mxu0 %v2534
        %4164 = vmatprep.subr.bf16.mxu0 %v2543
        %4165 = vmatpush1.bf16.msra.mxu0 %v2542
        %4166 = vmatprep.subr.bf16.mxu0 %v2551
        %4167 = vmatpush1.bf16.msra.mxu0 %v2550
        %4168 = vmatprep.subr.bf16.mxu0 %v2559
        %4169 = vmatpush1.bf16.msra.mxu0 %v2558
        %4170 = vmatprep.subr.bf16.mxu0 %v2567
        %4171 = vmatpush1.bf16.msra.mxu0 %v2566
        %4172 = vmatprep.subr.bf16.mxu0 %v2575
        %4173 = vmatpush1.bf16.msra.mxu0 %v2574
        %4174 = vmatprep.subr.bf16.mxu0 %v2583
        %4175 = vmatpush1.bf16.msra.mxu0 %v2582
        %4176 = vmatprep.subr.bf16.mxu0 %v2591
        %4177 = vmatpush1.bf16.msra.mxu0 %v2590
        %4178 = vmatprep.subr.bf16.mxu0 %v2599
        %4179 = vmatpush1.bf16.msra.mxu0 %v2598
        %4180 = vmatprep.subr.bf16.mxu0 %v2607
        %4181 = vmatpush1.bf16.msra.mxu0 %v2606
        %4182 = vmatprep.mubr.bf16.mxu0 %v1393
        %4183 = vmatmul.mubr.bf16.gmra.mrb[0].mxu0 %v1392
        %v4184 = vpop.f32.mrb[0].mxu0
        %v4185 = vadd.f32 0.0, %v4184
        %v4186 = vpop.f32.mrb[0].mxu0
        %v4187 = vadd.f32 0.0, %v4186
        %v4188 = vpop.f32.mrb[0].mxu0
        %v4189 = vadd.f32 0.0, %v4188
        %v4190 = vpop.f32.mrb[0].mxu0
        %v4191 = vadd.f32 0.0, %v4190
        %4192 = vmatprep.mubr.bf16.mxu0 %v1397
        %4193 = vmatmul.mubr.bf16.gmra.mrb[0].mxu0 %v1396
        %v4194 = vpop.f32.mrb[0].mxu0
        %v4195 = vadd.f32 0.0, %v4194
        %v4196 = vpop.f32.mrb[0].mxu0
        %v4197 = vadd.f32 0.0, %v4196
        %v4198 = vpop.f32.mrb[0].mxu0
        %v4199 = vadd.f32 0.0, %v4198
        %v4200 = vpop.f32.mrb[0].mxu0
        %v4201 = vadd.f32 0.0, %v4200
        %4202 = vmatprep.mubr.bf16.mxu0 %v1401
        %4203 = vmatmul.mubr.bf16.gmra.mrb[0].mxu0 %v1400
        %v4204 = vpop.f32.mrb[0].mxu0
        %v4205 = vadd.f32 0.0, %v4204
        %v4206 = vpop.f32.mrb[0].mxu0
        %v4207 = vadd.f32 0.0, %v4206
        %v4208 = vpop.f32.mrb[0].mxu0
        %v4209 = vadd.f32 0.0, %v4208
        %v4210 = vpop.f32.mrb[0].mxu0
        %v4211 = vadd.f32 0.0, %v4210
        %4212 = vmatprep.mubr.bf16.mxu0 %v1405
        %4213 = vmatmul.mubr.bf16.gmra.mrb[0].mxu0 %v1404
        %v4214 = vpop.f32.mrb[0].mxu0
        %v4215 = vadd.f32 0.0, %v4214
        %v4216 = vpop.f32.mrb[0].mxu0
        %v4217 = vadd.f32 0.0, %v4216
        %v4218 = vpop.f32.mrb[0].mxu0
        %v4219 = vadd.f32 0.0, %v4218
        %v4220 = vpop.f32.mrb[0].mxu0
        %v4221 = vadd.f32 0.0, %v4220
        %4222 = vmatprep.mubr.bf16.mxu0 %v1409
        %4223 = vmatmul.mubr.bf16.gmra.mrb[0].mxu0 %v1408
        %v4224 = vpop.f32.mrb[0].mxu0
        %v4225 = vadd.f32 0.0, %v4224
        %v4226 = vpop.f32.mrb[0].mxu0
        %v4227 = vadd.f32 0.0, %v4226
        %v4228 = vpop.f32.mrb[0].mxu0
        %v4229 = vadd.f32 0.0, %v4228
        %v4230 = vpop.f32.mrb[0].mxu0
        %v4231 = vadd.f32 0.0, %v4230
        %4232 = vmatprep.mubr.bf16.mxu0 %v1413
        %4233 = vmatmul.mubr.bf16.gmra.mrb[0].mxu0 %v1412
        %v4234 = vpop.f32.mrb[0].mxu0
        %v4235 = vadd.f32 0.0, %v4234
        %v4236 = vpop.f32.mrb[0].mxu0
        %v4237 = vadd.f32 0.0, %v4236
        %v4238 = vpop.f32.mrb[0].mxu0
        %v4239 = vadd.f32 0.0, %v4238
        %v4240 = vpop.f32.mrb[0].mxu0
        %v4241 = vadd.f32 0.0, %v4240
        %4242 = vmatprep.mubr.bf16.mxu0 %v1417
        %4243 = vmatmul.mubr.bf16.gmra.mrb[0].mxu0 %v1416
        %v4244 = vpop.f32.mrb[0].mxu0
        %v4245 = vadd.f32 0.0, %v4244
        %v4246 = vpop.f32.mrb[0].mxu0
        %v4247 = vadd.f32 0.0, %v4246
        %v4248 = vpop.f32.mrb[0].mxu0
        %v4249 = vadd.f32 0.0, %v4248
        %v4250 = vpop.f32.mrb[0].mxu0
        %v4251 = vadd.f32 0.0, %v4250
        %4252 = vmatprep.mubr.bf16.mxu0 %v1421
        %4253 = vmatmul.mubr.bf16.gmra.mrb[0].mxu0 %v1420
        %v4254 = vpop.f32.mrb[0].mxu0
        %v4255 = vadd.f32 0.0, %v4254
        %v4256 = vpop.f32.mrb[0].mxu0
        %v4257 = vadd.f32 0.0, %v4256
        %v4258 = vpop.f32.mrb[0].mxu0
        %v4259 = vadd.f32 0.0, %v4258
        %v4260 = vpop.f32.mrb[0].mxu0
        %v4261 = vadd.f32 0.0, %v4260
        %4262 = vmatprep.mubr.bf16.mxu0 %v1425
        %4263 = vmatmul.mubr.bf16.gmra.mrb[0].mxu0 %v1424
        %v4264 = vpop.f32.mrb[0].mxu0
        %v4265 = vadd.f32 0.0, %v4264
        %v4266 = vpop.f32.mrb[0].mxu0
        %v4267 = vadd.f32 0.0, %v4266
        %v4268 = vpop.f32.mrb[0].mxu0
        %v4269 = vadd.f32 0.0, %v4268
        %v4270 = vpop.f32.mrb[0].mxu0
        %v4271 = vadd.f32 0.0, %v4270
        %4272 = vmatprep.mubr.bf16.mxu0 %v1429
        %4273 = vmatmul.mubr.bf16.gmra.mrb[0].mxu0 %v1428
        %v4274 = vpop.f32.mrb[0].mxu0
        %v4275 = vadd.f32 0.0, %v4274
        %v4276 = vpop.f32.mrb[0].mxu0
        %v4277 = vadd.f32 0.0, %v4276
        %v4278 = vpop.f32.mrb[0].mxu0
        %v4279 = vadd.f32 0.0, %v4278
        %v4280 = vpop.f32.mrb[0].mxu0
        %v4281 = vadd.f32 0.0, %v4280
        %4282 = vmatprep.mubr.bf16.mxu0 %v1433
        %4283 = vmatmul.mubr.bf16.gmra.mrb[0].mxu0 %v1432
        %v4284 = vpop.f32.mrb[0].mxu0
        %v4285 = vadd.f32 0.0, %v4284
        %v4286 = vpop.f32.mrb[0].mxu0
        %v4287 = vadd.f32 0.0, %v4286
        %v4288 = vpop.f32.mrb[0].mxu0
        %v4289 = vadd.f32 0.0, %v4288
        %v4290 = vpop.f32.mrb[0].mxu0
        %v4291 = vadd.f32 0.0, %v4290
        %4292 = vmatprep.mubr.bf16.mxu0 %v1437
        %4293 = vmatmul.mubr.bf16.gmra.mrb[0].mxu0 %v1436
        %v4294 = vpop.f32.mrb[0].mxu0
        %v4295 = vadd.f32 0.0, %v4294
        %v4296 = vpop.f32.mrb[0].mxu0
        %v4297 = vadd.f32 0.0, %v4296
        %v4298 = vpop.f32.mrb[0].mxu0
        %v4299 = vadd.f32 0.0, %v4298
        %v4300 = vpop.f32.mrb[0].mxu0
        %v4301 = vadd.f32 0.0, %v4300
        %4302 = vmatprep.mubr.bf16.mxu0 %v1441
        %4303 = vmatmul.mubr.bf16.gmra.mrb[0].mxu0 %v1440
        %v4304 = vpop.f32.mrb[0].mxu0
        %v4305 = vadd.f32 0.0, %v4304
        %v4306 = vpop.f32.mrb[0].mxu0
        %v4307 = vadd.f32 0.0, %v4306
        %v4308 = vpop.f32.mrb[0].mxu0
        %v4309 = vadd.f32 0.0, %v4308
        %v4310 = vpop.f32.mrb[0].mxu0
        %v4311 = vadd.f32 0.0, %v4310
        %4312 = vmatprep.mubr.bf16.mxu0 %v1445
        %4313 = vmatmul.mubr.bf16.gmra.mrb[0].mxu0 %v1444
        %v4314 = vpop.f32.mrb[0].mxu0
        %v4315 = vadd.f32 0.0, %v4314
        %v4316 = vpop.f32.mrb[0].mxu0
        %v4317 = vadd.f32 0.0, %v4316
        %v4318 = vpop.f32.mrb[0].mxu0
        %v4319 = vadd.f32 0.0, %v4318
        %v4320 = vpop.f32.mrb[0].mxu0
        %v4321 = vadd.f32 0.0, %v4320
        %4322 = vmatprep.mubr.bf16.mxu0 %v1449
        %4323 = vmatmul.mubr.bf16.gmra.mrb[0].mxu0 %v1448
        %v4324 = vpop.f32.mrb[0].mxu0
        %v4325 = vadd.f32 0.0, %v4324
        %v4326 = vpop.f32.mrb[0].mxu0
        %v4327 = vadd.f32 0.0, %v4326
        %v4328 = vpop.f32.mrb[0].mxu0
        %v4329 = vadd.f32 0.0, %v4328
        %v4330 = vpop.f32.mrb[0].mxu0
        %v4331 = vadd.f32 0.0, %v4330
        %4332 = vmatprep.mubr.bf16.mxu0 %v1453
        %4333 = vmatmul.mubr.bf16.gmra.mrb[0].mxu0 %v1452
        %v4334 = vpop.f32.mrb[0].mxu0
        %v4335 = vadd.f32 0.0, %v4334
        %v4336 = vpop.f32.mrb[0].mxu0
        %v4337 = vadd.f32 0.0, %v4336
        %v4338 = vpop.f32.mrb[0].mxu0
        %v4339 = vadd.f32 0.0, %v4338
        %v4340 = vpop.f32.mrb[0].mxu0
        %v4341 = vadd.f32 0.0, %v4340
        %4342 = vdwg.mxu0
        %4343 = vmatprep.subr.bf16.mxu0 %v2615
        %4344 = vmatpush1.bf16.msra.mxu0 %v2614
        %4345 = vmatprep.subr.bf16.mxu0 %v2623
        %4346 = vmatpush1.bf16.msra.mxu0 %v2622
        %4347 = vmatprep.subr.bf16.mxu0 %v2631
        %4348 = vmatpush1.bf16.msra.mxu0 %v2630
        %4349 = vmatprep.subr.bf16.mxu0 %v2639
        %4350 = vmatpush1.bf16.msra.mxu0 %v2638
        %4351 = vmatprep.subr.bf16.mxu0 %v2647
        %4352 = vmatpush1.bf16.msra.mxu0 %v2646
        %4353 = vmatprep.subr.bf16.mxu0 %v2655
        %4354 = vmatpush1.bf16.msra.mxu0 %v2654
        %4355 = vmatprep.subr.bf16.mxu0 %v2663
        %4356 = vmatpush1.bf16.msra.mxu0 %v2662
        %4357 = vmatprep.subr.bf16.mxu0 %v2671
        %4358 = vmatpush1.bf16.msra.mxu0 %v2670
        %4359 = vmatprep.subr.bf16.mxu0 %v2679
        %4360 = vmatpush1.bf16.msra.mxu0 %v2678
        %4361 = vmatprep.subr.bf16.mxu0 %v2687
        %4362 = vmatpush1.bf16.msra.mxu0 %v2686
        %4363 = vmatprep.subr.bf16.mxu0 %v2695
        %4364 = vmatpush1.bf16.msra.mxu0 %v2694
        %4365 = vmatprep.subr.bf16.mxu0 %v2703
        %4366 = vmatpush1.bf16.msra.mxu0 %v2702
        %4367 = vmatprep.subr.bf16.mxu0 %v2711
        %4368 = vmatpush1.bf16.msra.mxu0 %v2710
        %4369 = vmatprep.subr.bf16.mxu0 %v2719
        %4370 = vmatpush1.bf16.msra.mxu0 %v2718
        %4371 = vmatprep.subr.bf16.mxu0 %v2727
        %4372 = vmatpush1.bf16.msra.mxu0 %v2726
        %4373 = vmatprep.subr.bf16.mxu0 %v2735
        %4374 = vmatpush1.bf16.msra.mxu0 %v2734
        %4375 = vmatprep.mubr.bf16.mxu0 %v1395
        %4376 = vmatmul.mubr.bf16.gmra.mrb[0].mxu0 %v1394
        %v4377 = vpop.f32.mrb[0].mxu0
        %v4378 = vadd.f32 %v4185, %v4377
        %v4379 = vpop.f32.mrb[0].mxu0
        %v4380 = vadd.f32 %v4187, %v4379
        %v4381 = vpop.f32.mrb[0].mxu0
        %v4382 = vadd.f32 %v4189, %v4381
        %v4383 = vpop.f32.mrb[0].mxu0
        %v4384 = vadd.f32 %v4191, %v4383
        %4385 = vmatprep.mubr.bf16.mxu0 %v1399
        %4386 = vmatmul.mubr.bf16.gmra.mrb[0].mxu0 %v1398
        %v4387 = vpop.f32.mrb[0].mxu0
        %v4388 = vadd.f32 %v4195, %v4387
        %v4389 = vpop.f32.mrb[0].mxu0
        %v4390 = vadd.f32 %v4197, %v4389
        %v4391 = vpop.f32.mrb[0].mxu0
        %v4392 = vadd.f32 %v4199, %v4391
        %v4393 = vpop.f32.mrb[0].mxu0
        %v4394 = vadd.f32 %v4201, %v4393
        %4395 = vmatprep.mubr.bf16.mxu0 %v1403
        %4396 = vmatmul.mubr.bf16.gmra.mrb[0].mxu0 %v1402
        %v4397 = vpop.f32.mrb[0].mxu0
        %v4398 = vadd.f32 %v4205, %v4397
        %v4399 = vpop.f32.mrb[0].mxu0
        %v4400 = vadd.f32 %v4207, %v4399
        %v4401 = vpop.f32.mrb[0].mxu0
        %v4402 = vadd.f32 %v4209, %v4401
        %v4403 = vpop.f32.mrb[0].mxu0
        %v4404 = vadd.f32 %v4211, %v4403
        %4405 = vmatprep.mubr.bf16.mxu0 %v1407
        %4406 = vmatmul.mubr.bf16.gmra.mrb[0].mxu0 %v1406
        %v4407 = vpop.f32.mrb[0].mxu0
        %v4408 = vadd.f32 %v4215, %v4407
        %v4409 = vpop.f32.mrb[0].mxu0
        %v4410 = vadd.f32 %v4217, %v4409
        %v4411 = vpop.f32.mrb[0].mxu0
        %v4412 = vadd.f32 %v4219, %v4411
        %v4413 = vpop.f32.mrb[0].mxu0
        %v4414 = vadd.f32 %v4221, %v4413
        %4415 = vmatprep.mubr.bf16.mxu0 %v1411
        %4416 = vmatmul.mubr.bf16.gmra.mrb[0].mxu0 %v1410
        %v4417 = vpop.f32.mrb[0].mxu0
        %v4418 = vadd.f32 %v4225, %v4417
        %v4419 = vpop.f32.mrb[0].mxu0
        %v4420 = vadd.f32 %v4227, %v4419
        %v4421 = vpop.f32.mrb[0].mxu0
        %v4422 = vadd.f32 %v4229, %v4421
        %v4423 = vpop.f32.mrb[0].mxu0
        %v4424 = vadd.f32 %v4231, %v4423
        %4425 = vmatprep.mubr.bf16.mxu0 %v1415
        %4426 = vmatmul.mubr.bf16.gmra.mrb[0].mxu0 %v1414
        %v4427 = vpop.f32.mrb[0].mxu0
        %v4428 = vadd.f32 %v4235, %v4427
        %v4429 = vpop.f32.mrb[0].mxu0
        %v4430 = vadd.f32 %v4237, %v4429
        %v4431 = vpop.f32.mrb[0].mxu0
        %v4432 = vadd.f32 %v4239, %v4431
        %v4433 = vpop.f32.mrb[0].mxu0
        %v4434 = vadd.f32 %v4241, %v4433
        %4435 = vmatprep.mubr.bf16.mxu0 %v1419
        %4436 = vmatmul.mubr.bf16.gmra.mrb[0].mxu0 %v1418
        %v4437 = vpop.f32.mrb[0].mxu0
        %v4438 = vadd.f32 %v4245, %v4437
        %v4439 = vpop.f32.mrb[0].mxu0
        %v4440 = vadd.f32 %v4247, %v4439
        %v4441 = vpop.f32.mrb[0].mxu0
        %v4442 = vadd.f32 %v4249, %v4441
        %v4443 = vpop.f32.mrb[0].mxu0
        %v4444 = vadd.f32 %v4251, %v4443
        %4445 = vmatprep.mubr.bf16.mxu0 %v1423
        %4446 = vmatmul.mubr.bf16.gmra.mrb[0].mxu0 %v1422
        %v4447 = vpop.f32.mrb[0].mxu0
        %v4448 = vadd.f32 %v4255, %v4447
        %v4449 = vpop.f32.mrb[0].mxu0
        %v4450 = vadd.f32 %v4257, %v4449
        %v4451 = vpop.f32.mrb[0].mxu0
        %v4452 = vadd.f32 %v4259, %v4451
        %v4453 = vpop.f32.mrb[0].mxu0
        %v4454 = vadd.f32 %v4261, %v4453
        %4455 = vmatprep.mubr.bf16.mxu0 %v1427
        %4456 = vmatmul.mubr.bf16.gmra.mrb[0].mxu0 %v1426
        %v4457 = vpop.f32.mrb[0].mxu0
        %v4458 = vadd.f32 %v4265, %v4457
        %v4459 = vpop.f32.mrb[0].mxu0
        %v4460 = vadd.f32 %v4267, %v4459
        %v4461 = vpop.f32.mrb[0].mxu0
        %v4462 = vadd.f32 %v4269, %v4461
        %v4463 = vpop.f32.mrb[0].mxu0
        %v4464 = vadd.f32 %v4271, %v4463
        %4465 = vmatprep.mubr.bf16.mxu0 %v1431
        %4466 = vmatmul.mubr.bf16.gmra.mrb[0].mxu0 %v1430
        %v4467 = vpop.f32.mrb[0].mxu0
        %v4468 = vadd.f32 %v4275, %v4467
        %v4469 = vpop.f32.mrb[0].mxu0
        %v4470 = vadd.f32 %v4277, %v4469
        %v4471 = vpop.f32.mrb[0].mxu0
        %v4472 = vadd.f32 %v4279, %v4471
        %v4473 = vpop.f32.mrb[0].mxu0
        %v4474 = vadd.f32 %v4281, %v4473
        %4475 = vmatprep.mubr.bf16.mxu0 %v1435
        %4476 = vmatmul.mubr.bf16.gmra.mrb[0].mxu0 %v1434
        %v4477 = vpop.f32.mrb[0].mxu0
        %v4478 = vadd.f32 %v4285, %v4477
        %v4479 = vpop.f32.mrb[0].mxu0
        %v4480 = vadd.f32 %v4287, %v4479
        %v4481 = vpop.f32.mrb[0].mxu0
        %v4482 = vadd.f32 %v4289, %v4481
        %v4483 = vpop.f32.mrb[0].mxu0
        %v4484 = vadd.f32 %v4291, %v4483
        %4485 = vmatprep.mubr.bf16.mxu0 %v1439
        %4486 = vmatmul.mubr.bf16.gmra.mrb[0].mxu0 %v1438
        %v4487 = vpop.f32.mrb[0].mxu0
        %v4488 = vadd.f32 %v4295, %v4487
        %v4489 = vpop.f32.mrb[0].mxu0
        %v4490 = vadd.f32 %v4297, %v4489
        %v4491 = vpop.f32.mrb[0].mxu0
        %v4492 = vadd.f32 %v4299, %v4491
        %v4493 = vpop.f32.mrb[0].mxu0
        %v4494 = vadd.f32 %v4301, %v4493
        %4495 = vmatprep.mubr.bf16.mxu0 %v1443
        %4496 = vmatmul.mubr.bf16.gmra.mrb[0].mxu0 %v1442
        %v4497 = vpop.f32.mrb[0].mxu0
        %v4498 = vadd.f32 %v4305, %v4497
        %v4499 = vpop.f32.mrb[0].mxu0
        %v4500 = vadd.f32 %v4307, %v4499
        %v4501 = vpop.f32.mrb[0].mxu0
        %v4502 = vadd.f32 %v4309, %v4501
        %v4503 = vpop.f32.mrb[0].mxu0
        %v4504 = vadd.f32 %v4311, %v4503
        %4505 = vmatprep.mubr.bf16.mxu0 %v1447
        %4506 = vmatmul.mubr.bf16.gmra.mrb[0].mxu0 %v1446
        %v4507 = vpop.f32.mrb[0].mxu0
        %v4508 = vadd.f32 %v4315, %v4507
        %v4509 = vpop.f32.mrb[0].mxu0
        %v4510 = vadd.f32 %v4317, %v4509
        %v4511 = vpop.f32.mrb[0].mxu0
        %v4512 = vadd.f32 %v4319, %v4511
        %v4513 = vpop.f32.mrb[0].mxu0
        %v4514 = vadd.f32 %v4321, %v4513
        %4515 = vmatprep.mubr.bf16.mxu0 %v1451
        %4516 = vmatmul.mubr.bf16.gmra.mrb[0].mxu0 %v1450
        %v4517 = vpop.f32.mrb[0].mxu0
        %v4518 = vadd.f32 %v4325, %v4517
        %v4519 = vpop.f32.mrb[0].mxu0
        %v4520 = vadd.f32 %v4327, %v4519
        %v4521 = vpop.f32.mrb[0].mxu0
        %v4522 = vadd.f32 %v4329, %v4521
        %v4523 = vpop.f32.mrb[0].mxu0
        %v4524 = vadd.f32 %v4331, %v4523
        %4525 = vmatprep.mubr.bf16.mxu0 %v1455
        %4526 = vmatmul.mubr.bf16.gmra.mrb[0].mxu0 %v1454
        %v4527 = vpop.f32.mrb[0].mxu0
        %v4528 = vadd.f32 %v4335, %v4527
        %v4529 = vpop.f32.mrb[0].mxu0
        %v4530 = vadd.f32 %v4337, %v4529
        %v4531 = vpop.f32.mrb[0].mxu0
        %v4532 = vadd.f32 %v4339, %v4531
        %v4533 = vpop.f32.mrb[0].mxu0
        %v4534 = vadd.f32 %v4341, %v4533
        %4535 = vdwg.mxu0
        %v4536 = vpack.c.bf16 %v3224, %v3220
        %v4537 = vpack.c.bf16 %v3226, %v3222
        %v4538 = vpack.c.bf16 %v3610, %v3606
        %v4539 = vpack.c.bf16 %v3612, %v3608
        %v4540 = vpack.c.bf16 %v3996, %v3992
        %v4541 = vpack.c.bf16 %v3998, %v3994
        %v4542 = vpack.c.bf16 %v4382, %v4378
        %v4543 = vpack.c.bf16 %v4384, %v4380
        %v4544 = vpack.c.bf16 %v3234, %v3230
        %v4545 = vpack.c.bf16 %v3236, %v3232
        %v4546 = vpack.c.bf16 %v3620, %v3616
        %v4547 = vpack.c.bf16 %v3622, %v3618
        %v4548 = vpack.c.bf16 %v4006, %v4002
        %v4549 = vpack.c.bf16 %v4008, %v4004
        %v4550 = vpack.c.bf16 %v4392, %v4388
        %v4551 = vpack.c.bf16 %v4394, %v4390
        %v4552 = vpack.c.bf16 %v3244, %v3240
        %v4553 = vpack.c.bf16 %v3246, %v3242
        %v4554 = vpack.c.bf16 %v3630, %v3626
        %v4555 = vpack.c.bf16 %v3632, %v3628
        %v4556 = vpack.c.bf16 %v4016, %v4012
        %v4557 = vpack.c.bf16 %v4018, %v4014
        %v4558 = vpack.c.bf16 %v4402, %v4398
        %v4559 = vpack.c.bf16 %v4404, %v4400
        %v4560 = vpack.c.bf16 %v3254, %v3250
        %v4561 = vpack.c.bf16 %v3256, %v3252
        %v4562 = vpack.c.bf16 %v3640, %v3636
        %v4563 = vpack.c.bf16 %v3642, %v3638
        %v4564 = vpack.c.bf16 %v4026, %v4022
        %v4565 = vpack.c.bf16 %v4028, %v4024
        %v4566 = vpack.c.bf16 %v4412, %v4408
        %v4567 = vpack.c.bf16 %v4414, %v4410
        %v4568 = vpack.c.bf16 %v3264, %v3260
        %v4569 = vpack.c.bf16 %v3266, %v3262
        %v4570 = vpack.c.bf16 %v3650, %v3646
        %v4571 = vpack.c.bf16 %v3652, %v3648
        %v4572 = vpack.c.bf16 %v4036, %v4032
        %v4573 = vpack.c.bf16 %v4038, %v4034
        %v4574 = vpack.c.bf16 %v4422, %v4418
        %v4575 = vpack.c.bf16 %v4424, %v4420
        %v4576 = vpack.c.bf16 %v3274, %v3270
        %v4577 = vpack.c.bf16 %v3276, %v3272
        %v4578 = vpack.c.bf16 %v3660, %v3656
        %v4579 = vpack.c.bf16 %v3662, %v3658
        %v4580 = vpack.c.bf16 %v4046, %v4042
        %v4581 = vpack.c.bf16 %v4048, %v4044
        %v4582 = vpack.c.bf16 %v4432, %v4428
        %v4583 = vpack.c.bf16 %v4434, %v4430
        %v4584 = vpack.c.bf16 %v3284, %v3280
        %v4585 = vpack.c.bf16 %v3286, %v3282
        %v4586 = vpack.c.bf16 %v3670, %v3666
        %v4587 = vpack.c.bf16 %v3672, %v3668
        %v4588 = vpack.c.bf16 %v4056, %v4052
        %v4589 = vpack.c.bf16 %v4058, %v4054
        %v4590 = vpack.c.bf16 %v4442, %v4438
        %v4591 = vpack.c.bf16 %v4444, %v4440
        %v4592 = vpack.c.bf16 %v3294, %v3290
        %v4593 = vpack.c.bf16 %v3296, %v3292
        %v4594 = vpack.c.bf16 %v3680, %v3676
        %v4595 = vpack.c.bf16 %v3682, %v3678
        %v4596 = vpack.c.bf16 %v4066, %v4062
        %v4597 = vpack.c.bf16 %v4068, %v4064
        %v4598 = vpack.c.bf16 %v4452, %v4448
        %v4599 = vpack.c.bf16 %v4454, %v4450
        %v4600 = vpack.c.bf16 %v3304, %v3300
        %v4601 = vpack.c.bf16 %v3306, %v3302
        %v4602 = vpack.c.bf16 %v3690, %v3686
        %v4603 = vpack.c.bf16 %v3692, %v3688
        %v4604 = vpack.c.bf16 %v4076, %v4072
        %v4605 = vpack.c.bf16 %v4078, %v4074
        %v4606 = vpack.c.bf16 %v4462, %v4458
        %v4607 = vpack.c.bf16 %v4464, %v4460
        %v4608 = vpack.c.bf16 %v3314, %v3310
        %v4609 = vpack.c.bf16 %v3316, %v3312
        %v4610 = vpack.c.bf16 %v3700, %v3696
        %v4611 = vpack.c.bf16 %v3702, %v3698
        %v4612 = vpack.c.bf16 %v4086, %v4082
        %v4613 = vpack.c.bf16 %v4088, %v4084
        %v4614 = vpack.c.bf16 %v4472, %v4468
        %v4615 = vpack.c.bf16 %v4474, %v4470
        %v4616 = vpack.c.bf16 %v3324, %v3320
        %v4617 = vpack.c.bf16 %v3326, %v3322
        %v4618 = vpack.c.bf16 %v3710, %v3706
        %v4619 = vpack.c.bf16 %v3712, %v3708
        %v4620 = vpack.c.bf16 %v4096, %v4092
        %v4621 = vpack.c.bf16 %v4098, %v4094
        %v4622 = vpack.c.bf16 %v4482, %v4478
        %v4623 = vpack.c.bf16 %v4484, %v4480
        %v4624 = vpack.c.bf16 %v3334, %v3330
        %v4625 = vpack.c.bf16 %v3336, %v3332
        %v4626 = vpack.c.bf16 %v3720, %v3716
        %v4627 = vpack.c.bf16 %v3722, %v3718
        %v4628 = vpack.c.bf16 %v4106, %v4102
        %v4629 = vpack.c.bf16 %v4108, %v4104
        %v4630 = vpack.c.bf16 %v4492, %v4488
        %v4631 = vpack.c.bf16 %v4494, %v4490
        %v4632 = vpack.c.bf16 %v3344, %v3340
        %v4633 = vpack.c.bf16 %v3346, %v3342
        %v4634 = vpack.c.bf16 %v3730, %v3726
        %v4635 = vpack.c.bf16 %v3732, %v3728
        %v4636 = vpack.c.bf16 %v4116, %v4112
        %v4637 = vpack.c.bf16 %v4118, %v4114
        %v4638 = vpack.c.bf16 %v4502, %v4498
        %v4639 = vpack.c.bf16 %v4504, %v4500
        %v4640 = vpack.c.bf16 %v3354, %v3350
        %v4641 = vpack.c.bf16 %v3356, %v3352
        %v4642 = vpack.c.bf16 %v3740, %v3736
        %v4643 = vpack.c.bf16 %v3742, %v3738
        %v4644 = vpack.c.bf16 %v4126, %v4122
        %v4645 = vpack.c.bf16 %v4128, %v4124
        %v4646 = vpack.c.bf16 %v4512, %v4508
        %v4647 = vpack.c.bf16 %v4514, %v4510
        %v4648 = vpack.c.bf16 %v3364, %v3360
        %v4649 = vpack.c.bf16 %v3366, %v3362
        %v4650 = vpack.c.bf16 %v3750, %v3746
        %v4651 = vpack.c.bf16 %v3752, %v3748
        %v4652 = vpack.c.bf16 %v4136, %v4132
        %v4653 = vpack.c.bf16 %v4138, %v4134
        %v4654 = vpack.c.bf16 %v4522, %v4518
        %v4655 = vpack.c.bf16 %v4524, %v4520
        %v4656 = vpack.c.bf16 %v3374, %v3370
        %v4657 = vpack.c.bf16 %v3376, %v3372
        %v4658 = vpack.c.bf16 %v3760, %v3756
        %v4659 = vpack.c.bf16 %v3762, %v3758
        %v4660 = vpack.c.bf16 %v4146, %v4142
        %v4661 = vpack.c.bf16 %v4148, %v4144
        %v4662 = vpack.c.bf16 %v4532, %v4528
        %v4663 = vpack.c.bf16 %v4534, %v4530
        %s4664 = scalar_lea.vmem %s429, 7 [#allocation2]
        %v4665 = vld [vmem:[%s4664] ss:$8 sm:$0x3]
        %s4666 = scalar_lea.vmem %s429, 23 [#allocation2]
        %v4667 = vld [vmem:[%s4666] ss:$8 sm:$0x3]
        %s4668 = scalar_lea.vmem %s429, 39 [#allocation2]
        %v4669 = vld [vmem:[%s4668] ss:$8 sm:$0x3]
        %s4670 = scalar_lea.vmem %s429, 55 [#allocation2]
        %v4671 = vld [vmem:[%s4670] ss:$8 sm:$0x3]
        %s4672 = scalar_lea.vmem %s429, 71 [#allocation2]
        %v4673 = vld [vmem:[%s4672] ss:$8 sm:$0x3]
        %s4674 = scalar_lea.vmem %s429, 87 [#allocation2]
        %v4675 = vld [vmem:[%s4674] ss:$8 sm:$0x3]
        %s4676 = scalar_lea.vmem %s429, 103 [#allocation2]
        %v4677 = vld [vmem:[%s4676] ss:$8 sm:$0x3]
        %s4678 = scalar_lea.vmem %s429, 119 [#allocation2]
        %v4679 = vld [vmem:[%s4678] ss:$8 sm:$0x3]
        %s4680 = scalar_lea.vmem %s429, 135 [#allocation2]
        %v4681 = vld [vmem:[%s4680] ss:$8 sm:$0x3]
        %s4682 = scalar_lea.vmem %s429, 151 [#allocation2]
        %v4683 = vld [vmem:[%s4682] ss:$8 sm:$0x3]
        %s4684 = scalar_lea.vmem %s429, 167 [#allocation2]
        %v4685 = vld [vmem:[%s4684] ss:$8 sm:$0x3]
        %s4686 = scalar_lea.vmem %s429, 183 [#allocation2]
        %v4687 = vld [vmem:[%s4686] ss:$8 sm:$0x3]
        %s4688 = scalar_lea.vmem %s429, 199 [#allocation2]
        %v4689 = vld [vmem:[%s4688] ss:$8 sm:$0x3]
        %s4690 = scalar_lea.vmem %s429, 215 [#allocation2]
        %v4691 = vld [vmem:[%s4690] ss:$8 sm:$0x3]
        %s4692 = scalar_lea.vmem %s429, 231 [#allocation2]
        %v4693 = vld [vmem:[%s4692] ss:$8 sm:$0x3]
        %s4694 = scalar_lea.vmem %s429, 247 [#allocation2]
        %v4695 = vld [vmem:[%s4694] ss:$8 sm:$0x3]
        %s4696 = scalar_lea.vmem %s429, 263 [#allocation2]
        %v4697 = vld [vmem:[%s4696] ss:$8 sm:$0x3]
        %s4698 = scalar_lea.vmem %s429, 279 [#allocation2]
        %v4699 = vld [vmem:[%s4698] ss:$8 sm:$0x3]
        %s4700 = scalar_lea.vmem %s429, 295 [#allocation2]
        %v4701 = vld [vmem:[%s4700] ss:$8 sm:$0x3]
        %s4702 = scalar_lea.vmem %s429, 311 [#allocation2]
        %v4703 = vld [vmem:[%s4702] ss:$8 sm:$0x3]
        %s4704 = scalar_lea.vmem %s429, 327 [#allocation2]
        %v4705 = vld [vmem:[%s4704] ss:$8 sm:$0x3]
        %s4706 = scalar_lea.vmem %s429, 343 [#allocation2]
        %v4707 = vld [vmem:[%s4706] ss:$8 sm:$0x3]
        %s4708 = scalar_lea.vmem %s429, 359 [#allocation2]
        %v4709 = vld [vmem:[%s4708] ss:$8 sm:$0x3]
        %s4710 = scalar_lea.vmem %s429, 375 [#allocation2]
        %v4711 = vld [vmem:[%s4710] ss:$8 sm:$0x3]
        %s4712 = scalar_lea.vmem %s429, 391 [#allocation2]
        %v4713 = vld [vmem:[%s4712] ss:$8 sm:$0x3]
        %s4714 = scalar_lea.vmem %s429, 407 [#allocation2]
        %v4715 = vld [vmem:[%s4714] ss:$8 sm:$0x3]
        %s4716 = scalar_lea.vmem %s429, 423 [#allocation2]
        %v4717 = vld [vmem:[%s4716] ss:$8 sm:$0x3]
        %s4718 = scalar_lea.vmem %s429, 439 [#allocation2]
        %v4719 = vld [vmem:[%s4718] ss:$8 sm:$0x3]
        %s4720 = scalar_lea.vmem %s429, 455 [#allocation2]
        %v4721 = vld [vmem:[%s4720] ss:$8 sm:$0x3]
        %s4722 = scalar_lea.vmem %s429, 471 [#allocation2]
        %v4723 = vld [vmem:[%s4722] ss:$8 sm:$0x3]
        %s4724 = scalar_lea.vmem %s429, 487 [#allocation2]
        %v4725 = vld [vmem:[%s4724] ss:$8 sm:$0x3]
        %s4726 = scalar_lea.vmem %s429, 503 [#allocation2]
        %v4727 = vld [vmem:[%s4726] ss:$8 sm:$0x3]
        %v4760 = vlaneseq
        %v4761 = vshrl.u32 %v4760, 7
        %v4762 = vsub.s32 0, %v4761
        %v4763 = vrot.slane %v4665, %v4762
        %v4764 = vlaneseq
        %v4765 = vshrl.u32 %v4764, 7
        %v4766 = vsub.s32 1, %v4765
        %v4767 = vrot.slane %v4665, %v4766
        %v4768 = vlaneseq
        %v4769 = vshrl.u32 %v4768, 7
        %v4770 = vsub.s32 0, %v4769
        %v4771 = vrot.slane %v4667, %v4770
        %v4772 = vlaneseq
        %v4773 = vshrl.u32 %v4772, 7
        %v4774 = vsub.s32 1, %v4773
        %v4775 = vrot.slane %v4667, %v4774
        %v4776 = vlaneseq
        %v4777 = vshrl.u32 %v4776, 7
        %v4778 = vsub.s32 0, %v4777
        %v4779 = vrot.slane %v4669, %v4778
        %v4780 = vlaneseq
        %v4781 = vshrl.u32 %v4780, 7
        %v4782 = vsub.s32 1, %v4781
        %v4783 = vrot.slane %v4669, %v4782
        %v4784 = vlaneseq
        %v4785 = vshrl.u32 %v4784, 7
        %v4786 = vsub.s32 0, %v4785
        %v4787 = vrot.slane %v4671, %v4786
        %v4788 = vlaneseq
        %v4789 = vshrl.u32 %v4788, 7
        %v4790 = vsub.s32 1, %v4789
        %v4791 = vrot.slane %v4671, %v4790
        %v4792 = vlaneseq
        %v4793 = vshrl.u32 %v4792, 7
        %v4794 = vsub.s32 0, %v4793
        %v4795 = vrot.slane %v4673, %v4794
        %v4796 = vlaneseq
        %v4797 = vshrl.u32 %v4796, 7
        %v4798 = vsub.s32 1, %v4797
        %v4799 = vrot.slane %v4673, %v4798
        %v4800 = vlaneseq
        %v4801 = vshrl.u32 %v4800, 7
        %v4802 = vsub.s32 0, %v4801
        %v4803 = vrot.slane %v4675, %v4802
        %v4804 = vlaneseq
        %v4805 = vshrl.u32 %v4804, 7
        %v4806 = vsub.s32 1, %v4805
        %v4807 = vrot.slane %v4675, %v4806
        %v4808 = vlaneseq
        %v4809 = vshrl.u32 %v4808, 7
        %v4810 = vsub.s32 0, %v4809
        %v4811 = vrot.slane %v4677, %v4810
        %v4812 = vlaneseq
        %v4813 = vshrl.u32 %v4812, 7
        %v4814 = vsub.s32 1, %v4813
        %v4815 = vrot.slane %v4677, %v4814
        %v4816 = vlaneseq
        %v4817 = vshrl.u32 %v4816, 7
        %v4818 = vsub.s32 0, %v4817
        %v4819 = vrot.slane %v4679, %v4818
        %v4820 = vlaneseq
        %v4821 = vshrl.u32 %v4820, 7
        %v4822 = vsub.s32 1, %v4821
        %v4823 = vrot.slane %v4679, %v4822
        %v4824 = vlaneseq
        %v4825 = vshrl.u32 %v4824, 7
        %v4826 = vsub.s32 0, %v4825
        %v4827 = vrot.slane %v4681, %v4826
        %v4828 = vlaneseq
        %v4829 = vshrl.u32 %v4828, 7
        %v4830 = vsub.s32 1, %v4829
        %v4831 = vrot.slane %v4681, %v4830
        %v4832 = vlaneseq
        %v4833 = vshrl.u32 %v4832, 7
        %v4834 = vsub.s32 0, %v4833
        %v4835 = vrot.slane %v4683, %v4834
        %v4836 = vlaneseq
        %v4837 = vshrl.u32 %v4836, 7
        %v4838 = vsub.s32 1, %v4837
        %v4839 = vrot.slane %v4683, %v4838
        %v4840 = vlaneseq
        %v4841 = vshrl.u32 %v4840, 7
        %v4842 = vsub.s32 0, %v4841
        %v4843 = vrot.slane %v4685, %v4842
        %v4844 = vlaneseq
        %v4845 = vshrl.u32 %v4844, 7
        %v4846 = vsub.s32 1, %v4845
        %v4847 = vrot.slane %v4685, %v4846
        %v4848 = vlaneseq
        %v4849 = vshrl.u32 %v4848, 7
        %v4850 = vsub.s32 0, %v4849
        %v4851 = vrot.slane %v4687, %v4850
        %v4852 = vlaneseq
        %v4853 = vshrl.u32 %v4852, 7
        %v4854 = vsub.s32 1, %v4853
        %v4855 = vrot.slane %v4687, %v4854
        %v4856 = vlaneseq
        %v4857 = vshrl.u32 %v4856, 7
        %v4858 = vsub.s32 0, %v4857
        %v4859 = vrot.slane %v4689, %v4858
        %v4860 = vlaneseq
        %v4861 = vshrl.u32 %v4860, 7
        %v4862 = vsub.s32 1, %v4861
        %v4863 = vrot.slane %v4689, %v4862
        %v4864 = vlaneseq
        %v4865 = vshrl.u32 %v4864, 7
        %v4866 = vsub.s32 0, %v4865
        %v4867 = vrot.slane %v4691, %v4866
        %v4868 = vlaneseq
        %v4869 = vshrl.u32 %v4868, 7
        %v4870 = vsub.s32 1, %v4869
        %v4871 = vrot.slane %v4691, %v4870
        %v4872 = vlaneseq
        %v4873 = vshrl.u32 %v4872, 7
        %v4874 = vsub.s32 0, %v4873
        %v4875 = vrot.slane %v4693, %v4874
        %v4876 = vlaneseq
        %v4877 = vshrl.u32 %v4876, 7
        %v4878 = vsub.s32 1, %v4877
        %v4879 = vrot.slane %v4693, %v4878
        %v4880 = vlaneseq
        %v4881 = vshrl.u32 %v4880, 7
        %v4882 = vsub.s32 0, %v4881
        %v4883 = vrot.slane %v4695, %v4882
        %v4884 = vlaneseq
        %v4885 = vshrl.u32 %v4884, 7
        %v4886 = vsub.s32 1, %v4885
        %v4887 = vrot.slane %v4695, %v4886
        %v4888 = vlaneseq
        %v4889 = vshrl.u32 %v4888, 7
        %v4890 = vsub.s32 0, %v4889
        %v4891 = vrot.slane %v4697, %v4890
        %v4892 = vlaneseq
        %v4893 = vshrl.u32 %v4892, 7
        %v4894 = vsub.s32 1, %v4893
        %v4895 = vrot.slane %v4697, %v4894
        %v4896 = vlaneseq
        %v4897 = vshrl.u32 %v4896, 7
        %v4898 = vsub.s32 0, %v4897
        %v4899 = vrot.slane %v4699, %v4898
        %v4900 = vlaneseq
        %v4901 = vshrl.u32 %v4900, 7
        %v4902 = vsub.s32 1, %v4901
        %v4903 = vrot.slane %v4699, %v4902
        %v4904 = vlaneseq
        %v4905 = vshrl.u32 %v4904, 7
        %v4906 = vsub.s32 0, %v4905
        %v4907 = vrot.slane %v4701, %v4906
        %v4908 = vlaneseq
        %v4909 = vshrl.u32 %v4908, 7
        %v4910 = vsub.s32 1, %v4909
        %v4911 = vrot.slane %v4701, %v4910
        %v4912 = vlaneseq
        %v4913 = vshrl.u32 %v4912, 7
        %v4914 = vsub.s32 0, %v4913
        %v4915 = vrot.slane %v4703, %v4914
        %v4916 = vlaneseq
        %v4917 = vshrl.u32 %v4916, 7
        %v4918 = vsub.s32 1, %v4917
        %v4919 = vrot.slane %v4703, %v4918
        %v4920 = vlaneseq
        %v4921 = vshrl.u32 %v4920, 7
        %v4922 = vsub.s32 0, %v4921
        %v4923 = vrot.slane %v4705, %v4922
        %v4924 = vlaneseq
        %v4925 = vshrl.u32 %v4924, 7
        %v4926 = vsub.s32 1, %v4925
        %v4927 = vrot.slane %v4705, %v4926
        %v4928 = vlaneseq
        %v4929 = vshrl.u32 %v4928, 7
        %v4930 = vsub.s32 0, %v4929
        %v4931 = vrot.slane %v4707, %v4930
        %v4932 = vlaneseq
        %v4933 = vshrl.u32 %v4932, 7
        %v4934 = vsub.s32 1, %v4933
        %v4935 = vrot.slane %v4707, %v4934
        %v4936 = vlaneseq
        %v4937 = vshrl.u32 %v4936, 7
        %v4938 = vsub.s32 0, %v4937
        %v4939 = vrot.slane %v4709, %v4938
        %v4940 = vlaneseq
        %v4941 = vshrl.u32 %v4940, 7
        %v4942 = vsub.s32 1, %v4941
        %v4943 = vrot.slane %v4709, %v4942
        %v4944 = vlaneseq
        %v4945 = vshrl.u32 %v4944, 7
        %v4946 = vsub.s32 0, %v4945
        %v4947 = vrot.slane %v4711, %v4946
        %v4948 = vlaneseq
        %v4949 = vshrl.u32 %v4948, 7
        %v4950 = vsub.s32 1, %v4949
        %v4951 = vrot.slane %v4711, %v4950
        %v4952 = vlaneseq
        %v4953 = vshrl.u32 %v4952, 7
        %v4954 = vsub.s32 0, %v4953
        %v4955 = vrot.slane %v4713, %v4954
        %v4956 = vlaneseq
        %v4957 = vshrl.u32 %v4956, 7
        %v4958 = vsub.s32 1, %v4957
        %v4959 = vrot.slane %v4713, %v4958
        %v4960 = vlaneseq
        %v4961 = vshrl.u32 %v4960, 7
        %v4962 = vsub.s32 0, %v4961
        %v4963 = vrot.slane %v4715, %v4962
        %v4964 = vlaneseq
        %v4965 = vshrl.u32 %v4964, 7
        %v4966 = vsub.s32 1, %v4965
        %v4967 = vrot.slane %v4715, %v4966
        %v4968 = vlaneseq
        %v4969 = vshrl.u32 %v4968, 7
        %v4970 = vsub.s32 0, %v4969
        %v4971 = vrot.slane %v4717, %v4970
        %v4972 = vlaneseq
        %v4973 = vshrl.u32 %v4972, 7
        %v4974 = vsub.s32 1, %v4973
        %v4975 = vrot.slane %v4717, %v4974
        %v4976 = vlaneseq
        %v4977 = vshrl.u32 %v4976, 7
        %v4978 = vsub.s32 0, %v4977
        %v4979 = vrot.slane %v4719, %v4978
        %v4980 = vlaneseq
        %v4981 = vshrl.u32 %v4980, 7
        %v4982 = vsub.s32 1, %v4981
        %v4983 = vrot.slane %v4719, %v4982
        %v4984 = vlaneseq
        %v4985 = vshrl.u32 %v4984, 7
        %v4986 = vsub.s32 0, %v4985
        %v4987 = vrot.slane %v4721, %v4986
        %v4988 = vlaneseq
        %v4989 = vshrl.u32 %v4988, 7
        %v4990 = vsub.s32 1, %v4989
        %v4991 = vrot.slane %v4721, %v4990
        %v4992 = vlaneseq
        %v4993 = vshrl.u32 %v4992, 7
        %v4994 = vsub.s32 0, %v4993
        %v4995 = vrot.slane %v4723, %v4994
        %v4996 = vlaneseq
        %v4997 = vshrl.u32 %v4996, 7
        %v4998 = vsub.s32 1, %v4997
        %v4999 = vrot.slane %v4723, %v4998
        %v5000 = vlaneseq
        %v5001 = vshrl.u32 %v5000, 7
        %v5002 = vsub.s32 0, %v5001
        %v5003 = vrot.slane %v4725, %v5002
        %v5004 = vlaneseq
        %v5005 = vshrl.u32 %v5004, 7
        %v5006 = vsub.s32 1, %v5005
        %v5007 = vrot.slane %v4725, %v5006
        %v5008 = vlaneseq
        %v5009 = vshrl.u32 %v5008, 7
        %v5010 = vsub.s32 0, %v5009
        %v5011 = vrot.slane %v4727, %v5010
        %v5012 = vlaneseq
        %v5013 = vshrl.u32 %v5012, 7
        %v5014 = vsub.s32 1, %v5013
        %v5015 = vrot.slane %v4727, %v5014
        %v5080 = vpack.c.bf16 %v4763, %v4763
        %v5081 = vpack.c.bf16 %v4767, %v4767
        %v5082 = vpack.c.bf16 %v4771, %v4771
        %v5083 = vpack.c.bf16 %v4775, %v4775
        %v5084 = vpack.c.bf16 %v4779, %v4779
        %v5085 = vpack.c.bf16 %v4783, %v4783
        %v5086 = vpack.c.bf16 %v4787, %v4787
        %v5087 = vpack.c.bf16 %v4791, %v4791
        %v5088 = vpack.c.bf16 %v4795, %v4795
        %v5089 = vpack.c.bf16 %v4799, %v4799
        %v5090 = vpack.c.bf16 %v4803, %v4803
        %v5091 = vpack.c.bf16 %v4807, %v4807
        %v5092 = vpack.c.bf16 %v4811, %v4811
        %v5093 = vpack.c.bf16 %v4815, %v4815
        %v5094 = vpack.c.bf16 %v4819, %v4819
        %v5095 = vpack.c.bf16 %v4823, %v4823
        %v5096 = vpack.c.bf16 %v4827, %v4827
        %v5097 = vpack.c.bf16 %v4831, %v4831
        %v5098 = vpack.c.bf16 %v4835, %v4835
        %v5099 = vpack.c.bf16 %v4839, %v4839
        %v5100 = vpack.c.bf16 %v4843, %v4843
        %v5101 = vpack.c.bf16 %v4847, %v4847
        %v5102 = vpack.c.bf16 %v4851, %v4851
        %v5103 = vpack.c.bf16 %v4855, %v4855
        %v5104 = vpack.c.bf16 %v4859, %v4859
        %v5105 = vpack.c.bf16 %v4863, %v4863
        %v5106 = vpack.c.bf16 %v4867, %v4867
        %v5107 = vpack.c.bf16 %v4871, %v4871
        %v5108 = vpack.c.bf16 %v4875, %v4875
        %v5109 = vpack.c.bf16 %v4879, %v4879
        %v5110 = vpack.c.bf16 %v4883, %v4883
        %v5111 = vpack.c.bf16 %v4887, %v4887
        %v5112 = vpack.c.bf16 %v4891, %v4891
        %v5113 = vpack.c.bf16 %v4895, %v4895
        %v5114 = vpack.c.bf16 %v4899, %v4899
        %v5115 = vpack.c.bf16 %v4903, %v4903
        %v5116 = vpack.c.bf16 %v4907, %v4907
        %v5117 = vpack.c.bf16 %v4911, %v4911
        %v5118 = vpack.c.bf16 %v4915, %v4915
        %v5119 = vpack.c.bf16 %v4919, %v4919
        %v5120 = vpack.c.bf16 %v4923, %v4923
        %v5121 = vpack.c.bf16 %v4927, %v4927
        %v5122 = vpack.c.bf16 %v4931, %v4931
        %v5123 = vpack.c.bf16 %v4935, %v4935
        %v5124 = vpack.c.bf16 %v4939, %v4939
        %v5125 = vpack.c.bf16 %v4943, %v4943
        %v5126 = vpack.c.bf16 %v4947, %v4947
        %v5127 = vpack.c.bf16 %v4951, %v4951
        %v5128 = vpack.c.bf16 %v4955, %v4955
        %v5129 = vpack.c.bf16 %v4959, %v4959
        %v5130 = vpack.c.bf16 %v4963, %v4963
        %v5131 = vpack.c.bf16 %v4967, %v4967
        %v5132 = vpack.c.bf16 %v4971, %v4971
        %v5133 = vpack.c.bf16 %v4975, %v4975
        %v5134 = vpack.c.bf16 %v4979, %v4979
        %v5135 = vpack.c.bf16 %v4983, %v4983
        %v5136 = vpack.c.bf16 %v4987, %v4987
        %v5137 = vpack.c.bf16 %v4991, %v4991
        %v5138 = vpack.c.bf16 %v4995, %v4995
        %v5139 = vpack.c.bf16 %v4999, %v4999
        %v5140 = vpack.c.bf16 %v5003, %v5003
        %v5141 = vpack.c.bf16 %v5007, %v5007
        %v5142 = vpack.c.bf16 %v5011, %v5011
        %v5143 = vpack.c.bf16 %v5015, %v5015
        %v5208 = vunpack.c.l.b16 %v5080
        %v5209 = vunpack.c.l.b16 %v5081
        %v5210 = vunpack.c.l.b16 %v5082
        %v5211 = vunpack.c.l.b16 %v5083
        %v5212 = vunpack.c.l.b16 %v5084
        %v5213 = vunpack.c.l.b16 %v5085
        %v5214 = vunpack.c.l.b16 %v5086
        %v5215 = vunpack.c.l.b16 %v5087
        %v5216 = vunpack.c.l.b16 %v5088
        %v5217 = vunpack.c.l.b16 %v5089
        %v5218 = vunpack.c.l.b16 %v5090
        %v5219 = vunpack.c.l.b16 %v5091
        %v5220 = vunpack.c.l.b16 %v5092
        %v5221 = vunpack.c.l.b16 %v5093
        %v5222 = vunpack.c.l.b16 %v5094
        %v5223 = vunpack.c.l.b16 %v5095
        %v5224 = vunpack.c.l.b16 %v5096
        %v5225 = vunpack.c.l.b16 %v5097
        %v5226 = vunpack.c.l.b16 %v5098
        %v5227 = vunpack.c.l.b16 %v5099
        %v5228 = vunpack.c.l.b16 %v5100
        %v5229 = vunpack.c.l.b16 %v5101
        %v5230 = vunpack.c.l.b16 %v5102
        %v5231 = vunpack.c.l.b16 %v5103
        %v5232 = vunpack.c.l.b16 %v5104
        %v5233 = vunpack.c.l.b16 %v5105
        %v5234 = vunpack.c.l.b16 %v5106
        %v5235 = vunpack.c.l.b16 %v5107
        %v5236 = vunpack.c.l.b16 %v5108
        %v5237 = vunpack.c.l.b16 %v5109
        %v5238 = vunpack.c.l.b16 %v5110
        %v5239 = vunpack.c.l.b16 %v5111
        %v5240 = vunpack.c.l.b16 %v5112
        %v5241 = vunpack.c.l.b16 %v5113
        %v5242 = vunpack.c.l.b16 %v5114
        %v5243 = vunpack.c.l.b16 %v5115
        %v5244 = vunpack.c.l.b16 %v5116
        %v5245 = vunpack.c.l.b16 %v5117
        %v5246 = vunpack.c.l.b16 %v5118
        %v5247 = vunpack.c.l.b16 %v5119
        %v5248 = vunpack.c.l.b16 %v5120
        %v5249 = vunpack.c.l.b16 %v5121
        %v5250 = vunpack.c.l.b16 %v5122
        %v5251 = vunpack.c.l.b16 %v5123
        %v5252 = vunpack.c.l.b16 %v5124
        %v5253 = vunpack.c.l.b16 %v5125
        %v5254 = vunpack.c.l.b16 %v5126
        %v5255 = vunpack.c.l.b16 %v5127
        %v5256 = vunpack.c.l.b16 %v5128
        %v5257 = vunpack.c.l.b16 %v5129
        %v5258 = vunpack.c.l.b16 %v5130
        %v5259 = vunpack.c.l.b16 %v5131
        %v5260 = vunpack.c.l.b16 %v5132
        %v5261 = vunpack.c.l.b16 %v5133
        %v5262 = vunpack.c.l.b16 %v5134
        %v5263 = vunpack.c.l.b16 %v5135
        %v5264 = vunpack.c.l.b16 %v5136
        %v5265 = vunpack.c.l.b16 %v5137
        %v5266 = vunpack.c.l.b16 %v5138
        %v5267 = vunpack.c.l.b16 %v5139
        %v5268 = vunpack.c.l.b16 %v5140
        %v5269 = vunpack.c.l.b16 %v5141
        %v5270 = vunpack.c.l.b16 %v5142
        %v5271 = vunpack.c.l.b16 %v5143
        %v5272 = vrot.slane %v5210, 7
        %vm5273 = vcmask 1041409
        %v5274 = vsel %vm5273, %v5272, %v5208
        %v5275 = vrot.slane %v5212, 6
        %vm5276 = vcmask 1042434
        %v5277 = vsel %vm5276, %v5275, %v5274
        %v5278 = vrot.slane %v5214, 5
        %vm5279 = vcmask 1043459
        %v5280 = vsel %vm5279, %v5278, %v5277
        %v5281 = vrot.slane %v5216, 4
        %vm5282 = vcmask 1044484
        %v5283 = vsel %vm5282, %v5281, %v5280
        %v5284 = vrot.slane %v5218, 3
        %vm5285 = vcmask 1045509
        %v5286 = vsel %vm5285, %v5284, %v5283
        %v5287 = vrot.slane %v5220, 2
        %vm5288 = vcmask 1046534
        %v5289 = vsel %vm5288, %v5287, %v5286
        %v5290 = vrot.slane %v5222, 1
        %vm5291 = vcmask 1047559
        %v5292 = vsel %vm5291, %v5290, %v5289
        %v5293 = vrot.slane %v5211, 7
        %v5294 = vsel %vm5273, %v5293, %v5209
        %v5295 = vrot.slane %v5213, 6
        %v5296 = vsel %vm5276, %v5295, %v5294
        %v5297 = vrot.slane %v5215, 5
        %v5298 = vsel %vm5279, %v5297, %v5296
        %v5299 = vrot.slane %v5217, 4
        %v5300 = vsel %vm5282, %v5299, %v5298
        %v5301 = vrot.slane %v5219, 3
        %v5302 = vsel %vm5285, %v5301, %v5300
        %v5303 = vrot.slane %v5221, 2
        %v5304 = vsel %vm5288, %v5303, %v5302
        %v5305 = vrot.slane %v5223, 1
        %v5306 = vsel %vm5291, %v5305, %v5304
        %v5307 = vrot.slane %v5226, 7
        %v5308 = vsel %vm5273, %v5307, %v5224
        %v5309 = vrot.slane %v5228, 6
        %v5310 = vsel %vm5276, %v5309, %v5308
        %v5311 = vrot.slane %v5230, 5
        %v5312 = vsel %vm5279, %v5311, %v5310
        %v5313 = vrot.slane %v5232, 4
        %v5314 = vsel %vm5282, %v5313, %v5312
        %v5315 = vrot.slane %v5234, 3
        %v5316 = vsel %vm5285, %v5315, %v5314
        %v5317 = vrot.slane %v5236, 2
        %v5318 = vsel %vm5288, %v5317, %v5316
        %v5319 = vrot.slane %v5238, 1
        %v5320 = vsel %vm5291, %v5319, %v5318
        %v5321 = vrot.slane %v5227, 7
        %v5322 = vsel %vm5273, %v5321, %v5225
        %v5323 = vrot.slane %v5229, 6
        %v5324 = vsel %vm5276, %v5323, %v5322
        %v5325 = vrot.slane %v5231, 5
        %v5326 = vsel %vm5279, %v5325, %v5324
        %v5327 = vrot.slane %v5233, 4
        %v5328 = vsel %vm5282, %v5327, %v5326
        %v5329 = vrot.slane %v5235, 3
        %v5330 = vsel %vm5285, %v5329, %v5328
        %v5331 = vrot.slane %v5237, 2
        %v5332 = vsel %vm5288, %v5331, %v5330
        %v5333 = vrot.slane %v5239, 1
        %v5334 = vsel %vm5291, %v5333, %v5332
        %v5335 = vrot.slane %v5242, 7
        %v5336 = vsel %vm5273, %v5335, %v5240
        %v5337 = vrot.slane %v5244, 6
        %v5338 = vsel %vm5276, %v5337, %v5336
        %v5339 = vrot.slane %v5246, 5
        %v5340 = vsel %vm5279, %v5339, %v5338
        %v5341 = vrot.slane %v5248, 4
        %v5342 = vsel %vm5282, %v5341, %v5340
        %v5343 = vrot.slane %v5250, 3
        %v5344 = vsel %vm5285, %v5343, %v5342
        %v5345 = vrot.slane %v5252, 2
        %v5346 = vsel %vm5288, %v5345, %v5344
        %v5347 = vrot.slane %v5254, 1
        %v5348 = vsel %vm5291, %v5347, %v5346
        %v5349 = vrot.slane %v5243, 7
        %v5350 = vsel %vm5273, %v5349, %v5241
        %v5351 = vrot.slane %v5245, 6
        %v5352 = vsel %vm5276, %v5351, %v5350
        %v5353 = vrot.slane %v5247, 5
        %v5354 = vsel %vm5279, %v5353, %v5352
        %v5355 = vrot.slane %v5249, 4
        %v5356 = vsel %vm5282, %v5355, %v5354
        %v5357 = vrot.slane %v5251, 3
        %v5358 = vsel %vm5285, %v5357, %v5356
        %v5359 = vrot.slane %v5253, 2
        %v5360 = vsel %vm5288, %v5359, %v5358
        %v5361 = vrot.slane %v5255, 1
        %v5362 = vsel %vm5291, %v5361, %v5360
        %v5363 = vrot.slane %v5258, 7
        %v5364 = vsel %vm5273, %v5363, %v5256
        %v5365 = vrot.slane %v5260, 6
        %v5366 = vsel %vm5276, %v5365, %v5364
        %v5367 = vrot.slane %v5262, 5
        %v5368 = vsel %vm5279, %v5367, %v5366
        %v5369 = vrot.slane %v5264, 4
        %v5370 = vsel %vm5282, %v5369, %v5368
        %v5371 = vrot.slane %v5266, 3
        %v5372 = vsel %vm5285, %v5371, %v5370
        %v5373 = vrot.slane %v5268, 2
        %v5374 = vsel %vm5288, %v5373, %v5372
        %v5375 = vrot.slane %v5270, 1
        %v5376 = vsel %vm5291, %v5375, %v5374
        %v5377 = vrot.slane %v5259, 7
        %v5378 = vsel %vm5273, %v5377, %v5257
        %v5379 = vrot.slane %v5261, 6
        %v5380 = vsel %vm5276, %v5379, %v5378
        %v5381 = vrot.slane %v5263, 5
        %v5382 = vsel %vm5279, %v5381, %v5380
        %v5383 = vrot.slane %v5265, 4
        %v5384 = vsel %vm5282, %v5383, %v5382
        %v5385 = vrot.slane %v5267, 3
        %v5386 = vsel %vm5285, %v5385, %v5384
        %v5387 = vrot.slane %v5269, 2
        %v5388 = vsel %vm5288, %v5387, %v5386
        %v5389 = vrot.slane %v5271, 1
        %v5390 = vsel %vm5291, %v5389, %v5388
        %v5391 = vpack.c.b16 %v5320, %v5292
        %v5392 = vpack.c.b16 %v5334, %v5306
        %v5393 = vpack.c.b16 %v5376, %v5348
        %v5394 = vpack.c.b16 %v5390, %v5362
        %5399 = vmatprep.subr.bf16.mxu0 %v879
        %5400 = vmatpush1.bf16.msra.mxu0 %v878
        %5401 = vmatprep.subr.bf16.mxu0 %v883
        %5402 = vmatpush1.bf16.msra.mxu0 %v882
        %5403 = vmatprep.subr.bf16.mxu0 %v887
        %5404 = vmatpush1.bf16.msra.mxu0 %v886
        %5405 = vmatprep.subr.bf16.mxu0 %v891
        %5406 = vmatpush1.bf16.msra.mxu0 %v890
        %5407 = vmatprep.subr.bf16.mxu0 %v895
        %5408 = vmatpush1.bf16.msra.mxu0 %v894
        %5409 = vmatprep.subr.bf16.mxu0 %v899
        %5410 = vmatpush1.bf16.msra.mxu0 %v898
        %5411 = vmatprep.subr.bf16.mxu0 %v903
        %5412 = vmatpush1.bf16.msra.mxu0 %v902
        %5413 = vmatprep.subr.bf16.mxu0 %v907
        %5414 = vmatpush1.bf16.msra.mxu0 %v906
        %5415 = vmatprep.subr.bf16.mxu0 %v911
        %5416 = vmatpush1.bf16.msra.mxu0 %v910
        %5417 = vmatprep.subr.bf16.mxu0 %v915
        %5418 = vmatpush1.bf16.msra.mxu0 %v914
        %5419 = vmatprep.subr.bf16.mxu0 %v919
        %5420 = vmatpush1.bf16.msra.mxu0 %v918
        %5421 = vmatprep.subr.bf16.mxu0 %v923
        %5422 = vmatpush1.bf16.msra.mxu0 %v922
        %5423 = vmatprep.subr.bf16.mxu0 %v927
        %5424 = vmatpush1.bf16.msra.mxu0 %v926
        %5425 = vmatprep.subr.bf16.mxu0 %v931
        %5426 = vmatpush1.bf16.msra.mxu0 %v930
        %5427 = vmatprep.subr.bf16.mxu0 %v935
        %5428 = vmatpush1.bf16.msra.mxu0 %v934
        %5429 = vmatprep.subr.bf16.mxu0 %v939
        %5430 = vmatpush1.bf16.msra.mxu0 %v938
        %5431 = vmatprep.mubr.bf16.mxu0 %v5392
        %5432 = vmatmul.mubr.bf16.gmra.mrb[0].mxu0 %v5391
        %v5433 = vpop.f32.mrb[0].mxu0
        %v5434 = vadd.f32 %v669, %v5433
        %v5435 = vpop.f32.mrb[0].mxu0
        %v5436 = vadd.f32 %v673, %v5435
        %v5437 = vpop.f32.mrb[0].mxu0
        %v5438 = vadd.f32 %v669, %v5437
        %v5439 = vpop.f32.mrb[0].mxu0
        %v5440 = vadd.f32 %v673, %v5439
        %5441 = vmatprep.mubr.bf16.mxu0 %v5394
        %5442 = vmatmul.mubr.bf16.gmra.mrb[0].mxu0 %v5393
        %v5443 = vpop.f32.mrb[0].mxu0
        %v5444 = vadd.f32 %v669, %v5443
        %v5445 = vpop.f32.mrb[0].mxu0
        %v5446 = vadd.f32 %v673, %v5445
        %v5447 = vpop.f32.mrb[0].mxu0
        %v5448 = vadd.f32 %v669, %v5447
        %v5449 = vpop.f32.mrb[0].mxu0
        %v5450 = vadd.f32 %v673, %v5449
        %5451 = vdwg.mxu0
        %5452 = vmatprep.subr.bf16.mxu0 %v881
        %5453 = vmatpush1.bf16.msra.mxu0 %v880
        %5454 = vmatprep.subr.bf16.mxu0 %v885
        %5455 = vmatpush1.bf16.msra.mxu0 %v884
        %5456 = vmatprep.subr.bf16.mxu0 %v889
        %5457 = vmatpush1.bf16.msra.mxu0 %v888
        %5458 = vmatprep.subr.bf16.mxu0 %v893
        %5459 = vmatpush1.bf16.msra.mxu0 %v892
        %5460 = vmatprep.subr.bf16.mxu0 %v897
        %5461 = vmatpush1.bf16.msra.mxu0 %v896
        %5462 = vmatprep.subr.bf16.mxu0 %v901
        %5463 = vmatpush1.bf16.msra.mxu0 %v900
        %5464 = vmatprep.subr.bf16.mxu0 %v905
        %5465 = vmatpush1.bf16.msra.mxu0 %v904
        %5466 = vmatprep.subr.bf16.mxu0 %v909
        %5467 = vmatpush1.bf16.msra.mxu0 %v908
        %5468 = vmatprep.subr.bf16.mxu0 %v913
        %5469 = vmatpush1.bf16.msra.mxu0 %v912
        %5470 = vmatprep.subr.bf16.mxu0 %v917
        %5471 = vmatpush1.bf16.msra.mxu0 %v916
        %5472 = vmatprep.subr.bf16.mxu0 %v921
        %5473 = vmatpush1.bf16.msra.mxu0 %v920
        %5474 = vmatprep.subr.bf16.mxu0 %v925
        %5475 = vmatpush1.bf16.msra.mxu0 %v924
        %5476 = vmatprep.subr.bf16.mxu0 %v929
        %5477 = vmatpush1.bf16.msra.mxu0 %v928
        %5478 = vmatprep.subr.bf16.mxu0 %v933
        %5479 = vmatpush1.bf16.msra.mxu0 %v932
        %5480 = vmatprep.subr.bf16.mxu0 %v937
        %5481 = vmatpush1.bf16.msra.mxu0 %v936
        %5482 = vmatprep.subr.bf16.mxu0 %v941
        %5483 = vmatpush1.bf16.msra.mxu0 %v940
        %5484 = vmatprep.mubr.bf16.mxu0 %v5392
        %5485 = vmatmul.mubr.bf16.gmra.mrb[0].mxu0 %v5391
        %v5486 = vpop.f32.mrb[0].mxu0
        %v5487 = vadd.f32 %v677, %v5486
        %v5488 = vpop.f32.mrb[0].mxu0
        %v5489 = vadd.f32 %v681, %v5488
        %v5490 = vpop.f32.mrb[0].mxu0
        %v5491 = vadd.f32 %v677, %v5490
        %v5492 = vpop.f32.mrb[0].mxu0
        %v5493 = vadd.f32 %v681, %v5492
        %5494 = vmatprep.mubr.bf16.mxu0 %v5394
        %5495 = vmatmul.mubr.bf16.gmra.mrb[0].mxu0 %v5393
        %v5496 = vpop.f32.mrb[0].mxu0
        %v5497 = vadd.f32 %v677, %v5496
        %v5498 = vpop.f32.mrb[0].mxu0
        %v5499 = vadd.f32 %v681, %v5498
        %v5500 = vpop.f32.mrb[0].mxu0
        %v5501 = vadd.f32 %v677, %v5500
        %v5502 = vpop.f32.mrb[0].mxu0
        %v5503 = vadd.f32 %v681, %v5502
        %5504 = vdwg.mxu0
        %v5505 = vpack.c.bf16 %v5438, %v5434
        %v5506 = vpack.c.bf16 %v5440, %v5436
        %v5507 = vpack.c.bf16 %v5491, %v5487
        %v5508 = vpack.c.bf16 %v5493, %v5489
        %v5509 = vpack.c.bf16 %v5448, %v5444
        %v5510 = vpack.c.bf16 %v5450, %v5446
        %v5511 = vpack.c.bf16 %v5501, %v5497
        %v5512 = vpack.c.bf16 %v5503, %v5499
        %v5513 = vld [vmem:[#allocation10] sm:$0xff]
        %v5514 = vld [vmem:[#allocation10 + $0x8] sm:$0xff]
        %v5515 = vld [vmem:[#allocation10 + $0x10] sm:$0xff]
        %v5516 = vld [vmem:[#allocation10 + $0x18] sm:$0xff]
        %v5517 = vld [vmem:[#allocation10 + $0x20] sm:$0xff]
        %v5518 = vld [vmem:[#allocation10 + $0x28] sm:$0xff]
        %v5519 = vld [vmem:[#allocation10 + $0x30] sm:$0xff]
        %v5520 = vld [vmem:[#allocation10 + $0x38] sm:$0xff]
        %v5521 = vld [vmem:[#allocation10 + $0x40] sm:$0xff]
        %v5522 = vld [vmem:[#allocation10 + $0x48] sm:$0xff]
        %v5523 = vld [vmem:[#allocation10 + $0x50] sm:$0xff]
        %v5524 = vld [vmem:[#allocation10 + $0x58] sm:$0xff]
        %v5525 = vld [vmem:[#allocation10 + $0x60] sm:$0xff]
        %v5526 = vld [vmem:[#allocation10 + $0x68] sm:$0xff]
        %v5527 = vld [vmem:[#allocation10 + $0x70] sm:$0xff]
        %v5528 = vld [vmem:[#allocation10 + $0x78] sm:$0xff]
        %v5529 = vld [vmem:[#allocation10 + $0x80] sm:$0xff]
        %v5530 = vld [vmem:[#allocation10 + $0x88] sm:$0xff]
        %v5531 = vld [vmem:[#allocation10 + $0x90] sm:$0xff]
        %v5532 = vld [vmem:[#allocation10 + $0x98] sm:$0xff]
        %v5533 = vld [vmem:[#allocation10 + $0xa0] sm:$0xff]
        %v5534 = vld [vmem:[#allocation10 + $0xa8] sm:$0xff]
        %v5535 = vld [vmem:[#allocation10 + $0xb0] sm:$0xff]
        %v5536 = vld [vmem:[#allocation10 + $0xb8] sm:$0xff]
        %v5537 = vld [vmem:[#allocation10 + $0xc0] sm:$0xff]
        %v5538 = vld [vmem:[#allocation10 + $0xc8] sm:$0xff]
        %v5539 = vld [vmem:[#allocation10 + $0xd0] sm:$0xff]
        %v5540 = vld [vmem:[#allocation10 + $0xd8] sm:$0xff]
        %v5541 = vld [vmem:[#allocation10 + $0xe0] sm:$0xff]
        %v5542 = vld [vmem:[#allocation10 + $0xe8] sm:$0xff]
        %v5543 = vld [vmem:[#allocation10 + $0xf0] sm:$0xff]
        %v5544 = vld [vmem:[#allocation10 + $0xf8] sm:$0xff]
        %v5545 = vld [vmem:[#allocation10 + $0x100] sm:$0xff]
        %v5546 = vld [vmem:[#allocation10 + $0x108] sm:$0xff]
        %v5547 = vld [vmem:[#allocation10 + $0x110] sm:$0xff]
        %v5548 = vld [vmem:[#allocation10 + $0x118] sm:$0xff]
        %v5549 = vld [vmem:[#allocation10 + $0x120] sm:$0xff]
        %v5550 = vld [vmem:[#allocation10 + $0x128] sm:$0xff]
        %v5551 = vld [vmem:[#allocation10 + $0x130] sm:$0xff]
        %v5552 = vld [vmem:[#allocation10 + $0x138] sm:$0xff]
        %v5553 = vld [vmem:[#allocation10 + $0x140] sm:$0xff]
        %v5554 = vld [vmem:[#allocation10 + $0x148] sm:$0xff]
        %v5555 = vld [vmem:[#allocation10 + $0x150] sm:$0xff]
        %v5556 = vld [vmem:[#allocation10 + $0x158] sm:$0xff]
        %v5557 = vld [vmem:[#allocation10 + $0x160] sm:$0xff]
        %v5558 = vld [vmem:[#allocation10 + $0x168] sm:$0xff]
        %v5559 = vld [vmem:[#allocation10 + $0x170] sm:$0xff]
        %v5560 = vld [vmem:[#allocation10 + $0x178] sm:$0xff]
        %v5561 = vld [vmem:[#allocation10 + $0x180] sm:$0xff]
        %v5562 = vld [vmem:[#allocation10 + $0x188] sm:$0xff]
        %v5563 = vld [vmem:[#allocation10 + $0x190] sm:$0xff]
        %v5564 = vld [vmem:[#allocation10 + $0x198] sm:$0xff]
        %v5565 = vld [vmem:[#allocation10 + $0x1a0] sm:$0xff]
        %v5566 = vld [vmem:[#allocation10 + $0x1a8] sm:$0xff]
        %v5567 = vld [vmem:[#allocation10 + $0x1b0] sm:$0xff]
        %v5568 = vld [vmem:[#allocation10 + $0x1b8] sm:$0xff]
        %v5569 = vld [vmem:[#allocation10 + $0x1c0] sm:$0xff]
        %v5570 = vld [vmem:[#allocation10 + $0x1c8] sm:$0xff]
        %v5571 = vld [vmem:[#allocation10 + $0x1d0] sm:$0xff]
        %v5572 = vld [vmem:[#allocation10 + $0x1d8] sm:$0xff]
        %v5573 = vld [vmem:[#allocation10 + $0x1e0] sm:$0xff]
        %v5574 = vld [vmem:[#allocation10 + $0x1e8] sm:$0xff]
        %v5575 = vld [vmem:[#allocation10 + $0x1f0] sm:$0xff]
        %v5576 = vld [vmem:[#allocation10 + $0x1f8] sm:$0xff]
        %v5577 = vld [vmem:[#allocation10 + $0x200] sm:$0xff]
        %v5578 = vld [vmem:[#allocation10 + $0x208] sm:$0xff]
        %v5579 = vld [vmem:[#allocation10 + $0x210] sm:$0xff]
        %v5580 = vld [vmem:[#allocation10 + $0x218] sm:$0xff]
        %v5581 = vld [vmem:[#allocation10 + $0x220] sm:$0xff]
        %v5582 = vld [vmem:[#allocation10 + $0x228] sm:$0xff]
        %v5583 = vld [vmem:[#allocation10 + $0x230] sm:$0xff]
        %v5584 = vld [vmem:[#allocation10 + $0x238] sm:$0xff]
        %v5585 = vld [vmem:[#allocation10 + $0x240] sm:$0xff]
        %v5586 = vld [vmem:[#allocation10 + $0x248] sm:$0xff]
        %v5587 = vld [vmem:[#allocation10 + $0x250] sm:$0xff]
        %v5588 = vld [vmem:[#allocation10 + $0x258] sm:$0xff]
        %v5589 = vld [vmem:[#allocation10 + $0x260] sm:$0xff]
        %v5590 = vld [vmem:[#allocation10 + $0x268] sm:$0xff]
        %v5591 = vld [vmem:[#allocation10 + $0x270] sm:$0xff]
        %v5592 = vld [vmem:[#allocation10 + $0x278] sm:$0xff]
        %v5593 = vld [vmem:[#allocation10 + $0x280] sm:$0xff]
        %v5594 = vld [vmem:[#allocation10 + $0x288] sm:$0xff]
        %v5595 = vld [vmem:[#allocation10 + $0x290] sm:$0xff]
        %v5596 = vld [vmem:[#allocation10 + $0x298] sm:$0xff]
        %v5597 = vld [vmem:[#allocation10 + $0x2a0] sm:$0xff]
        %v5598 = vld [vmem:[#allocation10 + $0x2a8] sm:$0xff]
        %v5599 = vld [vmem:[#allocation10 + $0x2b0] sm:$0xff]
        %v5600 = vld [vmem:[#allocation10 + $0x2b8] sm:$0xff]
        %v5601 = vld [vmem:[#allocation10 + $0x2c0] sm:$0xff]
        %v5602 = vld [vmem:[#allocation10 + $0x2c8] sm:$0xff]
        %v5603 = vld [vmem:[#allocation10 + $0x2d0] sm:$0xff]
        %v5604 = vld [vmem:[#allocation10 + $0x2d8] sm:$0xff]
        %v5605 = vld [vmem:[#allocation10 + $0x2e0] sm:$0xff]
        %v5606 = vld [vmem:[#allocation10 + $0x2e8] sm:$0xff]
        %v5607 = vld [vmem:[#allocation10 + $0x2f0] sm:$0xff]
        %v5608 = vld [vmem:[#allocation10 + $0x2f8] sm:$0xff]
        %v5609 = vld [vmem:[#allocation10 + $0x300] sm:$0xff]
        %v5610 = vld [vmem:[#allocation10 + $0x308] sm:$0xff]
        %v5611 = vld [vmem:[#allocation10 + $0x310] sm:$0xff]
        %v5612 = vld [vmem:[#allocation10 + $0x318] sm:$0xff]
        %v5613 = vld [vmem:[#allocation10 + $0x320] sm:$0xff]
        %v5614 = vld [vmem:[#allocation10 + $0x328] sm:$0xff]
        %v5615 = vld [vmem:[#allocation10 + $0x330] sm:$0xff]
        %v5616 = vld [vmem:[#allocation10 + $0x338] sm:$0xff]
        %v5617 = vld [vmem:[#allocation10 + $0x340] sm:$0xff]
        %v5618 = vld [vmem:[#allocation10 + $0x348] sm:$0xff]
        %v5619 = vld [vmem:[#allocation10 + $0x350] sm:$0xff]
        %v5620 = vld [vmem:[#allocation10 + $0x358] sm:$0xff]
        %v5621 = vld [vmem:[#allocation10 + $0x360] sm:$0xff]
        %v5622 = vld [vmem:[#allocation10 + $0x368] sm:$0xff]
        %v5623 = vld [vmem:[#allocation10 + $0x370] sm:$0xff]
        %v5624 = vld [vmem:[#allocation10 + $0x378] sm:$0xff]
        %v5625 = vld [vmem:[#allocation10 + $0x380] sm:$0xff]
        %v5626 = vld [vmem:[#allocation10 + $0x388] sm:$0xff]
        %v5627 = vld [vmem:[#allocation10 + $0x390] sm:$0xff]
        %v5628 = vld [vmem:[#allocation10 + $0x398] sm:$0xff]
        %v5629 = vld [vmem:[#allocation10 + $0x3a0] sm:$0xff]
        %v5630 = vld [vmem:[#allocation10 + $0x3a8] sm:$0xff]
        %v5631 = vld [vmem:[#allocation10 + $0x3b0] sm:$0xff]
        %v5632 = vld [vmem:[#allocation10 + $0x3b8] sm:$0xff]
        %v5633 = vld [vmem:[#allocation10 + $0x3c0] sm:$0xff]
        %v5634 = vld [vmem:[#allocation10 + $0x3c8] sm:$0xff]
        %v5635 = vld [vmem:[#allocation10 + $0x3d0] sm:$0xff]
        %v5636 = vld [vmem:[#allocation10 + $0x3d8] sm:$0xff]
        %v5637 = vld [vmem:[#allocation10 + $0x3e0] sm:$0xff]
        %v5638 = vld [vmem:[#allocation10 + $0x3e8] sm:$0xff]
        %v5639 = vld [vmem:[#allocation10 + $0x3f0] sm:$0xff]
        %v5640 = vld [vmem:[#allocation10 + $0x3f8] sm:$0xff]
        %v5769 = vunpack.c.l.b16 %v5513
        %v5770 = vunpack.c.h.b16 %v5513
        %v5771 = vunpack.c.l.b16 %v5514
        %v5772 = vunpack.c.h.b16 %v5514
        %v5773 = vunpack.c.l.b16 %v5515
        %v5774 = vunpack.c.h.b16 %v5515
        %v5775 = vunpack.c.l.b16 %v5516
        %v5776 = vunpack.c.h.b16 %v5516
        %v5777 = vunpack.c.l.b16 %v5517
        %v5778 = vunpack.c.h.b16 %v5517
        %v5779 = vunpack.c.l.b16 %v5518
        %v5780 = vunpack.c.h.b16 %v5518
        %v5781 = vunpack.c.l.b16 %v5519
        %v5782 = vunpack.c.h.b16 %v5519
        %v5783 = vunpack.c.l.b16 %v5520
        %v5784 = vunpack.c.h.b16 %v5520
        %v5785 = vunpack.c.l.b16 %v5521
        %v5786 = vunpack.c.h.b16 %v5521
        %v5787 = vunpack.c.l.b16 %v5522
        %v5788 = vunpack.c.h.b16 %v5522
        %v5789 = vunpack.c.l.b16 %v5523
        %v5790 = vunpack.c.h.b16 %v5523
        %v5791 = vunpack.c.l.b16 %v5524
        %v5792 = vunpack.c.h.b16 %v5524
        %v5793 = vunpack.c.l.b16 %v5525
        %v5794 = vunpack.c.h.b16 %v5525
        %v5795 = vunpack.c.l.b16 %v5526
        %v5796 = vunpack.c.h.b16 %v5526
        %v5797 = vunpack.c.l.b16 %v5527
        %v5798 = vunpack.c.h.b16 %v5527
        %v5799 = vunpack.c.l.b16 %v5528
        %v5800 = vunpack.c.h.b16 %v5528
        %v5801 = vunpack.c.l.b16 %v5529
        %v5802 = vunpack.c.h.b16 %v5529
        %v5803 = vunpack.c.l.b16 %v5530
        %v5804 = vunpack.c.h.b16 %v5530
        %v5805 = vunpack.c.l.b16 %v5531
        %v5806 = vunpack.c.h.b16 %v5531
        %v5807 = vunpack.c.l.b16 %v5532
        %v5808 = vunpack.c.h.b16 %v5532
        %v5809 = vunpack.c.l.b16 %v5533
        %v5810 = vunpack.c.h.b16 %v5533
        %v5811 = vunpack.c.l.b16 %v5534
        %v5812 = vunpack.c.h.b16 %v5534
        %v5813 = vunpack.c.l.b16 %v5535
        %v5814 = vunpack.c.h.b16 %v5535
        %v5815 = vunpack.c.l.b16 %v5536
        %v5816 = vunpack.c.h.b16 %v5536
        %v5817 = vunpack.c.l.b16 %v5537
        %v5818 = vunpack.c.h.b16 %v5537
        %v5819 = vunpack.c.l.b16 %v5538
        %v5820 = vunpack.c.h.b16 %v5538
        %v5821 = vunpack.c.l.b16 %v5539
        %v5822 = vunpack.c.h.b16 %v5539
        %v5823 = vunpack.c.l.b16 %v5540
        %v5824 = vunpack.c.h.b16 %v5540
        %v5825 = vunpack.c.l.b16 %v5541
        %v5826 = vunpack.c.h.b16 %v5541
        %v5827 = vunpack.c.l.b16 %v5542
        %v5828 = vunpack.c.h.b16 %v5542
        %v5829 = vunpack.c.l.b16 %v5543
        %v5830 = vunpack.c.h.b16 %v5543
        %v5831 = vunpack.c.l.b16 %v5544
        %v5832 = vunpack.c.h.b16 %v5544
        %v5833 = vunpack.c.l.b16 %v5545
        %v5834 = vunpack.c.h.b16 %v5545
        %v5835 = vunpack.c.l.b16 %v5546
        %v5836 = vunpack.c.h.b16 %v5546
        %v5837 = vunpack.c.l.b16 %v5547
        %v5838 = vunpack.c.h.b16 %v5547
        %v5839 = vunpack.c.l.b16 %v5548
        %v5840 = vunpack.c.h.b16 %v5548
        %v5841 = vunpack.c.l.b16 %v5549
        %v5842 = vunpack.c.h.b16 %v5549
        %v5843 = vunpack.c.l.b16 %v5550
        %v5844 = vunpack.c.h.b16 %v5550
        %v5845 = vunpack.c.l.b16 %v5551
        %v5846 = vunpack.c.h.b16 %v5551
        %v5847 = vunpack.c.l.b16 %v5552
        %v5848 = vunpack.c.h.b16 %v5552
        %v5849 = vunpack.c.l.b16 %v5553
        %v5850 = vunpack.c.h.b16 %v5553
        %v5851 = vunpack.c.l.b16 %v5554
        %v5852 = vunpack.c.h.b16 %v5554
        %v5853 = vunpack.c.l.b16 %v5555
        %v5854 = vunpack.c.h.b16 %v5555
        %v5855 = vunpack.c.l.b16 %v5556
        %v5856 = vunpack.c.h.b16 %v5556
        %v5857 = vunpack.c.l.b16 %v5557
        %v5858 = vunpack.c.h.b16 %v5557
        %v5859 = vunpack.c.l.b16 %v5558
        %v5860 = vunpack.c.h.b16 %v5558
        %v5861 = vunpack.c.l.b16 %v5559
        %v5862 = vunpack.c.h.b16 %v5559
        %v5863 = vunpack.c.l.b16 %v5560
        %v5864 = vunpack.c.h.b16 %v5560
        %v5865 = vunpack.c.l.b16 %v5561
        %v5866 = vunpack.c.h.b16 %v5561
        %v5867 = vunpack.c.l.b16 %v5562
        %v5868 = vunpack.c.h.b16 %v5562
        %v5869 = vunpack.c.l.b16 %v5563
        %v5870 = vunpack.c.h.b16 %v5563
        %v5871 = vunpack.c.l.b16 %v5564
        %v5872 = vunpack.c.h.b16 %v5564
        %v5873 = vunpack.c.l.b16 %v5565
        %v5874 = vunpack.c.h.b16 %v5565
        %v5875 = vunpack.c.l.b16 %v5566
        %v5876 = vunpack.c.h.b16 %v5566
        %v5877 = vunpack.c.l.b16 %v5567
        %v5878 = vunpack.c.h.b16 %v5567
        %v5879 = vunpack.c.l.b16 %v5568
        %v5880 = vunpack.c.h.b16 %v5568
        %v5881 = vunpack.c.l.b16 %v5569
        %v5882 = vunpack.c.h.b16 %v5569
        %v5883 = vunpack.c.l.b16 %v5570
        %v5884 = vunpack.c.h.b16 %v5570
        %v5885 = vunpack.c.l.b16 %v5571
        %v5886 = vunpack.c.h.b16 %v5571
        %v5887 = vunpack.c.l.b16 %v5572
        %v5888 = vunpack.c.h.b16 %v5572
        %v5889 = vunpack.c.l.b16 %v5573
        %v5890 = vunpack.c.h.b16 %v5573
        %v5891 = vunpack.c.l.b16 %v5574
        %v5892 = vunpack.c.h.b16 %v5574
        %v5893 = vunpack.c.l.b16 %v5575
        %v5894 = vunpack.c.h.b16 %v5575
        %v5895 = vunpack.c.l.b16 %v5576
        %v5896 = vunpack.c.h.b16 %v5576
        %v5897 = vunpack.c.l.b16 %v5577
        %v5898 = vunpack.c.h.b16 %v5577
        %v5899 = vunpack.c.l.b16 %v5578
        %v5900 = vunpack.c.h.b16 %v5578
        %v5901 = vunpack.c.l.b16 %v5579
        %v5902 = vunpack.c.h.b16 %v5579
        %v5903 = vunpack.c.l.b16 %v5580
        %v5904 = vunpack.c.h.b16 %v5580
        %v5905 = vunpack.c.l.b16 %v5581
        %v5906 = vunpack.c.h.b16 %v5581
        %v5907 = vunpack.c.l.b16 %v5582
        %v5908 = vunpack.c.h.b16 %v5582
        %v5909 = vunpack.c.l.b16 %v5583
        %v5910 = vunpack.c.h.b16 %v5583
        %v5911 = vunpack.c.l.b16 %v5584
        %v5912 = vunpack.c.h.b16 %v5584
        %v5913 = vunpack.c.l.b16 %v5585
        %v5914 = vunpack.c.h.b16 %v5585
        %v5915 = vunpack.c.l.b16 %v5586
        %v5916 = vunpack.c.h.b16 %v5586
        %v5917 = vunpack.c.l.b16 %v5587
        %v5918 = vunpack.c.h.b16 %v5587
        %v5919 = vunpack.c.l.b16 %v5588
        %v5920 = vunpack.c.h.b16 %v5588
        %v5921 = vunpack.c.l.b16 %v5589
        %v5922 = vunpack.c.h.b16 %v5589
        %v5923 = vunpack.c.l.b16 %v5590
        %v5924 = vunpack.c.h.b16 %v5590
        %v5925 = vunpack.c.l.b16 %v5591
        %v5926 = vunpack.c.h.b16 %v5591
        %v5927 = vunpack.c.l.b16 %v5592
        %v5928 = vunpack.c.h.b16 %v5592
        %v5929 = vunpack.c.l.b16 %v5593
        %v5930 = vunpack.c.h.b16 %v5593
        %v5931 = vunpack.c.l.b16 %v5594
        %v5932 = vunpack.c.h.b16 %v5594
        %v5933 = vunpack.c.l.b16 %v5595
        %v5934 = vunpack.c.h.b16 %v5595
        %v5935 = vunpack.c.l.b16 %v5596
        %v5936 = vunpack.c.h.b16 %v5596
        %v5937 = vunpack.c.l.b16 %v5597
        %v5938 = vunpack.c.h.b16 %v5597
        %v5939 = vunpack.c.l.b16 %v5598
        %v5940 = vunpack.c.h.b16 %v5598
        %v5941 = vunpack.c.l.b16 %v5599
        %v5942 = vunpack.c.h.b16 %v5599
        %v5943 = vunpack.c.l.b16 %v5600
        %v5944 = vunpack.c.h.b16 %v5600
        %v5945 = vunpack.c.l.b16 %v5601
        %v5946 = vunpack.c.h.b16 %v5601
        %v5947 = vunpack.c.l.b16 %v5602
        %v5948 = vunpack.c.h.b16 %v5602
        %v5949 = vunpack.c.l.b16 %v5603
        %v5950 = vunpack.c.h.b16 %v5603
        %v5951 = vunpack.c.l.b16 %v5604
        %v5952 = vunpack.c.h.b16 %v5604
        %v5953 = vunpack.c.l.b16 %v5605
        %v5954 = vunpack.c.h.b16 %v5605
        %v5955 = vunpack.c.l.b16 %v5606
        %v5956 = vunpack.c.h.b16 %v5606
        %v5957 = vunpack.c.l.b16 %v5607
        %v5958 = vunpack.c.h.b16 %v5607
        %v5959 = vunpack.c.l.b16 %v5608
        %v5960 = vunpack.c.h.b16 %v5608
        %v5961 = vunpack.c.l.b16 %v5609
        %v5962 = vunpack.c.h.b16 %v5609
        %v5963 = vunpack.c.l.b16 %v5610
        %v5964 = vunpack.c.h.b16 %v5610
        %v5965 = vunpack.c.l.b16 %v5611
        %v5966 = vunpack.c.h.b16 %v5611
        %v5967 = vunpack.c.l.b16 %v5612
        %v5968 = vunpack.c.h.b16 %v5612
        %v5969 = vunpack.c.l.b16 %v5613
        %v5970 = vunpack.c.h.b16 %v5613
        %v5971 = vunpack.c.l.b16 %v5614
        %v5972 = vunpack.c.h.b16 %v5614
        %v5973 = vunpack.c.l.b16 %v5615
        %v5974 = vunpack.c.h.b16 %v5615
        %v5975 = vunpack.c.l.b16 %v5616
        %v5976 = vunpack.c.h.b16 %v5616
        %v5977 = vunpack.c.l.b16 %v5617
        %v5978 = vunpack.c.h.b16 %v5617
        %v5979 = vunpack.c.l.b16 %v5618
        %v5980 = vunpack.c.h.b16 %v5618
        %v5981 = vunpack.c.l.b16 %v5619
        %v5982 = vunpack.c.h.b16 %v5619
        %v5983 = vunpack.c.l.b16 %v5620
        %v5984 = vunpack.c.h.b16 %v5620
        %v5985 = vunpack.c.l.b16 %v5621
        %v5986 = vunpack.c.h.b16 %v5621
        %v5987 = vunpack.c.l.b16 %v5622
        %v5988 = vunpack.c.h.b16 %v5622
        %v5989 = vunpack.c.l.b16 %v5623
        %v5990 = vunpack.c.h.b16 %v5623
        %v5991 = vunpack.c.l.b16 %v5624
        %v5992 = vunpack.c.h.b16 %v5624
        %v5993 = vunpack.c.l.b16 %v5625
        %v5994 = vunpack.c.h.b16 %v5625
        %v5995 = vunpack.c.l.b16 %v5626
        %v5996 = vunpack.c.h.b16 %v5626
        %v5997 = vunpack.c.l.b16 %v5627
        %v5998 = vunpack.c.h.b16 %v5627
        %v5999 = vunpack.c.l.b16 %v5628
        %v6000 = vunpack.c.h.b16 %v5628
        %v6001 = vunpack.c.l.b16 %v5629
        %v6002 = vunpack.c.h.b16 %v5629
        %v6003 = vunpack.c.l.b16 %v5630
        %v6004 = vunpack.c.h.b16 %v5630
        %v6005 = vunpack.c.l.b16 %v5631
        %v6006 = vunpack.c.h.b16 %v5631
        %v6007 = vunpack.c.l.b16 %v5632
        %v6008 = vunpack.c.h.b16 %v5632
        %v6009 = vunpack.c.l.b16 %v5633
        %v6010 = vunpack.c.h.b16 %v5633
        %v6011 = vunpack.c.l.b16 %v5634
        %v6012 = vunpack.c.h.b16 %v5634
        %v6013 = vunpack.c.l.b16 %v5635
        %v6014 = vunpack.c.h.b16 %v5635
        %v6015 = vunpack.c.l.b16 %v5636
        %v6016 = vunpack.c.h.b16 %v5636
        %v6017 = vunpack.c.l.b16 %v5637
        %v6018 = vunpack.c.h.b16 %v5637
        %v6019 = vunpack.c.l.b16 %v5638
        %v6020 = vunpack.c.h.b16 %v5638
        %v6021 = vunpack.c.l.b16 %v5639
        %v6022 = vunpack.c.h.b16 %v5639
        %v6023 = vunpack.c.l.b16 %v5640
        %v6024 = vunpack.c.h.b16 %v5640
        %v6025 = vpack.c.b16 %v5773, %v5769
        %v6026 = vpack.c.b16 %v5774, %v5770
        %v6027 = vpack.c.b16 %v5775, %v5771
        %v6028 = vpack.c.b16 %v5776, %v5772
        %v6029 = vpack.c.b16 %v5781, %v5777
        %v6030 = vpack.c.b16 %v5782, %v5778
        %v6031 = vpack.c.b16 %v5783, %v5779
        %v6032 = vpack.c.b16 %v5784, %v5780
        %v6033 = vpack.c.b16 %v5789, %v5785
        %v6034 = vpack.c.b16 %v5790, %v5786
        %v6035 = vpack.c.b16 %v5791, %v5787
        %v6036 = vpack.c.b16 %v5792, %v5788
        %v6037 = vpack.c.b16 %v5797, %v5793
        %v6038 = vpack.c.b16 %v5798, %v5794
        %v6039 = vpack.c.b16 %v5799, %v5795
        %v6040 = vpack.c.b16 %v5800, %v5796
        %v6041 = vpack.c.b16 %v5805, %v5801
        %v6042 = vpack.c.b16 %v5806, %v5802
        %v6043 = vpack.c.b16 %v5807, %v5803
        %v6044 = vpack.c.b16 %v5808, %v5804
        %v6045 = vpack.c.b16 %v5813, %v5809
        %v6046 = vpack.c.b16 %v5814, %v5810
        %v6047 = vpack.c.b16 %v5815, %v5811
        %v6048 = vpack.c.b16 %v5816, %v5812
        %v6049 = vpack.c.b16 %v5821, %v5817
        %v6050 = vpack.c.b16 %v5822, %v5818
        %v6051 = vpack.c.b16 %v5823, %v5819
        %v6052 = vpack.c.b16 %v5824, %v5820
        %v6053 = vpack.c.b16 %v5829, %v5825
        %v6054 = vpack.c.b16 %v5830, %v5826
        %v6055 = vpack.c.b16 %v5831, %v5827
        %v6056 = vpack.c.b16 %v5832, %v5828
        %v6057 = vpack.c.b16 %v5837, %v5833
        %v6058 = vpack.c.b16 %v5838, %v5834
        %v6059 = vpack.c.b16 %v5839, %v5835
        %v6060 = vpack.c.b16 %v5840, %v5836
        %v6061 = vpack.c.b16 %v5845, %v5841
        %v6062 = vpack.c.b16 %v5846, %v5842
        %v6063 = vpack.c.b16 %v5847, %v5843
        %v6064 = vpack.c.b16 %v5848, %v5844
        %v6065 = vpack.c.b16 %v5853, %v5849
        %v6066 = vpack.c.b16 %v5854, %v5850
        %v6067 = vpack.c.b16 %v5855, %v5851
        %v6068 = vpack.c.b16 %v5856, %v5852
        %v6069 = vpack.c.b16 %v5861, %v5857
        %v6070 = vpack.c.b16 %v5862, %v5858
        %v6071 = vpack.c.b16 %v5863, %v5859
        %v6072 = vpack.c.b16 %v5864, %v5860
        %v6073 = vpack.c.b16 %v5869, %v5865
        %v6074 = vpack.c.b16 %v5870, %v5866
        %v6075 = vpack.c.b16 %v5871, %v5867
        %v6076 = vpack.c.b16 %v5872, %v5868
        %v6077 = vpack.c.b16 %v5877, %v5873
        %v6078 = vpack.c.b16 %v5878, %v5874
        %v6079 = vpack.c.b16 %v5879, %v5875
        %v6080 = vpack.c.b16 %v5880, %v5876
        %v6081 = vpack.c.b16 %v5885, %v5881
        %v6082 = vpack.c.b16 %v5886, %v5882
        %v6083 = vpack.c.b16 %v5887, %v5883
        %v6084 = vpack.c.b16 %v5888, %v5884
        %v6085 = vpack.c.b16 %v5893, %v5889
        %v6086 = vpack.c.b16 %v5894, %v5890
        %v6087 = vpack.c.b16 %v5895, %v5891
        %v6088 = vpack.c.b16 %v5896, %v5892
        %v6089 = vpack.c.b16 %v5901, %v5897
        %v6090 = vpack.c.b16 %v5902, %v5898
        %v6091 = vpack.c.b16 %v5903, %v5899
        %v6092 = vpack.c.b16 %v5904, %v5900
        %v6093 = vpack.c.b16 %v5909, %v5905
        %v6094 = vpack.c.b16 %v5910, %v5906
        %v6095 = vpack.c.b16 %v5911, %v5907
        %v6096 = vpack.c.b16 %v5912, %v5908
        %v6097 = vpack.c.b16 %v5917, %v5913
        %v6098 = vpack.c.b16 %v5918, %v5914
        %v6099 = vpack.c.b16 %v5919, %v5915
        %v6100 = vpack.c.b16 %v5920, %v5916
        %v6101 = vpack.c.b16 %v5925, %v5921
        %v6102 = vpack.c.b16 %v5926, %v5922
        %v6103 = vpack.c.b16 %v5927, %v5923
        %v6104 = vpack.c.b16 %v5928, %v5924
        %v6105 = vpack.c.b16 %v5933, %v5929
        %v6106 = vpack.c.b16 %v5934, %v5930
        %v6107 = vpack.c.b16 %v5935, %v5931
        %v6108 = vpack.c.b16 %v5936, %v5932
        %v6109 = vpack.c.b16 %v5941, %v5937
        %v6110 = vpack.c.b16 %v5942, %v5938
        %v6111 = vpack.c.b16 %v5943, %v5939
        %v6112 = vpack.c.b16 %v5944, %v5940
        %v6113 = vpack.c.b16 %v5949, %v5945
        %v6114 = vpack.c.b16 %v5950, %v5946
        %v6115 = vpack.c.b16 %v5951, %v5947
        %v6116 = vpack.c.b16 %v5952, %v5948
        %v6117 = vpack.c.b16 %v5957, %v5953
        %v6118 = vpack.c.b16 %v5958, %v5954
        %v6119 = vpack.c.b16 %v5959, %v5955
        %v6120 = vpack.c.b16 %v5960, %v5956
        %v6121 = vpack.c.b16 %v5965, %v5961
        %v6122 = vpack.c.b16 %v5966, %v5962
        %v6123 = vpack.c.b16 %v5967, %v5963
        %v6124 = vpack.c.b16 %v5968, %v5964
        %v6125 = vpack.c.b16 %v5973, %v5969
        %v6126 = vpack.c.b16 %v5974, %v5970
        %v6127 = vpack.c.b16 %v5975, %v5971
        %v6128 = vpack.c.b16 %v5976, %v5972
        %v6129 = vpack.c.b16 %v5981, %v5977
        %v6130 = vpack.c.b16 %v5982, %v5978
        %v6131 = vpack.c.b16 %v5983, %v5979
        %v6132 = vpack.c.b16 %v5984, %v5980
        %v6133 = vpack.c.b16 %v5989, %v5985
        %v6134 = vpack.c.b16 %v5990, %v5986
        %v6135 = vpack.c.b16 %v5991, %v5987
        %v6136 = vpack.c.b16 %v5992, %v5988
        %v6137 = vpack.c.b16 %v5997, %v5993
        %v6138 = vpack.c.b16 %v5998, %v5994
        %v6139 = vpack.c.b16 %v5999, %v5995
        %v6140 = vpack.c.b16 %v6000, %v5996
        %v6141 = vpack.c.b16 %v6005, %v6001
        %v6142 = vpack.c.b16 %v6006, %v6002
        %v6143 = vpack.c.b16 %v6007, %v6003
        %v6144 = vpack.c.b16 %v6008, %v6004
        %v6145 = vpack.c.b16 %v6013, %v6009
        %v6146 = vpack.c.b16 %v6014, %v6010
        %v6147 = vpack.c.b16 %v6015, %v6011
        %v6148 = vpack.c.b16 %v6016, %v6012
        %v6149 = vpack.c.b16 %v6021, %v6017
        %v6150 = vpack.c.b16 %v6022, %v6018
        %v6151 = vpack.c.b16 %v6023, %v6019
        %v6152 = vpack.c.b16 %v6024, %v6020
        %6281 = vmatprep.subr.bf16.mxu0 %v6026
        %6282 = vmatpush1.bf16.msra.mxu0 %v6025
        %6283 = vmatprep.subr.bf16.mxu0 %v6030
        %6284 = vmatpush1.bf16.msra.mxu0 %v6029
        %6285 = vmatprep.subr.bf16.mxu0 %v6034
        %6286 = vmatpush1.bf16.msra.mxu0 %v6033
        %6287 = vmatprep.subr.bf16.mxu0 %v6038
        %6288 = vmatpush1.bf16.msra.mxu0 %v6037
        %6289 = vmatprep.subr.bf16.mxu0 %v6042
        %6290 = vmatpush1.bf16.msra.mxu0 %v6041
        %6291 = vmatprep.subr.bf16.mxu0 %v6046
        %6292 = vmatpush1.bf16.msra.mxu0 %v6045
        %6293 = vmatprep.subr.bf16.mxu0 %v6050
        %6294 = vmatpush1.bf16.msra.mxu0 %v6049
        %6295 = vmatprep.subr.bf16.mxu0 %v6054
        %6296 = vmatpush1.bf16.msra.mxu0 %v6053
        %6297 = vmatprep.subr.bf16.mxu0 %v6058
        %6298 = vmatpush1.bf16.msra.mxu0 %v6057
        %6299 = vmatprep.subr.bf16.mxu0 %v6062
        %6300 = vmatpush1.bf16.msra.mxu0 %v6061
        %6301 = vmatprep.subr.bf16.mxu0 %v6066
        %6302 = vmatpush1.bf16.msra.mxu0 %v6065
        %6303 = vmatprep.subr.bf16.mxu0 %v6070
        %6304 = vmatpush1.bf16.msra.mxu0 %v6069
        %6305 = vmatprep.subr.bf16.mxu0 %v6074
        %6306 = vmatpush1.bf16.msra.mxu0 %v6073
        %6307 = vmatprep.subr.bf16.mxu0 %v6078
        %6308 = vmatpush1.bf16.msra.mxu0 %v6077
        %6309 = vmatprep.subr.bf16.mxu0 %v6082
        %6310 = vmatpush1.bf16.msra.mxu0 %v6081
        %6311 = vmatprep.subr.bf16.mxu0 %v6086
        %6312 = vmatpush1.bf16.msra.mxu0 %v6085
        %6313 = vmatprep.mubr.bf16.mxu0 %v5506
        %6314 = vmatmul.mubr.bf16.gmra.mrb[0].mxu0 %v5505
        %v6315 = vpop.f32.mrb[0].mxu0
        %v6316 = vadd.f32 0.0, %v6315
        %v6317 = vpop.f32.mrb[0].mxu0
        %v6318 = vadd.f32 0.0, %v6317
        %v6319 = vpop.f32.mrb[0].mxu0
        %v6320 = vadd.f32 0.0, %v6319
        %v6321 = vpop.f32.mrb[0].mxu0
        %v6322 = vadd.f32 0.0, %v6321
        %6323 = vmatprep.mubr.bf16.mxu0 %v5510
        %6324 = vmatmul.mubr.bf16.gmra.mrb[0].mxu0 %v5509
        %v6325 = vpop.f32.mrb[0].mxu0
        %v6326 = vadd.f32 0.0, %v6325
        %v6327 = vpop.f32.mrb[0].mxu0
        %v6328 = vadd.f32 0.0, %v6327
        %v6329 = vpop.f32.mrb[0].mxu0
        %v6330 = vadd.f32 0.0, %v6329
        %v6331 = vpop.f32.mrb[0].mxu0
        %v6332 = vadd.f32 0.0, %v6331
        %6333 = vdwg.mxu0
        %6334 = vmatprep.subr.bf16.mxu0 %v6090
        %6335 = vmatpush1.bf16.msra.mxu0 %v6089
        %6336 = vmatprep.subr.bf16.mxu0 %v6094
        %6337 = vmatpush1.bf16.msra.mxu0 %v6093
        %6338 = vmatprep.subr.bf16.mxu0 %v6098
        %6339 = vmatpush1.bf16.msra.mxu0 %v6097
        %6340 = vmatprep.subr.bf16.mxu0 %v6102
        %6341 = vmatpush1.bf16.msra.mxu0 %v6101
        %6342 = vmatprep.subr.bf16.mxu0 %v6106
        %6343 = vmatpush1.bf16.msra.mxu0 %v6105
        %6344 = vmatprep.subr.bf16.mxu0 %v6110
        %6345 = vmatpush1.bf16.msra.mxu0 %v6109
        %6346 = vmatprep.subr.bf16.mxu0 %v6114
        %6347 = vmatpush1.bf16.msra.mxu0 %v6113
        %6348 = vmatprep.subr.bf16.mxu0 %v6118
        %6349 = vmatpush1.bf16.msra.mxu0 %v6117
        %6350 = vmatprep.subr.bf16.mxu0 %v6122
        %6351 = vmatpush1.bf16.msra.mxu0 %v6121
        %6352 = vmatprep.subr.bf16.mxu0 %v6126
        %6353 = vmatpush1.bf16.msra.mxu0 %v6125
        %6354 = vmatprep.subr.bf16.mxu0 %v6130
        %6355 = vmatpush1.bf16.msra.mxu0 %v6129
        %6356 = vmatprep.subr.bf16.mxu0 %v6134
        %6357 = vmatpush1.bf16.msra.mxu0 %v6133
        %6358 = vmatprep.subr.bf16.mxu0 %v6138
        %6359 = vmatpush1.bf16.msra.mxu0 %v6137
        %6360 = vmatprep.subr.bf16.mxu0 %v6142
        %6361 = vmatpush1.bf16.msra.mxu0 %v6141
        %6362 = vmatprep.subr.bf16.mxu0 %v6146
        %6363 = vmatpush1.bf16.msra.mxu0 %v6145
        %6364 = vmatprep.subr.bf16.mxu0 %v6150
        %6365 = vmatpush1.bf16.msra.mxu0 %v6149
        %6366 = vmatprep.mubr.bf16.mxu0 %v5508
        %6367 = vmatmul.mubr.bf16.gmra.mrb[0].mxu0 %v5507
        %v6368 = vpop.f32.mrb[0].mxu0
        %v6369 = vadd.f32 %v6316, %v6368
        %v6370 = vpop.f32.mrb[0].mxu0
        %v6371 = vadd.f32 %v6318, %v6370
        %v6372 = vpop.f32.mrb[0].mxu0
        %v6373 = vadd.f32 %v6320, %v6372
        %v6374 = vpop.f32.mrb[0].mxu0
        %v6375 = vadd.f32 %v6322, %v6374
        %6376 = vmatprep.mubr.bf16.mxu0 %v5512
        %6377 = vmatmul.mubr.bf16.gmra.mrb[0].mxu0 %v5511
        %v6378 = vpop.f32.mrb[0].mxu0
        %v6379 = vadd.f32 %v6326, %v6378
        %v6380 = vpop.f32.mrb[0].mxu0
        %v6381 = vadd.f32 %v6328, %v6380
        %v6382 = vpop.f32.mrb[0].mxu0
        %v6383 = vadd.f32 %v6330, %v6382
        %v6384 = vpop.f32.mrb[0].mxu0
        %v6385 = vadd.f32 %v6332, %v6384
        %6386 = vdwg.mxu0
        %6387 = vmatprep.subr.bf16.mxu0 %v6028
        %6388 = vmatpush1.bf16.msra.mxu0 %v6027
        %6389 = vmatprep.subr.bf16.mxu0 %v6032
        %6390 = vmatpush1.bf16.msra.mxu0 %v6031
        %6391 = vmatprep.subr.bf16.mxu0 %v6036
        %6392 = vmatpush1.bf16.msra.mxu0 %v6035
        %6393 = vmatprep.subr.bf16.mxu0 %v6040
        %6394 = vmatpush1.bf16.msra.mxu0 %v6039
        %6395 = vmatprep.subr.bf16.mxu0 %v6044
        %6396 = vmatpush1.bf16.msra.mxu0 %v6043
        %6397 = vmatprep.subr.bf16.mxu0 %v6048
        %6398 = vmatpush1.bf16.msra.mxu0 %v6047
        %6399 = vmatprep.subr.bf16.mxu0 %v6052
        %6400 = vmatpush1.bf16.msra.mxu0 %v6051
        %6401 = vmatprep.subr.bf16.mxu0 %v6056
        %6402 = vmatpush1.bf16.msra.mxu0 %v6055
        %6403 = vmatprep.subr.bf16.mxu0 %v6060
        %6404 = vmatpush1.bf16.msra.mxu0 %v6059
        %6405 = vmatprep.subr.bf16.mxu0 %v6064
        %6406 = vmatpush1.bf16.msra.mxu0 %v6063
        %6407 = vmatprep.subr.bf16.mxu0 %v6068
        %6408 = vmatpush1.bf16.msra.mxu0 %v6067
        %6409 = vmatprep.subr.bf16.mxu0 %v6072
        %6410 = vmatpush1.bf16.msra.mxu0 %v6071
        %6411 = vmatprep.subr.bf16.mxu0 %v6076
        %6412 = vmatpush1.bf16.msra.mxu0 %v6075
        %6413 = vmatprep.subr.bf16.mxu0 %v6080
        %6414 = vmatpush1.bf16.msra.mxu0 %v6079
        %6415 = vmatprep.subr.bf16.mxu0 %v6084
        %6416 = vmatpush1.bf16.msra.mxu0 %v6083
        %6417 = vmatprep.subr.bf16.mxu0 %v6088
        %6418 = vmatpush1.bf16.msra.mxu0 %v6087
        %6419 = vmatprep.mubr.bf16.mxu0 %v5506
        %6420 = vmatmul.mubr.bf16.gmra.mrb[0].mxu0 %v5505
        %v6421 = vpop.f32.mrb[0].mxu0
        %v6422 = vadd.f32 0.0, %v6421
        %v6423 = vpop.f32.mrb[0].mxu0
        %v6424 = vadd.f32 0.0, %v6423
        %v6425 = vpop.f32.mrb[0].mxu0
        %v6426 = vadd.f32 0.0, %v6425
        %v6427 = vpop.f32.mrb[0].mxu0
        %v6428 = vadd.f32 0.0, %v6427
        %6429 = vmatprep.mubr.bf16.mxu0 %v5510
        %6430 = vmatmul.mubr.bf16.gmra.mrb[0].mxu0 %v5509
        %v6431 = vpop.f32.mrb[0].mxu0
        %v6432 = vadd.f32 0.0, %v6431
        %v6433 = vpop.f32.mrb[0].mxu0
        %v6434 = vadd.f32 0.0, %v6433
        %v6435 = vpop.f32.mrb[0].mxu0
        %v6436 = vadd.f32 0.0, %v6435
        %v6437 = vpop.f32.mrb[0].mxu0
        %v6438 = vadd.f32 0.0, %v6437
        %6439 = vdwg.mxu0
        %6440 = vmatprep.subr.bf16.mxu0 %v6092
        %6441 = vmatpush1.bf16.msra.mxu0 %v6091
        %6442 = vmatprep.subr.bf16.mxu0 %v6096
        %6443 = vmatpush1.bf16.msra.mxu0 %v6095
        %6444 = vmatprep.subr.bf16.mxu0 %v6100
        %6445 = vmatpush1.bf16.msra.mxu0 %v6099
        %6446 = vmatprep.subr.bf16.mxu0 %v6104
        %6447 = vmatpush1.bf16.msra.mxu0 %v6103
        %6448 = vmatprep.subr.bf16.mxu0 %v6108
        %6449 = vmatpush1.bf16.msra.mxu0 %v6107
        %6450 = vmatprep.subr.bf16.mxu0 %v6112
        %6451 = vmatpush1.bf16.msra.mxu0 %v6111
        %6452 = vmatprep.subr.bf16.mxu0 %v6116
        %6453 = vmatpush1.bf16.msra.mxu0 %v6115
        %6454 = vmatprep.subr.bf16.mxu0 %v6120
        %6455 = vmatpush1.bf16.msra.mxu0 %v6119
        %6456 = vmatprep.subr.bf16.mxu0 %v6124
        %6457 = vmatpush1.bf16.msra.mxu0 %v6123
        %6458 = vmatprep.subr.bf16.mxu0 %v6128
        %6459 = vmatpush1.bf16.msra.mxu0 %v6127
        %6460 = vmatprep.subr.bf16.mxu0 %v6132
        %6461 = vmatpush1.bf16.msra.mxu0 %v6131
        %6462 = vmatprep.subr.bf16.mxu0 %v6136
        %6463 = vmatpush1.bf16.msra.mxu0 %v6135
        %6464 = vmatprep.subr.bf16.mxu0 %v6140
        %6465 = vmatpush1.bf16.msra.mxu0 %v6139
        %6466 = vmatprep.subr.bf16.mxu0 %v6144
        %6467 = vmatpush1.bf16.msra.mxu0 %v6143
        %6468 = vmatprep.subr.bf16.mxu0 %v6148
        %6469 = vmatpush1.bf16.msra.mxu0 %v6147
        %6470 = vmatprep.subr.bf16.mxu0 %v6152
        %6471 = vmatpush1.bf16.msra.mxu0 %v6151
        %6472 = vmatprep.mubr.bf16.mxu0 %v5508
        %6473 = vmatmul.mubr.bf16.gmra.mrb[0].mxu0 %v5507
        %v6474 = vpop.f32.mrb[0].mxu0
        %v6475 = vadd.f32 %v6422, %v6474
        %v6476 = vpop.f32.mrb[0].mxu0
        %v6477 = vadd.f32 %v6424, %v6476
        %v6478 = vpop.f32.mrb[0].mxu0
        %v6479 = vadd.f32 %v6426, %v6478
        %v6480 = vpop.f32.mrb[0].mxu0
        %v6481 = vadd.f32 %v6428, %v6480
        %6482 = vmatprep.mubr.bf16.mxu0 %v5512
        %6483 = vmatmul.mubr.bf16.gmra.mrb[0].mxu0 %v5511
        %v6484 = vpop.f32.mrb[0].mxu0
        %v6485 = vadd.f32 %v6432, %v6484
        %v6486 = vpop.f32.mrb[0].mxu0
        %v6487 = vadd.f32 %v6434, %v6486
        %v6488 = vpop.f32.mrb[0].mxu0
        %v6489 = vadd.f32 %v6436, %v6488
        %v6490 = vpop.f32.mrb[0].mxu0
        %v6491 = vadd.f32 %v6438, %v6490
        %6492 = vdwg.mxu0
        %v6493 = vmul.f32 %v6369, 0.044194173
        %v6494 = vmul.f32 %v6371, 0.044194173
        %v6495 = vmul.f32 %v6475, 0.044194173
        %v6496 = vmul.f32 %v6477, 0.044194173
        %v6497 = vmul.f32 %v6373, 0.044194173
        %v6498 = vmul.f32 %v6375, 0.044194173
        %v6499 = vmul.f32 %v6479, 0.044194173
        %v6500 = vmul.f32 %v6481, 0.044194173
        %v6501 = vmul.f32 %v6379, 0.044194173
        %v6502 = vmul.f32 %v6381, 0.044194173
        %v6503 = vmul.f32 %v6485, 0.044194173
        %v6504 = vmul.f32 %v6487, 0.044194173
        %v6505 = vmul.f32 %v6383, 0.044194173
        %v6506 = vmul.f32 %v6385, 0.044194173
        %v6507 = vmul.f32 %v6489, 0.044194173
        %v6508 = vmul.f32 %v6491, 0.044194173
        %v6509 = vpack.c.bf16 %v6497, %v6493
        %v6510 = vpack.c.bf16 %v6498, %v6494
        %v6511 = vpack.c.bf16 %v6499, %v6495
        %v6512 = vpack.c.bf16 %v6500, %v6496
        %v6513 = vpack.c.bf16 %v6505, %v6501
        %v6514 = vpack.c.bf16 %v6506, %v6502
        %v6515 = vpack.c.bf16 %v6507, %v6503
        %v6516 = vpack.c.bf16 %v6508, %v6504
        %v6517 = vld [vmem:[#allocation17] sm:$0xff]
        %v6518 = vld [vmem:[#allocation17 + $0x8] sm:$0xff]
        %v6519 = vld [vmem:[#allocation17 + $0x10] sm:$0xff]
        %v6520 = vld [vmem:[#allocation17 + $0x18] sm:$0xff]
        %v6521 = vld [vmem:[#allocation17 + $0x20] sm:$0xff]
        %v6522 = vld [vmem:[#allocation17 + $0x28] sm:$0xff]
        %v6523 = vld [vmem:[#allocation17 + $0x30] sm:$0xff]
        %v6524 = vld [vmem:[#allocation17 + $0x38] sm:$0xff]
        %6525 = vmatprep.subr.bf16.mxu0 %v4537
        %6526 = vmatpush1.bf16.xpose.msra.mxu0 %v4536
        %6527 = vmatprep.subr.bf16.mxu0 %v4545
        %6528 = vmatpush1.bf16.xpose.msra.mxu0 %v4544
        %6529 = vmatprep.subr.bf16.mxu0 %v4553
        %6530 = vmatpush1.bf16.xpose.msra.mxu0 %v4552
        %6531 = vmatprep.subr.bf16.mxu0 %v4561
        %6532 = vmatpush1.bf16.xpose.msra.mxu0 %v4560
        %6533 = vmatprep.subr.bf16.mxu0 %v4569
        %6534 = vmatpush1.bf16.xpose.msra.mxu0 %v4568
        %6535 = vmatprep.subr.bf16.mxu0 %v4577
        %6536 = vmatpush1.bf16.xpose.msra.mxu0 %v4576
        %6537 = vmatprep.subr.bf16.mxu0 %v4585
        %6538 = vmatpush1.bf16.xpose.msra.mxu0 %v4584
        %6539 = vmatprep.subr.bf16.mxu0 %v4593
        %6540 = vmatpush1.bf16.xpose.msra.mxu0 %v4592
        %6541 = vmatprep.subr.bf16.mxu0 %v4601
        %6542 = vmatpush1.bf16.xpose.msra.mxu0 %v4600
        %6543 = vmatprep.subr.bf16.mxu0 %v4609
        %6544 = vmatpush1.bf16.xpose.msra.mxu0 %v4608
        %6545 = vmatprep.subr.bf16.mxu0 %v4617
        %6546 = vmatpush1.bf16.xpose.msra.mxu0 %v4616
        %6547 = vmatprep.subr.bf16.mxu0 %v4625
        %6548 = vmatpush1.bf16.xpose.msra.mxu0 %v4624
        %6549 = vmatprep.subr.bf16.mxu0 %v4633
        %6550 = vmatpush1.bf16.xpose.msra.mxu0 %v4632
        %6551 = vmatprep.subr.bf16.mxu0 %v4641
        %6552 = vmatpush1.bf16.xpose.msra.mxu0 %v4640
        %6553 = vmatprep.subr.bf16.mxu0 %v4649
        %6554 = vmatpush1.bf16.xpose.msra.mxu0 %v4648
        %6555 = vmatprep.subr.bf16.mxu0 %v4657
        %6556 = vmatpush1.bf16.xpose.msra.mxu0 %v4656
        %6557 = vmatprep.mubr.bf16.mxu0 %v6510
        %6558 = vmatmul.mubr.bf16.gmra.mrb[0].mxu0 %v6509
        %v6559 = vpop.f32.mrb[0].mxu0
        %v6560 = vadd.f32 %v6517, %v6559
        %v6561 = vpop.f32.mrb[0].mxu0
        %v6562 = vadd.f32 %v6518, %v6561
        %v6563 = vpop.f32.mrb[0].mxu0
        %v6564 = vadd.f32 %v6519, %v6563
        %v6565 = vpop.f32.mrb[0].mxu0
        %v6566 = vadd.f32 %v6520, %v6565
        %6567 = vmatprep.mubr.bf16.mxu0 %v6514
        %6568 = vmatmul.mubr.bf16.gmra.mrb[0].mxu0 %v6513
        %v6569 = vpop.f32.mrb[0].mxu0
        %v6570 = vadd.f32 %v6521, %v6569
        %v6571 = vpop.f32.mrb[0].mxu0
        %v6572 = vadd.f32 %v6522, %v6571
        %v6573 = vpop.f32.mrb[0].mxu0
        %v6574 = vadd.f32 %v6523, %v6573
        %v6575 = vpop.f32.mrb[0].mxu0
        %v6576 = vadd.f32 %v6524, %v6575
        %6577 = vdwg.mxu0
        %6578 = vmatprep.subr.bf16.mxu0 %v4539
        %6579 = vmatpush1.bf16.xpose.msra.mxu0 %v4538
        %6580 = vmatprep.subr.bf16.mxu0 %v4547
        %6581 = vmatpush1.bf16.xpose.msra.mxu0 %v4546
        %6582 = vmatprep.subr.bf16.mxu0 %v4555
        %6583 = vmatpush1.bf16.xpose.msra.mxu0 %v4554
        %6584 = vmatprep.subr.bf16.mxu0 %v4563
        %6585 = vmatpush1.bf16.xpose.msra.mxu0 %v4562
        %6586 = vmatprep.subr.bf16.mxu0 %v4571
        %6587 = vmatpush1.bf16.xpose.msra.mxu0 %v4570
        %6588 = vmatprep.subr.bf16.mxu0 %v4579
        %6589 = vmatpush1.bf16.xpose.msra.mxu0 %v4578
        %6590 = vmatprep.subr.bf16.mxu0 %v4587
        %6591 = vmatpush1.bf16.xpose.msra.mxu0 %v4586
        %6592 = vmatprep.subr.bf16.mxu0 %v4595
        %6593 = vmatpush1.bf16.xpose.msra.mxu0 %v4594
        %6594 = vmatprep.subr.bf16.mxu0 %v4603
        %6595 = vmatpush1.bf16.xpose.msra.mxu0 %v4602
        %6596 = vmatprep.subr.bf16.mxu0 %v4611
        %6597 = vmatpush1.bf16.xpose.msra.mxu0 %v4610
        %6598 = vmatprep.subr.bf16.mxu0 %v4619
        %6599 = vmatpush1.bf16.xpose.msra.mxu0 %v4618
        %6600 = vmatprep.subr.bf16.mxu0 %v4627
        %6601 = vmatpush1.bf16.xpose.msra.mxu0 %v4626
        %6602 = vmatprep.subr.bf16.mxu0 %v4635
        %6603 = vmatpush1.bf16.xpose.msra.mxu0 %v4634
        %6604 = vmatprep.subr.bf16.mxu0 %v4643
        %6605 = vmatpush1.bf16.xpose.msra.mxu0 %v4642
        %6606 = vmatprep.subr.bf16.mxu0 %v4651
        %6607 = vmatpush1.bf16.xpose.msra.mxu0 %v4650
        %6608 = vmatprep.subr.bf16.mxu0 %v4659
        %6609 = vmatpush1.bf16.xpose.msra.mxu0 %v4658
        %6610 = vmatprep.mubr.bf16.mxu0 %v6512
        %6611 = vmatmul.mubr.bf16.gmra.mrb[0].mxu0 %v6511
        %v6612 = vpop.f32.mrb[0].mxu0
        %v6613 = vadd.f32 %v6560, %v6612
        %v6614 = vpop.f32.mrb[0].mxu0
        %v6615 = vadd.f32 %v6562, %v6614
        %v6616 = vpop.f32.mrb[0].mxu0
        %v6617 = vadd.f32 %v6564, %v6616
        %v6618 = vpop.f32.mrb[0].mxu0
        %v6619 = vadd.f32 %v6566, %v6618
        %6620 = vmatprep.mubr.bf16.mxu0 %v6516
        %6621 = vmatmul.mubr.bf16.gmra.mrb[0].mxu0 %v6515
        %v6622 = vpop.f32.mrb[0].mxu0
        %v6623 = vadd.f32 %v6570, %v6622
        %v6624 = vpop.f32.mrb[0].mxu0
        %v6625 = vadd.f32 %v6572, %v6624
        %v6626 = vpop.f32.mrb[0].mxu0
        %v6627 = vadd.f32 %v6574, %v6626
        %v6628 = vpop.f32.mrb[0].mxu0
        %v6629 = vadd.f32 %v6576, %v6628
        %6630 = vdwg.mxu0
        %v6631 = vmax.f32 %v6613, %v6615
        %6632 = vmax.xlane.f32.xlu0 %v6631
        %v6633 = vpop.xlane.xlu0 %6632
        %v6634 = vmax.f32 %v6617, %v6619
        %6635 = vmax.xlane.f32.xlu0 %v6634
        %v6636 = vpop.xlane.xlu0 %6635
        %v6637 = vmax.f32 %v6623, %v6625
        %6638 = vmax.xlane.f32.xlu0 %v6637
        %v6639 = vpop.xlane.xlu0 %6638
        %v6640 = vmax.f32 %v6627, %v6629
        %6641 = vmax.xlane.f32.xlu0 %v6640
        %v6642 = vpop.xlane.xlu0 %6641
        %v6643 = vsub.f32 %v6613, %v6633
        %v6644 = vsub.f32 %v6615, %v6633
        %v6645 = vsub.f32 %v6617, %v6636
        %v6646 = vsub.f32 %v6619, %v6636
        %v6647 = vsub.f32 %v6623, %v6639
        %v6648 = vsub.f32 %v6625, %v6639
        %v6649 = vsub.f32 %v6627, %v6642
        %v6650 = vsub.f32 %v6629, %v6642
        %v6651 = vmul.f32 %v6643, 1.442695
        %v6652 = vpow.pop %v6651
        %v6653 = vmul.f32 %v6644, 1.442695
        %v6654 = vpow.pop %v6653
        %v6655 = vmul.f32 %v6645, 1.442695
        %v6656 = vpow.pop %v6655
        %v6657 = vmul.f32 %v6646, 1.442695
        %v6658 = vpow.pop %v6657
        %v6659 = vmul.f32 %v6647, 1.442695
        %v6660 = vpow.pop %v6659
        %v6661 = vmul.f32 %v6648, 1.442695
        %v6662 = vpow.pop %v6661
        %v6663 = vmul.f32 %v6649, 1.442695
        %v6664 = vpow.pop %v6663
        %v6665 = vmul.f32 %v6650, 1.442695
        %v6666 = vpow.pop %v6665
        %v6667 = vadd.f32 %v6652, %v6654
        %6668 = vadd.xlane.f32.xlu0 %v6667
        %v6669 = vpop.xlane.xlu0 %6668
        %v6670 = vadd.f32 %v6656, %v6658
        %6671 = vadd.xlane.f32.xlu0 %v6670
        %v6672 = vpop.xlane.xlu0 %6671
        %v6673 = vadd.f32 %v6660, %v6662
        %6674 = vadd.xlane.f32.xlu0 %v6673
        %v6675 = vpop.xlane.xlu0 %6674
        %v6676 = vadd.f32 %v6664, %v6666
        %6677 = vadd.xlane.f32.xlu0 %v6676
        %v6678 = vpop.xlane.xlu0 %6677
        %v6679 = vrcp.pop %v6669
        %v6680 = vrcp.pop %v6672
        %v6681 = vrcp.pop %v6675
        %v6682 = vrcp.pop %v6678
        %v6683 = vmul.f32 %v6652, %v6679
        %v6684 = vmul.f32 %v6654, %v6679
        %v6685 = vmul.f32 %v6656, %v6680
        %v6686 = vmul.f32 %v6658, %v6680
        %v6687 = vmul.f32 %v6660, %v6681
        %v6688 = vmul.f32 %v6662, %v6681
        %v6689 = vmul.f32 %v6664, %v6682
        %v6690 = vmul.f32 %v6666, %v6682
        %v6691 = vpack.c.bf16 %v6685, %v6683
        %v6692 = vpack.c.bf16 %v6686, %v6684
        %v6693 = vpack.c.bf16 %v6689, %v6687
        %v6694 = vpack.c.bf16 %v6690, %v6688
        %6695 = vmatprep.subr.bf16.mxu0 %v4541
        %6696 = vmatpush1.bf16.msra.mxu0 %v4540
        %6697 = vmatprep.subr.bf16.mxu0 %v4549
        %6698 = vmatpush1.bf16.msra.mxu0 %v4548
        %6699 = vmatprep.subr.bf16.mxu0 %v4557
        %6700 = vmatpush1.bf16.msra.mxu0 %v4556
        %6701 = vmatprep.subr.bf16.mxu0 %v4565
        %6702 = vmatpush1.bf16.msra.mxu0 %v4564
        %6703 = vmatprep.subr.bf16.mxu0 %v4573
        %6704 = vmatpush1.bf16.msra.mxu0 %v4572
        %6705 = vmatprep.subr.bf16.mxu0 %v4581
        %6706 = vmatpush1.bf16.msra.mxu0 %v4580
        %6707 = vmatprep.subr.bf16.mxu0 %v4589
        %6708 = vmatpush1.bf16.msra.mxu0 %v4588
        %6709 = vmatprep.subr.bf16.mxu0 %v4597
        %6710 = vmatpush1.bf16.msra.mxu0 %v4596
        %6711 = vmatprep.subr.bf16.mxu0 %v4605
        %6712 = vmatpush1.bf16.msra.mxu0 %v4604
        %6713 = vmatprep.subr.bf16.mxu0 %v4613
        %6714 = vmatpush1.bf16.msra.mxu0 %v4612
        %6715 = vmatprep.subr.bf16.mxu0 %v4621
        %6716 = vmatpush1.bf16.msra.mxu0 %v4620
        %6717 = vmatprep.subr.bf16.mxu0 %v4629
        %6718 = vmatpush1.bf16.msra.mxu0 %v4628
        %6719 = vmatprep.subr.bf16.mxu0 %v4637
        %6720 = vmatpush1.bf16.msra.mxu0 %v4636
        %6721 = vmatprep.subr.bf16.mxu0 %v4645
        %6722 = vmatpush1.bf16.msra.mxu0 %v4644
        %6723 = vmatprep.subr.bf16.mxu0 %v4653
        %6724 = vmatpush1.bf16.msra.mxu0 %v4652
        %6725 = vmatprep.subr.bf16.mxu0 %v4661
        %6726 = vmatpush1.bf16.msra.mxu0 %v4660
        %6727 = vmatprep.mubr.bf16.mxu0 %v6692
        %6728 = vmatmul.mubr.bf16.gmra.mrb[0].mxu0 %v6691
        %v6729 = vpop.f32.mrb[0].mxu0
        %v6730 = vadd.f32 0.0, %v6729
        %v6731 = vpop.f32.mrb[0].mxu0
        %v6732 = vadd.f32 0.0, %v6731
        %v6733 = vpop.f32.mrb[0].mxu0
        %v6734 = vadd.f32 0.0, %v6733
        %v6735 = vpop.f32.mrb[0].mxu0
        %v6736 = vadd.f32 0.0, %v6735
        %6737 = vmatprep.mubr.bf16.mxu0 %v6694
        %6738 = vmatmul.mubr.bf16.gmra.mrb[0].mxu0 %v6693
        %v6739 = vpop.f32.mrb[0].mxu0
        %v6740 = vadd.f32 0.0, %v6739
        %v6741 = vpop.f32.mrb[0].mxu0
        %v6742 = vadd.f32 0.0, %v6741
        %v6743 = vpop.f32.mrb[0].mxu0
        %v6744 = vadd.f32 0.0, %v6743
        %v6745 = vpop.f32.mrb[0].mxu0
        %v6746 = vadd.f32 0.0, %v6745
        %6747 = vdwg.mxu0
        %6748 = vmatprep.subr.bf16.mxu0 %v4543
        %6749 = vmatpush1.bf16.msra.mxu0 %v4542
        %6750 = vmatprep.subr.bf16.mxu0 %v4551
        %6751 = vmatpush1.bf16.msra.mxu0 %v4550
        %6752 = vmatprep.subr.bf16.mxu0 %v4559
        %6753 = vmatpush1.bf16.msra.mxu0 %v4558
        %6754 = vmatprep.subr.bf16.mxu0 %v4567
        %6755 = vmatpush1.bf16.msra.mxu0 %v4566
        %6756 = vmatprep.subr.bf16.mxu0 %v4575
        %6757 = vmatpush1.bf16.msra.mxu0 %v4574
        %6758 = vmatprep.subr.bf16.mxu0 %v4583
        %6759 = vmatpush1.bf16.msra.mxu0 %v4582
        %6760 = vmatprep.subr.bf16.mxu0 %v4591
        %6761 = vmatpush1.bf16.msra.mxu0 %v4590
        %6762 = vmatprep.subr.bf16.mxu0 %v4599
        %6763 = vmatpush1.bf16.msra.mxu0 %v4598
        %6764 = vmatprep.subr.bf16.mxu0 %v4607
        %6765 = vmatpush1.bf16.msra.mxu0 %v4606
        %6766 = vmatprep.subr.bf16.mxu0 %v4615
        %6767 = vmatpush1.bf16.msra.mxu0 %v4614
        %6768 = vmatprep.subr.bf16.mxu0 %v4623
        %6769 = vmatpush1.bf16.msra.mxu0 %v4622
        %6770 = vmatprep.subr.bf16.mxu0 %v4631
        %6771 = vmatpush1.bf16.msra.mxu0 %v4630
        %6772 = vmatprep.subr.bf16.mxu0 %v4639
        %6773 = vmatpush1.bf16.msra.mxu0 %v4638
        %6774 = vmatprep.subr.bf16.mxu0 %v4647
        %6775 = vmatpush1.bf16.msra.mxu0 %v4646
        %6776 = vmatprep.subr.bf16.mxu0 %v4655
        %6777 = vmatpush1.bf16.msra.mxu0 %v4654
        %6778 = vmatprep.subr.bf16.mxu0 %v4663
        %6779 = vmatpush1.bf16.msra.mxu0 %v4662
        %6780 = vmatprep.mubr.bf16.mxu0 %v6692
        %6781 = vmatmul.mubr.bf16.gmra.mrb[0].mxu0 %v6691
        %v6782 = vpop.f32.mrb[0].mxu0
        %v6783 = vadd.f32 0.0, %v6782
        %v6784 = vpop.f32.mrb[0].mxu0
        %v6785 = vadd.f32 0.0, %v6784
        %v6786 = vpop.f32.mrb[0].mxu0
        %v6787 = vadd.f32 0.0, %v6786
        %v6788 = vpop.f32.mrb[0].mxu0
        %v6789 = vadd.f32 0.0, %v6788
        %6790 = vmatprep.mubr.bf16.mxu0 %v6694
        %6791 = vmatmul.mubr.bf16.gmra.mrb[0].mxu0 %v6693
        %v6792 = vpop.f32.mrb[0].mxu0
        %v6793 = vadd.f32 0.0, %v6792
        %v6794 = vpop.f32.mrb[0].mxu0
        %v6795 = vadd.f32 0.0, %v6794
        %v6796 = vpop.f32.mrb[0].mxu0
        %v6797 = vadd.f32 0.0, %v6796
        %v6798 = vpop.f32.mrb[0].mxu0
        %v6799 = vadd.f32 0.0, %v6798
        %6800 = vdwg.mxu0
        %v6801 = vpack.c.bf16 %v6734, %v6730
        %v6802 = vpack.c.bf16 %v6736, %v6732
        %v6803 = vpack.c.bf16 %v6787, %v6783
        %v6804 = vpack.c.bf16 %v6789, %v6785
        %v6805 = vpack.c.bf16 %v6744, %v6740
        %v6806 = vpack.c.bf16 %v6746, %v6742
        %v6807 = vpack.c.bf16 %v6797, %v6793
        %v6808 = vpack.c.bf16 %v6799, %v6795
        %v6809 = vld [vmem:[#allocation11] sm:$0xff]
        %v6810 = vld [vmem:[#allocation11 + $0x8] sm:$0xff]
        %v6811 = vld [vmem:[#allocation11 + $0x10] sm:$0xff]
        %v6812 = vld [vmem:[#allocation11 + $0x18] sm:$0xff]
        %v6813 = vld [vmem:[#allocation11 + $0x20] sm:$0xff]
        %v6814 = vld [vmem:[#allocation11 + $0x28] sm:$0xff]
        %v6815 = vld [vmem:[#allocation11 + $0x30] sm:$0xff]
        %v6816 = vld [vmem:[#allocation11 + $0x38] sm:$0xff]
        %v6817 = vld [vmem:[#allocation11 + $0x40] sm:$0xff]
        %v6818 = vld [vmem:[#allocation11 + $0x48] sm:$0xff]
        %v6819 = vld [vmem:[#allocation11 + $0x50] sm:$0xff]
        %v6820 = vld [vmem:[#allocation11 + $0x58] sm:$0xff]
        %v6821 = vld [vmem:[#allocation11 + $0x60] sm:$0xff]
        %v6822 = vld [vmem:[#allocation11 + $0x68] sm:$0xff]
        %v6823 = vld [vmem:[#allocation11 + $0x70] sm:$0xff]
        %v6824 = vld [vmem:[#allocation11 + $0x78] sm:$0xff]
        %v6825 = vld [vmem:[#allocation11 + $0x80] sm:$0xff]
        %v6826 = vld [vmem:[#allocation11 + $0x88] sm:$0xff]
        %v6827 = vld [vmem:[#allocation11 + $0x90] sm:$0xff]
        %v6828 = vld [vmem:[#allocation11 + $0x98] sm:$0xff]
        %v6829 = vld [vmem:[#allocation11 + $0xa0] sm:$0xff]
        %v6830 = vld [vmem:[#allocation11 + $0xa8] sm:$0xff]
        %v6831 = vld [vmem:[#allocation11 + $0xb0] sm:$0xff]
        %v6832 = vld [vmem:[#allocation11 + $0xb8] sm:$0xff]
        %v6833 = vld [vmem:[#allocation11 + $0xc0] sm:$0xff]
        %v6834 = vld [vmem:[#allocation11 + $0xc8] sm:$0xff]
        %v6835 = vld [vmem:[#allocation11 + $0xd0] sm:$0xff]
        %v6836 = vld [vmem:[#allocation11 + $0xd8] sm:$0xff]
        %v6837 = vld [vmem:[#allocation11 + $0xe0] sm:$0xff]
        %v6838 = vld [vmem:[#allocation11 + $0xe8] sm:$0xff]
        %v6839 = vld [vmem:[#allocation11 + $0xf0] sm:$0xff]
        %v6840 = vld [vmem:[#allocation11 + $0xf8] sm:$0xff]
        %v6841 = vld [vmem:[#allocation11 + $0x100] sm:$0xff]
        %v6842 = vld [vmem:[#allocation11 + $0x108] sm:$0xff]
        %v6843 = vld [vmem:[#allocation11 + $0x110] sm:$0xff]
        %v6844 = vld [vmem:[#allocation11 + $0x118] sm:$0xff]
        %v6845 = vld [vmem:[#allocation11 + $0x120] sm:$0xff]
        %v6846 = vld [vmem:[#allocation11 + $0x128] sm:$0xff]
        %v6847 = vld [vmem:[#allocation11 + $0x130] sm:$0xff]
        %v6848 = vld [vmem:[#allocation11 + $0x138] sm:$0xff]
        %v6849 = vld [vmem:[#allocation11 + $0x140] sm:$0xff]
        %v6850 = vld [vmem:[#allocation11 + $0x148] sm:$0xff]
        %v6851 = vld [vmem:[#allocation11 + $0x150] sm:$0xff]
        %v6852 = vld [vmem:[#allocation11 + $0x158] sm:$0xff]
        %v6853 = vld [vmem:[#allocation11 + $0x160] sm:$0xff]
        %v6854 = vld [vmem:[#allocation11 + $0x168] sm:$0xff]
        %v6855 = vld [vmem:[#allocation11 + $0x170] sm:$0xff]
        %v6856 = vld [vmem:[#allocation11 + $0x178] sm:$0xff]
        %v6857 = vld [vmem:[#allocation11 + $0x180] sm:$0xff]
        %v6858 = vld [vmem:[#allocation11 + $0x188] sm:$0xff]
        %v6859 = vld [vmem:[#allocation11 + $0x190] sm:$0xff]
        %v6860 = vld [vmem:[#allocation11 + $0x198] sm:$0xff]
        %v6861 = vld [vmem:[#allocation11 + $0x1a0] sm:$0xff]
        %v6862 = vld [vmem:[#allocation11 + $0x1a8] sm:$0xff]
        %v6863 = vld [vmem:[#allocation11 + $0x1b0] sm:$0xff]
        %v6864 = vld [vmem:[#allocation11 + $0x1b8] sm:$0xff]
        %v6865 = vld [vmem:[#allocation11 + $0x1c0] sm:$0xff]
        %v6866 = vld [vmem:[#allocation11 + $0x1c8] sm:$0xff]
        %v6867 = vld [vmem:[#allocation11 + $0x1d0] sm:$0xff]
        %v6868 = vld [vmem:[#allocation11 + $0x1d8] sm:$0xff]
        %v6869 = vld [vmem:[#allocation11 + $0x1e0] sm:$0xff]
        %v6870 = vld [vmem:[#allocation11 + $0x1e8] sm:$0xff]
        %v6871 = vld [vmem:[#allocation11 + $0x1f0] sm:$0xff]
        %v6872 = vld [vmem:[#allocation11 + $0x1f8] sm:$0xff]
        %v6873 = vld [vmem:[#allocation11 + $0x200] sm:$0xff]
        %v6874 = vld [vmem:[#allocation11 + $0x208] sm:$0xff]
        %v6875 = vld [vmem:[#allocation11 + $0x210] sm:$0xff]
        %v6876 = vld [vmem:[#allocation11 + $0x218] sm:$0xff]
        %v6877 = vld [vmem:[#allocation11 + $0x220] sm:$0xff]
        %v6878 = vld [vmem:[#allocation11 + $0x228] sm:$0xff]
        %v6879 = vld [vmem:[#allocation11 + $0x230] sm:$0xff]
        %v6880 = vld [vmem:[#allocation11 + $0x238] sm:$0xff]
        %v6881 = vld [vmem:[#allocation11 + $0x240] sm:$0xff]
        %v6882 = vld [vmem:[#allocation11 + $0x248] sm:$0xff]
        %v6883 = vld [vmem:[#allocation11 + $0x250] sm:$0xff]
        %v6884 = vld [vmem:[#allocation11 + $0x258] sm:$0xff]
        %v6885 = vld [vmem:[#allocation11 + $0x260] sm:$0xff]
        %v6886 = vld [vmem:[#allocation11 + $0x268] sm:$0xff]
        %v6887 = vld [vmem:[#allocation11 + $0x270] sm:$0xff]
        %v6888 = vld [vmem:[#allocation11 + $0x278] sm:$0xff]
        %v6889 = vld [vmem:[#allocation11 + $0x280] sm:$0xff]
        %v6890 = vld [vmem:[#allocation11 + $0x288] sm:$0xff]
        %v6891 = vld [vmem:[#allocation11 + $0x290] sm:$0xff]
        %v6892 = vld [vmem:[#allocation11 + $0x298] sm:$0xff]
        %v6893 = vld [vmem:[#allocation11 + $0x2a0] sm:$0xff]
        %v6894 = vld [vmem:[#allocation11 + $0x2a8] sm:$0xff]
        %v6895 = vld [vmem:[#allocation11 + $0x2b0] sm:$0xff]
        %v6896 = vld [vmem:[#allocation11 + $0x2b8] sm:$0xff]
        %v6897 = vld [vmem:[#allocation11 + $0x2c0] sm:$0xff]
        %v6898 = vld [vmem:[#allocation11 + $0x2c8] sm:$0xff]
        %v6899 = vld [vmem:[#allocation11 + $0x2d0] sm:$0xff]
        %v6900 = vld [vmem:[#allocation11 + $0x2d8] sm:$0xff]
        %v6901 = vld [vmem:[#allocation11 + $0x2e0] sm:$0xff]
        %v6902 = vld [vmem:[#allocation11 + $0x2e8] sm:$0xff]
        %v6903 = vld [vmem:[#allocation11 + $0x2f0] sm:$0xff]
        %v6904 = vld [vmem:[#allocation11 + $0x2f8] sm:$0xff]
        %v6905 = vld [vmem:[#allocation11 + $0x300] sm:$0xff]
        %v6906 = vld [vmem:[#allocation11 + $0x308] sm:$0xff]
        %v6907 = vld [vmem:[#allocation11 + $0x310] sm:$0xff]
        %v6908 = vld [vmem:[#allocation11 + $0x318] sm:$0xff]
        %v6909 = vld [vmem:[#allocation11 + $0x320] sm:$0xff]
        %v6910 = vld [vmem:[#allocation11 + $0x328] sm:$0xff]
        %v6911 = vld [vmem:[#allocation11 + $0x330] sm:$0xff]
        %v6912 = vld [vmem:[#allocation11 + $0x338] sm:$0xff]
        %v6913 = vld [vmem:[#allocation11 + $0x340] sm:$0xff]
        %v6914 = vld [vmem:[#allocation11 + $0x348] sm:$0xff]
        %v6915 = vld [vmem:[#allocation11 + $0x350] sm:$0xff]
        %v6916 = vld [vmem:[#allocation11 + $0x358] sm:$0xff]
        %v6917 = vld [vmem:[#allocation11 + $0x360] sm:$0xff]
        %v6918 = vld [vmem:[#allocation11 + $0x368] sm:$0xff]
        %v6919 = vld [vmem:[#allocation11 + $0x370] sm:$0xff]
        %v6920 = vld [vmem:[#allocation11 + $0x378] sm:$0xff]
        %v6921 = vld [vmem:[#allocation11 + $0x380] sm:$0xff]
        %v6922 = vld [vmem:[#allocation11 + $0x388] sm:$0xff]
        %v6923 = vld [vmem:[#allocation11 + $0x390] sm:$0xff]
        %v6924 = vld [vmem:[#allocation11 + $0x398] sm:$0xff]
        %v6925 = vld [vmem:[#allocation11 + $0x3a0] sm:$0xff]
        %v6926 = vld [vmem:[#allocation11 + $0x3a8] sm:$0xff]
        %v6927 = vld [vmem:[#allocation11 + $0x3b0] sm:$0xff]
        %v6928 = vld [vmem:[#allocation11 + $0x3b8] sm:$0xff]
        %v6929 = vld [vmem:[#allocation11 + $0x3c0] sm:$0xff]
        %v6930 = vld [vmem:[#allocation11 + $0x3c8] sm:$0xff]
        %v6931 = vld [vmem:[#allocation11 + $0x3d0] sm:$0xff]
        %v6932 = vld [vmem:[#allocation11 + $0x3d8] sm:$0xff]
        %v6933 = vld [vmem:[#allocation11 + $0x3e0] sm:$0xff]
        %v6934 = vld [vmem:[#allocation11 + $0x3e8] sm:$0xff]
        %v6935 = vld [vmem:[#allocation11 + $0x3f0] sm:$0xff]
        %v6936 = vld [vmem:[#allocation11 + $0x3f8] sm:$0xff]
        %v6937 = vld [vmem:[#allocation13] sm:$0xf]
        %v6939 = vlaneseq
        %v6940 = vshrl.u32 %v6939, 7
        %v6941 = vsub.s32 0, %v6940
        %v6942 = vrot.slane %v6937, %v6941
        %v6943 = vlaneseq
        %v6944 = vshrl.u32 %v6943, 7
        %v6945 = vsub.s32 1, %v6944
        %v6946 = vrot.slane %v6937, %v6945
        %v6947 = vlaneseq
        %v6948 = vshrl.u32 %v6947, 7
        %v6949 = vsub.s32 2, %v6948
        %v6950 = vrot.slane %v6937, %v6949
        %v6951 = vlaneseq
        %v6952 = vshrl.u32 %v6951, 7
        %v6953 = vsub.s32 3, %v6952
        %v6954 = vrot.slane %v6937, %v6953
        %v7087 = vunpack.c.l.b16 %v6809
        %v7088 = vunpack.c.h.b16 %v6809
        %v7089 = vunpack.c.l.b16 %v6810
        %v7090 = vunpack.c.h.b16 %v6810
        %v7091 = vunpack.c.l.b16 %v6811
        %v7092 = vunpack.c.h.b16 %v6811
        %v7093 = vunpack.c.l.b16 %v6812
        %v7094 = vunpack.c.h.b16 %v6812
        %v7095 = vunpack.c.l.b16 %v6813
        %v7096 = vunpack.c.h.b16 %v6813
        %v7097 = vunpack.c.l.b16 %v6814
        %v7098 = vunpack.c.h.b16 %v6814
        %v7099 = vunpack.c.l.b16 %v6815
        %v7100 = vunpack.c.h.b16 %v6815
        %v7101 = vunpack.c.l.b16 %v6816
        %v7102 = vunpack.c.h.b16 %v6816
        %v7103 = vunpack.c.l.b16 %v6817
        %v7104 = vunpack.c.h.b16 %v6817
        %v7105 = vunpack.c.l.b16 %v6818
        %v7106 = vunpack.c.h.b16 %v6818
        %v7107 = vunpack.c.l.b16 %v6819
        %v7108 = vunpack.c.h.b16 %v6819
        %v7109 = vunpack.c.l.b16 %v6820
        %v7110 = vunpack.c.h.b16 %v6820
        %v7111 = vunpack.c.l.b16 %v6821
        %v7112 = vunpack.c.h.b16 %v6821
        %v7113 = vunpack.c.l.b16 %v6822
        %v7114 = vunpack.c.h.b16 %v6822
        %v7115 = vunpack.c.l.b16 %v6823
        %v7116 = vunpack.c.h.b16 %v6823
        %v7117 = vunpack.c.l.b16 %v6824
        %v7118 = vunpack.c.h.b16 %v6824
        %v7119 = vunpack.c.l.b16 %v6825
        %v7120 = vunpack.c.h.b16 %v6825
        %v7121 = vunpack.c.l.b16 %v6826
        %v7122 = vunpack.c.h.b16 %v6826
        %v7123 = vunpack.c.l.b16 %v6827
        %v7124 = vunpack.c.h.b16 %v6827
        %v7125 = vunpack.c.l.b16 %v6828
        %v7126 = vunpack.c.h.b16 %v6828
        %v7127 = vunpack.c.l.b16 %v6829
        %v7128 = vunpack.c.h.b16 %v6829
        %v7129 = vunpack.c.l.b16 %v6830
        %v7130 = vunpack.c.h.b16 %v6830
        %v7131 = vunpack.c.l.b16 %v6831
        %v7132 = vunpack.c.h.b16 %v6831
        %v7133 = vunpack.c.l.b16 %v6832
        %v7134 = vunpack.c.h.b16 %v6832
        %v7135 = vunpack.c.l.b16 %v6833
        %v7136 = vunpack.c.h.b16 %v6833
        %v7137 = vunpack.c.l.b16 %v6834
        %v7138 = vunpack.c.h.b16 %v6834
        %v7139 = vunpack.c.l.b16 %v6835
        %v7140 = vunpack.c.h.b16 %v6835
        %v7141 = vunpack.c.l.b16 %v6836
        %v7142 = vunpack.c.h.b16 %v6836
        %v7143 = vunpack.c.l.b16 %v6837
        %v7144 = vunpack.c.h.b16 %v6837
        %v7145 = vunpack.c.l.b16 %v6838
        %v7146 = vunpack.c.h.b16 %v6838
        %v7147 = vunpack.c.l.b16 %v6839
        %v7148 = vunpack.c.h.b16 %v6839
        %v7149 = vunpack.c.l.b16 %v6840
        %v7150 = vunpack.c.h.b16 %v6840
        %v7151 = vunpack.c.l.b16 %v6841
        %v7152 = vunpack.c.h.b16 %v6841
        %v7153 = vunpack.c.l.b16 %v6842
        %v7154 = vunpack.c.h.b16 %v6842
        %v7155 = vunpack.c.l.b16 %v6843
        %v7156 = vunpack.c.h.b16 %v6843
        %v7157 = vunpack.c.l.b16 %v6844
        %v7158 = vunpack.c.h.b16 %v6844
        %v7159 = vunpack.c.l.b16 %v6845
        %v7160 = vunpack.c.h.b16 %v6845
        %v7161 = vunpack.c.l.b16 %v6846
        %v7162 = vunpack.c.h.b16 %v6846
        %v7163 = vunpack.c.l.b16 %v6847
        %v7164 = vunpack.c.h.b16 %v6847
        %v7165 = vunpack.c.l.b16 %v6848
        %v7166 = vunpack.c.h.b16 %v6848
        %v7167 = vunpack.c.l.b16 %v6849
        %v7168 = vunpack.c.h.b16 %v6849
        %v7169 = vunpack.c.l.b16 %v6850
        %v7170 = vunpack.c.h.b16 %v6850
        %v7171 = vunpack.c.l.b16 %v6851
        %v7172 = vunpack.c.h.b16 %v6851
        %v7173 = vunpack.c.l.b16 %v6852
        %v7174 = vunpack.c.h.b16 %v6852
        %v7175 = vunpack.c.l.b16 %v6853
        %v7176 = vunpack.c.h.b16 %v6853
        %v7177 = vunpack.c.l.b16 %v6854
        %v7178 = vunpack.c.h.b16 %v6854
        %v7179 = vunpack.c.l.b16 %v6855
        %v7180 = vunpack.c.h.b16 %v6855
        %v7181 = vunpack.c.l.b16 %v6856
        %v7182 = vunpack.c.h.b16 %v6856
        %v7183 = vunpack.c.l.b16 %v6857
        %v7184 = vunpack.c.h.b16 %v6857
        %v7185 = vunpack.c.l.b16 %v6858
        %v7186 = vunpack.c.h.b16 %v6858
        %v7187 = vunpack.c.l.b16 %v6859
        %v7188 = vunpack.c.h.b16 %v6859
        %v7189 = vunpack.c.l.b16 %v6860
        %v7190 = vunpack.c.h.b16 %v6860
        %v7191 = vunpack.c.l.b16 %v6861
        %v7192 = vunpack.c.h.b16 %v6861
        %v7193 = vunpack.c.l.b16 %v6862
        %v7194 = vunpack.c.h.b16 %v6862
        %v7195 = vunpack.c.l.b16 %v6863
        %v7196 = vunpack.c.h.b16 %v6863
        %v7197 = vunpack.c.l.b16 %v6864
        %v7198 = vunpack.c.h.b16 %v6864
        %v7199 = vunpack.c.l.b16 %v6865
        %v7200 = vunpack.c.h.b16 %v6865
        %v7201 = vunpack.c.l.b16 %v6866
        %v7202 = vunpack.c.h.b16 %v6866
        %v7203 = vunpack.c.l.b16 %v6867
        %v7204 = vunpack.c.h.b16 %v6867
        %v7205 = vunpack.c.l.b16 %v6868
        %v7206 = vunpack.c.h.b16 %v6868
        %v7207 = vunpack.c.l.b16 %v6869
        %v7208 = vunpack.c.h.b16 %v6869
        %v7209 = vunpack.c.l.b16 %v6870
        %v7210 = vunpack.c.h.b16 %v6870
        %v7211 = vunpack.c.l.b16 %v6871
        %v7212 = vunpack.c.h.b16 %v6871
        %v7213 = vunpack.c.l.b16 %v6872
        %v7214 = vunpack.c.h.b16 %v6872
        %v7215 = vunpack.c.l.b16 %v6873
        %v7216 = vunpack.c.h.b16 %v6873
        %v7217 = vunpack.c.l.b16 %v6874
        %v7218 = vunpack.c.h.b16 %v6874
        %v7219 = vunpack.c.l.b16 %v6875
        %v7220 = vunpack.c.h.b16 %v6875
        %v7221 = vunpack.c.l.b16 %v6876
        %v7222 = vunpack.c.h.b16 %v6876
        %v7223 = vunpack.c.l.b16 %v6877
        %v7224 = vunpack.c.h.b16 %v6877
        %v7225 = vunpack.c.l.b16 %v6878
        %v7226 = vunpack.c.h.b16 %v6878
        %v7227 = vunpack.c.l.b16 %v6879
        %v7228 = vunpack.c.h.b16 %v6879
        %v7229 = vunpack.c.l.b16 %v6880
        %v7230 = vunpack.c.h.b16 %v6880
        %v7231 = vunpack.c.l.b16 %v6881
        %v7232 = vunpack.c.h.b16 %v6881
        %v7233 = vunpack.c.l.b16 %v6882
        %v7234 = vunpack.c.h.b16 %v6882
        %v7235 = vunpack.c.l.b16 %v6883
        %v7236 = vunpack.c.h.b16 %v6883
        %v7237 = vunpack.c.l.b16 %v6884
        %v7238 = vunpack.c.h.b16 %v6884
        %v7239 = vunpack.c.l.b16 %v6885
        %v7240 = vunpack.c.h.b16 %v6885
        %v7241 = vunpack.c.l.b16 %v6886
        %v7242 = vunpack.c.h.b16 %v6886
        %v7243 = vunpack.c.l.b16 %v6887
        %v7244 = vunpack.c.h.b16 %v6887
        %v7245 = vunpack.c.l.b16 %v6888
        %v7246 = vunpack.c.h.b16 %v6888
        %v7247 = vunpack.c.l.b16 %v6889
        %v7248 = vunpack.c.h.b16 %v6889
        %v7249 = vunpack.c.l.b16 %v6890
        %v7250 = vunpack.c.h.b16 %v6890
        %v7251 = vunpack.c.l.b16 %v6891
        %v7252 = vunpack.c.h.b16 %v6891
        %v7253 = vunpack.c.l.b16 %v6892
        %v7254 = vunpack.c.h.b16 %v6892
        %v7255 = vunpack.c.l.b16 %v6893
        %v7256 = vunpack.c.h.b16 %v6893
        %v7257 = vunpack.c.l.b16 %v6894
        %v7258 = vunpack.c.h.b16 %v6894
        %v7259 = vunpack.c.l.b16 %v6895
        %v7260 = vunpack.c.h.b16 %v6895
        %v7261 = vunpack.c.l.b16 %v6896
        %v7262 = vunpack.c.h.b16 %v6896
        %v7263 = vunpack.c.l.b16 %v6897
        %v7264 = vunpack.c.h.b16 %v6897
        %v7265 = vunpack.c.l.b16 %v6898
        %v7266 = vunpack.c.h.b16 %v6898
        %v7267 = vunpack.c.l.b16 %v6899
        %v7268 = vunpack.c.h.b16 %v6899
        %v7269 = vunpack.c.l.b16 %v6900
        %v7270 = vunpack.c.h.b16 %v6900
        %v7271 = vunpack.c.l.b16 %v6901
        %v7272 = vunpack.c.h.b16 %v6901
        %v7273 = vunpack.c.l.b16 %v6902
        %v7274 = vunpack.c.h.b16 %v6902
        %v7275 = vunpack.c.l.b16 %v6903
        %v7276 = vunpack.c.h.b16 %v6903
        %v7277 = vunpack.c.l.b16 %v6904
        %v7278 = vunpack.c.h.b16 %v6904
        %v7279 = vunpack.c.l.b16 %v6905
        %v7280 = vunpack.c.h.b16 %v6905
        %v7281 = vunpack.c.l.b16 %v6906
        %v7282 = vunpack.c.h.b16 %v6906
        %v7283 = vunpack.c.l.b16 %v6907
        %v7284 = vunpack.c.h.b16 %v6907
        %v7285 = vunpack.c.l.b16 %v6908
        %v7286 = vunpack.c.h.b16 %v6908
        %v7287 = vunpack.c.l.b16 %v6909
        %v7288 = vunpack.c.h.b16 %v6909
        %v7289 = vunpack.c.l.b16 %v6910
        %v7290 = vunpack.c.h.b16 %v6910
        %v7291 = vunpack.c.l.b16 %v6911
        %v7292 = vunpack.c.h.b16 %v6911
        %v7293 = vunpack.c.l.b16 %v6912
        %v7294 = vunpack.c.h.b16 %v6912
        %v7295 = vunpack.c.l.b16 %v6913
        %v7296 = vunpack.c.h.b16 %v6913
        %v7297 = vunpack.c.l.b16 %v6914
        %v7298 = vunpack.c.h.b16 %v6914
        %v7299 = vunpack.c.l.b16 %v6915
        %v7300 = vunpack.c.h.b16 %v6915
        %v7301 = vunpack.c.l.b16 %v6916
        %v7302 = vunpack.c.h.b16 %v6916
        %v7303 = vunpack.c.l.b16 %v6917
        %v7304 = vunpack.c.h.b16 %v6917
        %v7305 = vunpack.c.l.b16 %v6918
        %v7306 = vunpack.c.h.b16 %v6918
        %v7307 = vunpack.c.l.b16 %v6919
        %v7308 = vunpack.c.h.b16 %v6919
        %v7309 = vunpack.c.l.b16 %v6920
        %v7310 = vunpack.c.h.b16 %v6920
        %v7311 = vunpack.c.l.b16 %v6921
        %v7312 = vunpack.c.h.b16 %v6921
        %v7313 = vunpack.c.l.b16 %v6922
        %v7314 = vunpack.c.h.b16 %v6922
        %v7315 = vunpack.c.l.b16 %v6923
        %v7316 = vunpack.c.h.b16 %v6923
        %v7317 = vunpack.c.l.b16 %v6924
        %v7318 = vunpack.c.h.b16 %v6924
        %v7319 = vunpack.c.l.b16 %v6925
        %v7320 = vunpack.c.h.b16 %v6925
        %v7321 = vunpack.c.l.b16 %v6926
        %v7322 = vunpack.c.h.b16 %v6926
        %v7323 = vunpack.c.l.b16 %v6927
        %v7324 = vunpack.c.h.b16 %v6927
        %v7325 = vunpack.c.l.b16 %v6928
        %v7326 = vunpack.c.h.b16 %v6928
        %v7327 = vunpack.c.l.b16 %v6929
        %v7328 = vunpack.c.h.b16 %v6929
        %v7329 = vunpack.c.l.b16 %v6930
        %v7330 = vunpack.c.h.b16 %v6930
        %v7331 = vunpack.c.l.b16 %v6931
        %v7332 = vunpack.c.h.b16 %v6931
        %v7333 = vunpack.c.l.b16 %v6932
        %v7334 = vunpack.c.h.b16 %v6932
        %v7335 = vunpack.c.l.b16 %v6933
        %v7336 = vunpack.c.h.b16 %v6933
        %v7337 = vunpack.c.l.b16 %v6934
        %v7338 = vunpack.c.h.b16 %v6934
        %v7339 = vunpack.c.l.b16 %v6935
        %v7340 = vunpack.c.h.b16 %v6935
        %v7341 = vunpack.c.l.b16 %v6936
        %v7342 = vunpack.c.h.b16 %v6936
        %v7343 = vpack.c.b16 %v7091, %v7087
        %v7344 = vpack.c.b16 %v7092, %v7088
        %v7345 = vpack.c.b16 %v7093, %v7089
        %v7346 = vpack.c.b16 %v7094, %v7090
        %v7347 = vpack.c.b16 %v7099, %v7095
        %v7348 = vpack.c.b16 %v7100, %v7096
        %v7349 = vpack.c.b16 %v7101, %v7097
        %v7350 = vpack.c.b16 %v7102, %v7098
        %v7351 = vpack.c.b16 %v7107, %v7103
        %v7352 = vpack.c.b16 %v7108, %v7104
        %v7353 = vpack.c.b16 %v7109, %v7105
        %v7354 = vpack.c.b16 %v7110, %v7106
        %v7355 = vpack.c.b16 %v7115, %v7111
        %v7356 = vpack.c.b16 %v7116, %v7112
        %v7357 = vpack.c.b16 %v7117, %v7113
        %v7358 = vpack.c.b16 %v7118, %v7114
        %v7359 = vpack.c.b16 %v7123, %v7119
        %v7360 = vpack.c.b16 %v7124, %v7120
        %v7361 = vpack.c.b16 %v7125, %v7121
        %v7362 = vpack.c.b16 %v7126, %v7122
        %v7363 = vpack.c.b16 %v7131, %v7127
        %v7364 = vpack.c.b16 %v7132, %v7128
        %v7365 = vpack.c.b16 %v7133, %v7129
        %v7366 = vpack.c.b16 %v7134, %v7130
        %v7367 = vpack.c.b16 %v7139, %v7135
        %v7368 = vpack.c.b16 %v7140, %v7136
        %v7369 = vpack.c.b16 %v7141, %v7137
        %v7370 = vpack.c.b16 %v7142, %v7138
        %v7371 = vpack.c.b16 %v7147, %v7143
        %v7372 = vpack.c.b16 %v7148, %v7144
        %v7373 = vpack.c.b16 %v7149, %v7145
        %v7374 = vpack.c.b16 %v7150, %v7146
        %v7375 = vpack.c.b16 %v7155, %v7151
        %v7376 = vpack.c.b16 %v7156, %v7152
        %v7377 = vpack.c.b16 %v7157, %v7153
        %v7378 = vpack.c.b16 %v7158, %v7154
        %v7379 = vpack.c.b16 %v7163, %v7159
        %v7380 = vpack.c.b16 %v7164, %v7160
        %v7381 = vpack.c.b16 %v7165, %v7161
        %v7382 = vpack.c.b16 %v7166, %v7162
        %v7383 = vpack.c.b16 %v7171, %v7167
        %v7384 = vpack.c.b16 %v7172, %v7168
        %v7385 = vpack.c.b16 %v7173, %v7169
        %v7386 = vpack.c.b16 %v7174, %v7170
        %v7387 = vpack.c.b16 %v7179, %v7175
        %v7388 = vpack.c.b16 %v7180, %v7176
        %v7389 = vpack.c.b16 %v7181, %v7177
        %v7390 = vpack.c.b16 %v7182, %v7178
        %v7391 = vpack.c.b16 %v7187, %v7183
        %v7392 = vpack.c.b16 %v7188, %v7184
        %v7393 = vpack.c.b16 %v7189, %v7185
        %v7394 = vpack.c.b16 %v7190, %v7186
        %v7395 = vpack.c.b16 %v7195, %v7191
        %v7396 = vpack.c.b16 %v7196, %v7192
        %v7397 = vpack.c.b16 %v7197, %v7193
        %v7398 = vpack.c.b16 %v7198, %v7194
        %v7399 = vpack.c.b16 %v7203, %v7199
        %v7400 = vpack.c.b16 %v7204, %v7200
        %v7401 = vpack.c.b16 %v7205, %v7201
        %v7402 = vpack.c.b16 %v7206, %v7202
        %v7403 = vpack.c.b16 %v7211, %v7207
        %v7404 = vpack.c.b16 %v7212, %v7208
        %v7405 = vpack.c.b16 %v7213, %v7209
        %v7406 = vpack.c.b16 %v7214, %v7210
        %v7407 = vpack.c.b16 %v7219, %v7215
        %v7408 = vpack.c.b16 %v7220, %v7216
        %v7409 = vpack.c.b16 %v7221, %v7217
        %v7410 = vpack.c.b16 %v7222, %v7218
        %v7411 = vpack.c.b16 %v7227, %v7223
        %v7412 = vpack.c.b16 %v7228, %v7224
        %v7413 = vpack.c.b16 %v7229, %v7225
        %v7414 = vpack.c.b16 %v7230, %v7226
        %v7415 = vpack.c.b16 %v7235, %v7231
        %v7416 = vpack.c.b16 %v7236, %v7232
        %v7417 = vpack.c.b16 %v7237, %v7233
        %v7418 = vpack.c.b16 %v7238, %v7234
        %v7419 = vpack.c.b16 %v7243, %v7239
        %v7420 = vpack.c.b16 %v7244, %v7240
        %v7421 = vpack.c.b16 %v7245, %v7241
        %v7422 = vpack.c.b16 %v7246, %v7242
        %v7423 = vpack.c.b16 %v7251, %v7247
        %v7424 = vpack.c.b16 %v7252, %v7248
        %v7425 = vpack.c.b16 %v7253, %v7249
        %v7426 = vpack.c.b16 %v7254, %v7250
        %v7427 = vpack.c.b16 %v7259, %v7255
        %v7428 = vpack.c.b16 %v7260, %v7256
        %v7429 = vpack.c.b16 %v7261, %v7257
        %v7430 = vpack.c.b16 %v7262, %v7258
        %v7431 = vpack.c.b16 %v7267, %v7263
        %v7432 = vpack.c.b16 %v7268, %v7264
        %v7433 = vpack.c.b16 %v7269, %v7265
        %v7434 = vpack.c.b16 %v7270, %v7266
        %v7435 = vpack.c.b16 %v7275, %v7271
        %v7436 = vpack.c.b16 %v7276, %v7272
        %v7437 = vpack.c.b16 %v7277, %v7273
        %v7438 = vpack.c.b16 %v7278, %v7274
        %v7439 = vpack.c.b16 %v7283, %v7279
        %v7440 = vpack.c.b16 %v7284, %v7280
        %v7441 = vpack.c.b16 %v7285, %v7281
        %v7442 = vpack.c.b16 %v7286, %v7282
        %v7443 = vpack.c.b16 %v7291, %v7287
        %v7444 = vpack.c.b16 %v7292, %v7288
        %v7445 = vpack.c.b16 %v7293, %v7289
        %v7446 = vpack.c.b16 %v7294, %v7290
        %v7447 = vpack.c.b16 %v7299, %v7295
        %v7448 = vpack.c.b16 %v7300, %v7296
        %v7449 = vpack.c.b16 %v7301, %v7297
        %v7450 = vpack.c.b16 %v7302, %v7298
        %v7451 = vpack.c.b16 %v7307, %v7303
        %v7452 = vpack.c.b16 %v7308, %v7304
        %v7453 = vpack.c.b16 %v7309, %v7305
        %v7454 = vpack.c.b16 %v7310, %v7306
        %v7455 = vpack.c.b16 %v7315, %v7311
        %v7456 = vpack.c.b16 %v7316, %v7312
        %v7457 = vpack.c.b16 %v7317, %v7313
        %v7458 = vpack.c.b16 %v7318, %v7314
        %v7459 = vpack.c.b16 %v7323, %v7319
        %v7460 = vpack.c.b16 %v7324, %v7320
        %v7461 = vpack.c.b16 %v7325, %v7321
        %v7462 = vpack.c.b16 %v7326, %v7322
        %v7463 = vpack.c.b16 %v7331, %v7327
        %v7464 = vpack.c.b16 %v7332, %v7328
        %v7465 = vpack.c.b16 %v7333, %v7329
        %v7466 = vpack.c.b16 %v7334, %v7330
        %v7467 = vpack.c.b16 %v7339, %v7335
        %v7468 = vpack.c.b16 %v7340, %v7336
        %v7469 = vpack.c.b16 %v7341, %v7337
        %v7470 = vpack.c.b16 %v7342, %v7338
        %7599 = vmatprep.subr.bf16.mxu0 %v7344
        %7600 = vmatpush1.bf16.msra.mxu0 %v7343
        %7601 = vmatprep.subr.bf16.mxu0 %v7348
        %7602 = vmatpush1.bf16.msra.mxu0 %v7347
        %7603 = vmatprep.subr.bf16.mxu0 %v7352
        %7604 = vmatpush1.bf16.msra.mxu0 %v7351
        %7605 = vmatprep.subr.bf16.mxu0 %v7356
        %7606 = vmatpush1.bf16.msra.mxu0 %v7355
        %7607 = vmatprep.subr.bf16.mxu0 %v7360
        %7608 = vmatpush1.bf16.msra.mxu0 %v7359
        %7609 = vmatprep.subr.bf16.mxu0 %v7364
        %7610 = vmatpush1.bf16.msra.mxu0 %v7363
        %7611 = vmatprep.subr.bf16.mxu0 %v7368
        %7612 = vmatpush1.bf16.msra.mxu0 %v7367
        %7613 = vmatprep.subr.bf16.mxu0 %v7372
        %7614 = vmatpush1.bf16.msra.mxu0 %v7371
        %7615 = vmatprep.subr.bf16.mxu0 %v7376
        %7616 = vmatpush1.bf16.msra.mxu0 %v7375
        %7617 = vmatprep.subr.bf16.mxu0 %v7380
        %7618 = vmatpush1.bf16.msra.mxu0 %v7379
        %7619 = vmatprep.subr.bf16.mxu0 %v7384
        %7620 = vmatpush1.bf16.msra.mxu0 %v7383
        %7621 = vmatprep.subr.bf16.mxu0 %v7388
        %7622 = vmatpush1.bf16.msra.mxu0 %v7387
        %7623 = vmatprep.subr.bf16.mxu0 %v7392
        %7624 = vmatpush1.bf16.msra.mxu0 %v7391
        %7625 = vmatprep.subr.bf16.mxu0 %v7396
        %7626 = vmatpush1.bf16.msra.mxu0 %v7395
        %7627 = vmatprep.subr.bf16.mxu0 %v7400
        %7628 = vmatpush1.bf16.msra.mxu0 %v7399
        %7629 = vmatprep.subr.bf16.mxu0 %v7404
        %7630 = vmatpush1.bf16.msra.mxu0 %v7403
        %7631 = vmatprep.mubr.bf16.mxu0 %v6802
        %7632 = vmatmul.mubr.bf16.gmra.mrb[0].mxu0 %v6801
        %v7633 = vpop.f32.mrb[0].mxu0
        %v7634 = vadd.f32 %v6942, %v7633
        %v7635 = vpop.f32.mrb[0].mxu0
        %v7636 = vadd.f32 %v6946, %v7635
        %v7637 = vpop.f32.mrb[0].mxu0
        %v7638 = vadd.f32 %v6942, %v7637
        %v7639 = vpop.f32.mrb[0].mxu0
        %v7640 = vadd.f32 %v6946, %v7639
        %7641 = vmatprep.mubr.bf16.mxu0 %v6806
        %7642 = vmatmul.mubr.bf16.gmra.mrb[0].mxu0 %v6805
        %v7643 = vpop.f32.mrb[0].mxu0
        %v7644 = vadd.f32 %v6942, %v7643
        %v7645 = vpop.f32.mrb[0].mxu0
        %v7646 = vadd.f32 %v6946, %v7645
        %v7647 = vpop.f32.mrb[0].mxu0
        %v7648 = vadd.f32 %v6942, %v7647
        %v7649 = vpop.f32.mrb[0].mxu0
        %v7650 = vadd.f32 %v6946, %v7649
        %7651 = vdwg.mxu0
        %7652 = vmatprep.subr.bf16.mxu0 %v7408
        %7653 = vmatpush1.bf16.msra.mxu0 %v7407
        %7654 = vmatprep.subr.bf16.mxu0 %v7412
        %7655 = vmatpush1.bf16.msra.mxu0 %v7411
        %7656 = vmatprep.subr.bf16.mxu0 %v7416
        %7657 = vmatpush1.bf16.msra.mxu0 %v7415
        %7658 = vmatprep.subr.bf16.mxu0 %v7420
        %7659 = vmatpush1.bf16.msra.mxu0 %v7419
        %7660 = vmatprep.subr.bf16.mxu0 %v7424
        %7661 = vmatpush1.bf16.msra.mxu0 %v7423
        %7662 = vmatprep.subr.bf16.mxu0 %v7428
        %7663 = vmatpush1.bf16.msra.mxu0 %v7427
        %7664 = vmatprep.subr.bf16.mxu0 %v7432
        %7665 = vmatpush1.bf16.msra.mxu0 %v7431
        %7666 = vmatprep.subr.bf16.mxu0 %v7436
        %7667 = vmatpush1.bf16.msra.mxu0 %v7435
        %7668 = vmatprep.subr.bf16.mxu0 %v7440
        %7669 = vmatpush1.bf16.msra.mxu0 %v7439
        %7670 = vmatprep.subr.bf16.mxu0 %v7444
        %7671 = vmatpush1.bf16.msra.mxu0 %v7443
        %7672 = vmatprep.subr.bf16.mxu0 %v7448
        %7673 = vmatpush1.bf16.msra.mxu0 %v7447
        %7674 = vmatprep.subr.bf16.mxu0 %v7452
        %7675 = vmatpush1.bf16.msra.mxu0 %v7451
        %7676 = vmatprep.subr.bf16.mxu0 %v7456
        %7677 = vmatpush1.bf16.msra.mxu0 %v7455
        %7678 = vmatprep.subr.bf16.mxu0 %v7460
        %7679 = vmatpush1.bf16.msra.mxu0 %v7459
        %7680 = vmatprep.subr.bf16.mxu0 %v7464
        %7681 = vmatpush1.bf16.msra.mxu0 %v7463
        %7682 = vmatprep.subr.bf16.mxu0 %v7468
        %7683 = vmatpush1.bf16.msra.mxu0 %v7467
        %7684 = vmatprep.mubr.bf16.mxu0 %v6804
        %7685 = vmatmul.mubr.bf16.gmra.mrb[0].mxu0 %v6803
        %v7686 = vpop.f32.mrb[0].mxu0
        %v7687 = vadd.f32 %v7634, %v7686
        %v7688 = vpop.f32.mrb[0].mxu0
        %v7689 = vadd.f32 %v7636, %v7688
        %v7690 = vpop.f32.mrb[0].mxu0
        %v7691 = vadd.f32 %v7638, %v7690
        %v7692 = vpop.f32.mrb[0].mxu0
        %v7693 = vadd.f32 %v7640, %v7692
        %7694 = vmatprep.mubr.bf16.mxu0 %v6808
        %7695 = vmatmul.mubr.bf16.gmra.mrb[0].mxu0 %v6807
        %v7696 = vpop.f32.mrb[0].mxu0
        %v7697 = vadd.f32 %v7644, %v7696
        %v7698 = vpop.f32.mrb[0].mxu0
        %v7699 = vadd.f32 %v7646, %v7698
        %v7700 = vpop.f32.mrb[0].mxu0
        %v7701 = vadd.f32 %v7648, %v7700
        %v7702 = vpop.f32.mrb[0].mxu0
        %v7703 = vadd.f32 %v7650, %v7702
        %7704 = vdwg.mxu0
        %7705 = vmatprep.subr.bf16.mxu0 %v7346
        %7706 = vmatpush1.bf16.msra.mxu0 %v7345
        %7707 = vmatprep.subr.bf16.mxu0 %v7350
        %7708 = vmatpush1.bf16.msra.mxu0 %v7349
        %7709 = vmatprep.subr.bf16.mxu0 %v7354
        %7710 = vmatpush1.bf16.msra.mxu0 %v7353
        %7711 = vmatprep.subr.bf16.mxu0 %v7358
        %7712 = vmatpush1.bf16.msra.mxu0 %v7357
        %7713 = vmatprep.subr.bf16.mxu0 %v7362
        %7714 = vmatpush1.bf16.msra.mxu0 %v7361
        %7715 = vmatprep.subr.bf16.mxu0 %v7366
        %7716 = vmatpush1.bf16.msra.mxu0 %v7365
        %7717 = vmatprep.subr.bf16.mxu0 %v7370
        %7718 = vmatpush1.bf16.msra.mxu0 %v7369
        %7719 = vmatprep.subr.bf16.mxu0 %v7374
        %7720 = vmatpush1.bf16.msra.mxu0 %v7373
        %7721 = vmatprep.subr.bf16.mxu0 %v7378
        %7722 = vmatpush1.bf16.msra.mxu0 %v7377
        %7723 = vmatprep.subr.bf16.mxu0 %v7382
        %7724 = vmatpush1.bf16.msra.mxu0 %v7381
        %7725 = vmatprep.subr.bf16.mxu0 %v7386
        %7726 = vmatpush1.bf16.msra.mxu0 %v7385
        %7727 = vmatprep.subr.bf16.mxu0 %v7390
        %7728 = vmatpush1.bf16.msra.mxu0 %v7389
        %7729 = vmatprep.subr.bf16.mxu0 %v7394
        %7730 = vmatpush1.bf16.msra.mxu0 %v7393
        %7731 = vmatprep.subr.bf16.mxu0 %v7398
        %7732 = vmatpush1.bf16.msra.mxu0 %v7397
        %7733 = vmatprep.subr.bf16.mxu0 %v7402
        %7734 = vmatpush1.bf16.msra.mxu0 %v7401
        %7735 = vmatprep.subr.bf16.mxu0 %v7406
        %7736 = vmatpush1.bf16.msra.mxu0 %v7405
        %7737 = vmatprep.mubr.bf16.mxu0 %v6802
        %7738 = vmatmul.mubr.bf16.gmra.mrb[0].mxu0 %v6801
        %v7739 = vpop.f32.mrb[0].mxu0
        %v7740 = vadd.f32 %v6950, %v7739
        %v7741 = vpop.f32.mrb[0].mxu0
        %v7742 = vadd.f32 %v6954, %v7741
        %v7743 = vpop.f32.mrb[0].mxu0
        %v7744 = vadd.f32 %v6950, %v7743
        %v7745 = vpop.f32.mrb[0].mxu0
        %v7746 = vadd.f32 %v6954, %v7745
        %7747 = vmatprep.mubr.bf16.mxu0 %v6806
        %7748 = vmatmul.mubr.bf16.gmra.mrb[0].mxu0 %v6805
        %v7749 = vpop.f32.mrb[0].mxu0
        %v7750 = vadd.f32 %v6950, %v7749
        %v7751 = vpop.f32.mrb[0].mxu0
        %v7752 = vadd.f32 %v6954, %v7751
        %v7753 = vpop.f32.mrb[0].mxu0
        %v7754 = vadd.f32 %v6950, %v7753
        %v7755 = vpop.f32.mrb[0].mxu0
        %v7756 = vadd.f32 %v6954, %v7755
        %7757 = vdwg.mxu0
        %7758 = vmatprep.subr.bf16.mxu0 %v7410
        %7759 = vmatpush1.bf16.msra.mxu0 %v7409
        %7760 = vmatprep.subr.bf16.mxu0 %v7414
        %7761 = vmatpush1.bf16.msra.mxu0 %v7413
        %7762 = vmatprep.subr.bf16.mxu0 %v7418
        %7763 = vmatpush1.bf16.msra.mxu0 %v7417
        %7764 = vmatprep.subr.bf16.mxu0 %v7422
        %7765 = vmatpush1.bf16.msra.mxu0 %v7421
        %7766 = vmatprep.subr.bf16.mxu0 %v7426
        %7767 = vmatpush1.bf16.msra.mxu0 %v7425
        %7768 = vmatprep.subr.bf16.mxu0 %v7430
        %7769 = vmatpush1.bf16.msra.mxu0 %v7429
        %7770 = vmatprep.subr.bf16.mxu0 %v7434
        %7771 = vmatpush1.bf16.msra.mxu0 %v7433
        %7772 = vmatprep.subr.bf16.mxu0 %v7438
        %7773 = vmatpush1.bf16.msra.mxu0 %v7437
        %7774 = vmatprep.subr.bf16.mxu0 %v7442
        %7775 = vmatpush1.bf16.msra.mxu0 %v7441
        %7776 = vmatprep.subr.bf16.mxu0 %v7446
        %7777 = vmatpush1.bf16.msra.mxu0 %v7445
        %7778 = vmatprep.subr.bf16.mxu0 %v7450
        %7779 = vmatpush1.bf16.msra.mxu0 %v7449
        %7780 = vmatprep.subr.bf16.mxu0 %v7454
        %7781 = vmatpush1.bf16.msra.mxu0 %v7453
        %7782 = vmatprep.subr.bf16.mxu0 %v7458
        %7783 = vmatpush1.bf16.msra.mxu0 %v7457
        %7784 = vmatprep.subr.bf16.mxu0 %v7462
        %7785 = vmatpush1.bf16.msra.mxu0 %v7461
        %7786 = vmatprep.subr.bf16.mxu0 %v7466
        %7787 = vmatpush1.bf16.msra.mxu0 %v7465
        %7788 = vmatprep.subr.bf16.mxu0 %v7470
        %7789 = vmatpush1.bf16.msra.mxu0 %v7469
        %7790 = vmatprep.mubr.bf16.mxu0 %v6804
        %7791 = vmatmul.mubr.bf16.gmra.mrb[0].mxu0 %v6803
        %v7792 = vpop.f32.mrb[0].mxu0
        %v7793 = vadd.f32 %v7740, %v7792
        %v7794 = vpop.f32.mrb[0].mxu0
        %v7795 = vadd.f32 %v7742, %v7794
        %v7796 = vpop.f32.mrb[0].mxu0
        %v7797 = vadd.f32 %v7744, %v7796
        %v7798 = vpop.f32.mrb[0].mxu0
        %v7799 = vadd.f32 %v7746, %v7798
        %7800 = vmatprep.mubr.bf16.mxu0 %v6808
        %7801 = vmatmul.mubr.bf16.gmra.mrb[0].mxu0 %v6807
        %v7802 = vpop.f32.mrb[0].mxu0
        %v7803 = vadd.f32 %v7750, %v7802
        %v7804 = vpop.f32.mrb[0].mxu0
        %v7805 = vadd.f32 %v7752, %v7804
        %v7806 = vpop.f32.mrb[0].mxu0
        %v7807 = vadd.f32 %v7754, %v7806
        %v7808 = vpop.f32.mrb[0].mxu0
        %v7809 = vadd.f32 %v7756, %v7808
        %7810 = vdwg.mxu0
        %v7811 = vadd.f32 %v5434, %v7687
        %v7812 = vadd.f32 %v5436, %v7689
        %v7813 = vadd.f32 %v5487, %v7793
        %v7814 = vadd.f32 %v5489, %v7795
        %v7815 = vadd.f32 %v5438, %v7691
        %v7816 = vadd.f32 %v5440, %v7693
        %v7817 = vadd.f32 %v5491, %v7797
        %v7818 = vadd.f32 %v5493, %v7799
        %v7819 = vadd.f32 %v5444, %v7697
        %v7820 = vadd.f32 %v5446, %v7699
        %v7821 = vadd.f32 %v5497, %v7803
        %v7822 = vadd.f32 %v5499, %v7805
        %v7823 = vadd.f32 %v5448, %v7701
        %v7824 = vadd.f32 %v5450, %v7703
        %v7825 = vadd.f32 %v5501, %v7807
        %v7826 = vadd.f32 %v5503, %v7809
        %v7827 = vadd.f32 %v7811, %v7812
        %v7828 = vadd.f32 %v7827, %v7813
        %v7829 = vadd.f32 %v7828, %v7814
        %7830 = vadd.xlane.f32.xlu0 %v7829
        %v7831 = vpop.xlane.xlu0 %7830
        %v7832 = vadd.f32 %v7815, %v7816
        %v7833 = vadd.f32 %v7832, %v7817
        %v7834 = vadd.f32 %v7833, %v7818
        %7835 = vadd.xlane.f32.xlu0 %v7834
        %v7836 = vpop.xlane.xlu0 %7835
        %v7837 = vadd.f32 %v7819, %v7820
        %v7838 = vadd.f32 %v7837, %v7821
        %v7839 = vadd.f32 %v7838, %v7822
        %7840 = vadd.xlane.f32.xlu0 %v7839
        %v7841 = vpop.xlane.xlu0 %7840
        %v7842 = vadd.f32 %v7823, %v7824
        %v7843 = vadd.f32 %v7842, %v7825
        %v7844 = vadd.f32 %v7843, %v7826
        %7845 = vadd.xlane.f32.xlu0 %v7844
        %v7846 = vpop.xlane.xlu0 %7845
        %v7847 = vrcp.pop 512.0
        %v7848 = vmul.f32 %v7831, %v7847
        %v7849 = vmul.f32 %v7836, %v7847
        %v7850 = vmul.f32 %v7841, %v7847
        %v7851 = vmul.f32 %v7846, %v7847
        %v7852 = vsub.f32 %v7811, %v7848
        %v7853 = vsub.f32 %v7812, %v7848
        %v7854 = vsub.f32 %v7813, %v7848
        %v7855 = vsub.f32 %v7814, %v7848
        %v7856 = vsub.f32 %v7815, %v7849
        %v7857 = vsub.f32 %v7816, %v7849
        %v7858 = vsub.f32 %v7817, %v7849
        %v7859 = vsub.f32 %v7818, %v7849
        %v7860 = vsub.f32 %v7819, %v7850
        %v7861 = vsub.f32 %v7820, %v7850
        %v7862 = vsub.f32 %v7821, %v7850
        %v7863 = vsub.f32 %v7822, %v7850
        %v7864 = vsub.f32 %v7823, %v7851
        %v7865 = vsub.f32 %v7824, %v7851
        %v7866 = vsub.f32 %v7825, %v7851
        %v7867 = vsub.f32 %v7826, %v7851
        %v7868 = vmul.f32 %v7852, %v7852
        %v7869 = vmul.f32 %v7853, %v7853
        %v7870 = vmul.f32 %v7854, %v7854
        %v7871 = vmul.f32 %v7855, %v7855
        %v7872 = vmul.f32 %v7856, %v7856
        %v7873 = vmul.f32 %v7857, %v7857
        %v7874 = vmul.f32 %v7858, %v7858
        %v7875 = vmul.f32 %v7859, %v7859
        %v7876 = vmul.f32 %v7860, %v7860
        %v7877 = vmul.f32 %v7861, %v7861
        %v7878 = vmul.f32 %v7862, %v7862
        %v7879 = vmul.f32 %v7863, %v7863
        %v7880 = vmul.f32 %v7864, %v7864
        %v7881 = vmul.f32 %v7865, %v7865
        %v7882 = vmul.f32 %v7866, %v7866
        %v7883 = vmul.f32 %v7867, %v7867
        %v7884 = vadd.f32 %v7868, %v7869
        %v7885 = vadd.f32 %v7884, %v7870
        %v7886 = vadd.f32 %v7885, %v7871
        %7887 = vadd.xlane.f32.xlu0 %v7886
        %v7888 = vpop.xlane.xlu0 %7887
        %v7889 = vadd.f32 %v7872, %v7873
        %v7890 = vadd.f32 %v7889, %v7874
        %v7891 = vadd.f32 %v7890, %v7875
        %7892 = vadd.xlane.f32.xlu0 %v7891
        %v7893 = vpop.xlane.xlu0 %7892
        %v7894 = vadd.f32 %v7876, %v7877
        %v7895 = vadd.f32 %v7894, %v7878
        %v7896 = vadd.f32 %v7895, %v7879
        %7897 = vadd.xlane.f32.xlu0 %v7896
        %v7898 = vpop.xlane.xlu0 %7897
        %v7899 = vadd.f32 %v7880, %v7881
        %v7900 = vadd.f32 %v7899, %v7882
        %v7901 = vadd.f32 %v7900, %v7883
        %7902 = vadd.xlane.f32.xlu0 %v7901
        %v7903 = vpop.xlane.xlu0 %7902
        %v7904 = vmul.f32 %v7888, %v7847
        %v7905 = vmul.f32 %v7893, %v7847
        %v7906 = vmul.f32 %v7898, %v7847
        %v7907 = vmul.f32 %v7903, %v7847
        %v7908 = vadd.f32 %v7904, 1e-05
        %v7909 = vadd.f32 %v7905, 1e-05
        %v7910 = vadd.f32 %v7906, 1e-05
        %v7911 = vadd.f32 %v7907, 1e-05
        %v7912 = vrsqrt.pop %v7908
        %v7913 = vrsqrt.pop %v7909
        %v7914 = vrsqrt.pop %v7910
        %v7915 = vrsqrt.pop %v7911
        %v7916 = vmul.f32 %v7852, %v7912
        %v7917 = vmul.f32 %v7853, %v7912
        %v7918 = vmul.f32 %v7854, %v7912
        %v7919 = vmul.f32 %v7855, %v7912
        %v7920 = vmul.f32 %v7856, %v7913
        %v7921 = vmul.f32 %v7857, %v7913
        %v7922 = vmul.f32 %v7858, %v7913
        %v7923 = vmul.f32 %v7859, %v7913
        %v7924 = vmul.f32 %v7860, %v7914
        %v7925 = vmul.f32 %v7861, %v7914
        %v7926 = vmul.f32 %v7862, %v7914
        %v7927 = vmul.f32 %v7863, %v7914
        %v7928 = vmul.f32 %v7864, %v7915
        %v7929 = vmul.f32 %v7865, %v7915
        %v7930 = vmul.f32 %v7866, %v7915
        %v7931 = vmul.f32 %v7867, %v7915
        %v7932 = vld [vmem:[#allocation14] sm:$0xf]
        %v7934 = vlaneseq
        %v7935 = vshrl.u32 %v7934, 7
        %v7936 = vsub.s32 0, %v7935
        %v7937 = vrot.slane %v7932, %v7936
        %v7938 = vlaneseq
        %v7939 = vshrl.u32 %v7938, 7
        %v7940 = vsub.s32 1, %v7939
        %v7941 = vrot.slane %v7932, %v7940
        %v7942 = vlaneseq
        %v7943 = vshrl.u32 %v7942, 7
        %v7944 = vsub.s32 2, %v7943
        %v7945 = vrot.slane %v7932, %v7944
        %v7946 = vlaneseq
        %v7947 = vshrl.u32 %v7946, 7
        %v7948 = vsub.s32 3, %v7947
        %v7949 = vrot.slane %v7932, %v7948
        %v7954 = vmul.f32 %v7916, %v7937
        %v7955 = vmul.f32 %v7917, %v7941
        %v7956 = vmul.f32 %v7918, %v7945
        %v7957 = vmul.f32 %v7919, %v7949
        %v7958 = vmul.f32 %v7920, %v7937
        %v7959 = vmul.f32 %v7921, %v7941
        %v7960 = vmul.f32 %v7922, %v7945
        %v7961 = vmul.f32 %v7923, %v7949
        %v7962 = vmul.f32 %v7924, %v7937
        %v7963 = vmul.f32 %v7925, %v7941
        %v7964 = vmul.f32 %v7926, %v7945
        %v7965 = vmul.f32 %v7927, %v7949
        %v7966 = vmul.f32 %v7928, %v7937
        %v7967 = vmul.f32 %v7929, %v7941
        %v7968 = vmul.f32 %v7930, %v7945
        %v7969 = vmul.f32 %v7931, %v7949
        %v7970 = vld [vmem:[#allocation16] sm:$0xf]
        %v7972 = vlaneseq
        %v7973 = vshrl.u32 %v7972, 7
        %v7974 = vsub.s32 0, %v7973
        %v7975 = vrot.slane %v7970, %v7974
        %v7976 = vlaneseq
        %v7977 = vshrl.u32 %v7976, 7
        %v7978 = vsub.s32 1, %v7977
        %v7979 = vrot.slane %v7970, %v7978
        %v7980 = vlaneseq
        %v7981 = vshrl.u32 %v7980, 7
        %v7982 = vsub.s32 2, %v7981
        %v7983 = vrot.slane %v7970, %v7982
        %v7984 = vlaneseq
        %v7985 = vshrl.u32 %v7984, 7
        %v7986 = vsub.s32 3, %v7985
        %v7987 = vrot.slane %v7970, %v7986
        %v7992 = vadd.f32 %v7954, %v7975
        %v7993 = vadd.f32 %v7955, %v7979
        %v7994 = vadd.f32 %v7956, %v7983
        %v7995 = vadd.f32 %v7957, %v7987
        %v7996 = vadd.f32 %v7958, %v7975
        %v7997 = vadd.f32 %v7959, %v7979
        %v7998 = vadd.f32 %v7960, %v7983
        %v7999 = vadd.f32 %v7961, %v7987
        %v8000 = vadd.f32 %v7962, %v7975
        %v8001 = vadd.f32 %v7963, %v7979
        %v8002 = vadd.f32 %v7964, %v7983
        %v8003 = vadd.f32 %v7965, %v7987
        %v8004 = vadd.f32 %v7966, %v7975
        %v8005 = vadd.f32 %v7967, %v7979
        %v8006 = vadd.f32 %v7968, %v7983
        %v8007 = vadd.f32 %v7969, %v7987
        %8008 = vst [vmem:[%s501] sm:$0xff] %v7992
        %8009 = vst [vmem:[%s501 + $0x8] sm:$0xff] %v7993
        %8010 = vst [vmem:[%s501 + $0x10] sm:$0xff] %v7994
        %8011 = vst [vmem:[%s501 + $0x18] sm:$0xff] %v7995
        %8012 = vst [vmem:[%s501 + $0x20] sm:$0xff] %v7996
        %8013 = vst [vmem:[%s501 + $0x28] sm:$0xff] %v7997
        %8014 = vst [vmem:[%s501 + $0x30] sm:$0xff] %v7998
        %8015 = vst [vmem:[%s501 + $0x38] sm:$0xff] %v7999
        %8016 = vst [vmem:[%s501 + $0x40] sm:$0xff] %v8000
        %8017 = vst [vmem:[%s501 + $0x48] sm:$0xff] %v8001
        %8018 = vst [vmem:[%s501 + $0x50] sm:$0xff] %v8002
        %8019 = vst [vmem:[%s501 + $0x58] sm:$0xff] %v8003
        %8020 = vst [vmem:[%s501 + $0x60] sm:$0xff] %v8004
        %8021 = vst [vmem:[%s501 + $0x68] sm:$0xff] %v8005
        %8022 = vst [vmem:[%s501 + $0x70] sm:$0xff] %v8006
        %8023 = vst [vmem:[%s501 + $0x78] sm:$0xff] %v8007
        %s8024 = sand.u32 %s255, 1
        %s8025 = scalar_lea.sflag [#allocation4], %s8024
        %s8026 = sand.u32 %s255, 1
        %s8027 = smul.addr %s8026, 128
        %s8028 = scalar_lea.vmem [#allocation19], %s8027
        // Predicated region
        $region101: #{tpu_custom_call.1} parent=59 // pred_check
          %p8029 = pneg %p265
        $region102: #{tpu_custom_call.1} parent=59 // pred_check_branch
          %8031 = sbr.rel (%p8029) target = $region104
        $region103: #{tpu_custom_call.1} parent=59 // pred_region
          %s8032 = smul.u32 4, %s32
          %s8034 = ssub.s32 2048, 2048
          %8035 = vsyncadd %s8025, %s8034
          %s8036 = smul.addr %s8032, 4
          %s8037 = smul.addr %s8036, 128
          %s8038 = scalar_lea.hbm %s10, %s8037
          %s8039 = sshll.u32 %s8028, 4
          %s8040 = int_to_ptr.vmem [resolvable:$true] %s8039
          %8045 = dma.vmem_to_hbm [thread:$0]  %s8040, 2048, %s8038, %s8025, 512, 512, 32
        $region104: #{tpu_custom_call.1} parent=59 // pred_fallthru
          _
      $region60: #{tpu_custom_call.1} parent=5 // pred_fallthru
        _
      %p8046 = scmp.le.s32.totalorder 2, %s27
      // Predicated region
      $region105: #{tpu_custom_call.1} parent=5 // pred_check
        %p8047 = pneg %p8046
      $region106: #{tpu_custom_call.1} parent=5 // pred_check_branch
        %8049 = sbr.rel (%p8047) target = $region108
      $region107: #{tpu_custom_call.1} parent=5 // pred_region
        %s8050 = ssub.s32 %s27, 2
        // Predicated region
        $region109: #{tpu_custom_call.1} parent=107 // pred_check
          %p8051 = pneg %p271
        $region110: #{tpu_custom_call.1} parent=107 // pred_check_branch
          %8053 = sbr.rel (%p8051) target = $region112
        $region111: #{tpu_custom_call.1} parent=107 // pred_region
          %s8054 = sand.u32 %s256, 1
          %s8055 = scalar_lea.sflag [#allocation4], %s8054
          %s8056 = sand.u32 %s256, 1
          %s8057 = smul.addr %s8056, 128
          %s8058 = scalar_lea.vmem [#allocation19], %s8057
          %8059 = dma.done %s8055, 2048
        $region112: #{tpu_custom_call.1} parent=107 // pred_fallthru
          _
      $region108: #{tpu_custom_call.1} parent=5 // pred_fallthru
        _
    $region6: #{tpu_custom_call.1} parent=1 // loop_footer
      %s31 = sadd.s32 1, %s27
    $region7: #{tpu_custom_call.1} parent=1 // loop_footer_branch
      %26 = sbr.rel target = $region3
    $region8: #{tpu_custom_call.1} parent=1 // loop_exit
      _
    %8060 = vsyncpa [#allocation3], 1
    %s8061 = scalar_lea.sflag [#allocation3], 1
    %8062 = vsyncpa %s8061, 1
    %8063 = vsyncpa [#allocation6], 1
    %8064 = vsyncpa [#allocation9], 1
    %8065 = vsyncpa [#allocation12], 1
    %8066 = vsyncpa [#allocation15], 1
    %8067 = vsyncpa [#allocation18], 1
    %8068 = vsyncpa [#allocation4], 1
    %s8069 = scalar_lea.sflag [#allocation4], 1
    %8070 = vsyncpa %s8069, 1

</llo_original>
